<compile_context>
chip_gen: v5e
topology: v5e:2x2
jax: 0.10.0
libtpu: 0.0.40
codegen_flags: <defaults>
</compile_context>

<pallas_src>
import numpy as np

import jax
import jax.numpy as jnp
from jax.experimental import pallas as pl
from jax.experimental.pallas import tpu as pltpu


# ----------------------------------------------------------------------------
# Fused Pallas kernel: the entire VAE forward for one batch element
# ----------------------------------------------------------------------------
def _vae_fused_kernel(x_ref, eps_ref,
                      w1_ref, b1_ref, s1_ref,
                      w2_ref, b2_ref, s2_ref,
                      wh_ref, bh_ref, sh_ref,
                      wd1_ref, bd1_ref, sd1_ref, p1_ref,
                      wd2_ref, bd2_ref, sd2_ref, p2_ref,
                      wd3_ref, bd3_ref, sd3_ref,
                      recon_ref, mu_ref, lv_ref):
    f32, bf16 = jnp.float32, jnp.bfloat16

    def tap_conv(x_bf, w_ref, b_ref, s_ref, relu=True):
        """Conv as: y = x @ W_all (lane-dense, all taps concatenated along N),
        then out = sum_t S_t @ y[:, t*N:(t+1)*N] with constant 0/1 selection
        matrices doing the im2col gather (padding rows are all-zero)."""
        n_taps, m_out = s_ref.shape[0], s_ref.shape[1]
        n = b_ref.shape[-1]
        y = jnp.dot(x_bf, w_ref[...], preferred_element_type=f32).astype(bf16)
        acc = jnp.zeros((m_out, n), f32)
        for t in range(n_taps):                      # statically unrolled
            acc = acc + jnp.dot(s_ref[t], y[:, t * n:(t + 1) * n],
                                preferred_element_type=f32)
        acc = acc + b_ref[...]
        return jnp.maximum(acc, 0.0) if relu else acc

    def pixel_shuffle(pre, p_ref):
        """(M, 4*C) stride-phase layout -> (4*M, C) spatial layout via four 0/1
        permutation matmuls (keeps the shuffle on-chip, no XLA transpose)."""
        c = pre.shape[-1] // 4
        m_new = p_ref.shape[1]
        pre_bf = pre.astype(bf16)
        out = jnp.zeros((m_new, c), f32)
        for pq in range(4):
            out = out + jnp.dot(p_ref[pq], pre_bf[:, pq * c:(pq + 1) * c],
                                preferred_element_type=f32)
        return out.astype(bf16)

    # ----------------------------- encoder -----------------------------------
    h1 = tap_conv(x_ref[0], w1_ref, b1_ref, s1_ref)            # (H/2*W/2, 12)
    h2 = tap_conv(h1.astype(bf16), w2_ref, b2_ref, s2_ref)     # (H/4*W/4, 24)
    # mu / logvar heads share one concatenated weight: per-tap blocks are
    # [W_mu | W_logvar] so a single dot produces both heads at once.
    heads = tap_conv(h2.astype(bf16), wh_ref, bh_ref, sh_ref)  # (H/8*W/8, 96)
    nl = mu_ref.shape[-1]
    mu = heads[:, :nl]
    lv = heads[:, nl:]
    mu_ref[0] = mu
    lv_ref[0] = lv
    # reparameterize: z = mu + eps * exp(0.5 * logvar)
    z = mu + eps_ref[0] * jnp.exp(0.5 * lv)

    # --------- decoder (ConvTranspose2d k=4,s=2,p=1 as phase-3x3 conv) --------
    d1 = pixel_shuffle(tap_conv(z.astype(bf16), wd1_ref, bd1_ref, sd1_ref), p1_ref)
    d2 = pixel_shuffle(tap_conv(d1, wd2_ref, bd2_ref, sd2_ref), p2_ref)
    d3 = tap_conv(d2, wd3_ref, bd3_ref, sd3_ref, relu=False)   # (H/2*W/2, 4*3)
    recon_ref[0] = jnp.tanh(d3)      # tanh is elementwise -> applied pre-shuffle


# ----------------------------------------------------------------------------
# Constant selection matrices (built once at pack time, per batch element)
# ----------------------------------------------------------------------------
_TAP_MAP = {(0, 0): 3, (0, 1): 1, (1, 1): 2, (1, 2): 0}  # (phase, 3x3 offset) -> k4 tap


def _enc_selection(hi, wi):
    """k=4, s=2, p=1 conv im2col gather: 16 x (Ho*Wo, Hi*Wi) 0/1 matrices."""
    ho, wo = hi // 2, wi // 2
    s = np.zeros((16, ho * wo, hi * wi), np.float32)
    for di in range(4):
        for dj in range(4):
            t = di * 4 + dj
            for oh in range(ho):
                for ow in range(wo):
                    ii, jj = 2 * oh + di - 1, 2 * ow + dj - 1
                    if 0 <= ii < hi and 0 <= jj < wi:
                        s[t, oh * wo + ow, ii * wi + jj] = 1.0
    return s


def _dec_selection(hi, wi):
    """3x3 s=1 p=1 (stride-phase form of ConvTranspose2d): 9 x (Hi*Wi, Hi*Wi)."""
    s = np.zeros((9, hi * wi, hi * wi), np.float32)
    for dr in range(3):
        for dc in range(3):
            t = dr * 3 + dc
            for r in range(hi):
                for c in range(wi):
                    ii, jj = r + dr - 1, c + dc - 1
                    if 0 <= ii < hi and 0 <= jj < wi:
                        s[t, r * wi + c, ii * wi + jj] = 1.0
    return s


def _shuffle_selection(hi, wi):
    """Pixel shuffle (M, 4C) -> (4M, C): 4 x (4*Hi*Wi, Hi*Wi) permutations."""
    p = np.zeros((4, 4 * hi * wi, hi * wi), np.float32)
    for pp in range(2):
        for qq in range(2):
            for r in range(hi):
                for c in range(wi):
                    p[pp * 2 + qq,
                      (2 * r + pp) * (2 * wi) + (2 * c + qq),
                      r * wi + c] = 1.0
    return p


# ----------------------------------------------------------------------------
# Parameters: PyTorch-like init + one-time weight packing
# ----------------------------------------------------------------------------
def _init_conv_params(key, cout, cin, k):
    kw_, kb_ = jax.random.split(key)
    bound = 1.0 / (cin * k * k) ** 0.5
    w = jax.random.uniform(kw_, (cout, cin, k, k), jnp.float32, -bound, bound)
    b = jax.random.uniform(kb_, (cout,), jnp.float32, -bound, bound)
    return w, b


def _init_convT_params(key, cin, cout, k):
    kw_, kb_ = jax.random.split(key)
    bound = 1.0 / (cin * k * k) ** 0.5
    w = jax.random.uniform(kw_, (cin, cout, k, k), jnp.float32, -bound, bound)
    b = jax.random.uniform(kb_, (cout,), jnp.float32, -bound, bound)
    return w, b


def init_raw_params(key):
    keys = jax.random.split(key, 7)
    return {
        "enc1": _init_conv_params(keys[0], 12, 3, 4),
        "enc2": _init_conv_params(keys[1], 24, 12, 4),
        "mu": _init_conv_params(keys[2], 48, 24, 4),
        "logvar": _init_conv_params(keys[3], 48, 24, 4),
        "dec1": _init_convT_params(keys[4], 48, 24, 4),
        "dec2": _init_convT_params(keys[5], 24, 12, 4),
        "dec3": _init_convT_params(keys[6], 12, 3, 4),
    }


def _pack_conv(w):
    """Conv2d (Cout,Cin,4,4) -> (Cin, 16*Cout), col = (di*4+dj)*Cout + co."""
    cout, cin, kh, kw = w.shape
    return jnp.transpose(w, (1, 2, 3, 0)).reshape(cin, kh * kw * cout)


def _pack_heads(w_mu, w_lv, b_mu, b_lv):
    """Concatenate mu / logvar heads into one (Cin, 16*96) weight, (1, 96) bias."""
    cout, cin, kh, kw = w_mu.shape
    wm = jnp.transpose(w_mu, (1, 2, 3, 0)).reshape(cin, kh * kw, cout)
    wl = jnp.transpose(w_lv, (1, 2, 3, 0)).reshape(cin, kh * kw, cout)
    w = jnp.concatenate([wm, wl], axis=-1).reshape(cin, kh * kw * 2 * cout)
    b = jnp.concatenate([b_mu, b_lv]).reshape(1, 2 * cout)
    return w, b


def _pack_convT_phase(w, b):
    """ConvTranspose2d(4,2,1) weight (Cin,Cout,4,4) -> stride-phase packed
    (Cin, 9*4*Cout); col = (dr*3+dc)*4*Cout + (p*2+q)*Cout + co."""
    w_np = np.asarray(jax.device_get(w))
    cin, cout = w_np.shape[0], w_np.shape[1]
    wp = np.zeros((cin, 9, 4, cout), np.float32)
    for dr in range(3):
        for dc in range(3):
            for p in range(2):
                for q in range(2):
                    if (p, dr) in _TAP_MAP and (q, dc) in _TAP_MAP:
                        wp[:, dr * 3 + dc, p * 2 + q, :] = (
                            w_np[:, :, _TAP_MAP[(p, dr)], _TAP_MAP[(q, dc)]])
    b4 = jnp.tile(b, 4).reshape(1, 4 * cout)
    return jnp.asarray(wp.reshape(cin, 36 * cout)), b4


def pack_params(raw, h=16, w=16):
    bf, f32 = jnp.bfloat16, jnp.float32
    wh, bh = _pack_heads(raw["mu"][0], raw["logvar"][0],
                         raw["mu"][1], raw["logvar"][1])
    wd1, bd1 = _pack_convT_phase(*raw["dec1"])
    wd2, bd2 = _pack_convT_phase(*raw["dec2"])
    wd3, bd3 = _pack_convT_phase(*raw["dec3"])
    return {
        "w1": _pack_conv(raw["enc1"][0]).astype(bf),
        "b1": raw["enc1"][1].reshape(1, -1).astype(f32),
        "s1": jnp.asarray(_enc_selection(h, w), bf),
        "w2": _pack_conv(raw["enc2"][0]).astype(bf),
        "b2": raw["enc2"][1].reshape(1, -1).astype(f32),
        "s2": jnp.asarray(_enc_selection(h // 2, w // 2), bf),
        "wh": wh.astype(bf), "bh": bh.astype(f32),
        "sh": jnp.asarray(_enc_selection(h // 4, w // 4), bf),
        "wd1": wd1.astype(bf), "bd1": bd1.astype(f32),
        "sd1": jnp.asarray(_dec_selection(h // 8, w // 8), bf),
        "p1": jnp.asarray(_shuffle_selection(h // 8, w // 8), bf),
        "wd2": wd2.astype(bf), "bd2": bd2.astype(f32),
        "sd2": jnp.asarray(_dec_selection(h // 4, w // 4), bf),
        "p2": jnp.asarray(_shuffle_selection(h // 4, w // 4), bf),
        "wd3": wd3.astype(bf), "bd3": bd3.astype(f32),
        "sd3": jnp.asarray(_dec_selection(h // 2, w // 2), bf),
    }


# ----------------------------------------------------------------------------
# VAE forward: one fused pallas_call, layout transforms only at the boundary
# ----------------------------------------------------------------------------
def vae_forward(params, x_nchw, eps_key):
    B, C, H, W = x_nchw.shape
    n_lat = 48
    # NCHW -> (B, H*W, C) rows once at the input boundary; bf16 matmul operands.
    x = jnp.transpose(x_nchw, (0, 2, 3, 1)).reshape(B, H * W, C).astype(jnp.bfloat16)
    # eps kept as an explicit (tiny) input so the forward is exactly verifiable
    # against the pure-JAX reference (in-kernel pltpu.prng_* would break that).
    eps = jax.random.normal(eps_key, (B, (H // 8) * (W // 8), n_lat), jnp.float32)

    operands = [x, eps,
                params["w1"], params["b1"], params["s1"],
                params["w2"], params["b2"], params["s2"],
                params["wh"], params["bh"], params["sh"],
                params["wd1"], params["bd1"], params["sd1"], params["p1"],
                params["wd2"], params["bd2"], params["sd2"], params["p2"],
                params["wd3"], params["bd3"], params["sd3"]]

    def batch_spec(a):
        return pl.BlockSpec((1,) + a.shape[1:],
                            lambda b, nd=a.ndim: (b,) + (0,) * (nd - 1))

    def shared_spec(a):
        return pl.BlockSpec(a.shape, lambda b, nd=a.ndim: (0,) * nd)

    in_specs = [batch_spec(x), batch_spec(eps)] + [shared_spec(a) for a in operands[2:]]

    m_rec = (H // 2) * (W // 2)      # recon rows per batch (phase layout, 4*3 ch)
    m_lat = (H // 8) * (W // 8)      # latent rows per batch
    out_shape = (jax.ShapeDtypeStruct((B, m_rec, 12), jnp.float32),
                 jax.ShapeDtypeStruct((B, m_lat, n_lat), jnp.float32),
                 jax.ShapeDtypeStruct((B, m_lat, n_lat), jnp.float32))
    out_specs = (pl.BlockSpec((1, m_rec, 12), lambda b: (b, 0, 0)),
                 pl.BlockSpec((1, m_lat, n_lat), lambda b: (b, 0, 0)),
                 pl.BlockSpec((1, m_lat, n_lat), lambda b: (b, 0, 0)))

    recon_pre, mu, lv = pl.pallas_call(
        _vae_fused_kernel,
        out_shape=out_shape,
        grid=(B,),                                   # batch -> both TCs on v7x
        in_specs=in_specs,
        out_specs=out_specs,
        compiler_params=pltpu.CompilerParams(dimension_semantics=("parallel",)),
    )(*operands)

    # Output-boundary layout transforms only (once per output, in XLA).
    recon = (recon_pre.reshape(B, H // 2, W // 2, 2, 2, 3)
             .transpose(0, 5, 1, 3, 2, 4).reshape(B, 3, H, W))
    mu = mu.reshape(B, H // 8, W // 8, n_lat).transpose(0, 3, 1, 2)
    lv = lv.reshape(B, H // 8, W // 8, n_lat).transpose(0, 3, 1, 2)
    return recon, mu, lv


# ----------------------------------------------------------------------------
# Pure-JAX reference (lax.conv) for a numerical sanity check
# ----------------------------------------------------------------------------
def _ref_conv(x, w, b, stride, padding):
    out = jax.lax.conv_general_dilated(
        x, w, window_strides=(stride, stride),
        padding=((padding, padding), (padding, padding)),
        dimension_numbers=("NCHW", "OIHW", "NCHW"))
    return out + b.reshape(1, -1, 1, 1)


def _ref_convT(x, w, b, stride, padding):
    k = w.shape[2]
    w_conv = jnp.flip(w, axis=(2, 3)).transpose(1, 0, 2, 3)      # (Cout, Cin, kh, kw)
    pad = k - 1 - padding
    out = jax.lax.conv_general_dilated(
        x, w_conv, window_strides=(1, 1),
        padding=((pad, pad), (pad, pad)),
        lhs_dilation=(stride, stride),
        dimension_numbers=("NCHW", "OIHW", "NCHW"))
    return out + b.reshape(1, -1, 1, 1)


def vae_forward_ref(raw, x, eps_nchw):
    h = jax.nn.relu(_ref_conv(x, *raw["enc1"], 2, 1))
    h = jax.nn.relu(_ref_conv(h, *raw["enc2"], 2, 1))
    mu = jax.nn.relu(_ref_conv(h, *raw["mu"], 2, 1))
    logvar = jax.nn.relu(_ref_conv(h, *raw["logvar"], 2, 1))
    z = mu + eps_nchw * jnp.exp(0.5 * logvar)
    d = jax.nn.relu(_ref_convT(z, *raw["dec1"], 2, 1))
    d = jax.nn.relu(_ref_convT(d, *raw["dec2"], 2, 1))
    recon = jnp.tanh(_ref_convT(d, *raw["dec3"], 2, 1))
    return recon, mu, logvar


if __name__ == "__main__":
    key = jax.random.PRNGKey(0)
    k_param, k_input, k_eps = jax.random.split(key, 3)

    raw = init_raw_params(k_param)
    params = pack_params(raw)        # packing + selection matrices: once, outside fwd
    x = jax.random.normal(k_input, (2, 3, 16, 16), jnp.float32)  # NCHW like PyTorch

    recon, mu, logvar = jax.jit(vae_forward)(params, x, k_eps)
    jax.block_until_ready((recon, mu, logvar))

    assert recon.shape == (2, 3, 16, 16)
    assert mu.shape == (2, 48, 2, 2)
    assert logvar.shape == (2, 48, 2, 2)
    assert bool(jnp.all(jnp.isfinite(recon)))
    assert bool(jnp.all(jnp.abs(recon) <= 1.0))                  # tanh output range

    # Same eps draw as inside vae_forward, rearranged to NCHW for the reference.
    eps = jax.random.normal(k_eps, (2, 4, 48), jnp.float32)
    eps_nchw = eps.reshape(2, 2, 2, 48).transpose(0, 3, 1, 2)
    recon_r, mu_r, lv_r = jax.jit(vae_forward_ref)(raw, x, eps_nchw)
    # Loose tolerance: all matmul operands are bf16 per the perf review; a
    # packing/selection bug would produce errors orders of magnitude larger.
    assert bool(jnp.allclose(mu, mu_r, atol=1e-1, rtol=1e-1))
    assert bool(jnp.allclose(logvar, lv_r, atol=1e-1, rtol=1e-1))
    assert bool(jnp.allclose(recon, recon_r, atol=1e-1, rtol=1e-1))

    print("KERNEL_OK")
</pallas_src>

<mosaic_0001>
module attributes {stable_mosaic.version = 11 : i64} {
  func.func @_vae_fused_kernel(%arg0: i32, %arg1: memref<1x256x3xbf16, #tpu.memory_space<vmem>>, %arg2: memref<1x4x48xf32, #tpu.memory_space<vmem>>, %arg3: memref<3x192xbf16, #tpu.memory_space<vmem>>, %arg4: memref<1x12xf32, #tpu.memory_space<vmem>>, %arg5: memref<16x64x256xbf16, #tpu.memory_space<vmem>>, %arg6: memref<12x384xbf16, #tpu.memory_space<vmem>>, %arg7: memref<1x24xf32, #tpu.memory_space<vmem>>, %arg8: memref<16x16x64xbf16, #tpu.memory_space<vmem>>, %arg9: memref<24x1536xbf16, #tpu.memory_space<vmem>>, %arg10: memref<1x96xf32, #tpu.memory_space<vmem>>, %arg11: memref<16x4x16xbf16, #tpu.memory_space<vmem>>, %arg12: memref<48x864xbf16, #tpu.memory_space<vmem>>, %arg13: memref<1x96xf32, #tpu.memory_space<vmem>>, %arg14: memref<9x4x4xbf16, #tpu.memory_space<vmem>>, %arg15: memref<4x16x4xbf16, #tpu.memory_space<vmem>>, %arg16: memref<24x432xbf16, #tpu.memory_space<vmem>>, %arg17: memref<1x48xf32, #tpu.memory_space<vmem>>, %arg18: memref<9x16x16xbf16, #tpu.memory_space<vmem>>, %arg19: memref<4x64x16xbf16, #tpu.memory_space<vmem>>, %arg20: memref<12x108xbf16, #tpu.memory_space<vmem>>, %arg21: memref<1x12xf32, #tpu.memory_space<vmem>>, %arg22: memref<9x64x64xbf16, #tpu.memory_space<vmem>>, %arg23: memref<1x64x12xf32, #tpu.memory_space<vmem>>, %arg24: memref<1x4x48xf32, #tpu.memory_space<vmem>>, %arg25: memref<1x4x48xf32, #tpu.memory_space<vmem>>) attributes {dimension_semantics = [#tpu.dimension_semantics<parallel>], iteration_bounds = array<i64: 2>, scalar_prefetch = 0 : i64, scratch_operands = 0 : i64, tpu.core_type = #tpu.core_type<tc>, window_params = [{transform_indices = @transform_0, window_bounds = array<i64: 1, 256, 3>}, {transform_indices = @transform_1, window_bounds = array<i64: 1, 4, 48>}, {pipeline_mode = #tpu.pipeline_mode<synchronous>, transform_indices = @transform_2, window_bounds = array<i64: 3, 192>}, {pipeline_mode = #tpu.pipeline_mode<synchronous>, transform_indices = @transform_3, window_bounds = array<i64: 1, 12>}, {pipeline_mode = #tpu.pipeline_mode<synchronous>, transform_indices = @transform_4, window_bounds = array<i64: 16, 64, 256>}, {pipeline_mode = #tpu.pipeline_mode<synchronous>, transform_indices = @transform_5, window_bounds = array<i64: 12, 384>}, {pipeline_mode = #tpu.pipeline_mode<synchronous>, transform_indices = @transform_6, window_bounds = array<i64: 1, 24>}, {pipeline_mode = #tpu.pipeline_mode<synchronous>, transform_indices = @transform_7, window_bounds = array<i64: 16, 16, 64>}, {pipeline_mode = #tpu.pipeline_mode<synchronous>, transform_indices = @transform_8, window_bounds = array<i64: 24, 1536>}, {pipeline_mode = #tpu.pipeline_mode<synchronous>, transform_indices = @transform_9, window_bounds = array<i64: 1, 96>}, {pipeline_mode = #tpu.pipeline_mode<synchronous>, transform_indices = @transform_10, window_bounds = array<i64: 16, 4, 16>}, {pipeline_mode = #tpu.pipeline_mode<synchronous>, transform_indices = @transform_11, window_bounds = array<i64: 48, 864>}, {pipeline_mode = #tpu.pipeline_mode<synchronous>, transform_indices = @transform_12, window_bounds = array<i64: 1, 96>}, {pipeline_mode = #tpu.pipeline_mode<synchronous>, transform_indices = @transform_13, window_bounds = array<i64: 9, 4, 4>}, {pipeline_mode = #tpu.pipeline_mode<synchronous>, transform_indices = @transform_14, window_bounds = array<i64: 4, 16, 4>}, {pipeline_mode = #tpu.pipeline_mode<synchronous>, transform_indices = @transform_15, window_bounds = array<i64: 24, 432>}, {pipeline_mode = #tpu.pipeline_mode<synchronous>, transform_indices = @transform_16, window_bounds = array<i64: 1, 48>}, {pipeline_mode = #tpu.pipeline_mode<synchronous>, transform_indices = @transform_17, window_bounds = array<i64: 9, 16, 16>}, {pipeline_mode = #tpu.pipeline_mode<synchronous>, transform_indices = @transform_18, window_bounds = array<i64: 4, 64, 16>}, {pipeline_mode = #tpu.pipeline_mode<synchronous>, transform_indices = @transform_19, window_bounds = array<i64: 12, 108>}, {pipeline_mode = #tpu.pipeline_mode<synchronous>, transform_indices = @transform_20, window_bounds = array<i64: 1, 12>}, {pipeline_mode = #tpu.pipeline_mode<synchronous>, transform_indices = @transform_21, window_bounds = array<i64: 9, 64, 64>}, {transform_indices = @transform_22, window_bounds = array<i64: 1, 64, 12>}, {transform_indices = @transform_23, window_bounds = array<i64: 1, 4, 48>}, {transform_indices = @transform_24, window_bounds = array<i64: 1, 4, 48>}]} {
    %c0 = arith.constant 0 : index
    %c0_0 = arith.constant 0 : index
    %c0_1 = arith.constant 0 : index
    %0 = vector.load %arg1[%c0, %c0_0, %c0_1] : memref<1x256x3xbf16, #tpu.memory_space<vmem>>, vector<1x256x3xbf16>
    %1 = vector.shape_cast %0 : vector<1x256x3xbf16> to vector<256x3xbf16>
    %c0_2 = arith.constant 0 : index
    %c0_3 = arith.constant 0 : index
    %2 = vector.load %arg3[%c0_2, %c0_3] : memref<3x192xbf16, #tpu.memory_space<vmem>>, vector<3x192xbf16>
    %cst = arith.constant dense<0.000000e+00> : vector<256x192xf32>
    %3 = tpu.matmul %1, %2, %cst {dimension_numbers = #tpu.dot_dimension_numbers<[1], [0], [0], [1], [0, 0, 1, 1], [], []>} : vector<256x3xbf16>, vector<3x192xbf16>, vector<256x192xf32> -> vector<256x192xf32>
    %4 = arith.truncf %3 : vector<256x192xf32> to vector<256x192xbf16>
    %cst_4 = arith.constant 0.000000e+00 : f32
    %5 = vector.broadcast %cst_4 : f32 to vector<64x12xf32>
    %c0_5 = arith.constant 0 : index
    %c0_6 = arith.constant 0 : index
    %c0_7 = arith.constant 0 : index
    %6 = vector.load %arg5[%c0_5, %c0_6, %c0_7] : memref<16x64x256xbf16, #tpu.memory_space<vmem>>, vector<1x64x256xbf16>
    %7 = vector.shape_cast %6 : vector<1x64x256xbf16> to vector<64x256xbf16>
    %8 = vector.extract_strided_slice %4 {offsets = [0, 0], sizes = [256, 12], strides = [1, 1]} : vector<256x192xbf16> to vector<256x12xbf16>
    %cst_8 = arith.constant dense<0.000000e+00> : vector<64x12xf32>
    %9 = tpu.matmul %7, %8, %cst_8 {dimension_numbers = #tpu.dot_dimension_numbers<[1], [0], [0], [1], [0, 0, 1, 1], [], []>} : vector<64x256xbf16>, vector<256x12xbf16>, vector<64x12xf32> -> vector<64x12xf32>
    %10 = arith.addf %5, %9 : vector<64x12xf32>
    %c1 = arith.constant 1 : index
    %c0_9 = arith.constant 0 : index
    %c0_10 = arith.constant 0 : index
    %11 = vector.load %arg5[%c1, %c0_9, %c0_10] : memref<16x64x256xbf16, #tpu.memory_space<vmem>>, vector<1x64x256xbf16>
    %12 = vector.shape_cast %11 : vector<1x64x256xbf16> to vector<64x256xbf16>
    %13 = vector.extract_strided_slice %4 {offsets = [0, 12], sizes = [256, 12], strides = [1, 1]} : vector<256x192xbf16> to vector<256x12xbf16>
    %cst_11 = arith.constant dense<0.000000e+00> : vector<64x12xf32>
    %14 = tpu.matmul %12, %13, %cst_11 {dimension_numbers = #tpu.dot_dimension_numbers<[1], [0], [0], [1], [0, 0, 1, 1], [], []>} : vector<64x256xbf16>, vector<256x12xbf16>, vector<64x12xf32> -> vector<64x12xf32>
    %15 = arith.addf %10, %14 : vector<64x12xf32>
    %c2 = arith.constant 2 : index
    %c0_12 = arith.constant 0 : index
    %c0_13 = arith.constant 0 : index
    %16 = vector.load %arg5[%c2, %c0_12, %c0_13] : memref<16x64x256xbf16, #tpu.memory_space<vmem>>, vector<1x64x256xbf16>
    %17 = vector.shape_cast %16 : vector<1x64x256xbf16> to vector<64x256xbf16>
    %18 = vector.extract_strided_slice %4 {offsets = [0, 24], sizes = [256, 12], strides = [1, 1]} : vector<256x192xbf16> to vector<256x12xbf16>
    %cst_14 = arith.constant dense<0.000000e+00> : vector<64x12xf32>
    %19 = tpu.matmul %17, %18, %cst_14 {dimension_numbers = #tpu.dot_dimension_numbers<[1], [0], [0], [1], [0, 0, 1, 1], [], []>} : vector<64x256xbf16>, vector<256x12xbf16>, vector<64x12xf32> -> vector<64x12xf32>
    %20 = arith.addf %15, %19 : vector<64x12xf32>
    %c3 = arith.constant 3 : index
    %c0_15 = arith.constant 0 : index
    %c0_16 = arith.constant 0 : index
    %21 = vector.load %arg5[%c3, %c0_15, %c0_16] : memref<16x64x256xbf16, #tpu.memory_space<vmem>>, vector<1x64x256xbf16>
    %22 = vector.shape_cast %21 : vector<1x64x256xbf16> to vector<64x256xbf16>
    %23 = vector.extract_strided_slice %4 {offsets = [0, 36], sizes = [256, 12], strides = [1, 1]} : vector<256x192xbf16> to vector<256x12xbf16>
    %cst_17 = arith.constant dense<0.000000e+00> : vector<64x12xf32>
    %24 = tpu.matmul %22, %23, %cst_17 {dimension_numbers = #tpu.dot_dimension_numbers<[1], [0], [0], [1], [0, 0, 1, 1], [], []>} : vector<64x256xbf16>, vector<256x12xbf16>, vector<64x12xf32> -> vector<64x12xf32>
    %25 = arith.addf %20, %24 : vector<64x12xf32>
    %c4 = arith.constant 4 : index
    %c0_18 = arith.constant 0 : index
    %c0_19 = arith.constant 0 : index
    %26 = vector.load %arg5[%c4, %c0_18, %c0_19] : memref<16x64x256xbf16, #tpu.memory_space<vmem>>, vector<1x64x256xbf16>
    %27 = vector.shape_cast %26 : vector<1x64x256xbf16> to vector<64x256xbf16>
    %28 = vector.extract_strided_slice %4 {offsets = [0, 48], sizes = [256, 12], strides = [1, 1]} : vector<256x192xbf16> to vector<256x12xbf16>
    %cst_20 = arith.constant dense<0.000000e+00> : vector<64x12xf32>
    %29 = tpu.matmul %27, %28, %cst_20 {dimension_numbers = #tpu.dot_dimension_numbers<[1], [0], [0], [1], [0, 0, 1, 1], [], []>} : vector<64x256xbf16>, vector<256x12xbf16>, vector<64x12xf32> -> vector<64x12xf32>
    %30 = arith.addf %25, %29 : vector<64x12xf32>
    %c5 = arith.constant 5 : index
    %c0_21 = arith.constant 0 : index
    %c0_22 = arith.constant 0 : index
    %31 = vector.load %arg5[%c5, %c0_21, %c0_22] : memref<16x64x256xbf16, #tpu.memory_space<vmem>>, vector<1x64x256xbf16>
    %32 = vector.shape_cast %31 : vector<1x64x256xbf16> to vector<64x256xbf16>
    %33 = vector.extract_strided_slice %4 {offsets = [0, 60], sizes = [256, 12], strides = [1, 1]} : vector<256x192xbf16> to vector<256x12xbf16>
    %cst_23 = arith.constant dense<0.000000e+00> : vector<64x12xf32>
    %34 = tpu.matmul %32, %33, %cst_23 {dimension_numbers = #tpu.dot_dimension_numbers<[1], [0], [0], [1], [0, 0, 1, 1], [], []>} : vector<64x256xbf16>, vector<256x12xbf16>, vector<64x12xf32> -> vector<64x12xf32>
    %35 = arith.addf %30, %34 : vector<64x12xf32>
    %c6 = arith.constant 6 : index
    %c0_24 = arith.constant 0 : index
    %c0_25 = arith.constant 0 : index
    %36 = vector.load %arg5[%c6, %c0_24, %c0_25] : memref<16x64x256xbf16, #tpu.memory_space<vmem>>, vector<1x64x256xbf16>
    %37 = vector.shape_cast %36 : vector<1x64x256xbf16> to vector<64x256xbf16>
    %38 = vector.extract_strided_slice %4 {offsets = [0, 72], sizes = [256, 12], strides = [1, 1]} : vector<256x192xbf16> to vector<256x12xbf16>
    %cst_26 = arith.constant dense<0.000000e+00> : vector<64x12xf32>
    %39 = tpu.matmul %37, %38, %cst_26 {dimension_numbers = #tpu.dot_dimension_numbers<[1], [0], [0], [1], [0, 0, 1, 1], [], []>} : vector<64x256xbf16>, vector<256x12xbf16>, vector<64x12xf32> -> vector<64x12xf32>
    %40 = arith.addf %35, %39 : vector<64x12xf32>
    %c7 = arith.constant 7 : index
    %c0_27 = arith.constant 0 : index
    %c0_28 = arith.constant 0 : index
    %41 = vector.load %arg5[%c7, %c0_27, %c0_28] : memref<16x64x256xbf16, #tpu.memory_space<vmem>>, vector<1x64x256xbf16>
    %42 = vector.shape_cast %41 : vector<1x64x256xbf16> to vector<64x256xbf16>
    %43 = vector.extract_strided_slice %4 {offsets = [0, 84], sizes = [256, 12], strides = [1, 1]} : vector<256x192xbf16> to vector<256x12xbf16>
    %cst_29 = arith.constant dense<0.000000e+00> : vector<64x12xf32>
    %44 = tpu.matmul %42, %43, %cst_29 {dimension_numbers = #tpu.dot_dimension_numbers<[1], [0], [0], [1], [0, 0, 1, 1], [], []>} : vector<64x256xbf16>, vector<256x12xbf16>, vector<64x12xf32> -> vector<64x12xf32>
    %45 = arith.addf %40, %44 : vector<64x12xf32>
    %c8 = arith.constant 8 : index
    %c0_30 = arith.constant 0 : index
    %c0_31 = arith.constant 0 : index
    %46 = vector.load %arg5[%c8, %c0_30, %c0_31] : memref<16x64x256xbf16, #tpu.memory_space<vmem>>, vector<1x64x256xbf16>
    %47 = vector.shape_cast %46 : vector<1x64x256xbf16> to vector<64x256xbf16>
    %48 = vector.extract_strided_slice %4 {offsets = [0, 96], sizes = [256, 12], strides = [1, 1]} : vector<256x192xbf16> to vector<256x12xbf16>
    %cst_32 = arith.constant dense<0.000000e+00> : vector<64x12xf32>
    %49 = tpu.matmul %47, %48, %cst_32 {dimension_numbers = #tpu.dot_dimension_numbers<[1], [0], [0], [1], [0, 0, 1, 1], [], []>} : vector<64x256xbf16>, vector<256x12xbf16>, vector<64x12xf32> -> vector<64x12xf32>
    %50 = arith.addf %45, %49 : vector<64x12xf32>
    %c9 = arith.constant 9 : index
    %c0_33 = arith.constant 0 : index
    %c0_34 = arith.constant 0 : index
    %51 = vector.load %arg5[%c9, %c0_33, %c0_34] : memref<16x64x256xbf16, #tpu.memory_space<vmem>>, vector<1x64x256xbf16>
    %52 = vector.shape_cast %51 : vector<1x64x256xbf16> to vector<64x256xbf16>
    %53 = vector.extract_strided_slice %4 {offsets = [0, 108], sizes = [256, 12], strides = [1, 1]} : vector<256x192xbf16> to vector<256x12xbf16>
    %cst_35 = arith.constant dense<0.000000e+00> : vector<64x12xf32>
    %54 = tpu.matmul %52, %53, %cst_35 {dimension_numbers = #tpu.dot_dimension_numbers<[1], [0], [0], [1], [0, 0, 1, 1], [], []>} : vector<64x256xbf16>, vector<256x12xbf16>, vector<64x12xf32> -> vector<64x12xf32>
    %55 = arith.addf %50, %54 : vector<64x12xf32>
    %c10 = arith.constant 10 : index
    %c0_36 = arith.constant 0 : index
    %c0_37 = arith.constant 0 : index
    %56 = vector.load %arg5[%c10, %c0_36, %c0_37] : memref<16x64x256xbf16, #tpu.memory_space<vmem>>, vector<1x64x256xbf16>
    %57 = vector.shape_cast %56 : vector<1x64x256xbf16> to vector<64x256xbf16>
    %58 = vector.extract_strided_slice %4 {offsets = [0, 120], sizes = [256, 12], strides = [1, 1]} : vector<256x192xbf16> to vector<256x12xbf16>
    %cst_38 = arith.constant dense<0.000000e+00> : vector<64x12xf32>
    %59 = tpu.matmul %57, %58, %cst_38 {dimension_numbers = #tpu.dot_dimension_numbers<[1], [0], [0], [1], [0, 0, 1, 1], [], []>} : vector<64x256xbf16>, vector<256x12xbf16>, vector<64x12xf32> -> vector<64x12xf32>
    %60 = arith.addf %55, %59 : vector<64x12xf32>
    %c11 = arith.constant 11 : index
    %c0_39 = arith.constant 0 : index
    %c0_40 = arith.constant 0 : index
    %61 = vector.load %arg5[%c11, %c0_39, %c0_40] : memref<16x64x256xbf16, #tpu.memory_space<vmem>>, vector<1x64x256xbf16>
    %62 = vector.shape_cast %61 : vector<1x64x256xbf16> to vector<64x256xbf16>
    %63 = vector.extract_strided_slice %4 {offsets = [0, 132], sizes = [256, 12], strides = [1, 1]} : vector<256x192xbf16> to vector<256x12xbf16>
    %cst_41 = arith.constant dense<0.000000e+00> : vector<64x12xf32>
    %64 = tpu.matmul %62, %63, %cst_41 {dimension_numbers = #tpu.dot_dimension_numbers<[1], [0], [0], [1], [0, 0, 1, 1], [], []>} : vector<64x256xbf16>, vector<256x12xbf16>, vector<64x12xf32> -> vector<64x12xf32>
    %65 = arith.addf %60, %64 : vector<64x12xf32>
    %c12 = arith.constant 12 : index
    %c0_42 = arith.constant 0 : index
    %c0_43 = arith.constant 0 : index
    %66 = vector.load %arg5[%c12, %c0_42, %c0_43] : memref<16x64x256xbf16, #tpu.memory_space<vmem>>, vector<1x64x256xbf16>
    %67 = vector.shape_cast %66 : vector<1x64x256xbf16> to vector<64x256xbf16>
    %68 = vector.extract_strided_slice %4 {offsets = [0, 144], sizes = [256, 12], strides = [1, 1]} : vector<256x192xbf16> to vector<256x12xbf16>
    %cst_44 = arith.constant dense<0.000000e+00> : vector<64x12xf32>
    %69 = tpu.matmul %67, %68, %cst_44 {dimension_numbers = #tpu.dot_dimension_numbers<[1], [0], [0], [1], [0, 0, 1, 1], [], []>} : vector<64x256xbf16>, vector<256x12xbf16>, vector<64x12xf32> -> vector<64x12xf32>
    %70 = arith.addf %65, %69 : vector<64x12xf32>
    %c13 = arith.constant 13 : index
    %c0_45 = arith.constant 0 : index
    %c0_46 = arith.constant 0 : index
    %71 = vector.load %arg5[%c13, %c0_45, %c0_46] : memref<16x64x256xbf16, #tpu.memory_space<vmem>>, vector<1x64x256xbf16>
    %72 = vector.shape_cast %71 : vector<1x64x256xbf16> to vector<64x256xbf16>
    %73 = vector.extract_strided_slice %4 {offsets = [0, 156], sizes = [256, 12], strides = [1, 1]} : vector<256x192xbf16> to vector<256x12xbf16>
    %cst_47 = arith.constant dense<0.000000e+00> : vector<64x12xf32>
    %74 = tpu.matmul %72, %73, %cst_47 {dimension_numbers = #tpu.dot_dimension_numbers<[1], [0], [0], [1], [0, 0, 1, 1], [], []>} : vector<64x256xbf16>, vector<256x12xbf16>, vector<64x12xf32> -> vector<64x12xf32>
    %75 = arith.addf %70, %74 : vector<64x12xf32>
    %c14 = arith.constant 14 : index
    %c0_48 = arith.constant 0 : index
    %c0_49 = arith.constant 0 : index
    %76 = vector.load %arg5[%c14, %c0_48, %c0_49] : memref<16x64x256xbf16, #tpu.memory_space<vmem>>, vector<1x64x256xbf16>
    %77 = vector.shape_cast %76 : vector<1x64x256xbf16> to vector<64x256xbf16>
    %78 = vector.extract_strided_slice %4 {offsets = [0, 168], sizes = [256, 12], strides = [1, 1]} : vector<256x192xbf16> to vector<256x12xbf16>
    %cst_50 = arith.constant dense<0.000000e+00> : vector<64x12xf32>
    %79 = tpu.matmul %77, %78, %cst_50 {dimension_numbers = #tpu.dot_dimension_numbers<[1], [0], [0], [1], [0, 0, 1, 1], [], []>} : vector<64x256xbf16>, vector<256x12xbf16>, vector<64x12xf32> -> vector<64x12xf32>
    %80 = arith.addf %75, %79 : vector<64x12xf32>
    %c15 = arith.constant 15 : index
    %c0_51 = arith.constant 0 : index
    %c0_52 = arith.constant 0 : index
    %81 = vector.load %arg5[%c15, %c0_51, %c0_52] : memref<16x64x256xbf16, #tpu.memory_space<vmem>>, vector<1x64x256xbf16>
    %82 = vector.shape_cast %81 : vector<1x64x256xbf16> to vector<64x256xbf16>
    %83 = vector.extract_strided_slice %4 {offsets = [0, 180], sizes = [256, 12], strides = [1, 1]} : vector<256x192xbf16> to vector<256x12xbf16>
    %cst_53 = arith.constant dense<0.000000e+00> : vector<64x12xf32>
    %84 = tpu.matmul %82, %83, %cst_53 {dimension_numbers = #tpu.dot_dimension_numbers<[1], [0], [0], [1], [0, 0, 1, 1], [], []>} : vector<64x256xbf16>, vector<256x12xbf16>, vector<64x12xf32> -> vector<64x12xf32>
    %85 = arith.addf %80, %84 : vector<64x12xf32>
    %c0_54 = arith.constant 0 : index
    %c0_55 = arith.constant 0 : index
    %86 = vector.load %arg4[%c0_54, %c0_55] : memref<1x12xf32, #tpu.memory_space<vmem>>, vector<1x12xf32>
    %87 = vector.broadcast %86 : vector<1x12xf32> to vector<64x12xf32>
    %88 = arith.addf %85, %87 : vector<64x12xf32>
    %cst_56 = arith.constant 0.000000e+00 : f32
    %89 = vector.broadcast %cst_56 : f32 to vector<64x12xf32>
    %90 = arith.maximumf %88, %89 : vector<64x12xf32>
    %91 = arith.truncf %90 : vector<64x12xf32> to vector<64x12xbf16>
    %c0_57 = arith.constant 0 : index
    %c0_58 = arith.constant 0 : index
    %92 = vector.load %arg6[%c0_57, %c0_58] : memref<12x384xbf16, #tpu.memory_space<vmem>>, vector<12x384xbf16>
    %cst_59 = arith.constant dense<0.000000e+00> : vector<64x384xf32>
    %93 = tpu.matmul %91, %92, %cst_59 {dimension_numbers = #tpu.dot_dimension_numbers<[1], [0], [0], [1], [0, 0, 1, 1], [], []>} : vector<64x12xbf16>, vector<12x384xbf16>, vector<64x384xf32> -> vector<64x384xf32>
    %94 = arith.truncf %93 : vector<64x384xf32> to vector<64x384xbf16>
    %cst_60 = arith.constant 0.000000e+00 : f32
    %95 = vector.broadcast %cst_60 : f32 to vector<16x24xf32>
    %c0_61 = arith.constant 0 : index
    %c0_62 = arith.constant 0 : index
    %c0_63 = arith.constant 0 : index
    %96 = vector.load %arg8[%c0_61, %c0_62, %c0_63] : memref<16x16x64xbf16, #tpu.memory_space<vmem>>, vector<1x16x64xbf16>
    %97 = vector.shape_cast %96 : vector<1x16x64xbf16> to vector<16x64xbf16>
    %98 = vector.extract_strided_slice %94 {offsets = [0, 0], sizes = [64, 24], strides = [1, 1]} : vector<64x384xbf16> to vector<64x24xbf16>
    %cst_64 = arith.constant dense<0.000000e+00> : vector<16x24xf32>
    %99 = tpu.matmul %97, %98, %cst_64 {dimension_numbers = #tpu.dot_dimension_numbers<[1], [0], [0], [1], [0, 0, 1, 1], [], []>} : vector<16x64xbf16>, vector<64x24xbf16>, vector<16x24xf32> -> vector<16x24xf32>
    %100 = arith.addf %95, %99 : vector<16x24xf32>
    %c1_65 = arith.constant 1 : index
    %c0_66 = arith.constant 0 : index
    %c0_67 = arith.constant 0 : index
    %101 = vector.load %arg8[%c1_65, %c0_66, %c0_67] : memref<16x16x64xbf16, #tpu.memory_space<vmem>>, vector<1x16x64xbf16>
    %102 = vector.shape_cast %101 : vector<1x16x64xbf16> to vector<16x64xbf16>
    %103 = vector.extract_strided_slice %94 {offsets = [0, 24], sizes = [64, 24], strides = [1, 1]} : vector<64x384xbf16> to vector<64x24xbf16>
    %cst_68 = arith.constant dense<0.000000e+00> : vector<16x24xf32>
    %104 = tpu.matmul %102, %103, %cst_68 {dimension_numbers = #tpu.dot_dimension_numbers<[1], [0], [0], [1], [0, 0, 1, 1], [], []>} : vector<16x64xbf16>, vector<64x24xbf16>, vector<16x24xf32> -> vector<16x24xf32>
    %105 = arith.addf %100, %104 : vector<16x24xf32>
    %c2_69 = arith.constant 2 : index
    %c0_70 = arith.constant 0 : index
    %c0_71 = arith.constant 0 : index
    %106 = vector.load %arg8[%c2_69, %c0_70, %c0_71] : memref<16x16x64xbf16, #tpu.memory_space<vmem>>, vector<1x16x64xbf16>
    %107 = vector.shape_cast %106 : vector<1x16x64xbf16> to vector<16x64xbf16>
    %108 = vector.extract_strided_slice %94 {offsets = [0, 48], sizes = [64, 24], strides = [1, 1]} : vector<64x384xbf16> to vector<64x24xbf16>
    %cst_72 = arith.constant dense<0.000000e+00> : vector<16x24xf32>
    %109 = tpu.matmul %107, %108, %cst_72 {dimension_numbers = #tpu.dot_dimension_numbers<[1], [0], [0], [1], [0, 0, 1, 1], [], []>} : vector<16x64xbf16>, vector<64x24xbf16>, vector<16x24xf32> -> vector<16x24xf32>
    %110 = arith.addf %105, %109 : vector<16x24xf32>
    %c3_73 = arith.constant 3 : index
    %c0_74 = arith.constant 0 : index
    %c0_75 = arith.constant 0 : index
    %111 = vector.load %arg8[%c3_73, %c0_74, %c0_75] : memref<16x16x64xbf16, #tpu.memory_space<vmem>>, vector<1x16x64xbf16>
    %112 = vector.shape_cast %111 : vector<1x16x64xbf16> to vector<16x64xbf16>
    %113 = vector.extract_strided_slice %94 {offsets = [0, 72], sizes = [64, 24], strides = [1, 1]} : vector<64x384xbf16> to vector<64x24xbf16>
    %cst_76 = arith.constant dense<0.000000e+00> : vector<16x24xf32>
    %114 = tpu.matmul %112, %113, %cst_76 {dimension_numbers = #tpu.dot_dimension_numbers<[1], [0], [0], [1], [0, 0, 1, 1], [], []>} : vector<16x64xbf16>, vector<64x24xbf16>, vector<16x24xf32> -> vector<16x24xf32>
    %115 = arith.addf %110, %114 : vector<16x24xf32>
    %c4_77 = arith.constant 4 : index
    %c0_78 = arith.constant 0 : index
    %c0_79 = arith.constant 0 : index
    %116 = vector.load %arg8[%c4_77, %c0_78, %c0_79] : memref<16x16x64xbf16, #tpu.memory_space<vmem>>, vector<1x16x64xbf16>
    %117 = vector.shape_cast %116 : vector<1x16x64xbf16> to vector<16x64xbf16>
    %118 = vector.extract_strided_slice %94 {offsets = [0, 96], sizes = [64, 24], strides = [1, 1]} : vector<64x384xbf16> to vector<64x24xbf16>
    %cst_80 = arith.constant dense<0.000000e+00> : vector<16x24xf32>
    %119 = tpu.matmul %117, %118, %cst_80 {dimension_numbers = #tpu.dot_dimension_numbers<[1], [0], [0], [1], [0, 0, 1, 1], [], []>} : vector<16x64xbf16>, vector<64x24xbf16>, vector<16x24xf32> -> vector<16x24xf32>
    %120 = arith.addf %115, %119 : vector<16x24xf32>
    %c5_81 = arith.constant 5 : index
    %c0_82 = arith.constant 0 : index
    %c0_83 = arith.constant 0 : index
    %121 = vector.load %arg8[%c5_81, %c0_82, %c0_83] : memref<16x16x64xbf16, #tpu.memory_space<vmem>>, vector<1x16x64xbf16>
    %122 = vector.shape_cast %121 : vector<1x16x64xbf16> to vector<16x64xbf16>
    %123 = vector.extract_strided_slice %94 {offsets = [0, 120], sizes = [64, 24], strides = [1, 1]} : vector<64x384xbf16> to vector<64x24xbf16>
    %cst_84 = arith.constant dense<0.000000e+00> : vector<16x24xf32>
    %124 = tpu.matmul %122, %123, %cst_84 {dimension_numbers = #tpu.dot_dimension_numbers<[1], [0], [0], [1], [0, 0, 1, 1], [], []>} : vector<16x64xbf16>, vector<64x24xbf16>, vector<16x24xf32> -> vector<16x24xf32>
    %125 = arith.addf %120, %124 : vector<16x24xf32>
    %c6_85 = arith.constant 6 : index
    %c0_86 = arith.constant 0 : index
    %c0_87 = arith.constant 0 : index
    %126 = vector.load %arg8[%c6_85, %c0_86, %c0_87] : memref<16x16x64xbf16, #tpu.memory_space<vmem>>, vector<1x16x64xbf16>
    %127 = vector.shape_cast %126 : vector<1x16x64xbf16> to vector<16x64xbf16>
    %128 = vector.extract_strided_slice %94 {offsets = [0, 144], sizes = [64, 24], strides = [1, 1]} : vector<64x384xbf16> to vector<64x24xbf16>
    %cst_88 = arith.constant dense<0.000000e+00> : vector<16x24xf32>
    %129 = tpu.matmul %127, %128, %cst_88 {dimension_numbers = #tpu.dot_dimension_numbers<[1], [0], [0], [1], [0, 0, 1, 1], [], []>} : vector<16x64xbf16>, vector<64x24xbf16>, vector<16x24xf32> -> vector<16x24xf32>
    %130 = arith.addf %125, %129 : vector<16x24xf32>
    %c7_89 = arith.constant 7 : index
    %c0_90 = arith.constant 0 : index
    %c0_91 = arith.constant 0 : index
    %131 = vector.load %arg8[%c7_89, %c0_90, %c0_91] : memref<16x16x64xbf16, #tpu.memory_space<vmem>>, vector<1x16x64xbf16>
    %132 = vector.shape_cast %131 : vector<1x16x64xbf16> to vector<16x64xbf16>
    %133 = vector.extract_strided_slice %94 {offsets = [0, 168], sizes = [64, 24], strides = [1, 1]} : vector<64x384xbf16> to vector<64x24xbf16>
    %cst_92 = arith.constant dense<0.000000e+00> : vector<16x24xf32>
    %134 = tpu.matmul %132, %133, %cst_92 {dimension_numbers = #tpu.dot_dimension_numbers<[1], [0], [0], [1], [0, 0, 1, 1], [], []>} : vector<16x64xbf16>, vector<64x24xbf16>, vector<16x24xf32> -> vector<16x24xf32>
    %135 = arith.addf %130, %134 : vector<16x24xf32>
    %c8_93 = arith.constant 8 : index
    %c0_94 = arith.constant 0 : index
    %c0_95 = arith.constant 0 : index
    %136 = vector.load %arg8[%c8_93, %c0_94, %c0_95] : memref<16x16x64xbf16, #tpu.memory_space<vmem>>, vector<1x16x64xbf16>
    %137 = vector.shape_cast %136 : vector<1x16x64xbf16> to vector<16x64xbf16>
    %138 = vector.extract_strided_slice %94 {offsets = [0, 192], sizes = [64, 24], strides = [1, 1]} : vector<64x384xbf16> to vector<64x24xbf16>
    %cst_96 = arith.constant dense<0.000000e+00> : vector<16x24xf32>
    %139 = tpu.matmul %137, %138, %cst_96 {dimension_numbers = #tpu.dot_dimension_numbers<[1], [0], [0], [1], [0, 0, 1, 1], [], []>} : vector<16x64xbf16>, vector<64x24xbf16>, vector<16x24xf32> -> vector<16x24xf32>
    %140 = arith.addf %135, %139 : vector<16x24xf32>
    %c9_97 = arith.constant 9 : index
    %c0_98 = arith.constant 0 : index
    %c0_99 = arith.constant 0 : index
    %141 = vector.load %arg8[%c9_97, %c0_98, %c0_99] : memref<16x16x64xbf16, #tpu.memory_space<vmem>>, vector<1x16x64xbf16>
    %142 = vector.shape_cast %141 : vector<1x16x64xbf16> to vector<16x64xbf16>
    %143 = vector.extract_strided_slice %94 {offsets = [0, 216], sizes = [64, 24], strides = [1, 1]} : vector<64x384xbf16> to vector<64x24xbf16>
    %cst_100 = arith.constant dense<0.000000e+00> : vector<16x24xf32>
    %144 = tpu.matmul %142, %143, %cst_100 {dimension_numbers = #tpu.dot_dimension_numbers<[1], [0], [0], [1], [0, 0, 1, 1], [], []>} : vector<16x64xbf16>, vector<64x24xbf16>, vector<16x24xf32> -> vector<16x24xf32>
    %145 = arith.addf %140, %144 : vector<16x24xf32>
    %c10_101 = arith.constant 10 : index
    %c0_102 = arith.constant 0 : index
    %c0_103 = arith.constant 0 : index
    %146 = vector.load %arg8[%c10_101, %c0_102, %c0_103] : memref<16x16x64xbf16, #tpu.memory_space<vmem>>, vector<1x16x64xbf16>
    %147 = vector.shape_cast %146 : vector<1x16x64xbf16> to vector<16x64xbf16>
    %148 = vector.extract_strided_slice %94 {offsets = [0, 240], sizes = [64, 24], strides = [1, 1]} : vector<64x384xbf16> to vector<64x24xbf16>
    %cst_104 = arith.constant dense<0.000000e+00> : vector<16x24xf32>
    %149 = tpu.matmul %147, %148, %cst_104 {dimension_numbers = #tpu.dot_dimension_numbers<[1], [0], [0], [1], [0, 0, 1, 1], [], []>} : vector<16x64xbf16>, vector<64x24xbf16>, vector<16x24xf32> -> vector<16x24xf32>
    %150 = arith.addf %145, %149 : vector<16x24xf32>
    %c11_105 = arith.constant 11 : index
    %c0_106 = arith.constant 0 : index
    %c0_107 = arith.constant 0 : index
    %151 = vector.load %arg8[%c11_105, %c0_106, %c0_107] : memref<16x16x64xbf16, #tpu.memory_space<vmem>>, vector<1x16x64xbf16>
    %152 = vector.shape_cast %151 : vector<1x16x64xbf16> to vector<16x64xbf16>
    %153 = vector.extract_strided_slice %94 {offsets = [0, 264], sizes = [64, 24], strides = [1, 1]} : vector<64x384xbf16> to vector<64x24xbf16>
    %cst_108 = arith.constant dense<0.000000e+00> : vector<16x24xf32>
    %154 = tpu.matmul %152, %153, %cst_108 {dimension_numbers = #tpu.dot_dimension_numbers<[1], [0], [0], [1], [0, 0, 1, 1], [], []>} : vector<16x64xbf16>, vector<64x24xbf16>, vector<16x24xf32> -> vector<16x24xf32>
    %155 = arith.addf %150, %154 : vector<16x24xf32>
    %c12_109 = arith.constant 12 : index
    %c0_110 = arith.constant 0 : index
    %c0_111 = arith.constant 0 : index
    %156 = vector.load %arg8[%c12_109, %c0_110, %c0_111] : memref<16x16x64xbf16, #tpu.memory_space<vmem>>, vector<1x16x64xbf16>
    %157 = vector.shape_cast %156 : vector<1x16x64xbf16> to vector<16x64xbf16>
    %158 = vector.extract_strided_slice %94 {offsets = [0, 288], sizes = [64, 24], strides = [1, 1]} : vector<64x384xbf16> to vector<64x24xbf16>
    %cst_112 = arith.constant dense<0.000000e+00> : vector<16x24xf32>
    %159 = tpu.matmul %157, %158, %cst_112 {dimension_numbers = #tpu.dot_dimension_numbers<[1], [0], [0], [1], [0, 0, 1, 1], [], []>} : vector<16x64xbf16>, vector<64x24xbf16>, vector<16x24xf32> -> vector<16x24xf32>
    %160 = arith.addf %155, %159 : vector<16x24xf32>
    %c13_113 = arith.constant 13 : index
    %c0_114 = arith.constant 0 : index
    %c0_115 = arith.constant 0 : index
    %161 = vector.load %arg8[%c13_113, %c0_114, %c0_115] : memref<16x16x64xbf16, #tpu.memory_space<vmem>>, vector<1x16x64xbf16>
    %162 = vector.shape_cast %161 : vector<1x16x64xbf16> to vector<16x64xbf16>
    %163 = vector.extract_strided_slice %94 {offsets = [0, 312], sizes = [64, 24], strides = [1, 1]} : vector<64x384xbf16> to vector<64x24xbf16>
    %cst_116 = arith.constant dense<0.000000e+00> : vector<16x24xf32>
    %164 = tpu.matmul %162, %163, %cst_116 {dimension_numbers = #tpu.dot_dimension_numbers<[1], [0], [0], [1], [0, 0, 1, 1], [], []>} : vector<16x64xbf16>, vector<64x24xbf16>, vector<16x24xf32> -> vector<16x24xf32>
    %165 = arith.addf %160, %164 : vector<16x24xf32>
    %c14_117 = arith.constant 14 : index
    %c0_118 = arith.constant 0 : index
    %c0_119 = arith.constant 0 : index
    %166 = vector.load %arg8[%c14_117, %c0_118, %c0_119] : memref<16x16x64xbf16, #tpu.memory_space<vmem>>, vector<1x16x64xbf16>
    %167 = vector.shape_cast %166 : vector<1x16x64xbf16> to vector<16x64xbf16>
    %168 = vector.extract_strided_slice %94 {offsets = [0, 336], sizes = [64, 24], strides = [1, 1]} : vector<64x384xbf16> to vector<64x24xbf16>
    %cst_120 = arith.constant dense<0.000000e+00> : vector<16x24xf32>
    %169 = tpu.matmul %167, %168, %cst_120 {dimension_numbers = #tpu.dot_dimension_numbers<[1], [0], [0], [1], [0, 0, 1, 1], [], []>} : vector<16x64xbf16>, vector<64x24xbf16>, vector<16x24xf32> -> vector<16x24xf32>
    %170 = arith.addf %165, %169 : vector<16x24xf32>
    %c15_121 = arith.constant 15 : index
    %c0_122 = arith.constant 0 : index
    %c0_123 = arith.constant 0 : index
    %171 = vector.load %arg8[%c15_121, %c0_122, %c0_123] : memref<16x16x64xbf16, #tpu.memory_space<vmem>>, vector<1x16x64xbf16>
    %172 = vector.shape_cast %171 : vector<1x16x64xbf16> to vector<16x64xbf16>
    %173 = vector.extract_strided_slice %94 {offsets = [0, 360], sizes = [64, 24], strides = [1, 1]} : vector<64x384xbf16> to vector<64x24xbf16>
    %cst_124 = arith.constant dense<0.000000e+00> : vector<16x24xf32>
    %174 = tpu.matmul %172, %173, %cst_124 {dimension_numbers = #tpu.dot_dimension_numbers<[1], [0], [0], [1], [0, 0, 1, 1], [], []>} : vector<16x64xbf16>, vector<64x24xbf16>, vector<16x24xf32> -> vector<16x24xf32>
    %175 = arith.addf %170, %174 : vector<16x24xf32>
    %c0_125 = arith.constant 0 : index
    %c0_126 = arith.constant 0 : index
    %176 = vector.load %arg7[%c0_125, %c0_126] : memref<1x24xf32, #tpu.memory_space<vmem>>, vector<1x24xf32>
    %177 = vector.broadcast %176 : vector<1x24xf32> to vector<16x24xf32>
    %178 = arith.addf %175, %177 : vector<16x24xf32>
    %cst_127 = arith.constant 0.000000e+00 : f32
    %179 = vector.broadcast %cst_127 : f32 to vector<16x24xf32>
    %180 = arith.maximumf %178, %179 : vector<16x24xf32>
    %181 = arith.truncf %180 : vector<16x24xf32> to vector<16x24xbf16>
    %c0_128 = arith.constant 0 : index
    %c0_129 = arith.constant 0 : index
    %182 = vector.load %arg9[%c0_128, %c0_129] : memref<24x1536xbf16, #tpu.memory_space<vmem>>, vector<24x1536xbf16>
    %cst_130 = arith.constant dense<0.000000e+00> : vector<16x1536xf32>
    %183 = tpu.matmul %181, %182, %cst_130 {dimension_numbers = #tpu.dot_dimension_numbers<[1], [0], [0], [1], [0, 0, 1, 1], [], []>} : vector<16x24xbf16>, vector<24x1536xbf16>, vector<16x1536xf32> -> vector<16x1536xf32>
    %184 = arith.truncf %183 : vector<16x1536xf32> to vector<16x1536xbf16>
    %cst_131 = arith.constant 0.000000e+00 : f32
    %185 = vector.broadcast %cst_131 : f32 to vector<4x96xf32>
    %c0_132 = arith.constant 0 : index
    %c0_133 = arith.constant 0 : index
    %c0_134 = arith.constant 0 : index
    %186 = vector.load %arg11[%c0_132, %c0_133, %c0_134] : memref<16x4x16xbf16, #tpu.memory_space<vmem>>, vector<1x4x16xbf16>
    %187 = vector.shape_cast %186 : vector<1x4x16xbf16> to vector<4x16xbf16>
    %188 = vector.extract_strided_slice %184 {offsets = [0, 0], sizes = [16, 96], strides = [1, 1]} : vector<16x1536xbf16> to vector<16x96xbf16>
    %cst_135 = arith.constant dense<0.000000e+00> : vector<4x96xf32>
    %189 = tpu.matmul %187, %188, %cst_135 {dimension_numbers = #tpu.dot_dimension_numbers<[1], [0], [0], [1], [0, 0, 1, 1], [], []>} : vector<4x16xbf16>, vector<16x96xbf16>, vector<4x96xf32> -> vector<4x96xf32>
    %190 = arith.addf %185, %189 : vector<4x96xf32>
    %c1_136 = arith.constant 1 : index
    %c0_137 = arith.constant 0 : index
    %c0_138 = arith.constant 0 : index
    %191 = vector.load %arg11[%c1_136, %c0_137, %c0_138] : memref<16x4x16xbf16, #tpu.memory_space<vmem>>, vector<1x4x16xbf16>
    %192 = vector.shape_cast %191 : vector<1x4x16xbf16> to vector<4x16xbf16>
    %193 = vector.extract_strided_slice %184 {offsets = [0, 96], sizes = [16, 96], strides = [1, 1]} : vector<16x1536xbf16> to vector<16x96xbf16>
    %cst_139 = arith.constant dense<0.000000e+00> : vector<4x96xf32>
    %194 = tpu.matmul %192, %193, %cst_139 {dimension_numbers = #tpu.dot_dimension_numbers<[1], [0], [0], [1], [0, 0, 1, 1], [], []>} : vector<4x16xbf16>, vector<16x96xbf16>, vector<4x96xf32> -> vector<4x96xf32>
    %195 = arith.addf %190, %194 : vector<4x96xf32>
    %c2_140 = arith.constant 2 : index
    %c0_141 = arith.constant 0 : index
    %c0_142 = arith.constant 0 : index
    %196 = vector.load %arg11[%c2_140, %c0_141, %c0_142] : memref<16x4x16xbf16, #tpu.memory_space<vmem>>, vector<1x4x16xbf16>
    %197 = vector.shape_cast %196 : vector<1x4x16xbf16> to vector<4x16xbf16>
    %198 = vector.extract_strided_slice %184 {offsets = [0, 192], sizes = [16, 96], strides = [1, 1]} : vector<16x1536xbf16> to vector<16x96xbf16>
    %cst_143 = arith.constant dense<0.000000e+00> : vector<4x96xf32>
    %199 = tpu.matmul %197, %198, %cst_143 {dimension_numbers = #tpu.dot_dimension_numbers<[1], [0], [0], [1], [0, 0, 1, 1], [], []>} : vector<4x16xbf16>, vector<16x96xbf16>, vector<4x96xf32> -> vector<4x96xf32>
    %200 = arith.addf %195, %199 : vector<4x96xf32>
    %c3_144 = arith.constant 3 : index
    %c0_145 = arith.constant 0 : index
    %c0_146 = arith.constant 0 : index
    %201 = vector.load %arg11[%c3_144, %c0_145, %c0_146] : memref<16x4x16xbf16, #tpu.memory_space<vmem>>, vector<1x4x16xbf16>
    %202 = vector.shape_cast %201 : vector<1x4x16xbf16> to vector<4x16xbf16>
    %203 = vector.extract_strided_slice %184 {offsets = [0, 288], sizes = [16, 96], strides = [1, 1]} : vector<16x1536xbf16> to vector<16x96xbf16>
    %cst_147 = arith.constant dense<0.000000e+00> : vector<4x96xf32>
    %204 = tpu.matmul %202, %203, %cst_147 {dimension_numbers = #tpu.dot_dimension_numbers<[1], [0], [0], [1], [0, 0, 1, 1], [], []>} : vector<4x16xbf16>, vector<16x96xbf16>, vector<4x96xf32> -> vector<4x96xf32>
    %205 = arith.addf %200, %204 : vector<4x96xf32>
    %c4_148 = arith.constant 4 : index
    %c0_149 = arith.constant 0 : index
    %c0_150 = arith.constant 0 : index
    %206 = vector.load %arg11[%c4_148, %c0_149, %c0_150] : memref<16x4x16xbf16, #tpu.memory_space<vmem>>, vector<1x4x16xbf16>
    %207 = vector.shape_cast %206 : vector<1x4x16xbf16> to vector<4x16xbf16>
    %208 = vector.extract_strided_slice %184 {offsets = [0, 384], sizes = [16, 96], strides = [1, 1]} : vector<16x1536xbf16> to vector<16x96xbf16>
    %cst_151 = arith.constant dense<0.000000e+00> : vector<4x96xf32>
    %209 = tpu.matmul %207, %208, %cst_151 {dimension_numbers = #tpu.dot_dimension_numbers<[1], [0], [0], [1], [0, 0, 1, 1], [], []>} : vector<4x16xbf16>, vector<16x96xbf16>, vector<4x96xf32> -> vector<4x96xf32>
    %210 = arith.addf %205, %209 : vector<4x96xf32>
    %c5_152 = arith.constant 5 : index
    %c0_153 = arith.constant 0 : index
    %c0_154 = arith.constant 0 : index
    %211 = vector.load %arg11[%c5_152, %c0_153, %c0_154] : memref<16x4x16xbf16, #tpu.memory_space<vmem>>, vector<1x4x16xbf16>
    %212 = vector.shape_cast %211 : vector<1x4x16xbf16> to vector<4x16xbf16>
    %213 = vector.extract_strided_slice %184 {offsets = [0, 480], sizes = [16, 96], strides = [1, 1]} : vector<16x1536xbf16> to vector<16x96xbf16>
    %cst_155 = arith.constant dense<0.000000e+00> : vector<4x96xf32>
    %214 = tpu.matmul %212, %213, %cst_155 {dimension_numbers = #tpu.dot_dimension_numbers<[1], [0], [0], [1], [0, 0, 1, 1], [], []>} : vector<4x16xbf16>, vector<16x96xbf16>, vector<4x96xf32> -> vector<4x96xf32>
    %215 = arith.addf %210, %214 : vector<4x96xf32>
    %c6_156 = arith.constant 6 : index
    %c0_157 = arith.constant 0 : index
    %c0_158 = arith.constant 0 : index
    %216 = vector.load %arg11[%c6_156, %c0_157, %c0_158] : memref<16x4x16xbf16, #tpu.memory_space<vmem>>, vector<1x4x16xbf16>
    %217 = vector.shape_cast %216 : vector<1x4x16xbf16> to vector<4x16xbf16>
    %218 = vector.extract_strided_slice %184 {offsets = [0, 576], sizes = [16, 96], strides = [1, 1]} : vector<16x1536xbf16> to vector<16x96xbf16>
    %cst_159 = arith.constant dense<0.000000e+00> : vector<4x96xf32>
    %219 = tpu.matmul %217, %218, %cst_159 {dimension_numbers = #tpu.dot_dimension_numbers<[1], [0], [0], [1], [0, 0, 1, 1], [], []>} : vector<4x16xbf16>, vector<16x96xbf16>, vector<4x96xf32> -> vector<4x96xf32>
    %220 = arith.addf %215, %219 : vector<4x96xf32>
    %c7_160 = arith.constant 7 : index
    %c0_161 = arith.constant 0 : index
    %c0_162 = arith.constant 0 : index
    %221 = vector.load %arg11[%c7_160, %c0_161, %c0_162] : memref<16x4x16xbf16, #tpu.memory_space<vmem>>, vector<1x4x16xbf16>
    %222 = vector.shape_cast %221 : vector<1x4x16xbf16> to vector<4x16xbf16>
    %223 = vector.extract_strided_slice %184 {offsets = [0, 672], sizes = [16, 96], strides = [1, 1]} : vector<16x1536xbf16> to vector<16x96xbf16>
    %cst_163 = arith.constant dense<0.000000e+00> : vector<4x96xf32>
    %224 = tpu.matmul %222, %223, %cst_163 {dimension_numbers = #tpu.dot_dimension_numbers<[1], [0], [0], [1], [0, 0, 1, 1], [], []>} : vector<4x16xbf16>, vector<16x96xbf16>, vector<4x96xf32> -> vector<4x96xf32>
    %225 = arith.addf %220, %224 : vector<4x96xf32>
    %c8_164 = arith.constant 8 : index
    %c0_165 = arith.constant 0 : index
    %c0_166 = arith.constant 0 : index
    %226 = vector.load %arg11[%c8_164, %c0_165, %c0_166] : memref<16x4x16xbf16, #tpu.memory_space<vmem>>, vector<1x4x16xbf16>
    %227 = vector.shape_cast %226 : vector<1x4x16xbf16> to vector<4x16xbf16>
    %228 = vector.extract_strided_slice %184 {offsets = [0, 768], sizes = [16, 96], strides = [1, 1]} : vector<16x1536xbf16> to vector<16x96xbf16>
    %cst_167 = arith.constant dense<0.000000e+00> : vector<4x96xf32>
    %229 = tpu.matmul %227, %228, %cst_167 {dimension_numbers = #tpu.dot_dimension_numbers<[1], [0], [0], [1], [0, 0, 1, 1], [], []>} : vector<4x16xbf16>, vector<16x96xbf16>, vector<4x96xf32> -> vector<4x96xf32>
    %230 = arith.addf %225, %229 : vector<4x96xf32>
    %c9_168 = arith.constant 9 : index
    %c0_169 = arith.constant 0 : index
    %c0_170 = arith.constant 0 : index
    %231 = vector.load %arg11[%c9_168, %c0_169, %c0_170] : memref<16x4x16xbf16, #tpu.memory_space<vmem>>, vector<1x4x16xbf16>
    %232 = vector.shape_cast %231 : vector<1x4x16xbf16> to vector<4x16xbf16>
    %233 = vector.extract_strided_slice %184 {offsets = [0, 864], sizes = [16, 96], strides = [1, 1]} : vector<16x1536xbf16> to vector<16x96xbf16>
    %cst_171 = arith.constant dense<0.000000e+00> : vector<4x96xf32>
    %234 = tpu.matmul %232, %233, %cst_171 {dimension_numbers = #tpu.dot_dimension_numbers<[1], [0], [0], [1], [0, 0, 1, 1], [], []>} : vector<4x16xbf16>, vector<16x96xbf16>, vector<4x96xf32> -> vector<4x96xf32>
    %235 = arith.addf %230, %234 : vector<4x96xf32>
    %c10_172 = arith.constant 10 : index
    %c0_173 = arith.constant 0 : index
    %c0_174 = arith.constant 0 : index
    %236 = vector.load %arg11[%c10_172, %c0_173, %c0_174] : memref<16x4x16xbf16, #tpu.memory_space<vmem>>, vector<1x4x16xbf16>
    %237 = vector.shape_cast %236 : vector<1x4x16xbf16> to vector<4x16xbf16>
    %238 = vector.extract_strided_slice %184 {offsets = [0, 960], sizes = [16, 96], strides = [1, 1]} : vector<16x1536xbf16> to vector<16x96xbf16>
    %cst_175 = arith.constant dense<0.000000e+00> : vector<4x96xf32>
    %239 = tpu.matmul %237, %238, %cst_175 {dimension_numbers = #tpu.dot_dimension_numbers<[1], [0], [0], [1], [0, 0, 1, 1], [], []>} : vector<4x16xbf16>, vector<16x96xbf16>, vector<4x96xf32> -> vector<4x96xf32>
    %240 = arith.addf %235, %239 : vector<4x96xf32>
    %c11_176 = arith.constant 11 : index
    %c0_177 = arith.constant 0 : index
    %c0_178 = arith.constant 0 : index
    %241 = vector.load %arg11[%c11_176, %c0_177, %c0_178] : memref<16x4x16xbf16, #tpu.memory_space<vmem>>, vector<1x4x16xbf16>
    %242 = vector.shape_cast %241 : vector<1x4x16xbf16> to vector<4x16xbf16>
    %243 = vector.extract_strided_slice %184 {offsets = [0, 1056], sizes = [16, 96], strides = [1, 1]} : vector<16x1536xbf16> to vector<16x96xbf16>
    %cst_179 = arith.constant dense<0.000000e+00> : vector<4x96xf32>
    %244 = tpu.matmul %242, %243, %cst_179 {dimension_numbers = #tpu.dot_dimension_numbers<[1], [0], [0], [1], [0, 0, 1, 1], [], []>} : vector<4x16xbf16>, vector<16x96xbf16>, vector<4x96xf32> -> vector<4x96xf32>
    %245 = arith.addf %240, %244 : vector<4x96xf32>
    %c12_180 = arith.constant 12 : index
    %c0_181 = arith.constant 0 : index
    %c0_182 = arith.constant 0 : index
    %246 = vector.load %arg11[%c12_180, %c0_181, %c0_182] : memref<16x4x16xbf16, #tpu.memory_space<vmem>>, vector<1x4x16xbf16>
    %247 = vector.shape_cast %246 : vector<1x4x16xbf16> to vector<4x16xbf16>
    %248 = vector.extract_strided_slice %184 {offsets = [0, 1152], sizes = [16, 96], strides = [1, 1]} : vector<16x1536xbf16> to vector<16x96xbf16>
    %cst_183 = arith.constant dense<0.000000e+00> : vector<4x96xf32>
    %249 = tpu.matmul %247, %248, %cst_183 {dimension_numbers = #tpu.dot_dimension_numbers<[1], [0], [0], [1], [0, 0, 1, 1], [], []>} : vector<4x16xbf16>, vector<16x96xbf16>, vector<4x96xf32> -> vector<4x96xf32>
    %250 = arith.addf %245, %249 : vector<4x96xf32>
    %c13_184 = arith.constant 13 : index
    %c0_185 = arith.constant 0 : index
    %c0_186 = arith.constant 0 : index
    %251 = vector.load %arg11[%c13_184, %c0_185, %c0_186] : memref<16x4x16xbf16, #tpu.memory_space<vmem>>, vector<1x4x16xbf16>
    %252 = vector.shape_cast %251 : vector<1x4x16xbf16> to vector<4x16xbf16>
    %253 = vector.extract_strided_slice %184 {offsets = [0, 1248], sizes = [16, 96], strides = [1, 1]} : vector<16x1536xbf16> to vector<16x96xbf16>
    %cst_187 = arith.constant dense<0.000000e+00> : vector<4x96xf32>
    %254 = tpu.matmul %252, %253, %cst_187 {dimension_numbers = #tpu.dot_dimension_numbers<[1], [0], [0], [1], [0, 0, 1, 1], [], []>} : vector<4x16xbf16>, vector<16x96xbf16>, vector<4x96xf32> -> vector<4x96xf32>
    %255 = arith.addf %250, %254 : vector<4x96xf32>
    %c14_188 = arith.constant 14 : index
    %c0_189 = arith.constant 0 : index
    %c0_190 = arith.constant 0 : index
    %256 = vector.load %arg11[%c14_188, %c0_189, %c0_190] : memref<16x4x16xbf16, #tpu.memory_space<vmem>>, vector<1x4x16xbf16>
    %257 = vector.shape_cast %256 : vector<1x4x16xbf16> to vector<4x16xbf16>
    %258 = vector.extract_strided_slice %184 {offsets = [0, 1344], sizes = [16, 96], strides = [1, 1]} : vector<16x1536xbf16> to vector<16x96xbf16>
    %cst_191 = arith.constant dense<0.000000e+00> : vector<4x96xf32>
    %259 = tpu.matmul %257, %258, %cst_191 {dimension_numbers = #tpu.dot_dimension_numbers<[1], [0], [0], [1], [0, 0, 1, 1], [], []>} : vector<4x16xbf16>, vector<16x96xbf16>, vector<4x96xf32> -> vector<4x96xf32>
    %260 = arith.addf %255, %259 : vector<4x96xf32>
    %c15_192 = arith.constant 15 : index
    %c0_193 = arith.constant 0 : index
    %c0_194 = arith.constant 0 : index
    %261 = vector.load %arg11[%c15_192, %c0_193, %c0_194] : memref<16x4x16xbf16, #tpu.memory_space<vmem>>, vector<1x4x16xbf16>
    %262 = vector.shape_cast %261 : vector<1x4x16xbf16> to vector<4x16xbf16>
    %263 = vector.extract_strided_slice %184 {offsets = [0, 1440], sizes = [16, 96], strides = [1, 1]} : vector<16x1536xbf16> to vector<16x96xbf16>
    %cst_195 = arith.constant dense<0.000000e+00> : vector<4x96xf32>
    %264 = tpu.matmul %262, %263, %cst_195 {dimension_numbers = #tpu.dot_dimension_numbers<[1], [0], [0], [1], [0, 0, 1, 1], [], []>} : vector<4x16xbf16>, vector<16x96xbf16>, vector<4x96xf32> -> vector<4x96xf32>
    %265 = arith.addf %260, %264 : vector<4x96xf32>
    %c0_196 = arith.constant 0 : index
    %c0_197 = arith.constant 0 : index
    %266 = vector.load %arg10[%c0_196, %c0_197] : memref<1x96xf32, #tpu.memory_space<vmem>>, vector<1x96xf32>
    %267 = vector.broadcast %266 : vector<1x96xf32> to vector<4x96xf32>
    %268 = arith.addf %265, %267 : vector<4x96xf32>
    %cst_198 = arith.constant 0.000000e+00 : f32
    %269 = vector.broadcast %cst_198 : f32 to vector<4x96xf32>
    %270 = arith.maximumf %268, %269 : vector<4x96xf32>
    %271 = vector.extract_strided_slice %270 {offsets = [0, 0], sizes = [4, 48], strides = [1, 1]} : vector<4x96xf32> to vector<4x48xf32>
    %272 = vector.extract_strided_slice %270 {offsets = [0, 48], sizes = [4, 48], strides = [1, 1]} : vector<4x96xf32> to vector<4x48xf32>
    %c0_199 = arith.constant 0 : index
    %c0_200 = arith.constant 0 : index
    %c0_201 = arith.constant 0 : index
    %273 = vector.load %arg24[%c0_199, %c0_200, %c0_201] : memref<1x4x48xf32, #tpu.memory_space<vmem>>, vector<1x4x48xf32>
    %274 = vector.shape_cast %273 : vector<1x4x48xf32> to vector<4x48xf32>
    %275 = vector.shape_cast %271 : vector<4x48xf32> to vector<1x4x48xf32>
    tpu.vector_store %arg24[%c0_199, %c0_200, %c0_201], %275 {strides = array<i32>} : memref<1x4x48xf32, #tpu.memory_space<vmem>>, vector<1x4x48xf32>,
    %c0_202 = arith.constant 0 : index
    %c0_203 = arith.constant 0 : index
    %c0_204 = arith.constant 0 : index
    %276 = vector.load %arg25[%c0_202, %c0_203, %c0_204] : memref<1x4x48xf32, #tpu.memory_space<vmem>>, vector<1x4x48xf32>
    %277 = vector.shape_cast %276 : vector<1x4x48xf32> to vector<4x48xf32>
    %278 = vector.shape_cast %272 : vector<4x48xf32> to vector<1x4x48xf32>
    tpu.vector_store %arg25[%c0_202, %c0_203, %c0_204], %278 {strides = array<i32>} : memref<1x4x48xf32, #tpu.memory_space<vmem>>, vector<1x4x48xf32>,
    %c0_205 = arith.constant 0 : index
    %c0_206 = arith.constant 0 : index
    %c0_207 = arith.constant 0 : index
    %279 = vector.load %arg2[%c0_205, %c0_206, %c0_207] : memref<1x4x48xf32, #tpu.memory_space<vmem>>, vector<1x4x48xf32>
    %280 = vector.shape_cast %279 : vector<1x4x48xf32> to vector<4x48xf32>
    %cst_208 = arith.constant 5.000000e-01 : f32
    %281 = vector.broadcast %cst_208 : f32 to vector<4x48xf32>
    %282 = arith.mulf %281, %272 : vector<4x48xf32>
    %283 = math.exp %282 : vector<4x48xf32>
    %284 = arith.mulf %280, %283 : vector<4x48xf32>
    %285 = arith.addf %271, %284 : vector<4x48xf32>
    %286 = arith.truncf %285 : vector<4x48xf32> to vector<4x48xbf16>
    %c0_209 = arith.constant 0 : index
    %c0_210 = arith.constant 0 : index
    %287 = vector.load %arg12[%c0_209, %c0_210] : memref<48x864xbf16, #tpu.memory_space<vmem>>, vector<48x864xbf16>
    %cst_211 = arith.constant dense<0.000000e+00> : vector<4x864xf32>
    %288 = tpu.matmul %286, %287, %cst_211 {dimension_numbers = #tpu.dot_dimension_numbers<[1], [0], [0], [1], [0, 0, 1, 1], [], []>} : vector<4x48xbf16>, vector<48x864xbf16>, vector<4x864xf32> -> vector<4x864xf32>
    %289 = arith.truncf %288 : vector<4x864xf32> to vector<4x864xbf16>
    %cst_212 = arith.constant 0.000000e+00 : f32
    %290 = vector.broadcast %cst_212 : f32 to vector<4x96xf32>
    %c0_213 = arith.constant 0 : index
    %c0_214 = arith.constant 0 : index
    %c0_215 = arith.constant 0 : index
    %291 = vector.load %arg14[%c0_213, %c0_214, %c0_215] : memref<9x4x4xbf16, #tpu.memory_space<vmem>>, vector<1x4x4xbf16>
    %292 = vector.shape_cast %291 : vector<1x4x4xbf16> to vector<4x4xbf16>
    %293 = vector.extract_strided_slice %289 {offsets = [0, 0], sizes = [4, 96], strides = [1, 1]} : vector<4x864xbf16> to vector<4x96xbf16>
    %cst_216 = arith.constant dense<0.000000e+00> : vector<4x96xf32>
    %294 = tpu.matmul %292, %293, %cst_216 {dimension_numbers = #tpu.dot_dimension_numbers<[1], [0], [0], [1], [0, 0, 1, 1], [], []>} : vector<4x4xbf16>, vector<4x96xbf16>, vector<4x96xf32> -> vector<4x96xf32>
    %295 = arith.addf %290, %294 : vector<4x96xf32>
    %c1_217 = arith.constant 1 : index
    %c0_218 = arith.constant 0 : index
    %c0_219 = arith.constant 0 : index
    %296 = vector.load %arg14[%c1_217, %c0_218, %c0_219] : memref<9x4x4xbf16, #tpu.memory_space<vmem>>, vector<1x4x4xbf16>
    %297 = vector.shape_cast %296 : vector<1x4x4xbf16> to vector<4x4xbf16>
    %298 = vector.extract_strided_slice %289 {offsets = [0, 96], sizes = [4, 96], strides = [1, 1]} : vector<4x864xbf16> to vector<4x96xbf16>
    %cst_220 = arith.constant dense<0.000000e+00> : vector<4x96xf32>
    %299 = tpu.matmul %297, %298, %cst_220 {dimension_numbers = #tpu.dot_dimension_numbers<[1], [0], [0], [1], [0, 0, 1, 1], [], []>} : vector<4x4xbf16>, vector<4x96xbf16>, vector<4x96xf32> -> vector<4x96xf32>
    %300 = arith.addf %295, %299 : vector<4x96xf32>
    %c2_221 = arith.constant 2 : index
    %c0_222 = arith.constant 0 : index
    %c0_223 = arith.constant 0 : index
    %301 = vector.load %arg14[%c2_221, %c0_222, %c0_223] : memref<9x4x4xbf16, #tpu.memory_space<vmem>>, vector<1x4x4xbf16>
    %302 = vector.shape_cast %301 : vector<1x4x4xbf16> to vector<4x4xbf16>
    %303 = vector.extract_strided_slice %289 {offsets = [0, 192], sizes = [4, 96], strides = [1, 1]} : vector<4x864xbf16> to vector<4x96xbf16>
    %cst_224 = arith.constant dense<0.000000e+00> : vector<4x96xf32>
    %304 = tpu.matmul %302, %303, %cst_224 {dimension_numbers = #tpu.dot_dimension_numbers<[1], [0], [0], [1], [0, 0, 1, 1], [], []>} : vector<4x4xbf16>, vector<4x96xbf16>, vector<4x96xf32> -> vector<4x96xf32>
    %305 = arith.addf %300, %304 : vector<4x96xf32>
    %c3_225 = arith.constant 3 : index
    %c0_226 = arith.constant 0 : index
    %c0_227 = arith.constant 0 : index
    %306 = vector.load %arg14[%c3_225, %c0_226, %c0_227] : memref<9x4x4xbf16, #tpu.memory_space<vmem>>, vector<1x4x4xbf16>
    %307 = vector.shape_cast %306 : vector<1x4x4xbf16> to vector<4x4xbf16>
    %308 = vector.extract_strided_slice %289 {offsets = [0, 288], sizes = [4, 96], strides = [1, 1]} : vector<4x864xbf16> to vector<4x96xbf16>
    %cst_228 = arith.constant dense<0.000000e+00> : vector<4x96xf32>
    %309 = tpu.matmul %307, %308, %cst_228 {dimension_numbers = #tpu.dot_dimension_numbers<[1], [0], [0], [1], [0, 0, 1, 1], [], []>} : vector<4x4xbf16>, vector<4x96xbf16>, vector<4x96xf32> -> vector<4x96xf32>
    %310 = arith.addf %305, %309 : vector<4x96xf32>
    %c4_229 = arith.constant 4 : index
    %c0_230 = arith.constant 0 : index
    %c0_231 = arith.constant 0 : index
    %311 = vector.load %arg14[%c4_229, %c0_230, %c0_231] : memref<9x4x4xbf16, #tpu.memory_space<vmem>>, vector<1x4x4xbf16>
    %312 = vector.shape_cast %311 : vector<1x4x4xbf16> to vector<4x4xbf16>
    %313 = vector.extract_strided_slice %289 {offsets = [0, 384], sizes = [4, 96], strides = [1, 1]} : vector<4x864xbf16> to vector<4x96xbf16>
    %cst_232 = arith.constant dense<0.000000e+00> : vector<4x96xf32>
    %314 = tpu.matmul %312, %313, %cst_232 {dimension_numbers = #tpu.dot_dimension_numbers<[1], [0], [0], [1], [0, 0, 1, 1], [], []>} : vector<4x4xbf16>, vector<4x96xbf16>, vector<4x96xf32> -> vector<4x96xf32>
    %315 = arith.addf %310, %314 : vector<4x96xf32>
    %c5_233 = arith.constant 5 : index
    %c0_234 = arith.constant 0 : index
    %c0_235 = arith.constant 0 : index
    %316 = vector.load %arg14[%c5_233, %c0_234, %c0_235] : memref<9x4x4xbf16, #tpu.memory_space<vmem>>, vector<1x4x4xbf16>
    %317 = vector.shape_cast %316 : vector<1x4x4xbf16> to vector<4x4xbf16>
    %318 = vector.extract_strided_slice %289 {offsets = [0, 480], sizes = [4, 96], strides = [1, 1]} : vector<4x864xbf16> to vector<4x96xbf16>
    %cst_236 = arith.constant dense<0.000000e+00> : vector<4x96xf32>
    %319 = tpu.matmul %317, %318, %cst_236 {dimension_numbers = #tpu.dot_dimension_numbers<[1], [0], [0], [1], [0, 0, 1, 1], [], []>} : vector<4x4xbf16>, vector<4x96xbf16>, vector<4x96xf32> -> vector<4x96xf32>
    %320 = arith.addf %315, %319 : vector<4x96xf32>
    %c6_237 = arith.constant 6 : index
    %c0_238 = arith.constant 0 : index
    %c0_239 = arith.constant 0 : index
    %321 = vector.load %arg14[%c6_237, %c0_238, %c0_239] : memref<9x4x4xbf16, #tpu.memory_space<vmem>>, vector<1x4x4xbf16>
    %322 = vector.shape_cast %321 : vector<1x4x4xbf16> to vector<4x4xbf16>
    %323 = vector.extract_strided_slice %289 {offsets = [0, 576], sizes = [4, 96], strides = [1, 1]} : vector<4x864xbf16> to vector<4x96xbf16>
    %cst_240 = arith.constant dense<0.000000e+00> : vector<4x96xf32>
    %324 = tpu.matmul %322, %323, %cst_240 {dimension_numbers = #tpu.dot_dimension_numbers<[1], [0], [0], [1], [0, 0, 1, 1], [], []>} : vector<4x4xbf16>, vector<4x96xbf16>, vector<4x96xf32> -> vector<4x96xf32>
    %325 = arith.addf %320, %324 : vector<4x96xf32>
    %c7_241 = arith.constant 7 : index
    %c0_242 = arith.constant 0 : index
    %c0_243 = arith.constant 0 : index
    %326 = vector.load %arg14[%c7_241, %c0_242, %c0_243] : memref<9x4x4xbf16, #tpu.memory_space<vmem>>, vector<1x4x4xbf16>
    %327 = vector.shape_cast %326 : vector<1x4x4xbf16> to vector<4x4xbf16>
    %328 = vector.extract_strided_slice %289 {offsets = [0, 672], sizes = [4, 96], strides = [1, 1]} : vector<4x864xbf16> to vector<4x96xbf16>
    %cst_244 = arith.constant dense<0.000000e+00> : vector<4x96xf32>
    %329 = tpu.matmul %327, %328, %cst_244 {dimension_numbers = #tpu.dot_dimension_numbers<[1], [0], [0], [1], [0, 0, 1, 1], [], []>} : vector<4x4xbf16>, vector<4x96xbf16>, vector<4x96xf32> -> vector<4x96xf32>
    %330 = arith.addf %325, %329 : vector<4x96xf32>
    %c8_245 = arith.constant 8 : index
    %c0_246 = arith.constant 0 : index
    %c0_247 = arith.constant 0 : index
    %331 = vector.load %arg14[%c8_245, %c0_246, %c0_247] : memref<9x4x4xbf16, #tpu.memory_space<vmem>>, vector<1x4x4xbf16>
    %332 = vector.shape_cast %331 : vector<1x4x4xbf16> to vector<4x4xbf16>
    %333 = vector.extract_strided_slice %289 {offsets = [0, 768], sizes = [4, 96], strides = [1, 1]} : vector<4x864xbf16> to vector<4x96xbf16>
    %cst_248 = arith.constant dense<0.000000e+00> : vector<4x96xf32>
    %334 = tpu.matmul %332, %333, %cst_248 {dimension_numbers = #tpu.dot_dimension_numbers<[1], [0], [0], [1], [0, 0, 1, 1], [], []>} : vector<4x4xbf16>, vector<4x96xbf16>, vector<4x96xf32> -> vector<4x96xf32>
    %335 = arith.addf %330, %334 : vector<4x96xf32>
    %c0_249 = arith.constant 0 : index
    %c0_250 = arith.constant 0 : index
    %336 = vector.load %arg13[%c0_249, %c0_250] : memref<1x96xf32, #tpu.memory_space<vmem>>, vector<1x96xf32>
    %337 = vector.broadcast %336 : vector<1x96xf32> to vector<4x96xf32>
    %338 = arith.addf %335, %337 : vector<4x96xf32>
    %cst_251 = arith.constant 0.000000e+00 : f32
    %339 = vector.broadcast %cst_251 : f32 to vector<4x96xf32>
    %340 = arith.maximumf %338, %339 : vector<4x96xf32>
    %341 = arith.truncf %340 : vector<4x96xf32> to vector<4x96xbf16>
    %cst_252 = arith.constant 0.000000e+00 : f32
    %342 = vector.broadcast %cst_252 : f32 to vector<16x24xf32>
    %c0_253 = arith.constant 0 : index
    %c0_254 = arith.constant 0 : index
    %c0_255 = arith.constant 0 : index
    %343 = vector.load %arg15[%c0_253, %c0_254, %c0_255] : memref<4x16x4xbf16, #tpu.memory_space<vmem>>, vector<1x16x4xbf16>
    %344 = vector.shape_cast %343 : vector<1x16x4xbf16> to vector<16x4xbf16>
    %345 = vector.extract_strided_slice %341 {offsets = [0, 0], sizes = [4, 24], strides = [1, 1]} : vector<4x96xbf16> to vector<4x24xbf16>
    %cst_256 = arith.constant dense<0.000000e+00> : vector<16x24xf32>
    %346 = tpu.matmul %344, %345, %cst_256 {dimension_numbers = #tpu.dot_dimension_numbers<[1], [0], [0], [1], [0, 0, 1, 1], [], []>} : vector<16x4xbf16>, vector<4x24xbf16>, vector<16x24xf32> -> vector<16x24xf32>
    %347 = arith.addf %342, %346 : vector<16x24xf32>
    %c1_257 = arith.constant 1 : index
    %c0_258 = arith.constant 0 : index
    %c0_259 = arith.constant 0 : index
    %348 = vector.load %arg15[%c1_257, %c0_258, %c0_259] : memref<4x16x4xbf16, #tpu.memory_space<vmem>>, vector<1x16x4xbf16>
    %349 = vector.shape_cast %348 : vector<1x16x4xbf16> to vector<16x4xbf16>
    %350 = vector.extract_strided_slice %341 {offsets = [0, 24], sizes = [4, 24], strides = [1, 1]} : vector<4x96xbf16> to vector<4x24xbf16>
    %cst_260 = arith.constant dense<0.000000e+00> : vector<16x24xf32>
    %351 = tpu.matmul %349, %350, %cst_260 {dimension_numbers = #tpu.dot_dimension_numbers<[1], [0], [0], [1], [0, 0, 1, 1], [], []>} : vector<16x4xbf16>, vector<4x24xbf16>, vector<16x24xf32> -> vector<16x24xf32>
    %352 = arith.addf %347, %351 : vector<16x24xf32>
    %c2_261 = arith.constant 2 : index
    %c0_262 = arith.constant 0 : index
    %c0_263 = arith.constant 0 : index
    %353 = vector.load %arg15[%c2_261, %c0_262, %c0_263] : memref<4x16x4xbf16, #tpu.memory_space<vmem>>, vector<1x16x4xbf16>
    %354 = vector.shape_cast %353 : vector<1x16x4xbf16> to vector<16x4xbf16>
    %355 = vector.extract_strided_slice %341 {offsets = [0, 48], sizes = [4, 24], strides = [1, 1]} : vector<4x96xbf16> to vector<4x24xbf16>
    %cst_264 = arith.constant dense<0.000000e+00> : vector<16x24xf32>
    %356 = tpu.matmul %354, %355, %cst_264 {dimension_numbers = #tpu.dot_dimension_numbers<[1], [0], [0], [1], [0, 0, 1, 1], [], []>} : vector<16x4xbf16>, vector<4x24xbf16>, vector<16x24xf32> -> vector<16x24xf32>
    %357 = arith.addf %352, %356 : vector<16x24xf32>
    %c3_265 = arith.constant 3 : index
    %c0_266 = arith.constant 0 : index
    %c0_267 = arith.constant 0 : index
    %358 = vector.load %arg15[%c3_265, %c0_266, %c0_267] : memref<4x16x4xbf16, #tpu.memory_space<vmem>>, vector<1x16x4xbf16>
    %359 = vector.shape_cast %358 : vector<1x16x4xbf16> to vector<16x4xbf16>
    %360 = vector.extract_strided_slice %341 {offsets = [0, 72], sizes = [4, 24], strides = [1, 1]} : vector<4x96xbf16> to vector<4x24xbf16>
    %cst_268 = arith.constant dense<0.000000e+00> : vector<16x24xf32>
    %361 = tpu.matmul %359, %360, %cst_268 {dimension_numbers = #tpu.dot_dimension_numbers<[1], [0], [0], [1], [0, 0, 1, 1], [], []>} : vector<16x4xbf16>, vector<4x24xbf16>, vector<16x24xf32> -> vector<16x24xf32>
    %362 = arith.addf %357, %361 : vector<16x24xf32>
    %363 = arith.truncf %362 : vector<16x24xf32> to vector<16x24xbf16>
    %c0_269 = arith.constant 0 : index
    %c0_270 = arith.constant 0 : index
    %364 = vector.load %arg16[%c0_269, %c0_270] : memref<24x432xbf16, #tpu.memory_space<vmem>>, vector<24x432xbf16>
    %cst_271 = arith.constant dense<0.000000e+00> : vector<16x432xf32>
    %365 = tpu.matmul %363, %364, %cst_271 {dimension_numbers = #tpu.dot_dimension_numbers<[1], [0], [0], [1], [0, 0, 1, 1], [], []>} : vector<16x24xbf16>, vector<24x432xbf16>, vector<16x432xf32> -> vector<16x432xf32>
    %366 = arith.truncf %365 : vector<16x432xf32> to vector<16x432xbf16>
    %cst_272 = arith.constant 0.000000e+00 : f32
    %367 = vector.broadcast %cst_272 : f32 to vector<16x48xf32>
    %c0_273 = arith.constant 0 : index
    %c0_274 = arith.constant 0 : index
    %c0_275 = arith.constant 0 : index
    %368 = vector.load %arg18[%c0_273, %c0_274, %c0_275] : memref<9x16x16xbf16, #tpu.memory_space<vmem>>, vector<1x16x16xbf16>
    %369 = vector.shape_cast %368 : vector<1x16x16xbf16> to vector<16x16xbf16>
    %370 = vector.extract_strided_slice %366 {offsets = [0, 0], sizes = [16, 48], strides = [1, 1]} : vector<16x432xbf16> to vector<16x48xbf16>
    %cst_276 = arith.constant dense<0.000000e+00> : vector<16x48xf32>
    %371 = tpu.matmul %369, %370, %cst_276 {dimension_numbers = #tpu.dot_dimension_numbers<[1], [0], [0], [1], [0, 0, 1, 1], [], []>} : vector<16x16xbf16>, vector<16x48xbf16>, vector<16x48xf32> -> vector<16x48xf32>
    %372 = arith.addf %367, %371 : vector<16x48xf32>
    %c1_277 = arith.constant 1 : index
    %c0_278 = arith.constant 0 : index
    %c0_279 = arith.constant 0 : index
    %373 = vector.load %arg18[%c1_277, %c0_278, %c0_279] : memref<9x16x16xbf16, #tpu.memory_space<vmem>>, vector<1x16x16xbf16>
    %374 = vector.shape_cast %373 : vector<1x16x16xbf16> to vector<16x16xbf16>
    %375 = vector.extract_strided_slice %366 {offsets = [0, 48], sizes = [16, 48], strides = [1, 1]} : vector<16x432xbf16> to vector<16x48xbf16>
    %cst_280 = arith.constant dense<0.000000e+00> : vector<16x48xf32>
    %376 = tpu.matmul %374, %375, %cst_280 {dimension_numbers = #tpu.dot_dimension_numbers<[1], [0], [0], [1], [0, 0, 1, 1], [], []>} : vector<16x16xbf16>, vector<16x48xbf16>, vector<16x48xf32> -> vector<16x48xf32>
    %377 = arith.addf %372, %376 : vector<16x48xf32>
    %c2_281 = arith.constant 2 : index
    %c0_282 = arith.constant 0 : index
    %c0_283 = arith.constant 0 : index
    %378 = vector.load %arg18[%c2_281, %c0_282, %c0_283] : memref<9x16x16xbf16, #tpu.memory_space<vmem>>, vector<1x16x16xbf16>
    %379 = vector.shape_cast %378 : vector<1x16x16xbf16> to vector<16x16xbf16>
    %380 = vector.extract_strided_slice %366 {offsets = [0, 96], sizes = [16, 48], strides = [1, 1]} : vector<16x432xbf16> to vector<16x48xbf16>
    %cst_284 = arith.constant dense<0.000000e+00> : vector<16x48xf32>
    %381 = tpu.matmul %379, %380, %cst_284 {dimension_numbers = #tpu.dot_dimension_numbers<[1], [0], [0], [1], [0, 0, 1, 1], [], []>} : vector<16x16xbf16>, vector<16x48xbf16>, vector<16x48xf32> -> vector<16x48xf32>
    %382 = arith.addf %377, %381 : vector<16x48xf32>
    %c3_285 = arith.constant 3 : index
    %c0_286 = arith.constant 0 : index
    %c0_287 = arith.constant 0 : index
    %383 = vector.load %arg18[%c3_285, %c0_286, %c0_287] : memref<9x16x16xbf16, #tpu.memory_space<vmem>>, vector<1x16x16xbf16>
    %384 = vector.shape_cast %383 : vector<1x16x16xbf16> to vector<16x16xbf16>
    %385 = vector.extract_strided_slice %366 {offsets = [0, 144], sizes = [16, 48], strides = [1, 1]} : vector<16x432xbf16> to vector<16x48xbf16>
    %cst_288 = arith.constant dense<0.000000e+00> : vector<16x48xf32>
    %386 = tpu.matmul %384, %385, %cst_288 {dimension_numbers = #tpu.dot_dimension_numbers<[1], [0], [0], [1], [0, 0, 1, 1], [], []>} : vector<16x16xbf16>, vector<16x48xbf16>, vector<16x48xf32> -> vector<16x48xf32>
    %387 = arith.addf %382, %386 : vector<16x48xf32>
    %c4_289 = arith.constant 4 : index
    %c0_290 = arith.constant 0 : index
    %c0_291 = arith.constant 0 : index
    %388 = vector.load %arg18[%c4_289, %c0_290, %c0_291] : memref<9x16x16xbf16, #tpu.memory_space<vmem>>, vector<1x16x16xbf16>
    %389 = vector.shape_cast %388 : vector<1x16x16xbf16> to vector<16x16xbf16>
    %390 = vector.extract_strided_slice %366 {offsets = [0, 192], sizes = [16, 48], strides = [1, 1]} : vector<16x432xbf16> to vector<16x48xbf16>
    %cst_292 = arith.constant dense<0.000000e+00> : vector<16x48xf32>
    %391 = tpu.matmul %389, %390, %cst_292 {dimension_numbers = #tpu.dot_dimension_numbers<[1], [0], [0], [1], [0, 0, 1, 1], [], []>} : vector<16x16xbf16>, vector<16x48xbf16>, vector<16x48xf32> -> vector<16x48xf32>
    %392 = arith.addf %387, %391 : vector<16x48xf32>
    %c5_293 = arith.constant 5 : index
    %c0_294 = arith.constant 0 : index
    %c0_295 = arith.constant 0 : index
    %393 = vector.load %arg18[%c5_293, %c0_294, %c0_295] : memref<9x16x16xbf16, #tpu.memory_space<vmem>>, vector<1x16x16xbf16>
    %394 = vector.shape_cast %393 : vector<1x16x16xbf16> to vector<16x16xbf16>
    %395 = vector.extract_strided_slice %366 {offsets = [0, 240], sizes = [16, 48], strides = [1, 1]} : vector<16x432xbf16> to vector<16x48xbf16>
    %cst_296 = arith.constant dense<0.000000e+00> : vector<16x48xf32>
    %396 = tpu.matmul %394, %395, %cst_296 {dimension_numbers = #tpu.dot_dimension_numbers<[1], [0], [0], [1], [0, 0, 1, 1], [], []>} : vector<16x16xbf16>, vector<16x48xbf16>, vector<16x48xf32> -> vector<16x48xf32>
    %397 = arith.addf %392, %396 : vector<16x48xf32>
    %c6_297 = arith.constant 6 : index
    %c0_298 = arith.constant 0 : index
    %c0_299 = arith.constant 0 : index
    %398 = vector.load %arg18[%c6_297, %c0_298, %c0_299] : memref<9x16x16xbf16, #tpu.memory_space<vmem>>, vector<1x16x16xbf16>
    %399 = vector.shape_cast %398 : vector<1x16x16xbf16> to vector<16x16xbf16>
    %400 = vector.extract_strided_slice %366 {offsets = [0, 288], sizes = [16, 48], strides = [1, 1]} : vector<16x432xbf16> to vector<16x48xbf16>
    %cst_300 = arith.constant dense<0.000000e+00> : vector<16x48xf32>
    %401 = tpu.matmul %399, %400, %cst_300 {dimension_numbers = #tpu.dot_dimension_numbers<[1], [0], [0], [1], [0, 0, 1, 1], [], []>} : vector<16x16xbf16>, vector<16x48xbf16>, vector<16x48xf32> -> vector<16x48xf32>
    %402 = arith.addf %397, %401 : vector<16x48xf32>
    %c7_301 = arith.constant 7 : index
    %c0_302 = arith.constant 0 : index
    %c0_303 = arith.constant 0 : index
    %403 = vector.load %arg18[%c7_301, %c0_302, %c0_303] : memref<9x16x16xbf16, #tpu.memory_space<vmem>>, vector<1x16x16xbf16>
    %404 = vector.shape_cast %403 : vector<1x16x16xbf16> to vector<16x16xbf16>
    %405 = vector.extract_strided_slice %366 {offsets = [0, 336], sizes = [16, 48], strides = [1, 1]} : vector<16x432xbf16> to vector<16x48xbf16>
    %cst_304 = arith.constant dense<0.000000e+00> : vector<16x48xf32>
    %406 = tpu.matmul %404, %405, %cst_304 {dimension_numbers = #tpu.dot_dimension_numbers<[1], [0], [0], [1], [0, 0, 1, 1], [], []>} : vector<16x16xbf16>, vector<16x48xbf16>, vector<16x48xf32> -> vector<16x48xf32>
    %407 = arith.addf %402, %406 : vector<16x48xf32>
    %c8_305 = arith.constant 8 : index
    %c0_306 = arith.constant 0 : index
    %c0_307 = arith.constant 0 : index
    %408 = vector.load %arg18[%c8_305, %c0_306, %c0_307] : memref<9x16x16xbf16, #tpu.memory_space<vmem>>, vector<1x16x16xbf16>
    %409 = vector.shape_cast %408 : vector<1x16x16xbf16> to vector<16x16xbf16>
    %410 = vector.extract_strided_slice %366 {offsets = [0, 384], sizes = [16, 48], strides = [1, 1]} : vector<16x432xbf16> to vector<16x48xbf16>
    %cst_308 = arith.constant dense<0.000000e+00> : vector<16x48xf32>
    %411 = tpu.matmul %409, %410, %cst_308 {dimension_numbers = #tpu.dot_dimension_numbers<[1], [0], [0], [1], [0, 0, 1, 1], [], []>} : vector<16x16xbf16>, vector<16x48xbf16>, vector<16x48xf32> -> vector<16x48xf32>
    %412 = arith.addf %407, %411 : vector<16x48xf32>
    %c0_309 = arith.constant 0 : index
    %c0_310 = arith.constant 0 : index
    %413 = vector.load %arg17[%c0_309, %c0_310] : memref<1x48xf32, #tpu.memory_space<vmem>>, vector<1x48xf32>
    %414 = vector.broadcast %413 : vector<1x48xf32> to vector<16x48xf32>
    %415 = arith.addf %412, %414 : vector<16x48xf32>
    %cst_311 = arith.constant 0.000000e+00 : f32
    %416 = vector.broadcast %cst_311 : f32 to vector<16x48xf32>
    %417 = arith.maximumf %415, %416 : vector<16x48xf32>
    %418 = arith.truncf %417 : vector<16x48xf32> to vector<16x48xbf16>
    %cst_312 = arith.constant 0.000000e+00 : f32
    %419 = vector.broadcast %cst_312 : f32 to vector<64x12xf32>
    %c0_313 = arith.constant 0 : index
    %c0_314 = arith.constant 0 : index
    %c0_315 = arith.constant 0 : index
    %420 = vector.load %arg19[%c0_313, %c0_314, %c0_315] : memref<4x64x16xbf16, #tpu.memory_space<vmem>>, vector<1x64x16xbf16>
    %421 = vector.shape_cast %420 : vector<1x64x16xbf16> to vector<64x16xbf16>
    %422 = vector.extract_strided_slice %418 {offsets = [0, 0], sizes = [16, 12], strides = [1, 1]} : vector<16x48xbf16> to vector<16x12xbf16>
    %cst_316 = arith.constant dense<0.000000e+00> : vector<64x12xf32>
    %423 = tpu.matmul %421, %422, %cst_316 {dimension_numbers = #tpu.dot_dimension_numbers<[1], [0], [0], [1], [0, 0, 1, 1], [], []>} : vector<64x16xbf16>, vector<16x12xbf16>, vector<64x12xf32> -> vector<64x12xf32>
    %424 = arith.addf %419, %423 : vector<64x12xf32>
    %c1_317 = arith.constant 1 : index
    %c0_318 = arith.constant 0 : index
    %c0_319 = arith.constant 0 : index
    %425 = vector.load %arg19[%c1_317, %c0_318, %c0_319] : memref<4x64x16xbf16, #tpu.memory_space<vmem>>, vector<1x64x16xbf16>
    %426 = vector.shape_cast %425 : vector<1x64x16xbf16> to vector<64x16xbf16>
    %427 = vector.extract_strided_slice %418 {offsets = [0, 12], sizes = [16, 12], strides = [1, 1]} : vector<16x48xbf16> to vector<16x12xbf16>
    %cst_320 = arith.constant dense<0.000000e+00> : vector<64x12xf32>
    %428 = tpu.matmul %426, %427, %cst_320 {dimension_numbers = #tpu.dot_dimension_numbers<[1], [0], [0], [1], [0, 0, 1, 1], [], []>} : vector<64x16xbf16>, vector<16x12xbf16>, vector<64x12xf32> -> vector<64x12xf32>
    %429 = arith.addf %424, %428 : vector<64x12xf32>
    %c2_321 = arith.constant 2 : index
    %c0_322 = arith.constant 0 : index
    %c0_323 = arith.constant 0 : index
    %430 = vector.load %arg19[%c2_321, %c0_322, %c0_323] : memref<4x64x16xbf16, #tpu.memory_space<vmem>>, vector<1x64x16xbf16>
    %431 = vector.shape_cast %430 : vector<1x64x16xbf16> to vector<64x16xbf16>
    %432 = vector.extract_strided_slice %418 {offsets = [0, 24], sizes = [16, 12], strides = [1, 1]} : vector<16x48xbf16> to vector<16x12xbf16>
    %cst_324 = arith.constant dense<0.000000e+00> : vector<64x12xf32>
    %433 = tpu.matmul %431, %432, %cst_324 {dimension_numbers = #tpu.dot_dimension_numbers<[1], [0], [0], [1], [0, 0, 1, 1], [], []>} : vector<64x16xbf16>, vector<16x12xbf16>, vector<64x12xf32> -> vector<64x12xf32>
    %434 = arith.addf %429, %433 : vector<64x12xf32>
    %c3_325 = arith.constant 3 : index
    %c0_326 = arith.constant 0 : index
    %c0_327 = arith.constant 0 : index
    %435 = vector.load %arg19[%c3_325, %c0_326, %c0_327] : memref<4x64x16xbf16, #tpu.memory_space<vmem>>, vector<1x64x16xbf16>
    %436 = vector.shape_cast %435 : vector<1x64x16xbf16> to vector<64x16xbf16>
    %437 = vector.extract_strided_slice %418 {offsets = [0, 36], sizes = [16, 12], strides = [1, 1]} : vector<16x48xbf16> to vector<16x12xbf16>
    %cst_328 = arith.constant dense<0.000000e+00> : vector<64x12xf32>
    %438 = tpu.matmul %436, %437, %cst_328 {dimension_numbers = #tpu.dot_dimension_numbers<[1], [0], [0], [1], [0, 0, 1, 1], [], []>} : vector<64x16xbf16>, vector<16x12xbf16>, vector<64x12xf32> -> vector<64x12xf32>
    %439 = arith.addf %434, %438 : vector<64x12xf32>
    %440 = arith.truncf %439 : vector<64x12xf32> to vector<64x12xbf16>
    %c0_329 = arith.constant 0 : index
    %c0_330 = arith.constant 0 : index
    %441 = vector.load %arg20[%c0_329, %c0_330] : memref<12x108xbf16, #tpu.memory_space<vmem>>, vector<12x108xbf16>
    %cst_331 = arith.constant dense<0.000000e+00> : vector<64x108xf32>
    %442 = tpu.matmul %440, %441, %cst_331 {dimension_numbers = #tpu.dot_dimension_numbers<[1], [0], [0], [1], [0, 0, 1, 1], [], []>} : vector<64x12xbf16>, vector<12x108xbf16>, vector<64x108xf32> -> vector<64x108xf32>
    %443 = arith.truncf %442 : vector<64x108xf32> to vector<64x108xbf16>
    %cst_332 = arith.constant 0.000000e+00 : f32
    %444 = vector.broadcast %cst_332 : f32 to vector<64x12xf32>
    %c0_333 = arith.constant 0 : index
    %c0_334 = arith.constant 0 : index
    %c0_335 = arith.constant 0 : index
    %445 = vector.load %arg22[%c0_333, %c0_334, %c0_335] : memref<9x64x64xbf16, #tpu.memory_space<vmem>>, vector<1x64x64xbf16>
    %446 = vector.shape_cast %445 : vector<1x64x64xbf16> to vector<64x64xbf16>
    %447 = vector.extract_strided_slice %443 {offsets = [0, 0], sizes = [64, 12], strides = [1, 1]} : vector<64x108xbf16> to vector<64x12xbf16>
    %cst_336 = arith.constant dense<0.000000e+00> : vector<64x12xf32>
    %448 = tpu.matmul %446, %447, %cst_336 {dimension_numbers = #tpu.dot_dimension_numbers<[1], [0], [0], [1], [0, 0, 1, 1], [], []>} : vector<64x64xbf16>, vector<64x12xbf16>, vector<64x12xf32> -> vector<64x12xf32>
    %449 = arith.addf %444, %448 : vector<64x12xf32>
    %c1_337 = arith.constant 1 : index
    %c0_338 = arith.constant 0 : index
    %c0_339 = arith.constant 0 : index
    %450 = vector.load %arg22[%c1_337, %c0_338, %c0_339] : memref<9x64x64xbf16, #tpu.memory_space<vmem>>, vector<1x64x64xbf16>
    %451 = vector.shape_cast %450 : vector<1x64x64xbf16> to vector<64x64xbf16>
    %452 = vector.extract_strided_slice %443 {offsets = [0, 12], sizes = [64, 12], strides = [1, 1]} : vector<64x108xbf16> to vector<64x12xbf16>
    %cst_340 = arith.constant dense<0.000000e+00> : vector<64x12xf32>
    %453 = tpu.matmul %451, %452, %cst_340 {dimension_numbers = #tpu.dot_dimension_numbers<[1], [0], [0], [1], [0, 0, 1, 1], [], []>} : vector<64x64xbf16>, vector<64x12xbf16>, vector<64x12xf32> -> vector<64x12xf32>
    %454 = arith.addf %449, %453 : vector<64x12xf32>
    %c2_341 = arith.constant 2 : index
    %c0_342 = arith.constant 0 : index
    %c0_343 = arith.constant 0 : index
    %455 = vector.load %arg22[%c2_341, %c0_342, %c0_343] : memref<9x64x64xbf16, #tpu.memory_space<vmem>>, vector<1x64x64xbf16>
    %456 = vector.shape_cast %455 : vector<1x64x64xbf16> to vector<64x64xbf16>
    %457 = vector.extract_strided_slice %443 {offsets = [0, 24], sizes = [64, 12], strides = [1, 1]} : vector<64x108xbf16> to vector<64x12xbf16>
    %cst_344 = arith.constant dense<0.000000e+00> : vector<64x12xf32>
    %458 = tpu.matmul %456, %457, %cst_344 {dimension_numbers = #tpu.dot_dimension_numbers<[1], [0], [0], [1], [0, 0, 1, 1], [], []>} : vector<64x64xbf16>, vector<64x12xbf16>, vector<64x12xf32> -> vector<64x12xf32>
    %459 = arith.addf %454, %458 : vector<64x12xf32>
    %c3_345 = arith.constant 3 : index
    %c0_346 = arith.constant 0 : index
    %c0_347 = arith.constant 0 : index
    %460 = vector.load %arg22[%c3_345, %c0_346, %c0_347] : memref<9x64x64xbf16, #tpu.memory_space<vmem>>, vector<1x64x64xbf16>
    %461 = vector.shape_cast %460 : vector<1x64x64xbf16> to vector<64x64xbf16>
    %462 = vector.extract_strided_slice %443 {offsets = [0, 36], sizes = [64, 12], strides = [1, 1]} : vector<64x108xbf16> to vector<64x12xbf16>
    %cst_348 = arith.constant dense<0.000000e+00> : vector<64x12xf32>
    %463 = tpu.matmul %461, %462, %cst_348 {dimension_numbers = #tpu.dot_dimension_numbers<[1], [0], [0], [1], [0, 0, 1, 1], [], []>} : vector<64x64xbf16>, vector<64x12xbf16>, vector<64x12xf32> -> vector<64x12xf32>
    %464 = arith.addf %459, %463 : vector<64x12xf32>
    %c4_349 = arith.constant 4 : index
    %c0_350 = arith.constant 0 : index
    %c0_351 = arith.constant 0 : index
    %465 = vector.load %arg22[%c4_349, %c0_350, %c0_351] : memref<9x64x64xbf16, #tpu.memory_space<vmem>>, vector<1x64x64xbf16>
    %466 = vector.shape_cast %465 : vector<1x64x64xbf16> to vector<64x64xbf16>
    %467 = vector.extract_strided_slice %443 {offsets = [0, 48], sizes = [64, 12], strides = [1, 1]} : vector<64x108xbf16> to vector<64x12xbf16>
    %cst_352 = arith.constant dense<0.000000e+00> : vector<64x12xf32>
    %468 = tpu.matmul %466, %467, %cst_352 {dimension_numbers = #tpu.dot_dimension_numbers<[1], [0], [0], [1], [0, 0, 1, 1], [], []>} : vector<64x64xbf16>, vector<64x12xbf16>, vector<64x12xf32> -> vector<64x12xf32>
    %469 = arith.addf %464, %468 : vector<64x12xf32>
    %c5_353 = arith.constant 5 : index
    %c0_354 = arith.constant 0 : index
    %c0_355 = arith.constant 0 : index
    %470 = vector.load %arg22[%c5_353, %c0_354, %c0_355] : memref<9x64x64xbf16, #tpu.memory_space<vmem>>, vector<1x64x64xbf16>
    %471 = vector.shape_cast %470 : vector<1x64x64xbf16> to vector<64x64xbf16>
    %472 = vector.extract_strided_slice %443 {offsets = [0, 60], sizes = [64, 12], strides = [1, 1]} : vector<64x108xbf16> to vector<64x12xbf16>
    %cst_356 = arith.constant dense<0.000000e+00> : vector<64x12xf32>
    %473 = tpu.matmul %471, %472, %cst_356 {dimension_numbers = #tpu.dot_dimension_numbers<[1], [0], [0], [1], [0, 0, 1, 1], [], []>} : vector<64x64xbf16>, vector<64x12xbf16>, vector<64x12xf32> -> vector<64x12xf32>
    %474 = arith.addf %469, %473 : vector<64x12xf32>
    %c6_357 = arith.constant 6 : index
    %c0_358 = arith.constant 0 : index
    %c0_359 = arith.constant 0 : index
    %475 = vector.load %arg22[%c6_357, %c0_358, %c0_359] : memref<9x64x64xbf16, #tpu.memory_space<vmem>>, vector<1x64x64xbf16>
    %476 = vector.shape_cast %475 : vector<1x64x64xbf16> to vector<64x64xbf16>
    %477 = vector.extract_strided_slice %443 {offsets = [0, 72], sizes = [64, 12], strides = [1, 1]} : vector<64x108xbf16> to vector<64x12xbf16>
    %cst_360 = arith.constant dense<0.000000e+00> : vector<64x12xf32>
    %478 = tpu.matmul %476, %477, %cst_360 {dimension_numbers = #tpu.dot_dimension_numbers<[1], [0], [0], [1], [0, 0, 1, 1], [], []>} : vector<64x64xbf16>, vector<64x12xbf16>, vector<64x12xf32> -> vector<64x12xf32>
    %479 = arith.addf %474, %478 : vector<64x12xf32>
    %c7_361 = arith.constant 7 : index
    %c0_362 = arith.constant 0 : index
    %c0_363 = arith.constant 0 : index
    %480 = vector.load %arg22[%c7_361, %c0_362, %c0_363] : memref<9x64x64xbf16, #tpu.memory_space<vmem>>, vector<1x64x64xbf16>
    %481 = vector.shape_cast %480 : vector<1x64x64xbf16> to vector<64x64xbf16>
    %482 = vector.extract_strided_slice %443 {offsets = [0, 84], sizes = [64, 12], strides = [1, 1]} : vector<64x108xbf16> to vector<64x12xbf16>
    %cst_364 = arith.constant dense<0.000000e+00> : vector<64x12xf32>
    %483 = tpu.matmul %481, %482, %cst_364 {dimension_numbers = #tpu.dot_dimension_numbers<[1], [0], [0], [1], [0, 0, 1, 1], [], []>} : vector<64x64xbf16>, vector<64x12xbf16>, vector<64x12xf32> -> vector<64x12xf32>
    %484 = arith.addf %479, %483 : vector<64x12xf32>
    %c8_365 = arith.constant 8 : index
    %c0_366 = arith.constant 0 : index
    %c0_367 = arith.constant 0 : index
    %485 = vector.load %arg22[%c8_365, %c0_366, %c0_367] : memref<9x64x64xbf16, #tpu.memory_space<vmem>>, vector<1x64x64xbf16>
    %486 = vector.shape_cast %485 : vector<1x64x64xbf16> to vector<64x64xbf16>
    %487 = vector.extract_strided_slice %443 {offsets = [0, 96], sizes = [64, 12], strides = [1, 1]} : vector<64x108xbf16> to vector<64x12xbf16>
    %cst_368 = arith.constant dense<0.000000e+00> : vector<64x12xf32>
    %488 = tpu.matmul %486, %487, %cst_368 {dimension_numbers = #tpu.dot_dimension_numbers<[1], [0], [0], [1], [0, 0, 1, 1], [], []>} : vector<64x64xbf16>, vector<64x12xbf16>, vector<64x12xf32> -> vector<64x12xf32>
    %489 = arith.addf %484, %488 : vector<64x12xf32>
    %c0_369 = arith.constant 0 : index
    %c0_370 = arith.constant 0 : index
    %490 = vector.load %arg21[%c0_369, %c0_370] : memref<1x12xf32, #tpu.memory_space<vmem>>, vector<1x12xf32>
    %491 = vector.broadcast %490 : vector<1x12xf32> to vector<64x12xf32>
    %492 = arith.addf %489, %491 : vector<64x12xf32>
    %493 = math.tanh %492 : vector<64x12xf32>
    %c0_371 = arith.constant 0 : index
    %c0_372 = arith.constant 0 : index
    %c0_373 = arith.constant 0 : index
    %494 = vector.load %arg23[%c0_371, %c0_372, %c0_373] : memref<1x64x12xf32, #tpu.memory_space<vmem>>, vector<1x64x12xf32>
    %495 = vector.shape_cast %494 : vector<1x64x12xf32> to vector<64x12xf32>
    %496 = vector.shape_cast %493 : vector<64x12xf32> to vector<1x64x12xf32>
    tpu.vector_store %arg23[%c0_371, %c0_372, %c0_373], %496 {strides = array<i32>} : memref<1x64x12xf32, #tpu.memory_space<vmem>>, vector<1x64x12xf32>,
    return
  }
  func.func @transform_0(%arg0: i32) -> (i32, i32, i32) {
    %c0_i32 = arith.constant 0 : i32
    %c0_i32_0 = arith.constant 0 : i32
    %c0_i32_1 = arith.constant 0 : i32
    return %arg0, %c0_i32, %c0_i32_0 : i32, i32, i32
  }
  func.func @transform_1(%arg0: i32) -> (i32, i32, i32) {
    %c0_i32 = arith.constant 0 : i32
    %c0_i32_0 = arith.constant 0 : i32
    %c0_i32_1 = arith.constant 0 : i32
    return %arg0, %c0_i32, %c0_i32_0 : i32, i32, i32
  }
  func.func @transform_2(%arg0: i32) -> (i32, i32) {
    %c0_i32 = arith.constant 0 : i32
    %c0_i32_0 = arith.constant 0 : i32
    %c0_i32_1 = arith.constant 0 : i32
    return %c0_i32, %c0_i32_0 : i32, i32
  }
  func.func @transform_3(%arg0: i32) -> (i32, i32) {
    %c0_i32 = arith.constant 0 : i32
    %c0_i32_0 = arith.constant 0 : i32
    %c0_i32_1 = arith.constant 0 : i32
    return %c0_i32, %c0_i32_0 : i32, i32
  }
  func.func @transform_4(%arg0: i32) -> (i32, i32, i32) {
    %c0_i32 = arith.constant 0 : i32
    %c0_i32_0 = arith.constant 0 : i32
    %c0_i32_1 = arith.constant 0 : i32
    %c0_i32_2 = arith.constant 0 : i32
    return %c0_i32, %c0_i32_0, %c0_i32_1 : i32, i32, i32
  }
  func.func @transform_5(%arg0: i32) -> (i32, i32) {
    %c0_i32 = arith.constant 0 : i32
    %c0_i32_0 = arith.constant 0 : i32
    %c0_i32_1 = arith.constant 0 : i32
    return %c0_i32, %c0_i32_0 : i32, i32
  }
  func.func @transform_6(%arg0: i32) -> (i32, i32) {
    %c0_i32 = arith.constant 0 : i32
    %c0_i32_0 = arith.constant 0 : i32
    %c0_i32_1 = arith.constant 0 : i32
    return %c0_i32, %c0_i32_0 : i32, i32
  }
  func.func @transform_7(%arg0: i32) -> (i32, i32, i32) {
    %c0_i32 = arith.constant 0 : i32
    %c0_i32_0 = arith.constant 0 : i32
    %c0_i32_1 = arith.constant 0 : i32
    %c0_i32_2 = arith.constant 0 : i32
    return %c0_i32, %c0_i32_0, %c0_i32_1 : i32, i32, i32
  }
  func.func @transform_8(%arg0: i32) -> (i32, i32) {
    %c0_i32 = arith.constant 0 : i32
    %c0_i32_0 = arith.constant 0 : i32
    %c0_i32_1 = arith.constant 0 : i32
    return %c0_i32, %c0_i32_0 : i32, i32
  }
  func.func @transform_9(%arg0: i32) -> (i32, i32) {
    %c0_i32 = arith.constant 0 : i32
    %c0_i32_0 = arith.constant 0 : i32
    %c0_i32_1 = arith.constant 0 : i32
    return %c0_i32, %c0_i32_0 : i32, i32
  }
  func.func @transform_10(%arg0: i32) -> (i32, i32, i32) {
    %c0_i32 = arith.constant 0 : i32
    %c0_i32_0 = arith.constant 0 : i32
    %c0_i32_1 = arith.constant 0 : i32
    %c0_i32_2 = arith.constant 0 : i32
    return %c0_i32, %c0_i32_0, %c0_i32_1 : i32, i32, i32
  }
  func.func @transform_11(%arg0: i32) -> (i32, i32) {
    %c0_i32 = arith.constant 0 : i32
    %c0_i32_0 = arith.constant 0 : i32
    %c0_i32_1 = arith.constant 0 : i32
    return %c0_i32, %c0_i32_0 : i32, i32
  }
  func.func @transform_12(%arg0: i32) -> (i32, i32) {
    %c0_i32 = arith.constant 0 : i32
    %c0_i32_0 = arith.constant 0 : i32
    %c0_i32_1 = arith.constant 0 : i32
    return %c0_i32, %c0_i32_0 : i32, i32
  }
  func.func @transform_13(%arg0: i32) -> (i32, i32, i32) {
    %c0_i32 = arith.constant 0 : i32
    %c0_i32_0 = arith.constant 0 : i32
    %c0_i32_1 = arith.constant 0 : i32
    %c0_i32_2 = arith.constant 0 : i32
    return %c0_i32, %c0_i32_0, %c0_i32_1 : i32, i32, i32
  }
  func.func @transform_14(%arg0: i32) -> (i32, i32, i32) {
    %c0_i32 = arith.constant 0 : i32
    %c0_i32_0 = arith.constant 0 : i32
    %c0_i32_1 = arith.constant 0 : i32
    %c0_i32_2 = arith.constant 0 : i32
    return %c0_i32, %c0_i32_0, %c0_i32_1 : i32, i32, i32
  }
  func.func @transform_15(%arg0: i32) -> (i32, i32) {
    %c0_i32 = arith.constant 0 : i32
    %c0_i32_0 = arith.constant 0 : i32
    %c0_i32_1 = arith.constant 0 : i32
    return %c0_i32, %c0_i32_0 : i32, i32
  }
  func.func @transform_16(%arg0: i32) -> (i32, i32) {
    %c0_i32 = arith.constant 0 : i32
    %c0_i32_0 = arith.constant 0 : i32
    %c0_i32_1 = arith.constant 0 : i32
    return %c0_i32, %c0_i32_0 : i32, i32
  }
  func.func @transform_17(%arg0: i32) -> (i32, i32, i32) {
    %c0_i32 = arith.constant 0 : i32
    %c0_i32_0 = arith.constant 0 : i32
    %c0_i32_1 = arith.constant 0 : i32
    %c0_i32_2 = arith.constant 0 : i32
    return %c0_i32, %c0_i32_0, %c0_i32_1 : i32, i32, i32
  }
  func.func @transform_18(%arg0: i32) -> (i32, i32, i32) {
    %c0_i32 = arith.constant 0 : i32
    %c0_i32_0 = arith.constant 0 : i32
    %c0_i32_1 = arith.constant 0 : i32
    %c0_i32_2 = arith.constant 0 : i32
    return %c0_i32, %c0_i32_0, %c0_i32_1 : i32, i32, i32
  }
  func.func @transform_19(%arg0: i32) -> (i32, i32) {
    %c0_i32 = arith.constant 0 : i32
    %c0_i32_0 = arith.constant 0 : i32
    %c0_i32_1 = arith.constant 0 : i32
    return %c0_i32, %c0_i32_0 : i32, i32
  }
  func.func @transform_20(%arg0: i32) -> (i32, i32) {
    %c0_i32 = arith.constant 0 : i32
    %c0_i32_0 = arith.constant 0 : i32
    %c0_i32_1 = arith.constant 0 : i32
    return %c0_i32, %c0_i32_0 : i32, i32
  }
  func.func @transform_21(%arg0: i32) -> (i32, i32, i32) {
    %c0_i32 = arith.constant 0 : i32
    %c0_i32_0 = arith.constant 0 : i32
    %c0_i32_1 = arith.constant 0 : i32
    %c0_i32_2 = arith.constant 0 : i32
    return %c0_i32, %c0_i32_0, %c0_i32_1 : i32, i32, i32
  }
  func.func @transform_22(%arg0: i32) -> (i32, i32, i32) {
    %c0_i32 = arith.constant 0 : i32
    %c0_i32_0 = arith.constant 0 : i32
    %c0_i32_1 = arith.constant 0 : i32
    return %arg0, %c0_i32, %c0_i32_0 : i32, i32, i32
  }
  func.func @transform_23(%arg0: i32) -> (i32, i32, i32) {
    %c0_i32 = arith.constant 0 : i32
    %c0_i32_0 = arith.constant 0 : i32
    %c0_i32_1 = arith.constant 0 : i32
    return %arg0, %c0_i32, %c0_i32_0 : i32, i32, i32
  }
  func.func @transform_24(%arg0: i32) -> (i32, i32, i32) {
    %c0_i32 = arith.constant 0 : i32
    %c0_i32_0 = arith.constant 0 : i32
    %c0_i32_1 = arith.constant 0 : i32
    return %arg0, %c0_i32, %c0_i32_0 : i32, i32, i32
  }
}

</mosaic_0001>

<llo_original>
// kernel: vae_forward.1
$region0: #{vae_forward.1}
  #allocation0 [shape = 'u32[]', space=smem, size = 0x4, offset = 0x4, fixed_abs, tag = 'smem constant byte address 0x4 - core index']
  #allocation1 [shape = 'u32[72,128]{1,0:T(1,128)}', space=vmem, size = 0x9000, scoped, tag = 'internal scratch']
  %s0 = inlined_call_operand.vmem [shape: bf16[2,256,3], index: 0, kind: input, shape index: {}]
  %s1 = inlined_call_operand.vmem [shape: f32[2,4,48], index: 1, kind: input, shape index: {}]
  %s2 = inlined_call_operand.hbm [shape: bf16[3,192], index: 2, kind: input, shape index: {}]
  %s3 = inlined_call_operand.vmem [shape: f32[1,12], index: 3, kind: input, shape index: {}]
  %s4 = inlined_call_operand.hbm [shape: bf16[16,64,256], index: 4, kind: input, shape index: {}]
  %s5 = inlined_call_operand.hbm [shape: bf16[12,384], index: 5, kind: input, shape index: {}]
  %s6 = inlined_call_operand.hbm [shape: f32[1,24], index: 6, kind: input, shape index: {}]
  %s7 = inlined_call_operand.hbm [shape: bf16[16,16,64], index: 7, kind: input, shape index: {}]
  %s8 = inlined_call_operand.hbm [shape: bf16[24,1536], index: 8, kind: input, shape index: {}]
  %s9 = inlined_call_operand.hbm [shape: f32[1,96], index: 9, kind: input, shape index: {}]
  %s10 = inlined_call_operand.hbm [shape: bf16[16,4,16], index: 10, kind: input, shape index: {}]
  %s11 = inlined_call_operand.vmem [shape: bf16[48,864], index: 11, kind: input, shape index: {}]
  %s12 = inlined_call_operand.hbm [shape: f32[1,96], index: 12, kind: input, shape index: {}]
  %s13 = inlined_call_operand.vmem [shape: bf16[9,4,4], index: 13, kind: input, shape index: {}]
  %s14 = inlined_call_operand.vmem [shape: bf16[4,16,4], index: 14, kind: input, shape index: {}]
  %s15 = inlined_call_operand.vmem [shape: bf16[24,432], index: 15, kind: input, shape index: {}]
  %s16 = inlined_call_operand.hbm [shape: f32[1,48], index: 16, kind: input, shape index: {}]
  %s17 = inlined_call_operand.vmem [shape: bf16[9,16,16], index: 17, kind: input, shape index: {}]
  %s18 = inlined_call_operand.vmem [shape: bf16[4,64,16], index: 18, kind: input, shape index: {}]
  %s19 = inlined_call_operand.vmem [shape: bf16[12,108], index: 19, kind: input, shape index: {}]
  %s20 = inlined_call_operand.hbm [shape: f32[1,12], index: 20, kind: input, shape index: {}]
  %s21 = inlined_call_operand.vmem [shape: bf16[9,64,64], index: 21, kind: input, shape index: {}]
  %s22 = inlined_call_operand.vmem [shape: f32[2,64,12], index: 22, kind: output, shape index: {0}]
  %s23 = inlined_call_operand.hbm [shape: f32[2,4,48], index: 23, kind: output, shape index: {1}]
  %s24 = inlined_call_operand.hbm [shape: f32[2,4,48], index: 24, kind: output, shape index: {2}]
  %25 = xla_tuple %s22, %s23, %s24
  %s26 = sld [smem:[#allocation0]]
  $region181: #{vae_forward.1} parent=0
    _
  %s28 = ssub.s32 1, %s26
  %s29 = scalar_select 0, %s28, %s26
  $region1: #{vae_forward.1} parent=0
    #allocation2 [shape = 'u8[2048]{0}', space=vmem, size = 0x800, scoped, tag = 'input window, operand 2, single buffered']
    #allocation3 [shape = 's32[2]{0}', space=sflag, size = 0x8, scoped, tag = 'scoped memory for vae_forward.1']
    #allocation4 [shape = 's32[2]{0}', space=sflag, size = 0x8, scoped, tag = 'scoped memory for vae_forward.1']
    #allocation5 [shape = 'u8[524288]{0}', space=vmem, size = 0x80000, scoped, tag = 'input window, operand 4, single buffered']
    #allocation6 [shape = 's32[1]{0}', space=sflag, size = 0x4, scoped, tag = 'scoped memory for vae_forward.1']
    #allocation7 [shape = 'u8[12288]{0}', space=vmem, size = 0x3000, scoped, tag = 'input window, operand 5, single buffered']
    #allocation8 [shape = 'u8[512]{0}', space=vmem, size = 0x400, scoped, tag = 'input window, operand 6, single buffered']
    #allocation9 [shape = 's32[1]{0}', space=sflag, size = 0x4, scoped, tag = 'scoped memory for vae_forward.1']
    #allocation10 [shape = 'u8[65536]{0}', space=vmem, size = 0x10000, scoped, tag = 'input window, operand 7, single buffered']
    #allocation11 [shape = 'u8[73728]{0}', space=vmem, size = 0x12000, scoped, tag = 'input window, operand 8, single buffered']
    #allocation12 [shape = 's32[1]{0}', space=sflag, size = 0x4, scoped, tag = 'scoped memory for vae_forward.1']
    #allocation13 [shape = 'u8[512]{0}', space=vmem, size = 0x400, scoped, tag = 'input window, operand 9, single buffered']
    #allocation14 [shape = 'u8[16384]{0}', space=vmem, size = 0x4000, scoped, tag = 'input window, operand 10, single buffered']
    #allocation15 [shape = 's32[1]{0}', space=sflag, size = 0x4, scoped, tag = 'scoped memory for vae_forward.1']
    #allocation16 [shape = 'u8[512]{0}', space=vmem, size = 0x400, scoped, tag = 'input window, operand 12, single buffered']
    #allocation17 [shape = 'u8[512]{0}', space=vmem, size = 0x400, scoped, tag = 'input window, operand 16, single buffered']
    #allocation18 [shape = 's32[1]{0}', space=sflag, size = 0x4, scoped, tag = 'scoped memory for vae_forward.1']
    #allocation19 [shape = 'u8[512]{0}', space=vmem, size = 0x400, scoped, tag = 'input window, operand 20, single buffered']
    #allocation20 [shape = 'u8[4096]{0}', space=vmem, size = 0x1000, scoped, tag = 'output window, operand 1']
    #allocation21 [shape = 'u8[4096]{0}', space=vmem, size = 0x1000, scoped, tag = 'output window, operand 2']
    #allocation22 [shape = 's32[2]{0}', space=sflag, size = 0x8, scoped, tag = 'scoped memory for vae_forward.1']
    %30 = vsyncpa [#allocation3], 0
    %31 = vsyncpa [#allocation6], 0
    %32 = vsyncpa [#allocation9], 0
    %33 = vsyncpa [#allocation12], 0
    %34 = vsyncpa [#allocation15], 0
    %35 = vsyncpa [#allocation18], 0
    %36 = vsyncpa [#allocation4], 0
    %s37 = scalar_lea.sflag [#allocation4], 1
    %38 = vsyncpa %s37, 0
    %39 = vsyncpa [#allocation22], 0
    %s40 = scalar_lea.sflag [#allocation22], 1
    %41 = vsyncpa %s40, 0
    loop: start=0, step=1, limit=4
    $region2: #{vae_forward.1} parent=1 // loop_pre_header
      _
    $region3: #{vae_forward.1} parent=1 // loop_header
      %s43 = sphi 0, %s47
      %p44 = scmp.ge.s32.totalorder %s43, 4
      %s53 = sphi 0, %s55
      %s56 = sphi 0, %s53
      %s57 = sphi 0, %s56
      %s73 = sphi 0, %s57
      %s79 = sphi 0, %s81
      %s82 = sphi 0, %s79
      %s83 = sphi 0, %s82
      %s99 = sphi 0, %s83
      %s103 = sphi 0, %s103
      %s105 = sphi 0, %s103
      %s106 = sphi 0, %s105
      %s120 = sphi 0, %s106
      %s124 = sphi 0, %s124
      %s126 = sphi 0, %s124
      %s127 = sphi 0, %s126
      %s141 = sphi 0, %s127
      %s145 = sphi 0, %s145
      %s147 = sphi 0, %s145
      %s148 = sphi 0, %s147
      %s162 = sphi 0, %s148
      %s166 = sphi 0, %s166
      %s168 = sphi 0, %s166
      %s169 = sphi 0, %s168
      %s183 = sphi 0, %s169
      %s187 = sphi 0, %s187
      %s189 = sphi 0, %s187
      %s190 = sphi 0, %s189
      %s204 = sphi 0, %s190
      %s208 = sphi 0, %s208
      %s210 = sphi 0, %s208
      %s211 = sphi 0, %s210
      %s225 = sphi 0, %s211
      %s229 = sphi 0, %s229
      %s231 = sphi 0, %s229
      %s232 = sphi 0, %s231
      %s246 = sphi 0, %s232
      %s250 = sphi 0, %s250
      %s252 = sphi 0, %s250
      %s253 = sphi 0, %s252
      %s267 = sphi 0, %s253
      %s271 = sphi 0, %s271
      %s273 = sphi 0, %s271
      %s274 = sphi 0, %s273
      %s288 = sphi 0, %s274
      %s292 = sphi 0, %s292
      %s294 = sphi 0, %s292
      %s295 = sphi 0, %s294
      %s309 = sphi 0, %s295
      %s313 = sphi 0, %s313
      %s315 = sphi 0, %s313
      %s316 = sphi 0, %s315
      %s330 = sphi 0, %s316
      %s334 = sphi 0, %s334
      %s336 = sphi 0, %s334
      %s337 = sphi 0, %s336
      %s351 = sphi 0, %s337
      %s355 = sphi 0, %s355
      %s357 = sphi 0, %s355
      %s358 = sphi 0, %s357
      %s372 = sphi 0, %s358
      %s376 = sphi 0, %s376
      %s378 = sphi 0, %s376
      %s379 = sphi 0, %s378
      %s393 = sphi 0, %s379
      %s397 = sphi 0, %s397
      %s399 = sphi 0, %s397
      %s400 = sphi 0, %s399
      %s414 = sphi 0, %s400
      %s418 = sphi 0, %s418
      %s420 = sphi 0, %s418
      %s421 = sphi 0, %s420
      %s435 = sphi 0, %s421
      %s439 = sphi 0, %s439
      %s441 = sphi 0, %s439
      %s442 = sphi 0, %s441
      %s456 = sphi 0, %s442
      %s460 = sphi 0, %s460
      %s462 = sphi 0, %s460
      %s463 = sphi 0, %s462
      %s477 = sphi 0, %s463
      %s481 = sphi 0, %s481
      %s483 = sphi 0, %s481
      %s484 = sphi 0, %s483
      %s498 = sphi 0, %s484
      %s502 = sphi 0, %s502
      %s504 = sphi 0, %s502
      %s505 = sphi 0, %s504
      %s519 = sphi 0, %s505
      %s525 = sphi 0, %s527
      %s528 = sphi 0, %s525
      %s529 = sphi 0, %s528
      %s545 = sphi 0, %s529
      %s551 = sphi 0, %s553
      %s554 = sphi 0, %s551
      %s555 = sphi 0, %s554
      %s571 = sphi 0, %s555
      %s577 = sphi 0, %s579
      %s580 = sphi 0, %s577
      %s581 = sphi 0, %s580
      %s597 = sphi 0, %s581
    $region4: #{vae_forward.1} parent=1 // loop_header_branch
      %46 = sbr.rel (%p44) target = $region8
    $region5: #{vae_forward.1} parent=1 // loop_body
      %s48 = ssub.s32 %s43, 1
      %s49 = ssub.s32 %s43, 2
      %s50 = sadd.s32 %s43, 1
      %s51 = ssub.s32 %s43, %s50
      %p52 = scmp.eq.s32.totalorder %s51, 0
      %s54 = sadd.s32 %s53, 1
      %s55 = scalar_select %p52, %s53, %s54
      %p58 = pneg %p52
      %p59 = scmp.eq.s32.totalorder %s43, 1
      %p60 = por %p58, %p59
      %p61 = scmp.ne.s32.totalorder %s53, %s56
      %p62 = scmp.eq.s32.totalorder %s43, 0
      %p63 = por %p61, %p62
      %p64 = scmp.ne.s32.totalorder %s53, %s56
      %p65 = scmp.eq.s32.totalorder %s48, 1
      %p66 = por %p64, %p65
      %p67 = scmp.ne.s32.totalorder %s56, %s57
      %p68 = scmp.eq.s32.totalorder %s48, 0
      %p69 = por %p67, %p68
      %p70 = scmp.ne.s32.totalorder %s56, %s57
      %p71 = scmp.eq.s32.totalorder %s49, 1
      %p72 = por %p70, %p71
      %p74 = scmp.ne.s32.totalorder %s57, %s73
      %p75 = scmp.eq.s32.totalorder %s49, 0
      %p76 = por %p74, %p75
      %s77 = ssub.s32 %s43, %s50
      %p78 = scmp.eq.s32.totalorder %s77, 0
      %s80 = sadd.s32 %s79, 1
      %s81 = scalar_select %p78, %s79, %s80
      %p84 = pneg %p78
      %p85 = scmp.eq.s32.totalorder %s43, 1
      %p86 = por %p84, %p85
      %p87 = scmp.ne.s32.totalorder %s79, %s82
      %p88 = scmp.eq.s32.totalorder %s43, 0
      %p89 = por %p87, %p88
      %p90 = scmp.ne.s32.totalorder %s79, %s82
      %p91 = scmp.eq.s32.totalorder %s48, 1
      %p92 = por %p90, %p91
      %p93 = scmp.ne.s32.totalorder %s82, %s83
      %p94 = scmp.eq.s32.totalorder %s48, 0
      %p95 = por %p93, %p94
      %p96 = scmp.ne.s32.totalorder %s82, %s83
      %p97 = scmp.eq.s32.totalorder %s49, 1
      %p98 = por %p96, %p97
      %p100 = scmp.ne.s32.totalorder %s83, %s99
      %p101 = scmp.eq.s32.totalorder %s49, 0
      %p102 = por %p100, %p101
      %s104 = sadd.s32 %s103, 1
      %p107 = scmp.eq.s32.totalorder %s43, 1
      %p108 = scmp.ne.s32.totalorder %s103, %s105
      %p109 = scmp.eq.s32.totalorder %s43, 0
      %p110 = por %p108, %p109
      %p111 = scmp.ne.s32.totalorder %s103, %s105
      %p112 = scmp.eq.s32.totalorder %s48, 1
      %p113 = por %p111, %p112
      %p114 = scmp.ne.s32.totalorder %s105, %s106
      %p115 = scmp.eq.s32.totalorder %s48, 0
      %p116 = por %p114, %p115
      %p117 = scmp.ne.s32.totalorder %s105, %s106
      %p118 = scmp.eq.s32.totalorder %s49, 1
      %p119 = por %p117, %p118
      %p121 = scmp.ne.s32.totalorder %s106, %s120
      %p122 = scmp.eq.s32.totalorder %s49, 0
      %p123 = por %p121, %p122
      %s125 = sadd.s32 %s124, 1
      %p128 = scmp.eq.s32.totalorder %s43, 1
      %p129 = scmp.ne.s32.totalorder %s124, %s126
      %p130 = scmp.eq.s32.totalorder %s43, 0
      %p131 = por %p129, %p130
      %p132 = scmp.ne.s32.totalorder %s124, %s126
      %p133 = scmp.eq.s32.totalorder %s48, 1
      %p134 = por %p132, %p133
      %p135 = scmp.ne.s32.totalorder %s126, %s127
      %p136 = scmp.eq.s32.totalorder %s48, 0
      %p137 = por %p135, %p136
      %p138 = scmp.ne.s32.totalorder %s126, %s127
      %p139 = scmp.eq.s32.totalorder %s49, 1
      %p140 = por %p138, %p139
      %p142 = scmp.ne.s32.totalorder %s127, %s141
      %p143 = scmp.eq.s32.totalorder %s49, 0
      %p144 = por %p142, %p143
      %s146 = sadd.s32 %s145, 1
      %p149 = scmp.eq.s32.totalorder %s43, 1
      %p150 = scmp.ne.s32.totalorder %s145, %s147
      %p151 = scmp.eq.s32.totalorder %s43, 0
      %p152 = por %p150, %p151
      %p153 = scmp.ne.s32.totalorder %s145, %s147
      %p154 = scmp.eq.s32.totalorder %s48, 1
      %p155 = por %p153, %p154
      %p156 = scmp.ne.s32.totalorder %s147, %s148
      %p157 = scmp.eq.s32.totalorder %s48, 0
      %p158 = por %p156, %p157
      %p159 = scmp.ne.s32.totalorder %s147, %s148
      %p160 = scmp.eq.s32.totalorder %s49, 1
      %p161 = por %p159, %p160
      %p163 = scmp.ne.s32.totalorder %s148, %s162
      %p164 = scmp.eq.s32.totalorder %s49, 0
      %p165 = por %p163, %p164
      %s167 = sadd.s32 %s166, 1
      %p170 = scmp.eq.s32.totalorder %s43, 1
      %p171 = scmp.ne.s32.totalorder %s166, %s168
      %p172 = scmp.eq.s32.totalorder %s43, 0
      %p173 = por %p171, %p172
      %p174 = scmp.ne.s32.totalorder %s166, %s168
      %p175 = scmp.eq.s32.totalorder %s48, 1
      %p176 = por %p174, %p175
      %p177 = scmp.ne.s32.totalorder %s168, %s169
      %p178 = scmp.eq.s32.totalorder %s48, 0
      %p179 = por %p177, %p178
      %p180 = scmp.ne.s32.totalorder %s168, %s169
      %p181 = scmp.eq.s32.totalorder %s49, 1
      %p182 = por %p180, %p181
      %p184 = scmp.ne.s32.totalorder %s169, %s183
      %p185 = scmp.eq.s32.totalorder %s49, 0
      %p186 = por %p184, %p185
      %s188 = sadd.s32 %s187, 1
      %p191 = scmp.eq.s32.totalorder %s43, 1
      %p192 = scmp.ne.s32.totalorder %s187, %s189
      %p193 = scmp.eq.s32.totalorder %s43, 0
      %p194 = por %p192, %p193
      %p195 = scmp.ne.s32.totalorder %s187, %s189
      %p196 = scmp.eq.s32.totalorder %s48, 1
      %p197 = por %p195, %p196
      %p198 = scmp.ne.s32.totalorder %s189, %s190
      %p199 = scmp.eq.s32.totalorder %s48, 0
      %p200 = por %p198, %p199
      %p201 = scmp.ne.s32.totalorder %s189, %s190
      %p202 = scmp.eq.s32.totalorder %s49, 1
      %p203 = por %p201, %p202
      %p205 = scmp.ne.s32.totalorder %s190, %s204
      %p206 = scmp.eq.s32.totalorder %s49, 0
      %p207 = por %p205, %p206
      %s209 = sadd.s32 %s208, 1
      %p212 = scmp.eq.s32.totalorder %s43, 1
      %p213 = scmp.ne.s32.totalorder %s208, %s210
      %p214 = scmp.eq.s32.totalorder %s43, 0
      %p215 = por %p213, %p214
      %p216 = scmp.ne.s32.totalorder %s208, %s210
      %p217 = scmp.eq.s32.totalorder %s48, 1
      %p218 = por %p216, %p217
      %p219 = scmp.ne.s32.totalorder %s210, %s211
      %p220 = scmp.eq.s32.totalorder %s48, 0
      %p221 = por %p219, %p220
      %p222 = scmp.ne.s32.totalorder %s210, %s211
      %p223 = scmp.eq.s32.totalorder %s49, 1
      %p224 = por %p222, %p223
      %p226 = scmp.ne.s32.totalorder %s211, %s225
      %p227 = scmp.eq.s32.totalorder %s49, 0
      %p228 = por %p226, %p227
      %s230 = sadd.s32 %s229, 1
      %p233 = scmp.eq.s32.totalorder %s43, 1
      %p234 = scmp.ne.s32.totalorder %s229, %s231
      %p235 = scmp.eq.s32.totalorder %s43, 0
      %p236 = por %p234, %p235
      %p237 = scmp.ne.s32.totalorder %s229, %s231
      %p238 = scmp.eq.s32.totalorder %s48, 1
      %p239 = por %p237, %p238
      %p240 = scmp.ne.s32.totalorder %s231, %s232
      %p241 = scmp.eq.s32.totalorder %s48, 0
      %p242 = por %p240, %p241
      %p243 = scmp.ne.s32.totalorder %s231, %s232
      %p244 = scmp.eq.s32.totalorder %s49, 1
      %p245 = por %p243, %p244
      %p247 = scmp.ne.s32.totalorder %s232, %s246
      %p248 = scmp.eq.s32.totalorder %s49, 0
      %p249 = por %p247, %p248
      %s251 = sadd.s32 %s250, 1
      %p254 = scmp.eq.s32.totalorder %s43, 1
      %p255 = scmp.ne.s32.totalorder %s250, %s252
      %p256 = scmp.eq.s32.totalorder %s43, 0
      %p257 = por %p255, %p256
      %p258 = scmp.ne.s32.totalorder %s250, %s252
      %p259 = scmp.eq.s32.totalorder %s48, 1
      %p260 = por %p258, %p259
      %p261 = scmp.ne.s32.totalorder %s252, %s253
      %p262 = scmp.eq.s32.totalorder %s48, 0
      %p263 = por %p261, %p262
      %p264 = scmp.ne.s32.totalorder %s252, %s253
      %p265 = scmp.eq.s32.totalorder %s49, 1
      %p266 = por %p264, %p265
      %p268 = scmp.ne.s32.totalorder %s253, %s267
      %p269 = scmp.eq.s32.totalorder %s49, 0
      %p270 = por %p268, %p269
      %s272 = sadd.s32 %s271, 1
      %p275 = scmp.eq.s32.totalorder %s43, 1
      %p276 = scmp.ne.s32.totalorder %s271, %s273
      %p277 = scmp.eq.s32.totalorder %s43, 0
      %p278 = por %p276, %p277
      %p279 = scmp.ne.s32.totalorder %s271, %s273
      %p280 = scmp.eq.s32.totalorder %s48, 1
      %p281 = por %p279, %p280
      %p282 = scmp.ne.s32.totalorder %s273, %s274
      %p283 = scmp.eq.s32.totalorder %s48, 0
      %p284 = por %p282, %p283
      %p285 = scmp.ne.s32.totalorder %s273, %s274
      %p286 = scmp.eq.s32.totalorder %s49, 1
      %p287 = por %p285, %p286
      %p289 = scmp.ne.s32.totalorder %s274, %s288
      %p290 = scmp.eq.s32.totalorder %s49, 0
      %p291 = por %p289, %p290
      %s293 = sadd.s32 %s292, 1
      %p296 = scmp.eq.s32.totalorder %s43, 1
      %p297 = scmp.ne.s32.totalorder %s292, %s294
      %p298 = scmp.eq.s32.totalorder %s43, 0
      %p299 = por %p297, %p298
      %p300 = scmp.ne.s32.totalorder %s292, %s294
      %p301 = scmp.eq.s32.totalorder %s48, 1
      %p302 = por %p300, %p301
      %p303 = scmp.ne.s32.totalorder %s294, %s295
      %p304 = scmp.eq.s32.totalorder %s48, 0
      %p305 = por %p303, %p304
      %p306 = scmp.ne.s32.totalorder %s294, %s295
      %p307 = scmp.eq.s32.totalorder %s49, 1
      %p308 = por %p306, %p307
      %p310 = scmp.ne.s32.totalorder %s295, %s309
      %p311 = scmp.eq.s32.totalorder %s49, 0
      %p312 = por %p310, %p311
      %s314 = sadd.s32 %s313, 1
      %p317 = scmp.eq.s32.totalorder %s43, 1
      %p318 = scmp.ne.s32.totalorder %s313, %s315
      %p319 = scmp.eq.s32.totalorder %s43, 0
      %p320 = por %p318, %p319
      %p321 = scmp.ne.s32.totalorder %s313, %s315
      %p322 = scmp.eq.s32.totalorder %s48, 1
      %p323 = por %p321, %p322
      %p324 = scmp.ne.s32.totalorder %s315, %s316
      %p325 = scmp.eq.s32.totalorder %s48, 0
      %p326 = por %p324, %p325
      %p327 = scmp.ne.s32.totalorder %s315, %s316
      %p328 = scmp.eq.s32.totalorder %s49, 1
      %p329 = por %p327, %p328
      %p331 = scmp.ne.s32.totalorder %s316, %s330
      %p332 = scmp.eq.s32.totalorder %s49, 0
      %p333 = por %p331, %p332
      %s335 = sadd.s32 %s334, 1
      %p338 = scmp.eq.s32.totalorder %s43, 1
      %p339 = scmp.ne.s32.totalorder %s334, %s336
      %p340 = scmp.eq.s32.totalorder %s43, 0
      %p341 = por %p339, %p340
      %p342 = scmp.ne.s32.totalorder %s334, %s336
      %p343 = scmp.eq.s32.totalorder %s48, 1
      %p344 = por %p342, %p343
      %p345 = scmp.ne.s32.totalorder %s336, %s337
      %p346 = scmp.eq.s32.totalorder %s48, 0
      %p347 = por %p345, %p346
      %p348 = scmp.ne.s32.totalorder %s336, %s337
      %p349 = scmp.eq.s32.totalorder %s49, 1
      %p350 = por %p348, %p349
      %p352 = scmp.ne.s32.totalorder %s337, %s351
      %p353 = scmp.eq.s32.totalorder %s49, 0
      %p354 = por %p352, %p353
      %s356 = sadd.s32 %s355, 1
      %p359 = scmp.eq.s32.totalorder %s43, 1
      %p360 = scmp.ne.s32.totalorder %s355, %s357
      %p361 = scmp.eq.s32.totalorder %s43, 0
      %p362 = por %p360, %p361
      %p363 = scmp.ne.s32.totalorder %s355, %s357
      %p364 = scmp.eq.s32.totalorder %s48, 1
      %p365 = por %p363, %p364
      %p366 = scmp.ne.s32.totalorder %s357, %s358
      %p367 = scmp.eq.s32.totalorder %s48, 0
      %p368 = por %p366, %p367
      %p369 = scmp.ne.s32.totalorder %s357, %s358
      %p370 = scmp.eq.s32.totalorder %s49, 1
      %p371 = por %p369, %p370
      %p373 = scmp.ne.s32.totalorder %s358, %s372
      %p374 = scmp.eq.s32.totalorder %s49, 0
      %p375 = por %p373, %p374
      %s377 = sadd.s32 %s376, 1
      %p380 = scmp.eq.s32.totalorder %s43, 1
      %p381 = scmp.ne.s32.totalorder %s376, %s378
      %p382 = scmp.eq.s32.totalorder %s43, 0
      %p383 = por %p381, %p382
      %p384 = scmp.ne.s32.totalorder %s376, %s378
      %p385 = scmp.eq.s32.totalorder %s48, 1
      %p386 = por %p384, %p385
      %p387 = scmp.ne.s32.totalorder %s378, %s379
      %p388 = scmp.eq.s32.totalorder %s48, 0
      %p389 = por %p387, %p388
      %p390 = scmp.ne.s32.totalorder %s378, %s379
      %p391 = scmp.eq.s32.totalorder %s49, 1
      %p392 = por %p390, %p391
      %p394 = scmp.ne.s32.totalorder %s379, %s393
      %p395 = scmp.eq.s32.totalorder %s49, 0
      %p396 = por %p394, %p395
      %s398 = sadd.s32 %s397, 1
      %p401 = scmp.eq.s32.totalorder %s43, 1
      %p402 = scmp.ne.s32.totalorder %s397, %s399
      %p403 = scmp.eq.s32.totalorder %s43, 0
      %p404 = por %p402, %p403
      %p405 = scmp.ne.s32.totalorder %s397, %s399
      %p406 = scmp.eq.s32.totalorder %s48, 1
      %p407 = por %p405, %p406
      %p408 = scmp.ne.s32.totalorder %s399, %s400
      %p409 = scmp.eq.s32.totalorder %s48, 0
      %p410 = por %p408, %p409
      %p411 = scmp.ne.s32.totalorder %s399, %s400
      %p412 = scmp.eq.s32.totalorder %s49, 1
      %p413 = por %p411, %p412
      %p415 = scmp.ne.s32.totalorder %s400, %s414
      %p416 = scmp.eq.s32.totalorder %s49, 0
      %p417 = por %p415, %p416
      %s419 = sadd.s32 %s418, 1
      %p422 = scmp.eq.s32.totalorder %s43, 1
      %p423 = scmp.ne.s32.totalorder %s418, %s420
      %p424 = scmp.eq.s32.totalorder %s43, 0
      %p425 = por %p423, %p424
      %p426 = scmp.ne.s32.totalorder %s418, %s420
      %p427 = scmp.eq.s32.totalorder %s48, 1
      %p428 = por %p426, %p427
      %p429 = scmp.ne.s32.totalorder %s420, %s421
      %p430 = scmp.eq.s32.totalorder %s48, 0
      %p431 = por %p429, %p430
      %p432 = scmp.ne.s32.totalorder %s420, %s421
      %p433 = scmp.eq.s32.totalorder %s49, 1
      %p434 = por %p432, %p433
      %p436 = scmp.ne.s32.totalorder %s421, %s435
      %p437 = scmp.eq.s32.totalorder %s49, 0
      %p438 = por %p436, %p437
      %s440 = sadd.s32 %s439, 1
      %p443 = scmp.eq.s32.totalorder %s43, 1
      %p444 = scmp.ne.s32.totalorder %s439, %s441
      %p445 = scmp.eq.s32.totalorder %s43, 0
      %p446 = por %p444, %p445
      %p447 = scmp.ne.s32.totalorder %s439, %s441
      %p448 = scmp.eq.s32.totalorder %s48, 1
      %p449 = por %p447, %p448
      %p450 = scmp.ne.s32.totalorder %s441, %s442
      %p451 = scmp.eq.s32.totalorder %s48, 0
      %p452 = por %p450, %p451
      %p453 = scmp.ne.s32.totalorder %s441, %s442
      %p454 = scmp.eq.s32.totalorder %s49, 1
      %p455 = por %p453, %p454
      %p457 = scmp.ne.s32.totalorder %s442, %s456
      %p458 = scmp.eq.s32.totalorder %s49, 0
      %p459 = por %p457, %p458
      %s461 = sadd.s32 %s460, 1
      %p464 = scmp.eq.s32.totalorder %s43, 1
      %p465 = scmp.ne.s32.totalorder %s460, %s462
      %p466 = scmp.eq.s32.totalorder %s43, 0
      %p467 = por %p465, %p466
      %p468 = scmp.ne.s32.totalorder %s460, %s462
      %p469 = scmp.eq.s32.totalorder %s48, 1
      %p470 = por %p468, %p469
      %p471 = scmp.ne.s32.totalorder %s462, %s463
      %p472 = scmp.eq.s32.totalorder %s48, 0
      %p473 = por %p471, %p472
      %p474 = scmp.ne.s32.totalorder %s462, %s463
      %p475 = scmp.eq.s32.totalorder %s49, 1
      %p476 = por %p474, %p475
      %p478 = scmp.ne.s32.totalorder %s463, %s477
      %p479 = scmp.eq.s32.totalorder %s49, 0
      %p480 = por %p478, %p479
      %s482 = sadd.s32 %s481, 1
      %p485 = scmp.eq.s32.totalorder %s43, 1
      %p486 = scmp.ne.s32.totalorder %s481, %s483
      %p487 = scmp.eq.s32.totalorder %s43, 0
      %p488 = por %p486, %p487
      %p489 = scmp.ne.s32.totalorder %s481, %s483
      %p490 = scmp.eq.s32.totalorder %s48, 1
      %p491 = por %p489, %p490
      %p492 = scmp.ne.s32.totalorder %s483, %s484
      %p493 = scmp.eq.s32.totalorder %s48, 0
      %p494 = por %p492, %p493
      %p495 = scmp.ne.s32.totalorder %s483, %s484
      %p496 = scmp.eq.s32.totalorder %s49, 1
      %p497 = por %p495, %p496
      %p499 = scmp.ne.s32.totalorder %s484, %s498
      %p500 = scmp.eq.s32.totalorder %s49, 0
      %p501 = por %p499, %p500
      %s503 = sadd.s32 %s502, 1
      %p506 = scmp.eq.s32.totalorder %s43, 1
      %p507 = scmp.ne.s32.totalorder %s502, %s504
      %p508 = scmp.eq.s32.totalorder %s43, 0
      %p509 = por %p507, %p508
      %p510 = scmp.ne.s32.totalorder %s502, %s504
      %p511 = scmp.eq.s32.totalorder %s48, 1
      %p512 = por %p510, %p511
      %p513 = scmp.ne.s32.totalorder %s504, %s505
      %p514 = scmp.eq.s32.totalorder %s48, 0
      %p515 = por %p513, %p514
      %p516 = scmp.ne.s32.totalorder %s504, %s505
      %p517 = scmp.eq.s32.totalorder %s49, 1
      %p518 = por %p516, %p517
      %p520 = scmp.ne.s32.totalorder %s505, %s519
      %p521 = scmp.eq.s32.totalorder %s49, 0
      %p522 = por %p520, %p521
      %s523 = ssub.s32 %s43, %s50
      %p524 = scmp.eq.s32.totalorder %s523, 0
      %s526 = sadd.s32 %s525, 1
      %s527 = scalar_select %p524, %s525, %s526
      %p530 = pneg %p524
      %p531 = scmp.eq.s32.totalorder %s43, 1
      %p532 = por %p530, %p531
      %p533 = scmp.ne.s32.totalorder %s525, %s528
      %p534 = scmp.eq.s32.totalorder %s43, 0
      %p535 = por %p533, %p534
      %p536 = scmp.ne.s32.totalorder %s525, %s528
      %p537 = scmp.eq.s32.totalorder %s48, 1
      %p538 = por %p536, %p537
      %p539 = scmp.ne.s32.totalorder %s528, %s529
      %p540 = scmp.eq.s32.totalorder %s48, 0
      %p541 = por %p539, %p540
      %p542 = scmp.ne.s32.totalorder %s528, %s529
      %p543 = scmp.eq.s32.totalorder %s49, 1
      %p544 = por %p542, %p543
      %p546 = scmp.ne.s32.totalorder %s529, %s545
      %p547 = scmp.eq.s32.totalorder %s49, 0
      %p548 = por %p546, %p547
      %s549 = ssub.s32 %s43, %s50
      %p550 = scmp.eq.s32.totalorder %s549, 0
      %s552 = sadd.s32 %s551, 1
      %s553 = scalar_select %p550, %s551, %s552
      %p556 = pneg %p550
      %p557 = scmp.eq.s32.totalorder %s43, 1
      %p558 = por %p556, %p557
      %p559 = scmp.ne.s32.totalorder %s551, %s554
      %p560 = scmp.eq.s32.totalorder %s43, 0
      %p561 = por %p559, %p560
      %p562 = scmp.ne.s32.totalorder %s551, %s554
      %p563 = scmp.eq.s32.totalorder %s48, 1
      %p564 = por %p562, %p563
      %p565 = scmp.ne.s32.totalorder %s554, %s555
      %p566 = scmp.eq.s32.totalorder %s48, 0
      %p567 = por %p565, %p566
      %p568 = scmp.ne.s32.totalorder %s554, %s555
      %p569 = scmp.eq.s32.totalorder %s49, 1
      %p570 = por %p568, %p569
      %p572 = scmp.ne.s32.totalorder %s555, %s571
      %p573 = scmp.eq.s32.totalorder %s49, 0
      %p574 = por %p572, %p573
      %s575 = ssub.s32 %s43, %s50
      %p576 = scmp.eq.s32.totalorder %s575, 0
      %s578 = sadd.s32 %s577, 1
      %s579 = scalar_select %p576, %s577, %s578
      %p582 = pneg %p576
      %p583 = scmp.eq.s32.totalorder %s43, 1
      %p584 = por %p582, %p583
      %p585 = scmp.ne.s32.totalorder %s577, %s580
      %p586 = scmp.eq.s32.totalorder %s43, 0
      %p587 = por %p585, %p586
      %p588 = scmp.ne.s32.totalorder %s577, %s580
      %p589 = scmp.eq.s32.totalorder %s48, 1
      %p590 = por %p588, %p589
      %p591 = scmp.ne.s32.totalorder %s580, %s581
      %p592 = scmp.eq.s32.totalorder %s48, 0
      %p593 = por %p591, %p592
      %p594 = scmp.ne.s32.totalorder %s580, %s581
      %p595 = scmp.eq.s32.totalorder %s49, 1
      %p596 = por %p594, %p595
      %p598 = scmp.ne.s32.totalorder %s581, %s597
      %p599 = scmp.eq.s32.totalorder %s49, 0
      %p600 = por %p598, %p599
      %p601 = scmp.le.s32.totalorder 1, %s43
      %p602 = scmp.lt.s32.totalorder %s43, 3
      %p603 = pnand %p601, %p602
      %p604 = pneg %p603
      // Predicated region
      $region9: #{vae_forward.1} parent=5 // pred_check
        _
      $region10: #{vae_forward.1} parent=5 // pred_check_branch
        %606 = sbr.rel (%p603) target = $region12
      $region11: #{vae_forward.1} parent=5 // pred_region
        %s607 = ssub.s32 %s43, 1
        // Predicated region
        $region13: #{vae_forward.1} parent=11 // pred_check
          %p608 = pneg %p116
        $region14: #{vae_forward.1} parent=11 // pred_check_branch
          %610 = sbr.rel (%p608) target = $region16
        $region15: #{vae_forward.1} parent=11 // pred_region
          %612 = vsyncadd [#allocation3], 0
          %s614 = sshll.u32 %s2, 4
          %s615 = int_to_ptr.hbm [resolvable:$true] %s614
          %s616 = sshll.u32 [#allocation2], 4
          %s617 = int_to_ptr.vmem [resolvable:$true] %s616
          %619 = dma.hbm_to_vmem [thread:$0]  %s615, 64, %s617, [#allocation3]
        $region16: #{vae_forward.1} parent=11 // pred_fallthru
          _
        // Predicated region
        $region17: #{vae_forward.1} parent=11 // pred_check
          %p620 = pneg %p137
        $region18: #{vae_forward.1} parent=11 // pred_check_branch
          %622 = sbr.rel (%p620) target = $region20
        $region19: #{vae_forward.1} parent=11 // pred_region
          _
        $region20: #{vae_forward.1} parent=11 // pred_fallthru
          _
        // Predicated region
        $region21: #{vae_forward.1} parent=11 // pred_check
          %p623 = pneg %p158
        $region22: #{vae_forward.1} parent=11 // pred_check_branch
          %625 = sbr.rel (%p623) target = $region24
        $region23: #{vae_forward.1} parent=11 // pred_region
          %627 = vsyncadd [#allocation6], 0
          %s628 = sshll.u32 %s4, 4
          %s629 = int_to_ptr.hbm [resolvable:$true] %s628
          %s630 = sshll.u32 [#allocation5], 4
          %s631 = int_to_ptr.vmem [resolvable:$true] %s630
          %636 = dma.hbm_to_vmem [thread:$0]  %s629, 16384, %s631, [#allocation6], 128, 128, 8
        $region24: #{vae_forward.1} parent=11 // pred_fallthru
          _
        // Predicated region
        $region25: #{vae_forward.1} parent=11 // pred_check
          %p637 = pneg %p179
        $region26: #{vae_forward.1} parent=11 // pred_check_branch
          %639 = sbr.rel (%p637) target = $region28
        $region27: #{vae_forward.1} parent=11 // pred_region
          %641 = vsyncadd [#allocation6], 0
          %s642 = sshll.u32 %s5, 4
          %s643 = int_to_ptr.hbm [resolvable:$true] %s642
          %s644 = sshll.u32 [#allocation7], 4
          %s645 = int_to_ptr.vmem [resolvable:$true] %s644
          %650 = dma.hbm_to_vmem [thread:$0]  %s643, 384, %s645, [#allocation6], 192, 192, 12
        $region28: #{vae_forward.1} parent=11 // pred_fallthru
          _
        // Predicated region
        $region29: #{vae_forward.1} parent=11 // pred_check
          %p651 = pneg %p200
        $region30: #{vae_forward.1} parent=11 // pred_check_branch
          %653 = sbr.rel (%p651) target = $region32
        $region31: #{vae_forward.1} parent=11 // pred_region
          %655 = vsyncadd [#allocation9], 0
          %s657 = sshll.u32 %s6, 4
          %s658 = int_to_ptr.hbm [resolvable:$true] %s657
          %s659 = sshll.u32 [#allocation8], 4
          %s660 = int_to_ptr.vmem [resolvable:$true] %s659
          %662 = dma.hbm_to_vmem [thread:$0]  %s658, 16, %s660, [#allocation9]
        $region32: #{vae_forward.1} parent=11 // pred_fallthru
          _
        // Predicated region
        $region33: #{vae_forward.1} parent=11 // pred_check
          %p663 = pneg %p221
        $region34: #{vae_forward.1} parent=11 // pred_check_branch
          %665 = sbr.rel (%p663) target = $region36
        $region35: #{vae_forward.1} parent=11 // pred_region
          %667 = vsyncadd [#allocation9], 0
          %s668 = sshll.u32 %s7, 4
          %s669 = int_to_ptr.hbm [resolvable:$true] %s668
          %s670 = sshll.u32 [#allocation10], 4
          %s671 = int_to_ptr.vmem [resolvable:$true] %s670
          %676 = dma.hbm_to_vmem [thread:$0]  %s669, 2048, %s671, [#allocation9], 64, 64, 4
        $region36: #{vae_forward.1} parent=11 // pred_fallthru
          _
        // Predicated region
        $region37: #{vae_forward.1} parent=11 // pred_check
          %p677 = pneg %p242
        $region38: #{vae_forward.1} parent=11 // pred_check_branch
          %679 = sbr.rel (%p677) target = $region40
        $region39: #{vae_forward.1} parent=11 // pred_region
          %681 = vsyncadd [#allocation12], 0
          %s682 = sshll.u32 %s8, 4
          %s683 = int_to_ptr.hbm [resolvable:$true] %s682
          %s684 = sshll.u32 [#allocation11], 4
          %s685 = int_to_ptr.vmem [resolvable:$true] %s684
          %690 = dma.hbm_to_vmem [thread:$0]  %s683, 2304, %s685, [#allocation12], 768, 768, 48
        $region40: #{vae_forward.1} parent=11 // pred_fallthru
          _
        // Predicated region
        $region41: #{vae_forward.1} parent=11 // pred_check
          %p691 = pneg %p263
        $region42: #{vae_forward.1} parent=11 // pred_check_branch
          %693 = sbr.rel (%p691) target = $region44
        $region43: #{vae_forward.1} parent=11 // pred_region
          %695 = vsyncadd [#allocation12], 0
          %s697 = sshll.u32 %s9, 4
          %s698 = int_to_ptr.hbm [resolvable:$true] %s697
          %s699 = sshll.u32 [#allocation13], 4
          %s700 = int_to_ptr.vmem [resolvable:$true] %s699
          %702 = dma.hbm_to_vmem [thread:$0]  %s698, 16, %s700, [#allocation12]
        $region44: #{vae_forward.1} parent=11 // pred_fallthru
          _
        // Predicated region
        $region45: #{vae_forward.1} parent=11 // pred_check
          %p703 = pneg %p284
        $region46: #{vae_forward.1} parent=11 // pred_check_branch
          %705 = sbr.rel (%p703) target = $region48
        $region47: #{vae_forward.1} parent=11 // pred_region
          %707 = vsyncadd [#allocation15], 0
          %s708 = sshll.u32 %s10, 4
          %s709 = int_to_ptr.hbm [resolvable:$true] %s708
          %s710 = sshll.u32 [#allocation14], 4
          %s711 = int_to_ptr.vmem [resolvable:$true] %s710
          %716 = dma.hbm_to_vmem [thread:$0]  %s709, 512, %s711, [#allocation15], 32, 32, 2
        $region48: #{vae_forward.1} parent=11 // pred_fallthru
          _
        // Predicated region
        $region49: #{vae_forward.1} parent=11 // pred_check
          %p717 = pneg %p305
        $region50: #{vae_forward.1} parent=11 // pred_check_branch
          %719 = sbr.rel (%p717) target = $region52
        $region51: #{vae_forward.1} parent=11 // pred_region
          _
        $region52: #{vae_forward.1} parent=11 // pred_fallthru
          _
        // Predicated region
        $region53: #{vae_forward.1} parent=11 // pred_check
          %p720 = pneg %p326
        $region54: #{vae_forward.1} parent=11 // pred_check_branch
          %722 = sbr.rel (%p720) target = $region56
        $region55: #{vae_forward.1} parent=11 // pred_region
          %724 = vsyncadd [#allocation15], 0
          %s726 = sshll.u32 %s12, 4
          %s727 = int_to_ptr.hbm [resolvable:$true] %s726
          %s728 = sshll.u32 [#allocation16], 4
          %s729 = int_to_ptr.vmem [resolvable:$true] %s728
          %731 = dma.hbm_to_vmem [thread:$0]  %s727, 16, %s729, [#allocation15]
        $region56: #{vae_forward.1} parent=11 // pred_fallthru
          _
        // Predicated region
        $region57: #{vae_forward.1} parent=11 // pred_check
          %p732 = pneg %p347
        $region58: #{vae_forward.1} parent=11 // pred_check_branch
          %734 = sbr.rel (%p732) target = $region60
        $region59: #{vae_forward.1} parent=11 // pred_region
          _
        $region60: #{vae_forward.1} parent=11 // pred_fallthru
          _
        // Predicated region
        $region61: #{vae_forward.1} parent=11 // pred_check
          %p735 = pneg %p368
        $region62: #{vae_forward.1} parent=11 // pred_check_branch
          %737 = sbr.rel (%p735) target = $region64
        $region63: #{vae_forward.1} parent=11 // pred_region
          _
        $region64: #{vae_forward.1} parent=11 // pred_fallthru
          _
        // Predicated region
        $region65: #{vae_forward.1} parent=11 // pred_check
          %p738 = pneg %p389
        $region66: #{vae_forward.1} parent=11 // pred_check_branch
          %740 = sbr.rel (%p738) target = $region68
        $region67: #{vae_forward.1} parent=11 // pred_region
          _
        $region68: #{vae_forward.1} parent=11 // pred_fallthru
          _
        // Predicated region
        $region69: #{vae_forward.1} parent=11 // pred_check
          %p741 = pneg %p410
        $region70: #{vae_forward.1} parent=11 // pred_check_branch
          %743 = sbr.rel (%p741) target = $region72
        $region71: #{vae_forward.1} parent=11 // pred_region
          %745 = vsyncadd [#allocation18], 0
          %s747 = sshll.u32 %s16, 4
          %s748 = int_to_ptr.hbm [resolvable:$true] %s747
          %s749 = sshll.u32 [#allocation17], 4
          %s750 = int_to_ptr.vmem [resolvable:$true] %s749
          %752 = dma.hbm_to_vmem [thread:$0]  %s748, 16, %s750, [#allocation18]
        $region72: #{vae_forward.1} parent=11 // pred_fallthru
          _
        // Predicated region
        $region73: #{vae_forward.1} parent=11 // pred_check
          %p753 = pneg %p431
        $region74: #{vae_forward.1} parent=11 // pred_check_branch
          %755 = sbr.rel (%p753) target = $region76
        $region75: #{vae_forward.1} parent=11 // pred_region
          _
        $region76: #{vae_forward.1} parent=11 // pred_fallthru
          _
        // Predicated region
        $region77: #{vae_forward.1} parent=11 // pred_check
          %p756 = pneg %p452
        $region78: #{vae_forward.1} parent=11 // pred_check_branch
          %758 = sbr.rel (%p756) target = $region80
        $region79: #{vae_forward.1} parent=11 // pred_region
          _
        $region80: #{vae_forward.1} parent=11 // pred_fallthru
          _
        // Predicated region
        $region81: #{vae_forward.1} parent=11 // pred_check
          %p759 = pneg %p473
        $region82: #{vae_forward.1} parent=11 // pred_check_branch
          %761 = sbr.rel (%p759) target = $region84
        $region83: #{vae_forward.1} parent=11 // pred_region
          _
        $region84: #{vae_forward.1} parent=11 // pred_fallthru
          _
        // Predicated region
        $region85: #{vae_forward.1} parent=11 // pred_check
          %p762 = pneg %p494
        $region86: #{vae_forward.1} parent=11 // pred_check_branch
          %764 = sbr.rel (%p762) target = $region88
        $region87: #{vae_forward.1} parent=11 // pred_region
          %766 = vsyncadd [#allocation18], 0
          %s768 = sshll.u32 %s20, 4
          %s769 = int_to_ptr.hbm [resolvable:$true] %s768
          %s770 = sshll.u32 [#allocation19], 4
          %s771 = int_to_ptr.vmem [resolvable:$true] %s770
          %773 = dma.hbm_to_vmem [thread:$0]  %s769, 16, %s771, [#allocation18]
        $region88: #{vae_forward.1} parent=11 // pred_fallthru
          _
        // Predicated region
        $region89: #{vae_forward.1} parent=11 // pred_check
          %p774 = pneg %p515
        $region90: #{vae_forward.1} parent=11 // pred_check_branch
          %776 = sbr.rel (%p774) target = $region92
        $region91: #{vae_forward.1} parent=11 // pred_region
          _
        $region92: #{vae_forward.1} parent=11 // pred_fallthru
          _
      $region12: #{vae_forward.1} parent=5 // pred_fallthru
        _
      %p777 = scmp.lt.s32.totalorder %s43, 2
      // Predicated region
      $region93: #{vae_forward.1} parent=5 // pred_check
        %p778 = pneg %p777
      $region94: #{vae_forward.1} parent=5 // pred_check_branch
        %780 = sbr.rel (%p778) target = $region96
      $region95: #{vae_forward.1} parent=5 // pred_region
        // Predicated region
        $region97: #{vae_forward.1} parent=95 // pred_check
          %p781 = pneg %p63
        $region98: #{vae_forward.1} parent=95 // pred_check_branch
          %783 = sbr.rel (%p781) target = $region100
        $region99: #{vae_forward.1} parent=95 // pred_region
          %p784 = scmp.lt.s32.totalorder %s43, 1
          %s785 = scalar_select %p784, %s43, 1
          %s786 = smul.addr %s785, 32
          %s787 = smul.addr %s786, 4
          %s788 = scalar_lea.vmem %s0, %s787
        $region100: #{vae_forward.1} parent=95 // pred_fallthru
          _
        // Predicated region
        $region101: #{vae_forward.1} parent=95 // pred_check
          %p789 = pneg %p89
        $region102: #{vae_forward.1} parent=95 // pred_check_branch
          %791 = sbr.rel (%p789) target = $region104
        $region103: #{vae_forward.1} parent=95 // pred_region
          %p792 = scmp.lt.s32.totalorder %s43, 1
          %s793 = scalar_select %p792, %s43, 1
          %s794 = smul.addr %s793, 4
          %s795 = scalar_lea.vmem %s1, %s794
        $region104: #{vae_forward.1} parent=95 // pred_fallthru
          _
      $region96: #{vae_forward.1} parent=5 // pred_fallthru
        _
      %p796 = scmp.le.s32.totalorder 1, %s43
      %p797 = scmp.lt.s32.totalorder %s43, 3
      %p798 = pnand %p796, %p797
      %p799 = pneg %p798
      // Predicated region
      $region105: #{vae_forward.1} parent=5 // pred_check
        _
      $region106: #{vae_forward.1} parent=5 // pred_check_branch
        %801 = sbr.rel (%p798) target = $region108
      $region107: #{vae_forward.1} parent=5 // pred_region
        %s802 = ssub.s32 %s43, 1
        // Predicated region
        $region109: #{vae_forward.1} parent=107 // pred_check
          %p803 = pneg %p116
        $region110: #{vae_forward.1} parent=107 // pred_check_branch
          %805 = sbr.rel (%p803) target = $region112
        $region111: #{vae_forward.1} parent=107 // pred_region
          %807 = dma.done [#allocation3], 64
        $region112: #{vae_forward.1} parent=107 // pred_fallthru
          _
        // Predicated region
        $region113: #{vae_forward.1} parent=107 // pred_check
          %p808 = pneg %p158
        $region114: #{vae_forward.1} parent=107 // pred_check_branch
          %810 = sbr.rel (%p808) target = $region116
        $region115: #{vae_forward.1} parent=107 // pred_region
          %812 = dma.done [#allocation6], 16384
        $region116: #{vae_forward.1} parent=107 // pred_fallthru
          _
        // Predicated region
        $region117: #{vae_forward.1} parent=107 // pred_check
          %p813 = pneg %p179
        $region118: #{vae_forward.1} parent=107 // pred_check_branch
          %815 = sbr.rel (%p813) target = $region120
        $region119: #{vae_forward.1} parent=107 // pred_region
          %817 = dma.done [#allocation6], 384
        $region120: #{vae_forward.1} parent=107 // pred_fallthru
          _
        // Predicated region
        $region121: #{vae_forward.1} parent=107 // pred_check
          %p818 = pneg %p200
        $region122: #{vae_forward.1} parent=107 // pred_check_branch
          %820 = sbr.rel (%p818) target = $region124
        $region123: #{vae_forward.1} parent=107 // pred_region
          %822 = dma.done [#allocation9], 16
        $region124: #{vae_forward.1} parent=107 // pred_fallthru
          _
        // Predicated region
        $region125: #{vae_forward.1} parent=107 // pred_check
          %p823 = pneg %p221
        $region126: #{vae_forward.1} parent=107 // pred_check_branch
          %825 = sbr.rel (%p823) target = $region128
        $region127: #{vae_forward.1} parent=107 // pred_region
          %827 = dma.done [#allocation9], 2048
        $region128: #{vae_forward.1} parent=107 // pred_fallthru
          _
        // Predicated region
        $region129: #{vae_forward.1} parent=107 // pred_check
          %p828 = pneg %p242
        $region130: #{vae_forward.1} parent=107 // pred_check_branch
          %830 = sbr.rel (%p828) target = $region132
        $region131: #{vae_forward.1} parent=107 // pred_region
          %832 = dma.done [#allocation12], 2304
        $region132: #{vae_forward.1} parent=107 // pred_fallthru
          _
        // Predicated region
        $region133: #{vae_forward.1} parent=107 // pred_check
          %p833 = pneg %p263
        $region134: #{vae_forward.1} parent=107 // pred_check_branch
          %835 = sbr.rel (%p833) target = $region136
        $region135: #{vae_forward.1} parent=107 // pred_region
          %837 = dma.done [#allocation12], 16
        $region136: #{vae_forward.1} parent=107 // pred_fallthru
          _
        // Predicated region
        $region137: #{vae_forward.1} parent=107 // pred_check
          %p838 = pneg %p284
        $region138: #{vae_forward.1} parent=107 // pred_check_branch
          %840 = sbr.rel (%p838) target = $region140
        $region139: #{vae_forward.1} parent=107 // pred_region
          %842 = dma.done [#allocation15], 512
        $region140: #{vae_forward.1} parent=107 // pred_fallthru
          _
        // Predicated region
        $region141: #{vae_forward.1} parent=107 // pred_check
          %p843 = pneg %p326
        $region142: #{vae_forward.1} parent=107 // pred_check_branch
          %845 = sbr.rel (%p843) target = $region144
        $region143: #{vae_forward.1} parent=107 // pred_region
          %847 = dma.done [#allocation15], 16
        $region144: #{vae_forward.1} parent=107 // pred_fallthru
          _
        // Predicated region
        $region145: #{vae_forward.1} parent=107 // pred_check
          %p848 = pneg %p410
        $region146: #{vae_forward.1} parent=107 // pred_check_branch
          %850 = sbr.rel (%p848) target = $region148
        $region147: #{vae_forward.1} parent=107 // pred_region
          %852 = dma.done [#allocation18], 16
        $region148: #{vae_forward.1} parent=107 // pred_fallthru
          _
        // Predicated region
        $region149: #{vae_forward.1} parent=107 // pred_check
          %p853 = pneg %p494
        $region150: #{vae_forward.1} parent=107 // pred_check_branch
          %855 = sbr.rel (%p853) target = $region152
        $region151: #{vae_forward.1} parent=107 // pred_region
          %857 = dma.done [#allocation18], 16
        $region152: #{vae_forward.1} parent=107 // pred_fallthru
          _
        %p858 = scmp.lt.s32.totalorder %s48, 1
        %s859 = scalar_select %p858, %s48, 1
        %s860 = smul.addr %s859, 32
        %s861 = smul.addr %s860, 4
        %s862 = scalar_lea.vmem %s0, %s861
        %p863 = pneg %p69
        %p864 = pneg %p66
        %p865 = scmp.lt.s32.totalorder %s48, 1
        %s866 = scalar_select %p865, %s48, 1
        %s867 = smul.addr %s866, 4
        %s868 = scalar_lea.vmem %s1, %s867
        %p869 = pneg %p95
        %p870 = pneg %p92
        %p871 = pneg %p116
        %p872 = pneg %p113
        %p873 = pneg %p137
        %p874 = pneg %p134
        %p875 = pneg %p158
        %p876 = pneg %p155
        %p877 = pneg %p179
        %p878 = pneg %p176
        %p879 = pneg %p200
        %p880 = pneg %p197
        %p881 = pneg %p221
        %p882 = pneg %p218
        %p883 = pneg %p242
        %p884 = pneg %p239
        %p885 = pneg %p263
        %p886 = pneg %p260
        %p887 = pneg %p284
        %p888 = pneg %p281
        %p889 = pneg %p305
        %p890 = pneg %p302
        %p891 = pneg %p326
        %p892 = pneg %p323
        %p893 = pneg %p347
        %p894 = pneg %p344
        %p895 = pneg %p368
        %p896 = pneg %p365
        %p897 = pneg %p389
        %p898 = pneg %p386
        %p899 = pneg %p410
        %p900 = pneg %p407
        %p901 = pneg %p431
        %p902 = pneg %p428
        %p903 = pneg %p452
        %p904 = pneg %p449
        %p905 = pneg %p473
        %p906 = pneg %p470
        %p907 = pneg %p494
        %p908 = pneg %p491
        %p909 = pneg %p515
        %p910 = pneg %p512
        %p911 = pneg %p541
        %p912 = pneg %p538
        %p913 = scmp.lt.s32.totalorder %s48, 1
        %s914 = scalar_select %p913, %s48, 1
        %s915 = smul.addr %s914, 8
        %s916 = smul.addr %s915, 8
        %s917 = scalar_lea.vmem %s22, %s916
        %p918 = pneg %p567
        %p919 = pneg %p564
        %s920 = sand.u32 %s554, 1
        %s921 = scalar_lea.sflag [#allocation4], %s920
        %s922 = sand.u32 %s554, 1
        %s923 = smul.addr %s922, 4
        %s924 = scalar_lea.vmem [#allocation20], %s923
        %p925 = pneg %p593
        %p926 = pneg %p590
        %s927 = sand.u32 %s580, 1
        %s928 = scalar_lea.sflag [#allocation22], %s927
        %s929 = sand.u32 %s580, 1
        %s930 = smul.addr %s929, 4
        %s931 = scalar_lea.vmem [#allocation21], %s930
        %p932 = scmp.lt.s32.totalorder %s48, 1
        %s933 = scalar_select %p932, %s48, 1
        %s934 = smul.addr %s933, 32
        %s935 = smul.addr %s934, 4
        %s936 = scalar_lea.vmem %s0, %s935
        %p937 = scmp.lt.s32.totalorder %s48, 1
        %s938 = scalar_select %p937, %s48, 1
        %s939 = smul.addr %s938, 4
        %s940 = scalar_lea.vmem %s1, %s939
        %p941 = scmp.lt.s32.totalorder %s48, 1
        %s942 = scalar_select %p941, %s48, 1
        %s943 = smul.addr %s942, 8
        %s944 = smul.addr %s943, 8
        %s945 = scalar_lea.vmem %s22, %s944
        %v947 = vld [vmem:[%s936] sm:$0xf]
        %v948 = vld [vmem:[%s936 + $0x4] sm:$0xf]
        %v949 = vld [vmem:[%s936 + $0x8] sm:$0xf]
        %v950 = vld [vmem:[%s936 + $0xc] sm:$0xf]
        %v951 = vld [vmem:[%s936 + $0x10] sm:$0xf]
        %v952 = vld [vmem:[%s936 + $0x14] sm:$0xf]
        %v953 = vld [vmem:[%s936 + $0x18] sm:$0xf]
        %v954 = vld [vmem:[%s936 + $0x1c] sm:$0xf]
        %v955 = vld [vmem:[%s936 + $0x20] sm:$0xf]
        %v956 = vld [vmem:[%s936 + $0x24] sm:$0xf]
        %v957 = vld [vmem:[%s936 + $0x28] sm:$0xf]
        %v958 = vld [vmem:[%s936 + $0x2c] sm:$0xf]
        %v959 = vld [vmem:[%s936 + $0x30] sm:$0xf]
        %v960 = vld [vmem:[%s936 + $0x34] sm:$0xf]
        %v961 = vld [vmem:[%s936 + $0x38] sm:$0xf]
        %v962 = vld [vmem:[%s936 + $0x3c] sm:$0xf]
        %v963 = vld [vmem:[%s936 + $0x40] sm:$0xf]
        %v964 = vld [vmem:[%s936 + $0x44] sm:$0xf]
        %v965 = vld [vmem:[%s936 + $0x48] sm:$0xf]
        %v966 = vld [vmem:[%s936 + $0x4c] sm:$0xf]
        %v967 = vld [vmem:[%s936 + $0x50] sm:$0xf]
        %v968 = vld [vmem:[%s936 + $0x54] sm:$0xf]
        %v969 = vld [vmem:[%s936 + $0x58] sm:$0xf]
        %v970 = vld [vmem:[%s936 + $0x5c] sm:$0xf]
        %v971 = vld [vmem:[%s936 + $0x60] sm:$0xf]
        %v972 = vld [vmem:[%s936 + $0x64] sm:$0xf]
        %v973 = vld [vmem:[%s936 + $0x68] sm:$0xf]
        %v974 = vld [vmem:[%s936 + $0x6c] sm:$0xf]
        %v975 = vld [vmem:[%s936 + $0x70] sm:$0xf]
        %v976 = vld [vmem:[%s936 + $0x74] sm:$0xf]
        %v977 = vld [vmem:[%s936 + $0x78] sm:$0xf]
        %v978 = vld [vmem:[%s936 + $0x7c] sm:$0xf]
        %v979 = vld [vmem:[#allocation2] sm:$0xf]
        %v1012 = vunpack.c.l.b16 %v947
        %v1013 = vunpack.c.l.b16 %v948
        %v1014 = vunpack.c.l.b16 %v949
        %v1015 = vunpack.c.l.b16 %v950
        %v1016 = vunpack.c.l.b16 %v951
        %v1017 = vunpack.c.l.b16 %v952
        %v1018 = vunpack.c.l.b16 %v953
        %v1019 = vunpack.c.l.b16 %v954
        %v1020 = vunpack.c.l.b16 %v955
        %v1021 = vunpack.c.l.b16 %v956
        %v1022 = vunpack.c.l.b16 %v957
        %v1023 = vunpack.c.l.b16 %v958
        %v1024 = vunpack.c.l.b16 %v959
        %v1025 = vunpack.c.l.b16 %v960
        %v1026 = vunpack.c.l.b16 %v961
        %v1027 = vunpack.c.l.b16 %v962
        %v1028 = vunpack.c.l.b16 %v963
        %v1029 = vunpack.c.l.b16 %v964
        %v1030 = vunpack.c.l.b16 %v965
        %v1031 = vunpack.c.l.b16 %v966
        %v1032 = vunpack.c.l.b16 %v967
        %v1033 = vunpack.c.l.b16 %v968
        %v1034 = vunpack.c.l.b16 %v969
        %v1035 = vunpack.c.l.b16 %v970
        %v1036 = vunpack.c.l.b16 %v971
        %v1037 = vunpack.c.l.b16 %v972
        %v1038 = vunpack.c.l.b16 %v973
        %v1039 = vunpack.c.l.b16 %v974
        %v1040 = vunpack.c.l.b16 %v975
        %v1041 = vunpack.c.l.b16 %v976
        %v1042 = vunpack.c.l.b16 %v977
        %v1043 = vunpack.c.l.b16 %v978
        %v1044 = vpack.c.b16 %v1013, %v1012
        %v1045 = vpack.c.b16 %v1015, %v1014
        %v1046 = vpack.c.b16 %v1017, %v1016
        %v1047 = vpack.c.b16 %v1019, %v1018
        %v1048 = vpack.c.b16 %v1021, %v1020
        %v1049 = vpack.c.b16 %v1023, %v1022
        %v1050 = vpack.c.b16 %v1025, %v1024
        %v1051 = vpack.c.b16 %v1027, %v1026
        %v1052 = vpack.c.b16 %v1029, %v1028
        %v1053 = vpack.c.b16 %v1031, %v1030
        %v1054 = vpack.c.b16 %v1033, %v1032
        %v1055 = vpack.c.b16 %v1035, %v1034
        %v1056 = vpack.c.b16 %v1037, %v1036
        %v1057 = vpack.c.b16 %v1039, %v1038
        %v1058 = vpack.c.b16 %v1041, %v1040
        %v1059 = vpack.c.b16 %v1043, %v1042
        %1061 = vst [vmem:[#allocation1] ss:$4 sm:$0xff] %v979
        %v1062 = vld.sshfl [vmem:[#allocation1] sm:$0xff pattern:$0x73625140]
        %v1063 = vld.sshfl [vmem:[#allocation1 + $0x8] sm:$0xff pattern:$0x73625140]
        %vm1064 = vcmask 23552
        %v1066 = vsel %vm1064, %v1044, 0
        %v1069 = vsel %vm1064, %v1045, 0
        %v1072 = vsel %vm1064, %v1046, 0
        %v1075 = vsel %vm1064, %v1047, 0
        %v1078 = vsel %vm1064, %v1048, 0
        %v1081 = vsel %vm1064, %v1049, 0
        %v1084 = vsel %vm1064, %v1050, 0
        %v1087 = vsel %vm1064, %v1051, 0
        %v1090 = vsel %vm1064, %v1052, 0
        %v1093 = vsel %vm1064, %v1053, 0
        %v1096 = vsel %vm1064, %v1054, 0
        %v1099 = vsel %vm1064, %v1055, 0
        %v1102 = vsel %vm1064, %v1056, 0
        %v1105 = vsel %vm1064, %v1057, 0
        %v1108 = vsel %vm1064, %v1058, 0
        %v1111 = vsel %vm1064, %v1059, 0
        %vm1113 = vcmask 1040384
        %vm1114 = vcmask 1041408
        %v1115 = vsel %vm1113, 4294967295, 65535
        %v1116 = vsel %vm1114, %v1115, 0
        %v1117 = vand.u32 %v1062, %v1116
        %v1119 = vand.u32 %v1063, %v1116
        %1121 = vmatpush.bf16.msra.mxu0 0
        %1122 = vmatpush.bf16.msra.mxu0 0
        %1123 = vmatpush.bf16.msra.mxu0 0
        %1124 = vmatpush.bf16.msra.mxu0 0
        %1125 = vmatpush.bf16.msra.mxu0 0
        %1126 = vmatpush.bf16.msra.mxu0 0
        %1127 = vmatpush.bf16.msra.mxu0 0
        %1128 = vmatpush.bf16.msra.mxu0 %v1117
        %1129 = vmatmul.bf16.gmra.mxu0 %v1066
        %v1130 = vpop.f32.mrf.mxu0
        %v1131 = vadd.f32 0.0, %v1130
        %v1132 = vpop.f32.mrf.mxu0
        %v1133 = vadd.f32 0.0, %v1132
        %1134 = vmatmul.bf16.gmra.mxu0 %v1069
        %v1135 = vpop.f32.mrf.mxu0
        %v1136 = vadd.f32 0.0, %v1135
        %v1137 = vpop.f32.mrf.mxu0
        %v1138 = vadd.f32 0.0, %v1137
        %1139 = vmatmul.bf16.gmra.mxu0 %v1072
        %v1140 = vpop.f32.mrf.mxu0
        %v1141 = vadd.f32 0.0, %v1140
        %v1142 = vpop.f32.mrf.mxu0
        %v1143 = vadd.f32 0.0, %v1142
        %1144 = vmatmul.bf16.gmra.mxu0 %v1075
        %v1145 = vpop.f32.mrf.mxu0
        %v1146 = vadd.f32 0.0, %v1145
        %v1147 = vpop.f32.mrf.mxu0
        %v1148 = vadd.f32 0.0, %v1147
        %1149 = vmatmul.bf16.gmra.mxu0 %v1078
        %v1150 = vpop.f32.mrf.mxu0
        %v1151 = vadd.f32 0.0, %v1150
        %v1152 = vpop.f32.mrf.mxu0
        %v1153 = vadd.f32 0.0, %v1152
        %1154 = vmatmul.bf16.gmra.mxu0 %v1081
        %v1155 = vpop.f32.mrf.mxu0
        %v1156 = vadd.f32 0.0, %v1155
        %v1157 = vpop.f32.mrf.mxu0
        %v1158 = vadd.f32 0.0, %v1157
        %1159 = vmatmul.bf16.gmra.mxu0 %v1084
        %v1160 = vpop.f32.mrf.mxu0
        %v1161 = vadd.f32 0.0, %v1160
        %v1162 = vpop.f32.mrf.mxu0
        %v1163 = vadd.f32 0.0, %v1162
        %1164 = vmatmul.bf16.gmra.mxu0 %v1087
        %v1165 = vpop.f32.mrf.mxu0
        %v1166 = vadd.f32 0.0, %v1165
        %v1167 = vpop.f32.mrf.mxu0
        %v1168 = vadd.f32 0.0, %v1167
        %1169 = vmatmul.bf16.gmra.mxu0 %v1090
        %v1170 = vpop.f32.mrf.mxu0
        %v1171 = vadd.f32 0.0, %v1170
        %v1172 = vpop.f32.mrf.mxu0
        %v1173 = vadd.f32 0.0, %v1172
        %1174 = vmatmul.bf16.gmra.mxu0 %v1093
        %v1175 = vpop.f32.mrf.mxu0
        %v1176 = vadd.f32 0.0, %v1175
        %v1177 = vpop.f32.mrf.mxu0
        %v1178 = vadd.f32 0.0, %v1177
        %1179 = vmatmul.bf16.gmra.mxu0 %v1096
        %v1180 = vpop.f32.mrf.mxu0
        %v1181 = vadd.f32 0.0, %v1180
        %v1182 = vpop.f32.mrf.mxu0
        %v1183 = vadd.f32 0.0, %v1182
        %1184 = vmatmul.bf16.gmra.mxu0 %v1099
        %v1185 = vpop.f32.mrf.mxu0
        %v1186 = vadd.f32 0.0, %v1185
        %v1187 = vpop.f32.mrf.mxu0
        %v1188 = vadd.f32 0.0, %v1187
        %1189 = vmatmul.bf16.gmra.mxu0 %v1102
        %v1190 = vpop.f32.mrf.mxu0
        %v1191 = vadd.f32 0.0, %v1190
        %v1192 = vpop.f32.mrf.mxu0
        %v1193 = vadd.f32 0.0, %v1192
        %1194 = vmatmul.bf16.gmra.mxu0 %v1105
        %v1195 = vpop.f32.mrf.mxu0
        %v1196 = vadd.f32 0.0, %v1195
        %v1197 = vpop.f32.mrf.mxu0
        %v1198 = vadd.f32 0.0, %v1197
        %1199 = vmatmul.bf16.gmra.mxu0 %v1108
        %v1200 = vpop.f32.mrf.mxu0
        %v1201 = vadd.f32 0.0, %v1200
        %v1202 = vpop.f32.mrf.mxu0
        %v1203 = vadd.f32 0.0, %v1202
        %1204 = vmatmul.bf16.gmra.mxu0 %v1111
        %v1205 = vpop.f32.mrf.mxu0
        %v1206 = vadd.f32 0.0, %v1205
        %v1207 = vpop.f32.mrf.mxu0
        %v1208 = vadd.f32 0.0, %v1207
        %1209 = vdwg.mxu0
        %1210 = vmatpush.bf16.msra.mxu0 0
        %1211 = vmatpush.bf16.msra.mxu0 0
        %1212 = vmatpush.bf16.msra.mxu0 0
        %1213 = vmatpush.bf16.msra.mxu0 0
        %1214 = vmatpush.bf16.msra.mxu0 0
        %1215 = vmatpush.bf16.msra.mxu0 0
        %1216 = vmatpush.bf16.msra.mxu0 0
        %1217 = vmatpush.bf16.msra.mxu0 %v1119
        %1218 = vmatmul.bf16.gmra.mxu0 %v1066
        %v1219 = vpop.f32.mrf.mxu0
        %v1220 = vadd.f32 0.0, %v1219
        %v1221 = vpop.f32.mrf.mxu0
        %v1222 = vadd.f32 0.0, %v1221
        %1223 = vmatmul.bf16.gmra.mxu0 %v1069
        %v1224 = vpop.f32.mrf.mxu0
        %v1225 = vadd.f32 0.0, %v1224
        %v1226 = vpop.f32.mrf.mxu0
        %v1227 = vadd.f32 0.0, %v1226
        %1228 = vmatmul.bf16.gmra.mxu0 %v1072
        %v1229 = vpop.f32.mrf.mxu0
        %v1230 = vadd.f32 0.0, %v1229
        %v1231 = vpop.f32.mrf.mxu0
        %v1232 = vadd.f32 0.0, %v1231
        %1233 = vmatmul.bf16.gmra.mxu0 %v1075
        %v1234 = vpop.f32.mrf.mxu0
        %v1235 = vadd.f32 0.0, %v1234
        %v1236 = vpop.f32.mrf.mxu0
        %v1237 = vadd.f32 0.0, %v1236
        %1238 = vmatmul.bf16.gmra.mxu0 %v1078
        %v1239 = vpop.f32.mrf.mxu0
        %v1240 = vadd.f32 0.0, %v1239
        %v1241 = vpop.f32.mrf.mxu0
        %v1242 = vadd.f32 0.0, %v1241
        %1243 = vmatmul.bf16.gmra.mxu0 %v1081
        %v1244 = vpop.f32.mrf.mxu0
        %v1245 = vadd.f32 0.0, %v1244
        %v1246 = vpop.f32.mrf.mxu0
        %v1247 = vadd.f32 0.0, %v1246
        %1248 = vmatmul.bf16.gmra.mxu0 %v1084
        %v1249 = vpop.f32.mrf.mxu0
        %v1250 = vadd.f32 0.0, %v1249
        %v1251 = vpop.f32.mrf.mxu0
        %v1252 = vadd.f32 0.0, %v1251
        %1253 = vmatmul.bf16.gmra.mxu0 %v1087
        %v1254 = vpop.f32.mrf.mxu0
        %v1255 = vadd.f32 0.0, %v1254
        %v1256 = vpop.f32.mrf.mxu0
        %v1257 = vadd.f32 0.0, %v1256
        %1258 = vmatmul.bf16.gmra.mxu0 %v1090
        %v1259 = vpop.f32.mrf.mxu0
        %v1260 = vadd.f32 0.0, %v1259
        %v1261 = vpop.f32.mrf.mxu0
        %v1262 = vadd.f32 0.0, %v1261
        %1263 = vmatmul.bf16.gmra.mxu0 %v1093
        %v1264 = vpop.f32.mrf.mxu0
        %v1265 = vadd.f32 0.0, %v1264
        %v1266 = vpop.f32.mrf.mxu0
        %v1267 = vadd.f32 0.0, %v1266
        %1268 = vmatmul.bf16.gmra.mxu0 %v1096
        %v1269 = vpop.f32.mrf.mxu0
        %v1270 = vadd.f32 0.0, %v1269
        %v1271 = vpop.f32.mrf.mxu0
        %v1272 = vadd.f32 0.0, %v1271
        %1273 = vmatmul.bf16.gmra.mxu0 %v1099
        %v1274 = vpop.f32.mrf.mxu0
        %v1275 = vadd.f32 0.0, %v1274
        %v1276 = vpop.f32.mrf.mxu0
        %v1277 = vadd.f32 0.0, %v1276
        %1278 = vmatmul.bf16.gmra.mxu0 %v1102
        %v1279 = vpop.f32.mrf.mxu0
        %v1280 = vadd.f32 0.0, %v1279
        %v1281 = vpop.f32.mrf.mxu0
        %v1282 = vadd.f32 0.0, %v1281
        %1283 = vmatmul.bf16.gmra.mxu0 %v1105
        %v1284 = vpop.f32.mrf.mxu0
        %v1285 = vadd.f32 0.0, %v1284
        %v1286 = vpop.f32.mrf.mxu0
        %v1287 = vadd.f32 0.0, %v1286
        %1288 = vmatmul.bf16.gmra.mxu0 %v1108
        %v1289 = vpop.f32.mrf.mxu0
        %v1290 = vadd.f32 0.0, %v1289
        %v1291 = vpop.f32.mrf.mxu0
        %v1292 = vadd.f32 0.0, %v1291
        %1293 = vmatmul.bf16.gmra.mxu0 %v1111
        %v1294 = vpop.f32.mrf.mxu0
        %v1295 = vadd.f32 0.0, %v1294
        %v1296 = vpop.f32.mrf.mxu0
        %v1297 = vadd.f32 0.0, %v1296
        %1298 = vdwg.mxu0
        %v1299 = vpack.c.bf16 %v1220, %v1131
        %v1300 = vpack.c.bf16 %v1222, %v1133
        %v1301 = vpack.c.bf16 %v1225, %v1136
        %v1302 = vpack.c.bf16 %v1227, %v1138
        %v1303 = vpack.c.bf16 %v1230, %v1141
        %v1304 = vpack.c.bf16 %v1232, %v1143
        %v1305 = vpack.c.bf16 %v1235, %v1146
        %v1306 = vpack.c.bf16 %v1237, %v1148
        %v1307 = vpack.c.bf16 %v1240, %v1151
        %v1308 = vpack.c.bf16 %v1242, %v1153
        %v1309 = vpack.c.bf16 %v1245, %v1156
        %v1310 = vpack.c.bf16 %v1247, %v1158
        %v1311 = vpack.c.bf16 %v1250, %v1161
        %v1312 = vpack.c.bf16 %v1252, %v1163
        %v1313 = vpack.c.bf16 %v1255, %v1166
        %v1314 = vpack.c.bf16 %v1257, %v1168
        %v1315 = vpack.c.bf16 %v1260, %v1171
        %v1316 = vpack.c.bf16 %v1262, %v1173
        %v1317 = vpack.c.bf16 %v1265, %v1176
        %v1318 = vpack.c.bf16 %v1267, %v1178
        %v1319 = vpack.c.bf16 %v1270, %v1181
        %v1320 = vpack.c.bf16 %v1272, %v1183
        %v1321 = vpack.c.bf16 %v1275, %v1186
        %v1322 = vpack.c.bf16 %v1277, %v1188
        %v1323 = vpack.c.bf16 %v1280, %v1191
        %v1324 = vpack.c.bf16 %v1282, %v1193
        %v1325 = vpack.c.bf16 %v1285, %v1196
        %v1326 = vpack.c.bf16 %v1287, %v1198
        %v1327 = vpack.c.bf16 %v1290, %v1201
        %v1328 = vpack.c.bf16 %v1292, %v1203
        %v1329 = vpack.c.bf16 %v1295, %v1206
        %v1330 = vpack.c.bf16 %v1297, %v1208
        %v1331 = vld [vmem:[#allocation5] sm:$0xff]
        %v1332 = vld [vmem:[#allocation5 + $0x8] sm:$0xff]
        %v1333 = vld [vmem:[#allocation5 + $0x10] sm:$0xff]
        %v1334 = vld [vmem:[#allocation5 + $0x18] sm:$0xff]
        %v1335 = vld [vmem:[#allocation5 + $0x20] sm:$0xff]
        %v1336 = vld [vmem:[#allocation5 + $0x28] sm:$0xff]
        %v1337 = vld [vmem:[#allocation5 + $0x30] sm:$0xff]
        %v1338 = vld [vmem:[#allocation5 + $0x38] sm:$0xff]
        %s1339 = scalar_lea.vmem [#allocation5], 64
        %v1340 = vld [vmem:[%s1339] sm:$0xff]
        %v1341 = vld [vmem:[%s1339 + $0x8] sm:$0xff]
        %v1342 = vld [vmem:[%s1339 + $0x10] sm:$0xff]
        %v1343 = vld [vmem:[%s1339 + $0x18] sm:$0xff]
        %v1344 = vld [vmem:[%s1339 + $0x20] sm:$0xff]
        %v1345 = vld [vmem:[%s1339 + $0x28] sm:$0xff]
        %v1346 = vld [vmem:[%s1339 + $0x30] sm:$0xff]
        %v1347 = vld [vmem:[%s1339 + $0x38] sm:$0xff]
        %v1356 = vunpack.c.l.b16 %v1340
        %v1357 = vunpack.c.h.b16 %v1340
        %v1358 = vunpack.c.l.b16 %v1341
        %v1359 = vunpack.c.h.b16 %v1341
        %v1360 = vunpack.c.l.b16 %v1342
        %v1361 = vunpack.c.h.b16 %v1342
        %v1362 = vunpack.c.l.b16 %v1343
        %v1363 = vunpack.c.h.b16 %v1343
        %v1364 = vunpack.c.l.b16 %v1344
        %v1365 = vunpack.c.h.b16 %v1344
        %v1366 = vunpack.c.l.b16 %v1345
        %v1367 = vunpack.c.h.b16 %v1345
        %v1368 = vunpack.c.l.b16 %v1346
        %v1369 = vunpack.c.h.b16 %v1346
        %v1370 = vunpack.c.l.b16 %v1347
        %v1371 = vunpack.c.h.b16 %v1347
        %v1372 = vpack.c.b16 %v1358, %v1356
        %v1373 = vpack.c.b16 %v1359, %v1357
        %v1374 = vpack.c.b16 %v1362, %v1360
        %v1375 = vpack.c.b16 %v1363, %v1361
        %v1376 = vpack.c.b16 %v1366, %v1364
        %v1377 = vpack.c.b16 %v1367, %v1365
        %v1378 = vpack.c.b16 %v1370, %v1368
        %v1379 = vpack.c.b16 %v1371, %v1369
        %v1420 = vunpack.c.l.b16 %v1299
        %v1421 = vunpack.c.l.b16 %v1300
        %v1422 = vunpack.c.l.b16 %v1301
        %v1423 = vunpack.c.l.b16 %v1302
        %v1424 = vunpack.c.l.b16 %v1303
        %v1425 = vunpack.c.l.b16 %v1304
        %v1426 = vunpack.c.l.b16 %v1305
        %v1427 = vunpack.c.l.b16 %v1306
        %v1428 = vunpack.c.l.b16 %v1307
        %v1429 = vunpack.c.l.b16 %v1308
        %v1430 = vunpack.c.l.b16 %v1309
        %v1431 = vunpack.c.l.b16 %v1310
        %v1432 = vunpack.c.l.b16 %v1311
        %v1433 = vunpack.c.l.b16 %v1312
        %v1434 = vunpack.c.l.b16 %v1313
        %v1435 = vunpack.c.l.b16 %v1314
        %v1436 = vunpack.c.l.b16 %v1315
        %v1437 = vunpack.c.l.b16 %v1316
        %v1438 = vunpack.c.l.b16 %v1317
        %v1439 = vunpack.c.l.b16 %v1318
        %v1440 = vunpack.c.l.b16 %v1319
        %v1441 = vunpack.c.l.b16 %v1320
        %v1442 = vunpack.c.l.b16 %v1321
        %v1443 = vunpack.c.l.b16 %v1322
        %v1444 = vunpack.c.l.b16 %v1323
        %v1445 = vunpack.c.l.b16 %v1324
        %v1446 = vunpack.c.l.b16 %v1325
        %v1447 = vunpack.c.l.b16 %v1326
        %v1448 = vunpack.c.l.b16 %v1327
        %v1449 = vunpack.c.l.b16 %v1328
        %v1450 = vunpack.c.l.b16 %v1329
        %v1451 = vunpack.c.l.b16 %v1330
        %v1452 = vpack.c.b16 %v1421, %v1420
        %v1453 = vpack.c.b16 %v1423, %v1422
        %v1454 = vpack.c.b16 %v1425, %v1424
        %v1455 = vpack.c.b16 %v1427, %v1426
        %v1456 = vpack.c.b16 %v1429, %v1428
        %v1457 = vpack.c.b16 %v1431, %v1430
        %v1458 = vpack.c.b16 %v1433, %v1432
        %v1459 = vpack.c.b16 %v1435, %v1434
        %v1460 = vpack.c.b16 %v1437, %v1436
        %v1461 = vpack.c.b16 %v1439, %v1438
        %v1462 = vpack.c.b16 %v1441, %v1440
        %v1463 = vpack.c.b16 %v1443, %v1442
        %v1464 = vpack.c.b16 %v1445, %v1444
        %v1465 = vpack.c.b16 %v1447, %v1446
        %v1466 = vpack.c.b16 %v1449, %v1448
        %v1467 = vpack.c.b16 %v1451, %v1450
        %1468 = vrot.lane.b32.xlu0 %v1452, 116
        %v1469 = vpop.permute.xlu0 %1468
        %1470 = vrot.lane.b32.xlu0 %v1453, 116
        %v1471 = vpop.permute.xlu0 %1470
        %1472 = vrot.lane.b32.xlu0 %v1454, 116
        %v1473 = vpop.permute.xlu0 %1472
        %1474 = vrot.lane.b32.xlu0 %v1455, 116
        %v1475 = vpop.permute.xlu0 %1474
        %1476 = vrot.lane.b32.xlu0 %v1456, 116
        %v1477 = vpop.permute.xlu0 %1476
        %1478 = vrot.lane.b32.xlu0 %v1457, 116
        %v1479 = vpop.permute.xlu0 %1478
        %1480 = vrot.lane.b32.xlu0 %v1458, 116
        %v1481 = vpop.permute.xlu0 %1480
        %1482 = vrot.lane.b32.xlu0 %v1459, 116
        %v1483 = vpop.permute.xlu0 %1482
        %1484 = vrot.lane.b32.xlu0 %v1460, 116
        %v1485 = vpop.permute.xlu0 %1484
        %1486 = vrot.lane.b32.xlu0 %v1461, 116
        %v1487 = vpop.permute.xlu0 %1486
        %1488 = vrot.lane.b32.xlu0 %v1462, 116
        %v1489 = vpop.permute.xlu0 %1488
        %1490 = vrot.lane.b32.xlu0 %v1463, 116
        %v1491 = vpop.permute.xlu0 %1490
        %1492 = vrot.lane.b32.xlu0 %v1464, 116
        %v1493 = vpop.permute.xlu0 %1492
        %1494 = vrot.lane.b32.xlu0 %v1465, 116
        %v1495 = vpop.permute.xlu0 %1494
        %1496 = vrot.lane.b32.xlu0 %v1466, 116
        %v1497 = vpop.permute.xlu0 %1496
        %1498 = vrot.lane.b32.xlu0 %v1467, 116
        %v1499 = vpop.permute.xlu0 %1498
        %1516 = vmatpush.bf16.msra.mxu0 %v1483
        %1517 = vmatpush.bf16.msra.mxu0 %v1481
        %1518 = vmatpush.bf16.msra.mxu0 %v1479
        %1519 = vmatpush.bf16.msra.mxu0 %v1477
        %1520 = vmatpush.bf16.msra.mxu0 %v1475
        %1521 = vmatpush.bf16.msra.mxu0 %v1473
        %1522 = vmatpush.bf16.msra.mxu0 %v1471
        %1523 = vmatpush.bf16.msra.mxu0 %v1469
        %1524 = vmatmul.bf16.gmra.mxu0 %v1372
        %v1525 = vpop.f32.mrf.mxu0
        %v1526 = vadd.f32 0.0, %v1525
        %v1527 = vpop.f32.mrf.mxu0
        %v1528 = vadd.f32 0.0, %v1527
        %1529 = vmatmul.bf16.gmra.mxu0 %v1374
        %v1530 = vpop.f32.mrf.mxu0
        %v1531 = vadd.f32 0.0, %v1530
        %v1532 = vpop.f32.mrf.mxu0
        %v1533 = vadd.f32 0.0, %v1532
        %1534 = vmatmul.bf16.gmra.mxu0 %v1376
        %v1535 = vpop.f32.mrf.mxu0
        %v1536 = vadd.f32 0.0, %v1535
        %v1537 = vpop.f32.mrf.mxu0
        %v1538 = vadd.f32 0.0, %v1537
        %1539 = vmatmul.bf16.gmra.mxu0 %v1378
        %v1540 = vpop.f32.mrf.mxu0
        %v1541 = vadd.f32 0.0, %v1540
        %v1542 = vpop.f32.mrf.mxu0
        %v1543 = vadd.f32 0.0, %v1542
        %1544 = vdwg.mxu0
        %1545 = vmatpush.bf16.msra.mxu0 %v1499
        %1546 = vmatpush.bf16.msra.mxu0 %v1497
        %1547 = vmatpush.bf16.msra.mxu0 %v1495
        %1548 = vmatpush.bf16.msra.mxu0 %v1493
        %1549 = vmatpush.bf16.msra.mxu0 %v1491
        %1550 = vmatpush.bf16.msra.mxu0 %v1489
        %1551 = vmatpush.bf16.msra.mxu0 %v1487
        %1552 = vmatpush.bf16.msra.mxu0 %v1485
        %1553 = vmatmul.bf16.gmra.mxu0 %v1373
        %v1554 = vpop.f32.mrf.mxu0
        %v1555 = vadd.f32 %v1526, %v1554
        %v1556 = vpop.f32.mrf.mxu0
        %v1557 = vadd.f32 %v1528, %v1556
        %1558 = vmatmul.bf16.gmra.mxu0 %v1375
        %v1559 = vpop.f32.mrf.mxu0
        %v1560 = vadd.f32 %v1531, %v1559
        %v1561 = vpop.f32.mrf.mxu0
        %v1562 = vadd.f32 %v1533, %v1561
        %1563 = vmatmul.bf16.gmra.mxu0 %v1377
        %v1564 = vpop.f32.mrf.mxu0
        %v1565 = vadd.f32 %v1536, %v1564
        %v1566 = vpop.f32.mrf.mxu0
        %v1567 = vadd.f32 %v1538, %v1566
        %1568 = vmatmul.bf16.gmra.mxu0 %v1379
        %v1569 = vpop.f32.mrf.mxu0
        %v1570 = vadd.f32 %v1541, %v1569
        %v1571 = vpop.f32.mrf.mxu0
        %v1572 = vadd.f32 %v1543, %v1571
        %1573 = vdwg.mxu0
        %v1582 = vunpack.c.l.b16 %v1331
        %v1583 = vunpack.c.h.b16 %v1331
        %v1584 = vunpack.c.l.b16 %v1332
        %v1585 = vunpack.c.h.b16 %v1332
        %v1586 = vunpack.c.l.b16 %v1333
        %v1587 = vunpack.c.h.b16 %v1333
        %v1588 = vunpack.c.l.b16 %v1334
        %v1589 = vunpack.c.h.b16 %v1334
        %v1590 = vunpack.c.l.b16 %v1335
        %v1591 = vunpack.c.h.b16 %v1335
        %v1592 = vunpack.c.l.b16 %v1336
        %v1593 = vunpack.c.h.b16 %v1336
        %v1594 = vunpack.c.l.b16 %v1337
        %v1595 = vunpack.c.h.b16 %v1337
        %v1596 = vunpack.c.l.b16 %v1338
        %v1597 = vunpack.c.h.b16 %v1338
        %v1598 = vpack.c.b16 %v1584, %v1582
        %v1599 = vpack.c.b16 %v1585, %v1583
        %v1600 = vpack.c.b16 %v1588, %v1586
        %v1601 = vpack.c.b16 %v1589, %v1587
        %v1602 = vpack.c.b16 %v1592, %v1590
        %v1603 = vpack.c.b16 %v1593, %v1591
        %v1604 = vpack.c.b16 %v1596, %v1594
        %v1605 = vpack.c.b16 %v1597, %v1595
        %1630 = vmatpush.bf16.msra.mxu0 %v1459
        %1631 = vmatpush.bf16.msra.mxu0 %v1458
        %1632 = vmatpush.bf16.msra.mxu0 %v1457
        %1633 = vmatpush.bf16.msra.mxu0 %v1456
        %1634 = vmatpush.bf16.msra.mxu0 %v1455
        %1635 = vmatpush.bf16.msra.mxu0 %v1454
        %1636 = vmatpush.bf16.msra.mxu0 %v1453
        %1637 = vmatpush.bf16.msra.mxu0 %v1452
        %1638 = vmatmul.bf16.gmra.mxu0 %v1598
        %v1639 = vpop.f32.mrf.mxu0
        %v1640 = vadd.f32 %v1555, %v1639
        %v1641 = vpop.f32.mrf.mxu0
        %v1642 = vadd.f32 %v1557, %v1641
        %1643 = vmatmul.bf16.gmra.mxu0 %v1600
        %v1644 = vpop.f32.mrf.mxu0
        %v1645 = vadd.f32 %v1560, %v1644
        %v1646 = vpop.f32.mrf.mxu0
        %v1647 = vadd.f32 %v1562, %v1646
        %1648 = vmatmul.bf16.gmra.mxu0 %v1602
        %v1649 = vpop.f32.mrf.mxu0
        %v1650 = vadd.f32 %v1565, %v1649
        %v1651 = vpop.f32.mrf.mxu0
        %v1652 = vadd.f32 %v1567, %v1651
        %1653 = vmatmul.bf16.gmra.mxu0 %v1604
        %v1654 = vpop.f32.mrf.mxu0
        %v1655 = vadd.f32 %v1570, %v1654
        %v1656 = vpop.f32.mrf.mxu0
        %v1657 = vadd.f32 %v1572, %v1656
        %1658 = vdwg.mxu0
        %1659 = vmatpush.bf16.msra.mxu0 %v1467
        %1660 = vmatpush.bf16.msra.mxu0 %v1466
        %1661 = vmatpush.bf16.msra.mxu0 %v1465
        %1662 = vmatpush.bf16.msra.mxu0 %v1464
        %1663 = vmatpush.bf16.msra.mxu0 %v1463
        %1664 = vmatpush.bf16.msra.mxu0 %v1462
        %1665 = vmatpush.bf16.msra.mxu0 %v1461
        %1666 = vmatpush.bf16.msra.mxu0 %v1460
        %1667 = vmatmul.bf16.gmra.mxu0 %v1599
        %v1668 = vpop.f32.mrf.mxu0
        %v1669 = vadd.f32 %v1640, %v1668
        %v1670 = vpop.f32.mrf.mxu0
        %v1671 = vadd.f32 %v1642, %v1670
        %1672 = vmatmul.bf16.gmra.mxu0 %v1601
        %v1673 = vpop.f32.mrf.mxu0
        %v1674 = vadd.f32 %v1645, %v1673
        %v1675 = vpop.f32.mrf.mxu0
        %v1676 = vadd.f32 %v1647, %v1675
        %1677 = vmatmul.bf16.gmra.mxu0 %v1603
        %v1678 = vpop.f32.mrf.mxu0
        %v1679 = vadd.f32 %v1650, %v1678
        %v1680 = vpop.f32.mrf.mxu0
        %v1681 = vadd.f32 %v1652, %v1680
        %1682 = vmatmul.bf16.gmra.mxu0 %v1605
        %v1683 = vpop.f32.mrf.mxu0
        %v1684 = vadd.f32 %v1655, %v1683
        %v1685 = vpop.f32.mrf.mxu0
        %v1686 = vadd.f32 %v1657, %v1685
        %1687 = vdwg.mxu0
        %s1688 = scalar_lea.vmem [#allocation5], 128
        %v1689 = vld [vmem:[%s1688] sm:$0xff]
        %v1690 = vld [vmem:[%s1688 + $0x8] sm:$0xff]
        %v1691 = vld [vmem:[%s1688 + $0x10] sm:$0xff]
        %v1692 = vld [vmem:[%s1688 + $0x18] sm:$0xff]
        %v1693 = vld [vmem:[%s1688 + $0x20] sm:$0xff]
        %v1694 = vld [vmem:[%s1688 + $0x28] sm:$0xff]
        %v1695 = vld [vmem:[%s1688 + $0x30] sm:$0xff]
        %v1696 = vld [vmem:[%s1688 + $0x38] sm:$0xff]
        %v1705 = vunpack.c.l.b16 %v1689
        %v1706 = vunpack.c.h.b16 %v1689
        %v1707 = vunpack.c.l.b16 %v1690
        %v1708 = vunpack.c.h.b16 %v1690
        %v1709 = vunpack.c.l.b16 %v1691
        %v1710 = vunpack.c.h.b16 %v1691
        %v1711 = vunpack.c.l.b16 %v1692
        %v1712 = vunpack.c.h.b16 %v1692
        %v1713 = vunpack.c.l.b16 %v1693
        %v1714 = vunpack.c.h.b16 %v1693
        %v1715 = vunpack.c.l.b16 %v1694
        %v1716 = vunpack.c.h.b16 %v1694
        %v1717 = vunpack.c.l.b16 %v1695
        %v1718 = vunpack.c.h.b16 %v1695
        %v1719 = vunpack.c.l.b16 %v1696
        %v1720 = vunpack.c.h.b16 %v1696
        %v1721 = vpack.c.b16 %v1707, %v1705
        %v1722 = vpack.c.b16 %v1708, %v1706
        %v1723 = vpack.c.b16 %v1711, %v1709
        %v1724 = vpack.c.b16 %v1712, %v1710
        %v1725 = vpack.c.b16 %v1715, %v1713
        %v1726 = vpack.c.b16 %v1716, %v1714
        %v1727 = vpack.c.b16 %v1719, %v1717
        %v1728 = vpack.c.b16 %v1720, %v1718
        %1737 = vrot.lane.b32.xlu0 %v1452, 104
        %v1738 = vpop.permute.xlu0 %1737
        %1739 = vrot.lane.b32.xlu0 %v1453, 104
        %v1740 = vpop.permute.xlu0 %1739
        %1741 = vrot.lane.b32.xlu0 %v1454, 104
        %v1742 = vpop.permute.xlu0 %1741
        %1743 = vrot.lane.b32.xlu0 %v1455, 104
        %v1744 = vpop.permute.xlu0 %1743
        %1745 = vrot.lane.b32.xlu0 %v1456, 104
        %v1746 = vpop.permute.xlu0 %1745
        %1747 = vrot.lane.b32.xlu0 %v1457, 104
        %v1748 = vpop.permute.xlu0 %1747
        %1749 = vrot.lane.b32.xlu0 %v1458, 104
        %v1750 = vpop.permute.xlu0 %1749
        %1751 = vrot.lane.b32.xlu0 %v1459, 104
        %v1752 = vpop.permute.xlu0 %1751
        %1753 = vrot.lane.b32.xlu0 %v1460, 104
        %v1754 = vpop.permute.xlu0 %1753
        %1755 = vrot.lane.b32.xlu0 %v1461, 104
        %v1756 = vpop.permute.xlu0 %1755
        %1757 = vrot.lane.b32.xlu0 %v1462, 104
        %v1758 = vpop.permute.xlu0 %1757
        %1759 = vrot.lane.b32.xlu0 %v1463, 104
        %v1760 = vpop.permute.xlu0 %1759
        %1761 = vrot.lane.b32.xlu0 %v1464, 104
        %v1762 = vpop.permute.xlu0 %1761
        %1763 = vrot.lane.b32.xlu0 %v1465, 104
        %v1764 = vpop.permute.xlu0 %1763
        %1765 = vrot.lane.b32.xlu0 %v1466, 104
        %v1766 = vpop.permute.xlu0 %1765
        %1767 = vrot.lane.b32.xlu0 %v1467, 104
        %v1768 = vpop.permute.xlu0 %1767
        %1785 = vmatpush.bf16.msra.mxu0 %v1752
        %1786 = vmatpush.bf16.msra.mxu0 %v1750
        %1787 = vmatpush.bf16.msra.mxu0 %v1748
        %1788 = vmatpush.bf16.msra.mxu0 %v1746
        %1789 = vmatpush.bf16.msra.mxu0 %v1744
        %1790 = vmatpush.bf16.msra.mxu0 %v1742
        %1791 = vmatpush.bf16.msra.mxu0 %v1740
        %1792 = vmatpush.bf16.msra.mxu0 %v1738
        %1793 = vmatmul.bf16.gmra.mxu0 %v1721
        %v1794 = vpop.f32.mrf.mxu0
        %v1795 = vadd.f32 0.0, %v1794
        %v1796 = vpop.f32.mrf.mxu0
        %v1797 = vadd.f32 0.0, %v1796
        %1798 = vmatmul.bf16.gmra.mxu0 %v1723
        %v1799 = vpop.f32.mrf.mxu0
        %v1800 = vadd.f32 0.0, %v1799
        %v1801 = vpop.f32.mrf.mxu0
        %v1802 = vadd.f32 0.0, %v1801
        %1803 = vmatmul.bf16.gmra.mxu0 %v1725
        %v1804 = vpop.f32.mrf.mxu0
        %v1805 = vadd.f32 0.0, %v1804
        %v1806 = vpop.f32.mrf.mxu0
        %v1807 = vadd.f32 0.0, %v1806
        %1808 = vmatmul.bf16.gmra.mxu0 %v1727
        %v1809 = vpop.f32.mrf.mxu0
        %v1810 = vadd.f32 0.0, %v1809
        %v1811 = vpop.f32.mrf.mxu0
        %v1812 = vadd.f32 0.0, %v1811
        %1813 = vdwg.mxu0
        %1814 = vmatpush.bf16.msra.mxu0 %v1768
        %1815 = vmatpush.bf16.msra.mxu0 %v1766
        %1816 = vmatpush.bf16.msra.mxu0 %v1764
        %1817 = vmatpush.bf16.msra.mxu0 %v1762
        %1818 = vmatpush.bf16.msra.mxu0 %v1760
        %1819 = vmatpush.bf16.msra.mxu0 %v1758
        %1820 = vmatpush.bf16.msra.mxu0 %v1756
        %1821 = vmatpush.bf16.msra.mxu0 %v1754
        %1822 = vmatmul.bf16.gmra.mxu0 %v1722
        %v1823 = vpop.f32.mrf.mxu0
        %v1824 = vadd.f32 %v1795, %v1823
        %v1825 = vpop.f32.mrf.mxu0
        %v1826 = vadd.f32 %v1797, %v1825
        %1827 = vmatmul.bf16.gmra.mxu0 %v1724
        %v1828 = vpop.f32.mrf.mxu0
        %v1829 = vadd.f32 %v1800, %v1828
        %v1830 = vpop.f32.mrf.mxu0
        %v1831 = vadd.f32 %v1802, %v1830
        %1832 = vmatmul.bf16.gmra.mxu0 %v1726
        %v1833 = vpop.f32.mrf.mxu0
        %v1834 = vadd.f32 %v1805, %v1833
        %v1835 = vpop.f32.mrf.mxu0
        %v1836 = vadd.f32 %v1807, %v1835
        %1837 = vmatmul.bf16.gmra.mxu0 %v1728
        %v1838 = vpop.f32.mrf.mxu0
        %v1839 = vadd.f32 %v1810, %v1838
        %v1840 = vpop.f32.mrf.mxu0
        %v1841 = vadd.f32 %v1812, %v1840
        %1842 = vdwg.mxu0
        %v1843 = vadd.f32 %v1669, %v1824
        %v1844 = vadd.f32 %v1671, %v1826
        %v1845 = vadd.f32 %v1674, %v1829
        %v1846 = vadd.f32 %v1676, %v1831
        %v1847 = vadd.f32 %v1679, %v1834
        %v1848 = vadd.f32 %v1681, %v1836
        %v1849 = vadd.f32 %v1684, %v1839
        %v1850 = vadd.f32 %v1686, %v1841
        %s1851 = scalar_lea.vmem [#allocation5], 192
        %v1852 = vld [vmem:[%s1851] sm:$0xff]
        %v1853 = vld [vmem:[%s1851 + $0x8] sm:$0xff]
        %v1854 = vld [vmem:[%s1851 + $0x10] sm:$0xff]
        %v1855 = vld [vmem:[%s1851 + $0x18] sm:$0xff]
        %v1856 = vld [vmem:[%s1851 + $0x20] sm:$0xff]
        %v1857 = vld [vmem:[%s1851 + $0x28] sm:$0xff]
        %v1858 = vld [vmem:[%s1851 + $0x30] sm:$0xff]
        %v1859 = vld [vmem:[%s1851 + $0x38] sm:$0xff]
        %v1868 = vunpack.c.l.b16 %v1852
        %v1869 = vunpack.c.h.b16 %v1852
        %v1870 = vunpack.c.l.b16 %v1853
        %v1871 = vunpack.c.h.b16 %v1853
        %v1872 = vunpack.c.l.b16 %v1854
        %v1873 = vunpack.c.h.b16 %v1854
        %v1874 = vunpack.c.l.b16 %v1855
        %v1875 = vunpack.c.h.b16 %v1855
        %v1876 = vunpack.c.l.b16 %v1856
        %v1877 = vunpack.c.h.b16 %v1856
        %v1878 = vunpack.c.l.b16 %v1857
        %v1879 = vunpack.c.h.b16 %v1857
        %v1880 = vunpack.c.l.b16 %v1858
        %v1881 = vunpack.c.h.b16 %v1858
        %v1882 = vunpack.c.l.b16 %v1859
        %v1883 = vunpack.c.h.b16 %v1859
        %v1884 = vpack.c.b16 %v1870, %v1868
        %v1885 = vpack.c.b16 %v1871, %v1869
        %v1886 = vpack.c.b16 %v1874, %v1872
        %v1887 = vpack.c.b16 %v1875, %v1873
        %v1888 = vpack.c.b16 %v1878, %v1876
        %v1889 = vpack.c.b16 %v1879, %v1877
        %v1890 = vpack.c.b16 %v1882, %v1880
        %v1891 = vpack.c.b16 %v1883, %v1881
        %1900 = vrot.lane.b32.xlu0 %v1452, 92
        %v1901 = vpop.permute.xlu0 %1900
        %1902 = vrot.lane.b32.xlu0 %v1453, 92
        %v1903 = vpop.permute.xlu0 %1902
        %1904 = vrot.lane.b32.xlu0 %v1454, 92
        %v1905 = vpop.permute.xlu0 %1904
        %1906 = vrot.lane.b32.xlu0 %v1455, 92
        %v1907 = vpop.permute.xlu0 %1906
        %1908 = vrot.lane.b32.xlu0 %v1456, 92
        %v1909 = vpop.permute.xlu0 %1908
        %1910 = vrot.lane.b32.xlu0 %v1457, 92
        %v1911 = vpop.permute.xlu0 %1910
        %1912 = vrot.lane.b32.xlu0 %v1458, 92
        %v1913 = vpop.permute.xlu0 %1912
        %1914 = vrot.lane.b32.xlu0 %v1459, 92
        %v1915 = vpop.permute.xlu0 %1914
        %1916 = vrot.lane.b32.xlu0 %v1460, 92
        %v1917 = vpop.permute.xlu0 %1916
        %1918 = vrot.lane.b32.xlu0 %v1461, 92
        %v1919 = vpop.permute.xlu0 %1918
        %1920 = vrot.lane.b32.xlu0 %v1462, 92
        %v1921 = vpop.permute.xlu0 %1920
        %1922 = vrot.lane.b32.xlu0 %v1463, 92
        %v1923 = vpop.permute.xlu0 %1922
        %1924 = vrot.lane.b32.xlu0 %v1464, 92
        %v1925 = vpop.permute.xlu0 %1924
        %1926 = vrot.lane.b32.xlu0 %v1465, 92
        %v1927 = vpop.permute.xlu0 %1926
        %1928 = vrot.lane.b32.xlu0 %v1466, 92
        %v1929 = vpop.permute.xlu0 %1928
        %1930 = vrot.lane.b32.xlu0 %v1467, 92
        %v1931 = vpop.permute.xlu0 %1930
        %1948 = vmatpush.bf16.msra.mxu0 %v1915
        %1949 = vmatpush.bf16.msra.mxu0 %v1913
        %1950 = vmatpush.bf16.msra.mxu0 %v1911
        %1951 = vmatpush.bf16.msra.mxu0 %v1909
        %1952 = vmatpush.bf16.msra.mxu0 %v1907
        %1953 = vmatpush.bf16.msra.mxu0 %v1905
        %1954 = vmatpush.bf16.msra.mxu0 %v1903
        %1955 = vmatpush.bf16.msra.mxu0 %v1901
        %1956 = vmatmul.bf16.gmra.mxu0 %v1884
        %v1957 = vpop.f32.mrf.mxu0
        %v1958 = vadd.f32 0.0, %v1957
        %v1959 = vpop.f32.mrf.mxu0
        %v1960 = vadd.f32 0.0, %v1959
        %1961 = vmatmul.bf16.gmra.mxu0 %v1886
        %v1962 = vpop.f32.mrf.mxu0
        %v1963 = vadd.f32 0.0, %v1962
        %v1964 = vpop.f32.mrf.mxu0
        %v1965 = vadd.f32 0.0, %v1964
        %1966 = vmatmul.bf16.gmra.mxu0 %v1888
        %v1967 = vpop.f32.mrf.mxu0
        %v1968 = vadd.f32 0.0, %v1967
        %v1969 = vpop.f32.mrf.mxu0
        %v1970 = vadd.f32 0.0, %v1969
        %1971 = vmatmul.bf16.gmra.mxu0 %v1890
        %v1972 = vpop.f32.mrf.mxu0
        %v1973 = vadd.f32 0.0, %v1972
        %v1974 = vpop.f32.mrf.mxu0
        %v1975 = vadd.f32 0.0, %v1974
        %1976 = vdwg.mxu0
        %1977 = vmatpush.bf16.msra.mxu0 %v1931
        %1978 = vmatpush.bf16.msra.mxu0 %v1929
        %1979 = vmatpush.bf16.msra.mxu0 %v1927
        %1980 = vmatpush.bf16.msra.mxu0 %v1925
        %1981 = vmatpush.bf16.msra.mxu0 %v1923
        %1982 = vmatpush.bf16.msra.mxu0 %v1921
        %1983 = vmatpush.bf16.msra.mxu0 %v1919
        %1984 = vmatpush.bf16.msra.mxu0 %v1917
        %1985 = vmatmul.bf16.gmra.mxu0 %v1885
        %v1986 = vpop.f32.mrf.mxu0
        %v1987 = vadd.f32 %v1958, %v1986
        %v1988 = vpop.f32.mrf.mxu0
        %v1989 = vadd.f32 %v1960, %v1988
        %1990 = vmatmul.bf16.gmra.mxu0 %v1887
        %v1991 = vpop.f32.mrf.mxu0
        %v1992 = vadd.f32 %v1963, %v1991
        %v1993 = vpop.f32.mrf.mxu0
        %v1994 = vadd.f32 %v1965, %v1993
        %1995 = vmatmul.bf16.gmra.mxu0 %v1889
        %v1996 = vpop.f32.mrf.mxu0
        %v1997 = vadd.f32 %v1968, %v1996
        %v1998 = vpop.f32.mrf.mxu0
        %v1999 = vadd.f32 %v1970, %v1998
        %2000 = vmatmul.bf16.gmra.mxu0 %v1891
        %v2001 = vpop.f32.mrf.mxu0
        %v2002 = vadd.f32 %v1973, %v2001
        %v2003 = vpop.f32.mrf.mxu0
        %v2004 = vadd.f32 %v1975, %v2003
        %2005 = vdwg.mxu0
        %v2006 = vadd.f32 %v1843, %v1987
        %v2007 = vadd.f32 %v1844, %v1989
        %v2008 = vadd.f32 %v1845, %v1992
        %v2009 = vadd.f32 %v1846, %v1994
        %v2010 = vadd.f32 %v1847, %v1997
        %v2011 = vadd.f32 %v1848, %v1999
        %v2012 = vadd.f32 %v1849, %v2002
        %v2013 = vadd.f32 %v1850, %v2004
        %s2014 = scalar_lea.vmem [#allocation5], 256
        %v2015 = vld [vmem:[%s2014] sm:$0xff]
        %v2016 = vld [vmem:[%s2014 + $0x8] sm:$0xff]
        %v2017 = vld [vmem:[%s2014 + $0x10] sm:$0xff]
        %v2018 = vld [vmem:[%s2014 + $0x18] sm:$0xff]
        %v2019 = vld [vmem:[%s2014 + $0x20] sm:$0xff]
        %v2020 = vld [vmem:[%s2014 + $0x28] sm:$0xff]
        %v2021 = vld [vmem:[%s2014 + $0x30] sm:$0xff]
        %v2022 = vld [vmem:[%s2014 + $0x38] sm:$0xff]
        %v2031 = vunpack.c.l.b16 %v2015
        %v2032 = vunpack.c.h.b16 %v2015
        %v2033 = vunpack.c.l.b16 %v2016
        %v2034 = vunpack.c.h.b16 %v2016
        %v2035 = vunpack.c.l.b16 %v2017
        %v2036 = vunpack.c.h.b16 %v2017
        %v2037 = vunpack.c.l.b16 %v2018
        %v2038 = vunpack.c.h.b16 %v2018
        %v2039 = vunpack.c.l.b16 %v2019
        %v2040 = vunpack.c.h.b16 %v2019
        %v2041 = vunpack.c.l.b16 %v2020
        %v2042 = vunpack.c.h.b16 %v2020
        %v2043 = vunpack.c.l.b16 %v2021
        %v2044 = vunpack.c.h.b16 %v2021
        %v2045 = vunpack.c.l.b16 %v2022
        %v2046 = vunpack.c.h.b16 %v2022
        %v2047 = vpack.c.b16 %v2033, %v2031
        %v2048 = vpack.c.b16 %v2034, %v2032
        %v2049 = vpack.c.b16 %v2037, %v2035
        %v2050 = vpack.c.b16 %v2038, %v2036
        %v2051 = vpack.c.b16 %v2041, %v2039
        %v2052 = vpack.c.b16 %v2042, %v2040
        %v2053 = vpack.c.b16 %v2045, %v2043
        %v2054 = vpack.c.b16 %v2046, %v2044
        %2063 = vrot.lane.b32.xlu0 %v1452, 80
        %v2064 = vpop.permute.xlu0 %2063
        %2065 = vrot.lane.b32.xlu0 %v1453, 80
        %v2066 = vpop.permute.xlu0 %2065
        %2067 = vrot.lane.b32.xlu0 %v1454, 80
        %v2068 = vpop.permute.xlu0 %2067
        %2069 = vrot.lane.b32.xlu0 %v1455, 80
        %v2070 = vpop.permute.xlu0 %2069
        %2071 = vrot.lane.b32.xlu0 %v1456, 80
        %v2072 = vpop.permute.xlu0 %2071
        %2073 = vrot.lane.b32.xlu0 %v1457, 80
        %v2074 = vpop.permute.xlu0 %2073
        %2075 = vrot.lane.b32.xlu0 %v1458, 80
        %v2076 = vpop.permute.xlu0 %2075
        %2077 = vrot.lane.b32.xlu0 %v1459, 80
        %v2078 = vpop.permute.xlu0 %2077
        %2079 = vrot.lane.b32.xlu0 %v1460, 80
        %v2080 = vpop.permute.xlu0 %2079
        %2081 = vrot.lane.b32.xlu0 %v1461, 80
        %v2082 = vpop.permute.xlu0 %2081
        %2083 = vrot.lane.b32.xlu0 %v1462, 80
        %v2084 = vpop.permute.xlu0 %2083
        %2085 = vrot.lane.b32.xlu0 %v1463, 80
        %v2086 = vpop.permute.xlu0 %2085
        %2087 = vrot.lane.b32.xlu0 %v1464, 80
        %v2088 = vpop.permute.xlu0 %2087
        %2089 = vrot.lane.b32.xlu0 %v1465, 80
        %v2090 = vpop.permute.xlu0 %2089
        %2091 = vrot.lane.b32.xlu0 %v1466, 80
        %v2092 = vpop.permute.xlu0 %2091
        %2093 = vrot.lane.b32.xlu0 %v1467, 80
        %v2094 = vpop.permute.xlu0 %2093
        %2111 = vmatpush.bf16.msra.mxu0 %v2078
        %2112 = vmatpush.bf16.msra.mxu0 %v2076
        %2113 = vmatpush.bf16.msra.mxu0 %v2074
        %2114 = vmatpush.bf16.msra.mxu0 %v2072
        %2115 = vmatpush.bf16.msra.mxu0 %v2070
        %2116 = vmatpush.bf16.msra.mxu0 %v2068
        %2117 = vmatpush.bf16.msra.mxu0 %v2066
        %2118 = vmatpush.bf16.msra.mxu0 %v2064
        %2119 = vmatmul.bf16.gmra.mxu0 %v2047
        %v2120 = vpop.f32.mrf.mxu0
        %v2121 = vadd.f32 0.0, %v2120
        %v2122 = vpop.f32.mrf.mxu0
        %v2123 = vadd.f32 0.0, %v2122
        %2124 = vmatmul.bf16.gmra.mxu0 %v2049
        %v2125 = vpop.f32.mrf.mxu0
        %v2126 = vadd.f32 0.0, %v2125
        %v2127 = vpop.f32.mrf.mxu0
        %v2128 = vadd.f32 0.0, %v2127
        %2129 = vmatmul.bf16.gmra.mxu0 %v2051
        %v2130 = vpop.f32.mrf.mxu0
        %v2131 = vadd.f32 0.0, %v2130
        %v2132 = vpop.f32.mrf.mxu0
        %v2133 = vadd.f32 0.0, %v2132
        %2134 = vmatmul.bf16.gmra.mxu0 %v2053
        %v2135 = vpop.f32.mrf.mxu0
        %v2136 = vadd.f32 0.0, %v2135
        %v2137 = vpop.f32.mrf.mxu0
        %v2138 = vadd.f32 0.0, %v2137
        %2139 = vdwg.mxu0
        %2140 = vmatpush.bf16.msra.mxu0 %v2094
        %2141 = vmatpush.bf16.msra.mxu0 %v2092
        %2142 = vmatpush.bf16.msra.mxu0 %v2090
        %2143 = vmatpush.bf16.msra.mxu0 %v2088
        %2144 = vmatpush.bf16.msra.mxu0 %v2086
        %2145 = vmatpush.bf16.msra.mxu0 %v2084
        %2146 = vmatpush.bf16.msra.mxu0 %v2082
        %2147 = vmatpush.bf16.msra.mxu0 %v2080
        %2148 = vmatmul.bf16.gmra.mxu0 %v2048
        %v2149 = vpop.f32.mrf.mxu0
        %v2150 = vadd.f32 %v2121, %v2149
        %v2151 = vpop.f32.mrf.mxu0
        %v2152 = vadd.f32 %v2123, %v2151
        %2153 = vmatmul.bf16.gmra.mxu0 %v2050
        %v2154 = vpop.f32.mrf.mxu0
        %v2155 = vadd.f32 %v2126, %v2154
        %v2156 = vpop.f32.mrf.mxu0
        %v2157 = vadd.f32 %v2128, %v2156
        %2158 = vmatmul.bf16.gmra.mxu0 %v2052
        %v2159 = vpop.f32.mrf.mxu0
        %v2160 = vadd.f32 %v2131, %v2159
        %v2161 = vpop.f32.mrf.mxu0
        %v2162 = vadd.f32 %v2133, %v2161
        %2163 = vmatmul.bf16.gmra.mxu0 %v2054
        %v2164 = vpop.f32.mrf.mxu0
        %v2165 = vadd.f32 %v2136, %v2164
        %v2166 = vpop.f32.mrf.mxu0
        %v2167 = vadd.f32 %v2138, %v2166
        %2168 = vdwg.mxu0
        %v2169 = vadd.f32 %v2006, %v2150
        %v2170 = vadd.f32 %v2007, %v2152
        %v2171 = vadd.f32 %v2008, %v2155
        %v2172 = vadd.f32 %v2009, %v2157
        %v2173 = vadd.f32 %v2010, %v2160
        %v2174 = vadd.f32 %v2011, %v2162
        %v2175 = vadd.f32 %v2012, %v2165
        %v2176 = vadd.f32 %v2013, %v2167
        %s2177 = scalar_lea.vmem [#allocation5], 320
        %v2178 = vld [vmem:[%s2177] sm:$0xff]
        %v2179 = vld [vmem:[%s2177 + $0x8] sm:$0xff]
        %v2180 = vld [vmem:[%s2177 + $0x10] sm:$0xff]
        %v2181 = vld [vmem:[%s2177 + $0x18] sm:$0xff]
        %v2182 = vld [vmem:[%s2177 + $0x20] sm:$0xff]
        %v2183 = vld [vmem:[%s2177 + $0x28] sm:$0xff]
        %v2184 = vld [vmem:[%s2177 + $0x30] sm:$0xff]
        %v2185 = vld [vmem:[%s2177 + $0x38] sm:$0xff]
        %v2194 = vunpack.c.l.b16 %v2178
        %v2195 = vunpack.c.h.b16 %v2178
        %v2196 = vunpack.c.l.b16 %v2179
        %v2197 = vunpack.c.h.b16 %v2179
        %v2198 = vunpack.c.l.b16 %v2180
        %v2199 = vunpack.c.h.b16 %v2180
        %v2200 = vunpack.c.l.b16 %v2181
        %v2201 = vunpack.c.h.b16 %v2181
        %v2202 = vunpack.c.l.b16 %v2182
        %v2203 = vunpack.c.h.b16 %v2182
        %v2204 = vunpack.c.l.b16 %v2183
        %v2205 = vunpack.c.h.b16 %v2183
        %v2206 = vunpack.c.l.b16 %v2184
        %v2207 = vunpack.c.h.b16 %v2184
        %v2208 = vunpack.c.l.b16 %v2185
        %v2209 = vunpack.c.h.b16 %v2185
        %v2210 = vpack.c.b16 %v2196, %v2194
        %v2211 = vpack.c.b16 %v2197, %v2195
        %v2212 = vpack.c.b16 %v2200, %v2198
        %v2213 = vpack.c.b16 %v2201, %v2199
        %v2214 = vpack.c.b16 %v2204, %v2202
        %v2215 = vpack.c.b16 %v2205, %v2203
        %v2216 = vpack.c.b16 %v2208, %v2206
        %v2217 = vpack.c.b16 %v2209, %v2207
        %2226 = vrot.lane.b32.xlu0 %v1452, 68
        %v2227 = vpop.permute.xlu0 %2226
        %2228 = vrot.lane.b32.xlu0 %v1453, 68
        %v2229 = vpop.permute.xlu0 %2228
        %2230 = vrot.lane.b32.xlu0 %v1454, 68
        %v2231 = vpop.permute.xlu0 %2230
        %2232 = vrot.lane.b32.xlu0 %v1455, 68
        %v2233 = vpop.permute.xlu0 %2232
        %2234 = vrot.lane.b32.xlu0 %v1456, 68
        %v2235 = vpop.permute.xlu0 %2234
        %2236 = vrot.lane.b32.xlu0 %v1457, 68
        %v2237 = vpop.permute.xlu0 %2236
        %2238 = vrot.lane.b32.xlu0 %v1458, 68
        %v2239 = vpop.permute.xlu0 %2238
        %2240 = vrot.lane.b32.xlu0 %v1459, 68
        %v2241 = vpop.permute.xlu0 %2240
        %2242 = vrot.lane.b32.xlu0 %v1460, 68
        %v2243 = vpop.permute.xlu0 %2242
        %2244 = vrot.lane.b32.xlu0 %v1461, 68
        %v2245 = vpop.permute.xlu0 %2244
        %2246 = vrot.lane.b32.xlu0 %v1462, 68
        %v2247 = vpop.permute.xlu0 %2246
        %2248 = vrot.lane.b32.xlu0 %v1463, 68
        %v2249 = vpop.permute.xlu0 %2248
        %2250 = vrot.lane.b32.xlu0 %v1464, 68
        %v2251 = vpop.permute.xlu0 %2250
        %2252 = vrot.lane.b32.xlu0 %v1465, 68
        %v2253 = vpop.permute.xlu0 %2252
        %2254 = vrot.lane.b32.xlu0 %v1466, 68
        %v2255 = vpop.permute.xlu0 %2254
        %2256 = vrot.lane.b32.xlu0 %v1467, 68
        %v2257 = vpop.permute.xlu0 %2256
        %2274 = vmatpush.bf16.msra.mxu0 %v2241
        %2275 = vmatpush.bf16.msra.mxu0 %v2239
        %2276 = vmatpush.bf16.msra.mxu0 %v2237
        %2277 = vmatpush.bf16.msra.mxu0 %v2235
        %2278 = vmatpush.bf16.msra.mxu0 %v2233
        %2279 = vmatpush.bf16.msra.mxu0 %v2231
        %2280 = vmatpush.bf16.msra.mxu0 %v2229
        %2281 = vmatpush.bf16.msra.mxu0 %v2227
        %2282 = vmatmul.bf16.gmra.mxu0 %v2210
        %v2283 = vpop.f32.mrf.mxu0
        %v2284 = vadd.f32 0.0, %v2283
        %v2285 = vpop.f32.mrf.mxu0
        %v2286 = vadd.f32 0.0, %v2285
        %2287 = vmatmul.bf16.gmra.mxu0 %v2212
        %v2288 = vpop.f32.mrf.mxu0
        %v2289 = vadd.f32 0.0, %v2288
        %v2290 = vpop.f32.mrf.mxu0
        %v2291 = vadd.f32 0.0, %v2290
        %2292 = vmatmul.bf16.gmra.mxu0 %v2214
        %v2293 = vpop.f32.mrf.mxu0
        %v2294 = vadd.f32 0.0, %v2293
        %v2295 = vpop.f32.mrf.mxu0
        %v2296 = vadd.f32 0.0, %v2295
        %2297 = vmatmul.bf16.gmra.mxu0 %v2216
        %v2298 = vpop.f32.mrf.mxu0
        %v2299 = vadd.f32 0.0, %v2298
        %v2300 = vpop.f32.mrf.mxu0
        %v2301 = vadd.f32 0.0, %v2300
        %2302 = vdwg.mxu0
        %2303 = vmatpush.bf16.msra.mxu0 %v2257
        %2304 = vmatpush.bf16.msra.mxu0 %v2255
        %2305 = vmatpush.bf16.msra.mxu0 %v2253
        %2306 = vmatpush.bf16.msra.mxu0 %v2251
        %2307 = vmatpush.bf16.msra.mxu0 %v2249
        %2308 = vmatpush.bf16.msra.mxu0 %v2247
        %2309 = vmatpush.bf16.msra.mxu0 %v2245
        %2310 = vmatpush.bf16.msra.mxu0 %v2243
        %2311 = vmatmul.bf16.gmra.mxu0 %v2211
        %v2312 = vpop.f32.mrf.mxu0
        %v2313 = vadd.f32 %v2284, %v2312
        %v2314 = vpop.f32.mrf.mxu0
        %v2315 = vadd.f32 %v2286, %v2314
        %2316 = vmatmul.bf16.gmra.mxu0 %v2213
        %v2317 = vpop.f32.mrf.mxu0
        %v2318 = vadd.f32 %v2289, %v2317
        %v2319 = vpop.f32.mrf.mxu0
        %v2320 = vadd.f32 %v2291, %v2319
        %2321 = vmatmul.bf16.gmra.mxu0 %v2215
        %v2322 = vpop.f32.mrf.mxu0
        %v2323 = vadd.f32 %v2294, %v2322
        %v2324 = vpop.f32.mrf.mxu0
        %v2325 = vadd.f32 %v2296, %v2324
        %2326 = vmatmul.bf16.gmra.mxu0 %v2217
        %v2327 = vpop.f32.mrf.mxu0
        %v2328 = vadd.f32 %v2299, %v2327
        %v2329 = vpop.f32.mrf.mxu0
        %v2330 = vadd.f32 %v2301, %v2329
        %2331 = vdwg.mxu0
        %v2332 = vadd.f32 %v2169, %v2313
        %v2333 = vadd.f32 %v2170, %v2315
        %v2334 = vadd.f32 %v2171, %v2318
        %v2335 = vadd.f32 %v2172, %v2320
        %v2336 = vadd.f32 %v2173, %v2323
        %v2337 = vadd.f32 %v2174, %v2325
        %v2338 = vadd.f32 %v2175, %v2328
        %v2339 = vadd.f32 %v2176, %v2330
        %s2340 = scalar_lea.vmem [#allocation5], 384
        %v2341 = vld [vmem:[%s2340] sm:$0xff]
        %v2342 = vld [vmem:[%s2340 + $0x8] sm:$0xff]
        %v2343 = vld [vmem:[%s2340 + $0x10] sm:$0xff]
        %v2344 = vld [vmem:[%s2340 + $0x18] sm:$0xff]
        %v2345 = vld [vmem:[%s2340 + $0x20] sm:$0xff]
        %v2346 = vld [vmem:[%s2340 + $0x28] sm:$0xff]
        %v2347 = vld [vmem:[%s2340 + $0x30] sm:$0xff]
        %v2348 = vld [vmem:[%s2340 + $0x38] sm:$0xff]
        %v2357 = vunpack.c.l.b16 %v2341
        %v2358 = vunpack.c.h.b16 %v2341
        %v2359 = vunpack.c.l.b16 %v2342
        %v2360 = vunpack.c.h.b16 %v2342
        %v2361 = vunpack.c.l.b16 %v2343
        %v2362 = vunpack.c.h.b16 %v2343
        %v2363 = vunpack.c.l.b16 %v2344
        %v2364 = vunpack.c.h.b16 %v2344
        %v2365 = vunpack.c.l.b16 %v2345
        %v2366 = vunpack.c.h.b16 %v2345
        %v2367 = vunpack.c.l.b16 %v2346
        %v2368 = vunpack.c.h.b16 %v2346
        %v2369 = vunpack.c.l.b16 %v2347
        %v2370 = vunpack.c.h.b16 %v2347
        %v2371 = vunpack.c.l.b16 %v2348
        %v2372 = vunpack.c.h.b16 %v2348
        %v2373 = vpack.c.b16 %v2359, %v2357
        %v2374 = vpack.c.b16 %v2360, %v2358
        %v2375 = vpack.c.b16 %v2363, %v2361
        %v2376 = vpack.c.b16 %v2364, %v2362
        %v2377 = vpack.c.b16 %v2367, %v2365
        %v2378 = vpack.c.b16 %v2368, %v2366
        %v2379 = vpack.c.b16 %v2371, %v2369
        %v2380 = vpack.c.b16 %v2372, %v2370
        %2389 = vrot.lane.b32.xlu0 %v1452, 56
        %v2390 = vpop.permute.xlu0 %2389
        %2391 = vrot.lane.b32.xlu0 %v1453, 56
        %v2392 = vpop.permute.xlu0 %2391
        %2393 = vrot.lane.b32.xlu0 %v1454, 56
        %v2394 = vpop.permute.xlu0 %2393
        %2395 = vrot.lane.b32.xlu0 %v1455, 56
        %v2396 = vpop.permute.xlu0 %2395
        %2397 = vrot.lane.b32.xlu0 %v1456, 56
        %v2398 = vpop.permute.xlu0 %2397
        %2399 = vrot.lane.b32.xlu0 %v1457, 56
        %v2400 = vpop.permute.xlu0 %2399
        %2401 = vrot.lane.b32.xlu0 %v1458, 56
        %v2402 = vpop.permute.xlu0 %2401
        %2403 = vrot.lane.b32.xlu0 %v1459, 56
        %v2404 = vpop.permute.xlu0 %2403
        %2405 = vrot.lane.b32.xlu0 %v1460, 56
        %v2406 = vpop.permute.xlu0 %2405
        %2407 = vrot.lane.b32.xlu0 %v1461, 56
        %v2408 = vpop.permute.xlu0 %2407
        %2409 = vrot.lane.b32.xlu0 %v1462, 56
        %v2410 = vpop.permute.xlu0 %2409
        %2411 = vrot.lane.b32.xlu0 %v1463, 56
        %v2412 = vpop.permute.xlu0 %2411
        %2413 = vrot.lane.b32.xlu0 %v1464, 56
        %v2414 = vpop.permute.xlu0 %2413
        %2415 = vrot.lane.b32.xlu0 %v1465, 56
        %v2416 = vpop.permute.xlu0 %2415
        %2417 = vrot.lane.b32.xlu0 %v1466, 56
        %v2418 = vpop.permute.xlu0 %2417
        %2419 = vrot.lane.b32.xlu0 %v1467, 56
        %v2420 = vpop.permute.xlu0 %2419
        %2437 = vmatpush.bf16.msra.mxu0 %v2404
        %2438 = vmatpush.bf16.msra.mxu0 %v2402
        %2439 = vmatpush.bf16.msra.mxu0 %v2400
        %2440 = vmatpush.bf16.msra.mxu0 %v2398
        %2441 = vmatpush.bf16.msra.mxu0 %v2396
        %2442 = vmatpush.bf16.msra.mxu0 %v2394
        %2443 = vmatpush.bf16.msra.mxu0 %v2392
        %2444 = vmatpush.bf16.msra.mxu0 %v2390
        %2445 = vmatmul.bf16.gmra.mxu0 %v2373
        %v2446 = vpop.f32.mrf.mxu0
        %v2447 = vadd.f32 0.0, %v2446
        %v2448 = vpop.f32.mrf.mxu0
        %v2449 = vadd.f32 0.0, %v2448
        %2450 = vmatmul.bf16.gmra.mxu0 %v2375
        %v2451 = vpop.f32.mrf.mxu0
        %v2452 = vadd.f32 0.0, %v2451
        %v2453 = vpop.f32.mrf.mxu0
        %v2454 = vadd.f32 0.0, %v2453
        %2455 = vmatmul.bf16.gmra.mxu0 %v2377
        %v2456 = vpop.f32.mrf.mxu0
        %v2457 = vadd.f32 0.0, %v2456
        %v2458 = vpop.f32.mrf.mxu0
        %v2459 = vadd.f32 0.0, %v2458
        %2460 = vmatmul.bf16.gmra.mxu0 %v2379
        %v2461 = vpop.f32.mrf.mxu0
        %v2462 = vadd.f32 0.0, %v2461
        %v2463 = vpop.f32.mrf.mxu0
        %v2464 = vadd.f32 0.0, %v2463
        %2465 = vdwg.mxu0
        %2466 = vmatpush.bf16.msra.mxu0 %v2420
        %2467 = vmatpush.bf16.msra.mxu0 %v2418
        %2468 = vmatpush.bf16.msra.mxu0 %v2416
        %2469 = vmatpush.bf16.msra.mxu0 %v2414
        %2470 = vmatpush.bf16.msra.mxu0 %v2412
        %2471 = vmatpush.bf16.msra.mxu0 %v2410
        %2472 = vmatpush.bf16.msra.mxu0 %v2408
        %2473 = vmatpush.bf16.msra.mxu0 %v2406
        %2474 = vmatmul.bf16.gmra.mxu0 %v2374
        %v2475 = vpop.f32.mrf.mxu0
        %v2476 = vadd.f32 %v2447, %v2475
        %v2477 = vpop.f32.mrf.mxu0
        %v2478 = vadd.f32 %v2449, %v2477
        %2479 = vmatmul.bf16.gmra.mxu0 %v2376
        %v2480 = vpop.f32.mrf.mxu0
        %v2481 = vadd.f32 %v2452, %v2480
        %v2482 = vpop.f32.mrf.mxu0
        %v2483 = vadd.f32 %v2454, %v2482
        %2484 = vmatmul.bf16.gmra.mxu0 %v2378
        %v2485 = vpop.f32.mrf.mxu0
        %v2486 = vadd.f32 %v2457, %v2485
        %v2487 = vpop.f32.mrf.mxu0
        %v2488 = vadd.f32 %v2459, %v2487
        %2489 = vmatmul.bf16.gmra.mxu0 %v2380
        %v2490 = vpop.f32.mrf.mxu0
        %v2491 = vadd.f32 %v2462, %v2490
        %v2492 = vpop.f32.mrf.mxu0
        %v2493 = vadd.f32 %v2464, %v2492
        %2494 = vdwg.mxu0
        %v2495 = vadd.f32 %v2332, %v2476
        %v2496 = vadd.f32 %v2333, %v2478
        %v2497 = vadd.f32 %v2334, %v2481
        %v2498 = vadd.f32 %v2335, %v2483
        %v2499 = vadd.f32 %v2336, %v2486
        %v2500 = vadd.f32 %v2337, %v2488
        %v2501 = vadd.f32 %v2338, %v2491
        %v2502 = vadd.f32 %v2339, %v2493
        %s2503 = scalar_lea.vmem [#allocation5], 448
        %v2504 = vld [vmem:[%s2503] sm:$0xff]
        %v2505 = vld [vmem:[%s2503 + $0x8] sm:$0xff]
        %v2506 = vld [vmem:[%s2503 + $0x10] sm:$0xff]
        %v2507 = vld [vmem:[%s2503 + $0x18] sm:$0xff]
        %v2508 = vld [vmem:[%s2503 + $0x20] sm:$0xff]
        %v2509 = vld [vmem:[%s2503 + $0x28] sm:$0xff]
        %v2510 = vld [vmem:[%s2503 + $0x30] sm:$0xff]
        %v2511 = vld [vmem:[%s2503 + $0x38] sm:$0xff]
        %v2520 = vunpack.c.l.b16 %v2504
        %v2521 = vunpack.c.h.b16 %v2504
        %v2522 = vunpack.c.l.b16 %v2505
        %v2523 = vunpack.c.h.b16 %v2505
        %v2524 = vunpack.c.l.b16 %v2506
        %v2525 = vunpack.c.h.b16 %v2506
        %v2526 = vunpack.c.l.b16 %v2507
        %v2527 = vunpack.c.h.b16 %v2507
        %v2528 = vunpack.c.l.b16 %v2508
        %v2529 = vunpack.c.h.b16 %v2508
        %v2530 = vunpack.c.l.b16 %v2509
        %v2531 = vunpack.c.h.b16 %v2509
        %v2532 = vunpack.c.l.b16 %v2510
        %v2533 = vunpack.c.h.b16 %v2510
        %v2534 = vunpack.c.l.b16 %v2511
        %v2535 = vunpack.c.h.b16 %v2511
        %v2536 = vpack.c.b16 %v2522, %v2520
        %v2537 = vpack.c.b16 %v2523, %v2521
        %v2538 = vpack.c.b16 %v2526, %v2524
        %v2539 = vpack.c.b16 %v2527, %v2525
        %v2540 = vpack.c.b16 %v2530, %v2528
        %v2541 = vpack.c.b16 %v2531, %v2529
        %v2542 = vpack.c.b16 %v2534, %v2532
        %v2543 = vpack.c.b16 %v2535, %v2533
        %2552 = vrot.lane.b32.xlu0 %v1452, 44
        %v2553 = vpop.permute.xlu0 %2552
        %2554 = vrot.lane.b32.xlu0 %v1453, 44
        %v2555 = vpop.permute.xlu0 %2554
        %2556 = vrot.lane.b32.xlu0 %v1454, 44
        %v2557 = vpop.permute.xlu0 %2556
        %2558 = vrot.lane.b32.xlu0 %v1455, 44
        %v2559 = vpop.permute.xlu0 %2558
        %2560 = vrot.lane.b32.xlu0 %v1456, 44
        %v2561 = vpop.permute.xlu0 %2560
        %2562 = vrot.lane.b32.xlu0 %v1457, 44
        %v2563 = vpop.permute.xlu0 %2562
        %2564 = vrot.lane.b32.xlu0 %v1458, 44
        %v2565 = vpop.permute.xlu0 %2564
        %2566 = vrot.lane.b32.xlu0 %v1459, 44
        %v2567 = vpop.permute.xlu0 %2566
        %2568 = vrot.lane.b32.xlu0 %v1460, 44
        %v2569 = vpop.permute.xlu0 %2568
        %2570 = vrot.lane.b32.xlu0 %v1461, 44
        %v2571 = vpop.permute.xlu0 %2570
        %2572 = vrot.lane.b32.xlu0 %v1462, 44
        %v2573 = vpop.permute.xlu0 %2572
        %2574 = vrot.lane.b32.xlu0 %v1463, 44
        %v2575 = vpop.permute.xlu0 %2574
        %2576 = vrot.lane.b32.xlu0 %v1464, 44
        %v2577 = vpop.permute.xlu0 %2576
        %2578 = vrot.lane.b32.xlu0 %v1465, 44
        %v2579 = vpop.permute.xlu0 %2578
        %2580 = vrot.lane.b32.xlu0 %v1466, 44
        %v2581 = vpop.permute.xlu0 %2580
        %2582 = vrot.lane.b32.xlu0 %v1467, 44
        %v2583 = vpop.permute.xlu0 %2582
        %2600 = vmatpush.bf16.msra.mxu0 %v2567
        %2601 = vmatpush.bf16.msra.mxu0 %v2565
        %2602 = vmatpush.bf16.msra.mxu0 %v2563
        %2603 = vmatpush.bf16.msra.mxu0 %v2561
        %2604 = vmatpush.bf16.msra.mxu0 %v2559
        %2605 = vmatpush.bf16.msra.mxu0 %v2557
        %2606 = vmatpush.bf16.msra.mxu0 %v2555
        %2607 = vmatpush.bf16.msra.mxu0 %v2553
        %2608 = vmatmul.bf16.gmra.mxu0 %v2536
        %v2609 = vpop.f32.mrf.mxu0
        %v2610 = vadd.f32 0.0, %v2609
        %v2611 = vpop.f32.mrf.mxu0
        %v2612 = vadd.f32 0.0, %v2611
        %2613 = vmatmul.bf16.gmra.mxu0 %v2538
        %v2614 = vpop.f32.mrf.mxu0
        %v2615 = vadd.f32 0.0, %v2614
        %v2616 = vpop.f32.mrf.mxu0
        %v2617 = vadd.f32 0.0, %v2616
        %2618 = vmatmul.bf16.gmra.mxu0 %v2540
        %v2619 = vpop.f32.mrf.mxu0
        %v2620 = vadd.f32 0.0, %v2619
        %v2621 = vpop.f32.mrf.mxu0
        %v2622 = vadd.f32 0.0, %v2621
        %2623 = vmatmul.bf16.gmra.mxu0 %v2542
        %v2624 = vpop.f32.mrf.mxu0
        %v2625 = vadd.f32 0.0, %v2624
        %v2626 = vpop.f32.mrf.mxu0
        %v2627 = vadd.f32 0.0, %v2626
        %2628 = vdwg.mxu0
        %2629 = vmatpush.bf16.msra.mxu0 %v2583
        %2630 = vmatpush.bf16.msra.mxu0 %v2581
        %2631 = vmatpush.bf16.msra.mxu0 %v2579
        %2632 = vmatpush.bf16.msra.mxu0 %v2577
        %2633 = vmatpush.bf16.msra.mxu0 %v2575
        %2634 = vmatpush.bf16.msra.mxu0 %v2573
        %2635 = vmatpush.bf16.msra.mxu0 %v2571
        %2636 = vmatpush.bf16.msra.mxu0 %v2569
        %2637 = vmatmul.bf16.gmra.mxu0 %v2537
        %v2638 = vpop.f32.mrf.mxu0
        %v2639 = vadd.f32 %v2610, %v2638
        %v2640 = vpop.f32.mrf.mxu0
        %v2641 = vadd.f32 %v2612, %v2640
        %2642 = vmatmul.bf16.gmra.mxu0 %v2539
        %v2643 = vpop.f32.mrf.mxu0
        %v2644 = vadd.f32 %v2615, %v2643
        %v2645 = vpop.f32.mrf.mxu0
        %v2646 = vadd.f32 %v2617, %v2645
        %2647 = vmatmul.bf16.gmra.mxu0 %v2541
        %v2648 = vpop.f32.mrf.mxu0
        %v2649 = vadd.f32 %v2620, %v2648
        %v2650 = vpop.f32.mrf.mxu0
        %v2651 = vadd.f32 %v2622, %v2650
        %2652 = vmatmul.bf16.gmra.mxu0 %v2543
        %v2653 = vpop.f32.mrf.mxu0
        %v2654 = vadd.f32 %v2625, %v2653
        %v2655 = vpop.f32.mrf.mxu0
        %v2656 = vadd.f32 %v2627, %v2655
        %2657 = vdwg.mxu0
        %v2658 = vadd.f32 %v2495, %v2639
        %v2659 = vadd.f32 %v2496, %v2641
        %v2660 = vadd.f32 %v2497, %v2644
        %v2661 = vadd.f32 %v2498, %v2646
        %v2662 = vadd.f32 %v2499, %v2649
        %v2663 = vadd.f32 %v2500, %v2651
        %v2664 = vadd.f32 %v2501, %v2654
        %v2665 = vadd.f32 %v2502, %v2656
        %s2666 = scalar_lea.vmem [#allocation5], 512
        %v2667 = vld [vmem:[%s2666] sm:$0xff]
        %v2668 = vld [vmem:[%s2666 + $0x8] sm:$0xff]
        %v2669 = vld [vmem:[%s2666 + $0x10] sm:$0xff]
        %v2670 = vld [vmem:[%s2666 + $0x18] sm:$0xff]
        %v2671 = vld [vmem:[%s2666 + $0x20] sm:$0xff]
        %v2672 = vld [vmem:[%s2666 + $0x28] sm:$0xff]
        %v2673 = vld [vmem:[%s2666 + $0x30] sm:$0xff]
        %v2674 = vld [vmem:[%s2666 + $0x38] sm:$0xff]
        %v2683 = vunpack.c.l.b16 %v2667
        %v2684 = vunpack.c.h.b16 %v2667
        %v2685 = vunpack.c.l.b16 %v2668
        %v2686 = vunpack.c.h.b16 %v2668
        %v2687 = vunpack.c.l.b16 %v2669
        %v2688 = vunpack.c.h.b16 %v2669
        %v2689 = vunpack.c.l.b16 %v2670
        %v2690 = vunpack.c.h.b16 %v2670
        %v2691 = vunpack.c.l.b16 %v2671
        %v2692 = vunpack.c.h.b16 %v2671
        %v2693 = vunpack.c.l.b16 %v2672
        %v2694 = vunpack.c.h.b16 %v2672
        %v2695 = vunpack.c.l.b16 %v2673
        %v2696 = vunpack.c.h.b16 %v2673
        %v2697 = vunpack.c.l.b16 %v2674
        %v2698 = vunpack.c.h.b16 %v2674
        %v2699 = vpack.c.b16 %v2685, %v2683
        %v2700 = vpack.c.b16 %v2686, %v2684
        %v2701 = vpack.c.b16 %v2689, %v2687
        %v2702 = vpack.c.b16 %v2690, %v2688
        %v2703 = vpack.c.b16 %v2693, %v2691
        %v2704 = vpack.c.b16 %v2694, %v2692
        %v2705 = vpack.c.b16 %v2697, %v2695
        %v2706 = vpack.c.b16 %v2698, %v2696
        %2715 = vrot.lane.b32.xlu0 %v1452, 32
        %v2716 = vpop.permute.xlu0 %2715
        %2717 = vrot.lane.b32.xlu0 %v1453, 32
        %v2718 = vpop.permute.xlu0 %2717
        %2719 = vrot.lane.b32.xlu0 %v1454, 32
        %v2720 = vpop.permute.xlu0 %2719
        %2721 = vrot.lane.b32.xlu0 %v1455, 32
        %v2722 = vpop.permute.xlu0 %2721
        %2723 = vrot.lane.b32.xlu0 %v1456, 32
        %v2724 = vpop.permute.xlu0 %2723
        %2725 = vrot.lane.b32.xlu0 %v1457, 32
        %v2726 = vpop.permute.xlu0 %2725
        %2727 = vrot.lane.b32.xlu0 %v1458, 32
        %v2728 = vpop.permute.xlu0 %2727
        %2729 = vrot.lane.b32.xlu0 %v1459, 32
        %v2730 = vpop.permute.xlu0 %2729
        %2731 = vrot.lane.b32.xlu0 %v1460, 32
        %v2732 = vpop.permute.xlu0 %2731
        %2733 = vrot.lane.b32.xlu0 %v1461, 32
        %v2734 = vpop.permute.xlu0 %2733
        %2735 = vrot.lane.b32.xlu0 %v1462, 32
        %v2736 = vpop.permute.xlu0 %2735
        %2737 = vrot.lane.b32.xlu0 %v1463, 32
        %v2738 = vpop.permute.xlu0 %2737
        %2739 = vrot.lane.b32.xlu0 %v1464, 32
        %v2740 = vpop.permute.xlu0 %2739
        %2741 = vrot.lane.b32.xlu0 %v1465, 32
        %v2742 = vpop.permute.xlu0 %2741
        %2743 = vrot.lane.b32.xlu0 %v1466, 32
        %v2744 = vpop.permute.xlu0 %2743
        %2745 = vrot.lane.b32.xlu0 %v1467, 32
        %v2746 = vpop.permute.xlu0 %2745
        %2763 = vmatpush.bf16.msra.mxu0 %v2730
        %2764 = vmatpush.bf16.msra.mxu0 %v2728
        %2765 = vmatpush.bf16.msra.mxu0 %v2726
        %2766 = vmatpush.bf16.msra.mxu0 %v2724
        %2767 = vmatpush.bf16.msra.mxu0 %v2722
        %2768 = vmatpush.bf16.msra.mxu0 %v2720
        %2769 = vmatpush.bf16.msra.mxu0 %v2718
        %2770 = vmatpush.bf16.msra.mxu0 %v2716
        %2771 = vmatmul.bf16.gmra.mxu0 %v2699
        %v2772 = vpop.f32.mrf.mxu0
        %v2773 = vadd.f32 0.0, %v2772
        %v2774 = vpop.f32.mrf.mxu0
        %v2775 = vadd.f32 0.0, %v2774
        %2776 = vmatmul.bf16.gmra.mxu0 %v2701
        %v2777 = vpop.f32.mrf.mxu0
        %v2778 = vadd.f32 0.0, %v2777
        %v2779 = vpop.f32.mrf.mxu0
        %v2780 = vadd.f32 0.0, %v2779
        %2781 = vmatmul.bf16.gmra.mxu0 %v2703
        %v2782 = vpop.f32.mrf.mxu0
        %v2783 = vadd.f32 0.0, %v2782
        %v2784 = vpop.f32.mrf.mxu0
        %v2785 = vadd.f32 0.0, %v2784
        %2786 = vmatmul.bf16.gmra.mxu0 %v2705
        %v2787 = vpop.f32.mrf.mxu0
        %v2788 = vadd.f32 0.0, %v2787
        %v2789 = vpop.f32.mrf.mxu0
        %v2790 = vadd.f32 0.0, %v2789
        %2791 = vdwg.mxu0
        %2792 = vmatpush.bf16.msra.mxu0 %v2746
        %2793 = vmatpush.bf16.msra.mxu0 %v2744
        %2794 = vmatpush.bf16.msra.mxu0 %v2742
        %2795 = vmatpush.bf16.msra.mxu0 %v2740
        %2796 = vmatpush.bf16.msra.mxu0 %v2738
        %2797 = vmatpush.bf16.msra.mxu0 %v2736
        %2798 = vmatpush.bf16.msra.mxu0 %v2734
        %2799 = vmatpush.bf16.msra.mxu0 %v2732
        %2800 = vmatmul.bf16.gmra.mxu0 %v2700
        %v2801 = vpop.f32.mrf.mxu0
        %v2802 = vadd.f32 %v2773, %v2801
        %v2803 = vpop.f32.mrf.mxu0
        %v2804 = vadd.f32 %v2775, %v2803
        %2805 = vmatmul.bf16.gmra.mxu0 %v2702
        %v2806 = vpop.f32.mrf.mxu0
        %v2807 = vadd.f32 %v2778, %v2806
        %v2808 = vpop.f32.mrf.mxu0
        %v2809 = vadd.f32 %v2780, %v2808
        %2810 = vmatmul.bf16.gmra.mxu0 %v2704
        %v2811 = vpop.f32.mrf.mxu0
        %v2812 = vadd.f32 %v2783, %v2811
        %v2813 = vpop.f32.mrf.mxu0
        %v2814 = vadd.f32 %v2785, %v2813
        %2815 = vmatmul.bf16.gmra.mxu0 %v2706
        %v2816 = vpop.f32.mrf.mxu0
        %v2817 = vadd.f32 %v2788, %v2816
        %v2818 = vpop.f32.mrf.mxu0
        %v2819 = vadd.f32 %v2790, %v2818
        %2820 = vdwg.mxu0
        %v2821 = vadd.f32 %v2658, %v2802
        %v2822 = vadd.f32 %v2659, %v2804
        %v2823 = vadd.f32 %v2660, %v2807
        %v2824 = vadd.f32 %v2661, %v2809
        %v2825 = vadd.f32 %v2662, %v2812
        %v2826 = vadd.f32 %v2663, %v2814
        %v2827 = vadd.f32 %v2664, %v2817
        %v2828 = vadd.f32 %v2665, %v2819
        %s2829 = scalar_lea.vmem [#allocation5], 576
        %v2830 = vld [vmem:[%s2829] sm:$0xff]
        %v2831 = vld [vmem:[%s2829 + $0x8] sm:$0xff]
        %v2832 = vld [vmem:[%s2829 + $0x10] sm:$0xff]
        %v2833 = vld [vmem:[%s2829 + $0x18] sm:$0xff]
        %v2834 = vld [vmem:[%s2829 + $0x20] sm:$0xff]
        %v2835 = vld [vmem:[%s2829 + $0x28] sm:$0xff]
        %v2836 = vld [vmem:[%s2829 + $0x30] sm:$0xff]
        %v2837 = vld [vmem:[%s2829 + $0x38] sm:$0xff]
        %v2846 = vunpack.c.l.b16 %v2830
        %v2847 = vunpack.c.h.b16 %v2830
        %v2848 = vunpack.c.l.b16 %v2831
        %v2849 = vunpack.c.h.b16 %v2831
        %v2850 = vunpack.c.l.b16 %v2832
        %v2851 = vunpack.c.h.b16 %v2832
        %v2852 = vunpack.c.l.b16 %v2833
        %v2853 = vunpack.c.h.b16 %v2833
        %v2854 = vunpack.c.l.b16 %v2834
        %v2855 = vunpack.c.h.b16 %v2834
        %v2856 = vunpack.c.l.b16 %v2835
        %v2857 = vunpack.c.h.b16 %v2835
        %v2858 = vunpack.c.l.b16 %v2836
        %v2859 = vunpack.c.h.b16 %v2836
        %v2860 = vunpack.c.l.b16 %v2837
        %v2861 = vunpack.c.h.b16 %v2837
        %v2862 = vpack.c.b16 %v2848, %v2846
        %v2863 = vpack.c.b16 %v2849, %v2847
        %v2864 = vpack.c.b16 %v2852, %v2850
        %v2865 = vpack.c.b16 %v2853, %v2851
        %v2866 = vpack.c.b16 %v2856, %v2854
        %v2867 = vpack.c.b16 %v2857, %v2855
        %v2868 = vpack.c.b16 %v2860, %v2858
        %v2869 = vpack.c.b16 %v2861, %v2859
        %2878 = vrot.lane.b32.xlu0 %v1452, 20
        %v2879 = vpop.permute.xlu0 %2878
        %2880 = vrot.lane.b32.xlu0 %v1453, 20
        %v2881 = vpop.permute.xlu0 %2880
        %2882 = vrot.lane.b32.xlu0 %v1454, 20
        %v2883 = vpop.permute.xlu0 %2882
        %2884 = vrot.lane.b32.xlu0 %v1455, 20
        %v2885 = vpop.permute.xlu0 %2884
        %2886 = vrot.lane.b32.xlu0 %v1456, 20
        %v2887 = vpop.permute.xlu0 %2886
        %2888 = vrot.lane.b32.xlu0 %v1457, 20
        %v2889 = vpop.permute.xlu0 %2888
        %2890 = vrot.lane.b32.xlu0 %v1458, 20
        %v2891 = vpop.permute.xlu0 %2890
        %2892 = vrot.lane.b32.xlu0 %v1459, 20
        %v2893 = vpop.permute.xlu0 %2892
        %2894 = vrot.lane.b32.xlu0 %v1460, 20
        %v2895 = vpop.permute.xlu0 %2894
        %2896 = vrot.lane.b32.xlu0 %v1461, 20
        %v2897 = vpop.permute.xlu0 %2896
        %2898 = vrot.lane.b32.xlu0 %v1462, 20
        %v2899 = vpop.permute.xlu0 %2898
        %2900 = vrot.lane.b32.xlu0 %v1463, 20
        %v2901 = vpop.permute.xlu0 %2900
        %2902 = vrot.lane.b32.xlu0 %v1464, 20
        %v2903 = vpop.permute.xlu0 %2902
        %2904 = vrot.lane.b32.xlu0 %v1465, 20
        %v2905 = vpop.permute.xlu0 %2904
        %2906 = vrot.lane.b32.xlu0 %v1466, 20
        %v2907 = vpop.permute.xlu0 %2906
        %2908 = vrot.lane.b32.xlu0 %v1467, 20
        %v2909 = vpop.permute.xlu0 %2908
        %2926 = vmatpush.bf16.msra.mxu0 %v2893
        %2927 = vmatpush.bf16.msra.mxu0 %v2891
        %2928 = vmatpush.bf16.msra.mxu0 %v2889
        %2929 = vmatpush.bf16.msra.mxu0 %v2887
        %2930 = vmatpush.bf16.msra.mxu0 %v2885
        %2931 = vmatpush.bf16.msra.mxu0 %v2883
        %2932 = vmatpush.bf16.msra.mxu0 %v2881
        %2933 = vmatpush.bf16.msra.mxu0 %v2879
        %2934 = vmatmul.bf16.gmra.mxu0 %v2862
        %v2935 = vpop.f32.mrf.mxu0
        %v2936 = vadd.f32 0.0, %v2935
        %v2937 = vpop.f32.mrf.mxu0
        %v2938 = vadd.f32 0.0, %v2937
        %2939 = vmatmul.bf16.gmra.mxu0 %v2864
        %v2940 = vpop.f32.mrf.mxu0
        %v2941 = vadd.f32 0.0, %v2940
        %v2942 = vpop.f32.mrf.mxu0
        %v2943 = vadd.f32 0.0, %v2942
        %2944 = vmatmul.bf16.gmra.mxu0 %v2866
        %v2945 = vpop.f32.mrf.mxu0
        %v2946 = vadd.f32 0.0, %v2945
        %v2947 = vpop.f32.mrf.mxu0
        %v2948 = vadd.f32 0.0, %v2947
        %2949 = vmatmul.bf16.gmra.mxu0 %v2868
        %v2950 = vpop.f32.mrf.mxu0
        %v2951 = vadd.f32 0.0, %v2950
        %v2952 = vpop.f32.mrf.mxu0
        %v2953 = vadd.f32 0.0, %v2952
        %2954 = vdwg.mxu0
        %2955 = vmatpush.bf16.msra.mxu0 %v2909
        %2956 = vmatpush.bf16.msra.mxu0 %v2907
        %2957 = vmatpush.bf16.msra.mxu0 %v2905
        %2958 = vmatpush.bf16.msra.mxu0 %v2903
        %2959 = vmatpush.bf16.msra.mxu0 %v2901
        %2960 = vmatpush.bf16.msra.mxu0 %v2899
        %2961 = vmatpush.bf16.msra.mxu0 %v2897
        %2962 = vmatpush.bf16.msra.mxu0 %v2895
        %2963 = vmatmul.bf16.gmra.mxu0 %v2863
        %v2964 = vpop.f32.mrf.mxu0
        %v2965 = vadd.f32 %v2936, %v2964
        %v2966 = vpop.f32.mrf.mxu0
        %v2967 = vadd.f32 %v2938, %v2966
        %2968 = vmatmul.bf16.gmra.mxu0 %v2865
        %v2969 = vpop.f32.mrf.mxu0
        %v2970 = vadd.f32 %v2941, %v2969
        %v2971 = vpop.f32.mrf.mxu0
        %v2972 = vadd.f32 %v2943, %v2971
        %2973 = vmatmul.bf16.gmra.mxu0 %v2867
        %v2974 = vpop.f32.mrf.mxu0
        %v2975 = vadd.f32 %v2946, %v2974
        %v2976 = vpop.f32.mrf.mxu0
        %v2977 = vadd.f32 %v2948, %v2976
        %2978 = vmatmul.bf16.gmra.mxu0 %v2869
        %v2979 = vpop.f32.mrf.mxu0
        %v2980 = vadd.f32 %v2951, %v2979
        %v2981 = vpop.f32.mrf.mxu0
        %v2982 = vadd.f32 %v2953, %v2981
        %2983 = vdwg.mxu0
        %v2984 = vadd.f32 %v2821, %v2965
        %v2985 = vadd.f32 %v2822, %v2967
        %v2986 = vadd.f32 %v2823, %v2970
        %v2987 = vadd.f32 %v2824, %v2972
        %v2988 = vadd.f32 %v2825, %v2975
        %v2989 = vadd.f32 %v2826, %v2977
        %v2990 = vadd.f32 %v2827, %v2980
        %v2991 = vadd.f32 %v2828, %v2982
        %s2992 = scalar_lea.vmem [#allocation5], 640
        %v2993 = vld [vmem:[%s2992] sm:$0xff]
        %v2994 = vld [vmem:[%s2992 + $0x8] sm:$0xff]
        %v2995 = vld [vmem:[%s2992 + $0x10] sm:$0xff]
        %v2996 = vld [vmem:[%s2992 + $0x18] sm:$0xff]
        %v2997 = vld [vmem:[%s2992 + $0x20] sm:$0xff]
        %v2998 = vld [vmem:[%s2992 + $0x28] sm:$0xff]
        %v2999 = vld [vmem:[%s2992 + $0x30] sm:$0xff]
        %v3000 = vld [vmem:[%s2992 + $0x38] sm:$0xff]
        %v3009 = vunpack.c.l.b16 %v2993
        %v3010 = vunpack.c.h.b16 %v2993
        %v3011 = vunpack.c.l.b16 %v2994
        %v3012 = vunpack.c.h.b16 %v2994
        %v3013 = vunpack.c.l.b16 %v2995
        %v3014 = vunpack.c.h.b16 %v2995
        %v3015 = vunpack.c.l.b16 %v2996
        %v3016 = vunpack.c.h.b16 %v2996
        %v3017 = vunpack.c.l.b16 %v2997
        %v3018 = vunpack.c.h.b16 %v2997
        %v3019 = vunpack.c.l.b16 %v2998
        %v3020 = vunpack.c.h.b16 %v2998
        %v3021 = vunpack.c.l.b16 %v2999
        %v3022 = vunpack.c.h.b16 %v2999
        %v3023 = vunpack.c.l.b16 %v3000
        %v3024 = vunpack.c.h.b16 %v3000
        %v3025 = vpack.c.b16 %v3011, %v3009
        %v3026 = vpack.c.b16 %v3012, %v3010
        %v3027 = vpack.c.b16 %v3015, %v3013
        %v3028 = vpack.c.b16 %v3016, %v3014
        %v3029 = vpack.c.b16 %v3019, %v3017
        %v3030 = vpack.c.b16 %v3020, %v3018
        %v3031 = vpack.c.b16 %v3023, %v3021
        %v3032 = vpack.c.b16 %v3024, %v3022
        %v3041 = vunpack.c.h.b16 %v1299
        %v3042 = vunpack.c.h.b16 %v1300
        %v3043 = vunpack.c.h.b16 %v1301
        %v3044 = vunpack.c.h.b16 %v1302
        %v3045 = vunpack.c.h.b16 %v1303
        %v3046 = vunpack.c.h.b16 %v1304
        %v3047 = vunpack.c.h.b16 %v1305
        %v3048 = vunpack.c.h.b16 %v1306
        %v3049 = vunpack.c.h.b16 %v1307
        %v3050 = vunpack.c.h.b16 %v1308
        %v3051 = vunpack.c.h.b16 %v1309
        %v3052 = vunpack.c.h.b16 %v1310
        %v3053 = vunpack.c.h.b16 %v1311
        %v3054 = vunpack.c.h.b16 %v1312
        %v3055 = vunpack.c.h.b16 %v1313
        %v3056 = vunpack.c.h.b16 %v1314
        %v3057 = vunpack.c.h.b16 %v1315
        %v3058 = vunpack.c.h.b16 %v1316
        %v3059 = vunpack.c.h.b16 %v1317
        %v3060 = vunpack.c.h.b16 %v1318
        %v3061 = vunpack.c.h.b16 %v1319
        %v3062 = vunpack.c.h.b16 %v1320
        %v3063 = vunpack.c.h.b16 %v1321
        %v3064 = vunpack.c.h.b16 %v1322
        %v3065 = vunpack.c.h.b16 %v1323
        %v3066 = vunpack.c.h.b16 %v1324
        %v3067 = vunpack.c.h.b16 %v1325
        %v3068 = vunpack.c.h.b16 %v1326
        %v3069 = vunpack.c.h.b16 %v1327
        %v3070 = vunpack.c.h.b16 %v1328
        %v3071 = vunpack.c.h.b16 %v1329
        %v3072 = vunpack.c.h.b16 %v1330
        %v3073 = vpack.c.b16 %v3042, %v3041
        %v3074 = vpack.c.b16 %v3044, %v3043
        %v3075 = vpack.c.b16 %v3046, %v3045
        %v3076 = vpack.c.b16 %v3048, %v3047
        %v3077 = vpack.c.b16 %v3050, %v3049
        %v3078 = vpack.c.b16 %v3052, %v3051
        %v3079 = vpack.c.b16 %v3054, %v3053
        %v3080 = vpack.c.b16 %v3056, %v3055
        %v3081 = vpack.c.b16 %v3058, %v3057
        %v3082 = vpack.c.b16 %v3060, %v3059
        %v3083 = vpack.c.b16 %v3062, %v3061
        %v3084 = vpack.c.b16 %v3064, %v3063
        %v3085 = vpack.c.b16 %v3066, %v3065
        %v3086 = vpack.c.b16 %v3068, %v3067
        %v3087 = vpack.c.b16 %v3070, %v3069
        %v3088 = vpack.c.b16 %v3072, %v3071
        %3089 = vrot.lane.b32.xlu0 %v1452, 8
        %v3090 = vpop.permute.xlu0 %3089
        %3091 = vrot.lane.b32.xlu0 %v3073, 8
        %v3092 = vpop.permute.xlu0 %3091
        %3093 = vrot.lane.b32.xlu0 %v1453, 8
        %v3094 = vpop.permute.xlu0 %3093
        %3095 = vrot.lane.b32.xlu0 %v3074, 8
        %v3096 = vpop.permute.xlu0 %3095
        %3097 = vrot.lane.b32.xlu0 %v1454, 8
        %v3098 = vpop.permute.xlu0 %3097
        %3099 = vrot.lane.b32.xlu0 %v3075, 8
        %v3100 = vpop.permute.xlu0 %3099
        %3101 = vrot.lane.b32.xlu0 %v1455, 8
        %v3102 = vpop.permute.xlu0 %3101
        %3103 = vrot.lane.b32.xlu0 %v3076, 8
        %v3104 = vpop.permute.xlu0 %3103
        %3105 = vrot.lane.b32.xlu0 %v1456, 8
        %v3106 = vpop.permute.xlu0 %3105
        %3107 = vrot.lane.b32.xlu0 %v3077, 8
        %v3108 = vpop.permute.xlu0 %3107
        %3109 = vrot.lane.b32.xlu0 %v1457, 8
        %v3110 = vpop.permute.xlu0 %3109
        %3111 = vrot.lane.b32.xlu0 %v3078, 8
        %v3112 = vpop.permute.xlu0 %3111
        %3113 = vrot.lane.b32.xlu0 %v1458, 8
        %v3114 = vpop.permute.xlu0 %3113
        %3115 = vrot.lane.b32.xlu0 %v3079, 8
        %v3116 = vpop.permute.xlu0 %3115
        %3117 = vrot.lane.b32.xlu0 %v1459, 8
        %v3118 = vpop.permute.xlu0 %3117
        %3119 = vrot.lane.b32.xlu0 %v3080, 8
        %v3120 = vpop.permute.xlu0 %3119
        %3121 = vrot.lane.b32.xlu0 %v1460, 8
        %v3122 = vpop.permute.xlu0 %3121
        %3123 = vrot.lane.b32.xlu0 %v3081, 8
        %v3124 = vpop.permute.xlu0 %3123
        %3125 = vrot.lane.b32.xlu0 %v1461, 8
        %v3126 = vpop.permute.xlu0 %3125
        %3127 = vrot.lane.b32.xlu0 %v3082, 8
        %v3128 = vpop.permute.xlu0 %3127
        %3129 = vrot.lane.b32.xlu0 %v1462, 8
        %v3130 = vpop.permute.xlu0 %3129
        %3131 = vrot.lane.b32.xlu0 %v3083, 8
        %v3132 = vpop.permute.xlu0 %3131
        %3133 = vrot.lane.b32.xlu0 %v1463, 8
        %v3134 = vpop.permute.xlu0 %3133
        %3135 = vrot.lane.b32.xlu0 %v3084, 8
        %v3136 = vpop.permute.xlu0 %3135
        %3137 = vrot.lane.b32.xlu0 %v1464, 8
        %v3138 = vpop.permute.xlu0 %3137
        %3139 = vrot.lane.b32.xlu0 %v3085, 8
        %v3140 = vpop.permute.xlu0 %3139
        %3141 = vrot.lane.b32.xlu0 %v1465, 8
        %v3142 = vpop.permute.xlu0 %3141
        %3143 = vrot.lane.b32.xlu0 %v3086, 8
        %v3144 = vpop.permute.xlu0 %3143
        %3145 = vrot.lane.b32.xlu0 %v1466, 8
        %v3146 = vpop.permute.xlu0 %3145
        %3147 = vrot.lane.b32.xlu0 %v3087, 8
        %v3148 = vpop.permute.xlu0 %3147
        %3149 = vrot.lane.b32.xlu0 %v1467, 8
        %v3150 = vpop.permute.xlu0 %3149
        %3151 = vrot.lane.b32.xlu0 %v3088, 8
        %v3152 = vpop.permute.xlu0 %3151
        %vm3153 = vcmask 64512
        %v3154 = vsel %vm3153, %v3090, %v3092
        %v3155 = vsel %vm3153, %v3094, %v3096
        %v3156 = vsel %vm3153, %v3098, %v3100
        %v3157 = vsel %vm3153, %v3102, %v3104
        %v3158 = vsel %vm3153, %v3106, %v3108
        %v3159 = vsel %vm3153, %v3110, %v3112
        %v3160 = vsel %vm3153, %v3114, %v3116
        %v3161 = vsel %vm3153, %v3118, %v3120
        %v3162 = vsel %vm3153, %v3122, %v3124
        %v3163 = vsel %vm3153, %v3126, %v3128
        %v3164 = vsel %vm3153, %v3130, %v3132
        %v3165 = vsel %vm3153, %v3134, %v3136
        %v3166 = vsel %vm3153, %v3138, %v3140
        %v3167 = vsel %vm3153, %v3142, %v3144
        %v3168 = vsel %vm3153, %v3146, %v3148
        %v3169 = vsel %vm3153, %v3150, %v3152
        %3186 = vmatpush.bf16.msra.mxu0 %v3161
        %3187 = vmatpush.bf16.msra.mxu0 %v3160
        %3188 = vmatpush.bf16.msra.mxu0 %v3159
        %3189 = vmatpush.bf16.msra.mxu0 %v3158
        %3190 = vmatpush.bf16.msra.mxu0 %v3157
        %3191 = vmatpush.bf16.msra.mxu0 %v3156
        %3192 = vmatpush.bf16.msra.mxu0 %v3155
        %3193 = vmatpush.bf16.msra.mxu0 %v3154
        %3194 = vmatmul.bf16.gmra.mxu0 %v3025
        %v3195 = vpop.f32.mrf.mxu0
        %v3196 = vadd.f32 0.0, %v3195
        %v3197 = vpop.f32.mrf.mxu0
        %v3198 = vadd.f32 0.0, %v3197
        %3199 = vmatmul.bf16.gmra.mxu0 %v3027
        %v3200 = vpop.f32.mrf.mxu0
        %v3201 = vadd.f32 0.0, %v3200
        %v3202 = vpop.f32.mrf.mxu0
        %v3203 = vadd.f32 0.0, %v3202
        %3204 = vmatmul.bf16.gmra.mxu0 %v3029
        %v3205 = vpop.f32.mrf.mxu0
        %v3206 = vadd.f32 0.0, %v3205
        %v3207 = vpop.f32.mrf.mxu0
        %v3208 = vadd.f32 0.0, %v3207
        %3209 = vmatmul.bf16.gmra.mxu0 %v3031
        %v3210 = vpop.f32.mrf.mxu0
        %v3211 = vadd.f32 0.0, %v3210
        %v3212 = vpop.f32.mrf.mxu0
        %v3213 = vadd.f32 0.0, %v3212
        %3214 = vdwg.mxu0
        %3215 = vmatpush.bf16.msra.mxu0 %v3169
        %3216 = vmatpush.bf16.msra.mxu0 %v3168
        %3217 = vmatpush.bf16.msra.mxu0 %v3167
        %3218 = vmatpush.bf16.msra.mxu0 %v3166
        %3219 = vmatpush.bf16.msra.mxu0 %v3165
        %3220 = vmatpush.bf16.msra.mxu0 %v3164
        %3221 = vmatpush.bf16.msra.mxu0 %v3163
        %3222 = vmatpush.bf16.msra.mxu0 %v3162
        %3223 = vmatmul.bf16.gmra.mxu0 %v3026
        %v3224 = vpop.f32.mrf.mxu0
        %v3225 = vadd.f32 %v3196, %v3224
        %v3226 = vpop.f32.mrf.mxu0
        %v3227 = vadd.f32 %v3198, %v3226
        %3228 = vmatmul.bf16.gmra.mxu0 %v3028
        %v3229 = vpop.f32.mrf.mxu0
        %v3230 = vadd.f32 %v3201, %v3229
        %v3231 = vpop.f32.mrf.mxu0
        %v3232 = vadd.f32 %v3203, %v3231
        %3233 = vmatmul.bf16.gmra.mxu0 %v3030
        %v3234 = vpop.f32.mrf.mxu0
        %v3235 = vadd.f32 %v3206, %v3234
        %v3236 = vpop.f32.mrf.mxu0
        %v3237 = vadd.f32 %v3208, %v3236
        %3238 = vmatmul.bf16.gmra.mxu0 %v3032
        %v3239 = vpop.f32.mrf.mxu0
        %v3240 = vadd.f32 %v3211, %v3239
        %v3241 = vpop.f32.mrf.mxu0
        %v3242 = vadd.f32 %v3213, %v3241
        %3243 = vdwg.mxu0
        %v3244 = vadd.f32 %v2984, %v3225
        %v3245 = vadd.f32 %v2985, %v3227
        %v3246 = vadd.f32 %v2986, %v3230
        %v3247 = vadd.f32 %v2987, %v3232
        %v3248 = vadd.f32 %v2988, %v3235
        %v3249 = vadd.f32 %v2989, %v3237
        %v3250 = vadd.f32 %v2990, %v3240
        %v3251 = vadd.f32 %v2991, %v3242
        %s3252 = scalar_lea.vmem [#allocation5], 704
        %v3253 = vld [vmem:[%s3252] sm:$0xff]
        %v3254 = vld [vmem:[%s3252 + $0x8] sm:$0xff]
        %v3255 = vld [vmem:[%s3252 + $0x10] sm:$0xff]
        %v3256 = vld [vmem:[%s3252 + $0x18] sm:$0xff]
        %v3257 = vld [vmem:[%s3252 + $0x20] sm:$0xff]
        %v3258 = vld [vmem:[%s3252 + $0x28] sm:$0xff]
        %v3259 = vld [vmem:[%s3252 + $0x30] sm:$0xff]
        %v3260 = vld [vmem:[%s3252 + $0x38] sm:$0xff]
        %v3269 = vunpack.c.l.b16 %v3253
        %v3270 = vunpack.c.h.b16 %v3253
        %v3271 = vunpack.c.l.b16 %v3254
        %v3272 = vunpack.c.h.b16 %v3254
        %v3273 = vunpack.c.l.b16 %v3255
        %v3274 = vunpack.c.h.b16 %v3255
        %v3275 = vunpack.c.l.b16 %v3256
        %v3276 = vunpack.c.h.b16 %v3256
        %v3277 = vunpack.c.l.b16 %v3257
        %v3278 = vunpack.c.h.b16 %v3257
        %v3279 = vunpack.c.l.b16 %v3258
        %v3280 = vunpack.c.h.b16 %v3258
        %v3281 = vunpack.c.l.b16 %v3259
        %v3282 = vunpack.c.h.b16 %v3259
        %v3283 = vunpack.c.l.b16 %v3260
        %v3284 = vunpack.c.h.b16 %v3260
        %v3285 = vpack.c.b16 %v3271, %v3269
        %v3286 = vpack.c.b16 %v3272, %v3270
        %v3287 = vpack.c.b16 %v3275, %v3273
        %v3288 = vpack.c.b16 %v3276, %v3274
        %v3289 = vpack.c.b16 %v3279, %v3277
        %v3290 = vpack.c.b16 %v3280, %v3278
        %v3291 = vpack.c.b16 %v3283, %v3281
        %v3292 = vpack.c.b16 %v3284, %v3282
        %3301 = vrot.lane.b32.xlu0 %v3073, 124
        %v3302 = vpop.permute.xlu0 %3301
        %3303 = vrot.lane.b32.xlu0 %v3074, 124
        %v3304 = vpop.permute.xlu0 %3303
        %3305 = vrot.lane.b32.xlu0 %v3075, 124
        %v3306 = vpop.permute.xlu0 %3305
        %3307 = vrot.lane.b32.xlu0 %v3076, 124
        %v3308 = vpop.permute.xlu0 %3307
        %3309 = vrot.lane.b32.xlu0 %v3077, 124
        %v3310 = vpop.permute.xlu0 %3309
        %3311 = vrot.lane.b32.xlu0 %v3078, 124
        %v3312 = vpop.permute.xlu0 %3311
        %3313 = vrot.lane.b32.xlu0 %v3079, 124
        %v3314 = vpop.permute.xlu0 %3313
        %3315 = vrot.lane.b32.xlu0 %v3080, 124
        %v3316 = vpop.permute.xlu0 %3315
        %3317 = vrot.lane.b32.xlu0 %v3081, 124
        %v3318 = vpop.permute.xlu0 %3317
        %3319 = vrot.lane.b32.xlu0 %v3082, 124
        %v3320 = vpop.permute.xlu0 %3319
        %3321 = vrot.lane.b32.xlu0 %v3083, 124
        %v3322 = vpop.permute.xlu0 %3321
        %3323 = vrot.lane.b32.xlu0 %v3084, 124
        %v3324 = vpop.permute.xlu0 %3323
        %3325 = vrot.lane.b32.xlu0 %v3085, 124
        %v3326 = vpop.permute.xlu0 %3325
        %3327 = vrot.lane.b32.xlu0 %v3086, 124
        %v3328 = vpop.permute.xlu0 %3327
        %3329 = vrot.lane.b32.xlu0 %v3087, 124
        %v3330 = vpop.permute.xlu0 %3329
        %3331 = vrot.lane.b32.xlu0 %v3088, 124
        %v3332 = vpop.permute.xlu0 %3331
        %3349 = vmatpush.bf16.msra.mxu0 %v3316
        %3350 = vmatpush.bf16.msra.mxu0 %v3314
        %3351 = vmatpush.bf16.msra.mxu0 %v3312
        %3352 = vmatpush.bf16.msra.mxu0 %v3310
        %3353 = vmatpush.bf16.msra.mxu0 %v3308
        %3354 = vmatpush.bf16.msra.mxu0 %v3306
        %3355 = vmatpush.bf16.msra.mxu0 %v3304
        %3356 = vmatpush.bf16.msra.mxu0 %v3302
        %3357 = vmatmul.bf16.gmra.mxu0 %v3285
        %v3358 = vpop.f32.mrf.mxu0
        %v3359 = vadd.f32 0.0, %v3358
        %v3360 = vpop.f32.mrf.mxu0
        %v3361 = vadd.f32 0.0, %v3360
        %3362 = vmatmul.bf16.gmra.mxu0 %v3287
        %v3363 = vpop.f32.mrf.mxu0
        %v3364 = vadd.f32 0.0, %v3363
        %v3365 = vpop.f32.mrf.mxu0
        %v3366 = vadd.f32 0.0, %v3365
        %3367 = vmatmul.bf16.gmra.mxu0 %v3289
        %v3368 = vpop.f32.mrf.mxu0
        %v3369 = vadd.f32 0.0, %v3368
        %v3370 = vpop.f32.mrf.mxu0
        %v3371 = vadd.f32 0.0, %v3370
        %3372 = vmatmul.bf16.gmra.mxu0 %v3291
        %v3373 = vpop.f32.mrf.mxu0
        %v3374 = vadd.f32 0.0, %v3373
        %v3375 = vpop.f32.mrf.mxu0
        %v3376 = vadd.f32 0.0, %v3375
        %3377 = vdwg.mxu0
        %3378 = vmatpush.bf16.msra.mxu0 %v3332
        %3379 = vmatpush.bf16.msra.mxu0 %v3330
        %3380 = vmatpush.bf16.msra.mxu0 %v3328
        %3381 = vmatpush.bf16.msra.mxu0 %v3326
        %3382 = vmatpush.bf16.msra.mxu0 %v3324
        %3383 = vmatpush.bf16.msra.mxu0 %v3322
        %3384 = vmatpush.bf16.msra.mxu0 %v3320
        %3385 = vmatpush.bf16.msra.mxu0 %v3318
        %3386 = vmatmul.bf16.gmra.mxu0 %v3286
        %v3387 = vpop.f32.mrf.mxu0
        %v3388 = vadd.f32 %v3359, %v3387
        %v3389 = vpop.f32.mrf.mxu0
        %v3390 = vadd.f32 %v3361, %v3389
        %3391 = vmatmul.bf16.gmra.mxu0 %v3288
        %v3392 = vpop.f32.mrf.mxu0
        %v3393 = vadd.f32 %v3364, %v3392
        %v3394 = vpop.f32.mrf.mxu0
        %v3395 = vadd.f32 %v3366, %v3394
        %3396 = vmatmul.bf16.gmra.mxu0 %v3290
        %v3397 = vpop.f32.mrf.mxu0
        %v3398 = vadd.f32 %v3369, %v3397
        %v3399 = vpop.f32.mrf.mxu0
        %v3400 = vadd.f32 %v3371, %v3399
        %3401 = vmatmul.bf16.gmra.mxu0 %v3292
        %v3402 = vpop.f32.mrf.mxu0
        %v3403 = vadd.f32 %v3374, %v3402
        %v3404 = vpop.f32.mrf.mxu0
        %v3405 = vadd.f32 %v3376, %v3404
        %3406 = vdwg.mxu0
        %v3407 = vadd.f32 %v3244, %v3388
        %v3408 = vadd.f32 %v3245, %v3390
        %v3409 = vadd.f32 %v3246, %v3393
        %v3410 = vadd.f32 %v3247, %v3395
        %v3411 = vadd.f32 %v3248, %v3398
        %v3412 = vadd.f32 %v3249, %v3400
        %v3413 = vadd.f32 %v3250, %v3403
        %v3414 = vadd.f32 %v3251, %v3405
        %s3415 = scalar_lea.vmem [#allocation5], 768
        %v3416 = vld [vmem:[%s3415] sm:$0xff]
        %v3417 = vld [vmem:[%s3415 + $0x8] sm:$0xff]
        %v3418 = vld [vmem:[%s3415 + $0x10] sm:$0xff]
        %v3419 = vld [vmem:[%s3415 + $0x18] sm:$0xff]
        %v3420 = vld [vmem:[%s3415 + $0x20] sm:$0xff]
        %v3421 = vld [vmem:[%s3415 + $0x28] sm:$0xff]
        %v3422 = vld [vmem:[%s3415 + $0x30] sm:$0xff]
        %v3423 = vld [vmem:[%s3415 + $0x38] sm:$0xff]
        %v3432 = vunpack.c.l.b16 %v3416
        %v3433 = vunpack.c.h.b16 %v3416
        %v3434 = vunpack.c.l.b16 %v3417
        %v3435 = vunpack.c.h.b16 %v3417
        %v3436 = vunpack.c.l.b16 %v3418
        %v3437 = vunpack.c.h.b16 %v3418
        %v3438 = vunpack.c.l.b16 %v3419
        %v3439 = vunpack.c.h.b16 %v3419
        %v3440 = vunpack.c.l.b16 %v3420
        %v3441 = vunpack.c.h.b16 %v3420
        %v3442 = vunpack.c.l.b16 %v3421
        %v3443 = vunpack.c.h.b16 %v3421
        %v3444 = vunpack.c.l.b16 %v3422
        %v3445 = vunpack.c.h.b16 %v3422
        %v3446 = vunpack.c.l.b16 %v3423
        %v3447 = vunpack.c.h.b16 %v3423
        %v3448 = vpack.c.b16 %v3434, %v3432
        %v3449 = vpack.c.b16 %v3435, %v3433
        %v3450 = vpack.c.b16 %v3438, %v3436
        %v3451 = vpack.c.b16 %v3439, %v3437
        %v3452 = vpack.c.b16 %v3442, %v3440
        %v3453 = vpack.c.b16 %v3443, %v3441
        %v3454 = vpack.c.b16 %v3446, %v3444
        %v3455 = vpack.c.b16 %v3447, %v3445
        %3464 = vrot.lane.b32.xlu0 %v3073, 112
        %v3465 = vpop.permute.xlu0 %3464
        %3466 = vrot.lane.b32.xlu0 %v3074, 112
        %v3467 = vpop.permute.xlu0 %3466
        %3468 = vrot.lane.b32.xlu0 %v3075, 112
        %v3469 = vpop.permute.xlu0 %3468
        %3470 = vrot.lane.b32.xlu0 %v3076, 112
        %v3471 = vpop.permute.xlu0 %3470
        %3472 = vrot.lane.b32.xlu0 %v3077, 112
        %v3473 = vpop.permute.xlu0 %3472
        %3474 = vrot.lane.b32.xlu0 %v3078, 112
        %v3475 = vpop.permute.xlu0 %3474
        %3476 = vrot.lane.b32.xlu0 %v3079, 112
        %v3477 = vpop.permute.xlu0 %3476
        %3478 = vrot.lane.b32.xlu0 %v3080, 112
        %v3479 = vpop.permute.xlu0 %3478
        %3480 = vrot.lane.b32.xlu0 %v3081, 112
        %v3481 = vpop.permute.xlu0 %3480
        %3482 = vrot.lane.b32.xlu0 %v3082, 112
        %v3483 = vpop.permute.xlu0 %3482
        %3484 = vrot.lane.b32.xlu0 %v3083, 112
        %v3485 = vpop.permute.xlu0 %3484
        %3486 = vrot.lane.b32.xlu0 %v3084, 112
        %v3487 = vpop.permute.xlu0 %3486
        %3488 = vrot.lane.b32.xlu0 %v3085, 112
        %v3489 = vpop.permute.xlu0 %3488
        %3490 = vrot.lane.b32.xlu0 %v3086, 112
        %v3491 = vpop.permute.xlu0 %3490
        %3492 = vrot.lane.b32.xlu0 %v3087, 112
        %v3493 = vpop.permute.xlu0 %3492
        %3494 = vrot.lane.b32.xlu0 %v3088, 112
        %v3495 = vpop.permute.xlu0 %3494
        %3512 = vmatpush.bf16.msra.mxu0 %v3479
        %3513 = vmatpush.bf16.msra.mxu0 %v3477
        %3514 = vmatpush.bf16.msra.mxu0 %v3475
        %3515 = vmatpush.bf16.msra.mxu0 %v3473
        %3516 = vmatpush.bf16.msra.mxu0 %v3471
        %3517 = vmatpush.bf16.msra.mxu0 %v3469
        %3518 = vmatpush.bf16.msra.mxu0 %v3467
        %3519 = vmatpush.bf16.msra.mxu0 %v3465
        %3520 = vmatmul.bf16.gmra.mxu0 %v3448
        %v3521 = vpop.f32.mrf.mxu0
        %v3522 = vadd.f32 0.0, %v3521
        %v3523 = vpop.f32.mrf.mxu0
        %v3524 = vadd.f32 0.0, %v3523
        %3525 = vmatmul.bf16.gmra.mxu0 %v3450
        %v3526 = vpop.f32.mrf.mxu0
        %v3527 = vadd.f32 0.0, %v3526
        %v3528 = vpop.f32.mrf.mxu0
        %v3529 = vadd.f32 0.0, %v3528
        %3530 = vmatmul.bf16.gmra.mxu0 %v3452
        %v3531 = vpop.f32.mrf.mxu0
        %v3532 = vadd.f32 0.0, %v3531
        %v3533 = vpop.f32.mrf.mxu0
        %v3534 = vadd.f32 0.0, %v3533
        %3535 = vmatmul.bf16.gmra.mxu0 %v3454
        %v3536 = vpop.f32.mrf.mxu0
        %v3537 = vadd.f32 0.0, %v3536
        %v3538 = vpop.f32.mrf.mxu0
        %v3539 = vadd.f32 0.0, %v3538
        %3540 = vdwg.mxu0
        %3541 = vmatpush.bf16.msra.mxu0 %v3495
        %3542 = vmatpush.bf16.msra.mxu0 %v3493
        %3543 = vmatpush.bf16.msra.mxu0 %v3491
        %3544 = vmatpush.bf16.msra.mxu0 %v3489
        %3545 = vmatpush.bf16.msra.mxu0 %v3487
        %3546 = vmatpush.bf16.msra.mxu0 %v3485
        %3547 = vmatpush.bf16.msra.mxu0 %v3483
        %3548 = vmatpush.bf16.msra.mxu0 %v3481
        %3549 = vmatmul.bf16.gmra.mxu0 %v3449
        %v3550 = vpop.f32.mrf.mxu0
        %v3551 = vadd.f32 %v3522, %v3550
        %v3552 = vpop.f32.mrf.mxu0
        %v3553 = vadd.f32 %v3524, %v3552
        %3554 = vmatmul.bf16.gmra.mxu0 %v3451
        %v3555 = vpop.f32.mrf.mxu0
        %v3556 = vadd.f32 %v3527, %v3555
        %v3557 = vpop.f32.mrf.mxu0
        %v3558 = vadd.f32 %v3529, %v3557
        %3559 = vmatmul.bf16.gmra.mxu0 %v3453
        %v3560 = vpop.f32.mrf.mxu0
        %v3561 = vadd.f32 %v3532, %v3560
        %v3562 = vpop.f32.mrf.mxu0
        %v3563 = vadd.f32 %v3534, %v3562
        %3564 = vmatmul.bf16.gmra.mxu0 %v3455
        %v3565 = vpop.f32.mrf.mxu0
        %v3566 = vadd.f32 %v3537, %v3565
        %v3567 = vpop.f32.mrf.mxu0
        %v3568 = vadd.f32 %v3539, %v3567
        %3569 = vdwg.mxu0
        %v3570 = vadd.f32 %v3407, %v3551
        %v3571 = vadd.f32 %v3408, %v3553
        %v3572 = vadd.f32 %v3409, %v3556
        %v3573 = vadd.f32 %v3410, %v3558
        %v3574 = vadd.f32 %v3411, %v3561
        %v3575 = vadd.f32 %v3412, %v3563
        %v3576 = vadd.f32 %v3413, %v3566
        %v3577 = vadd.f32 %v3414, %v3568
        %s3578 = scalar_lea.vmem [#allocation5], 832
        %v3579 = vld [vmem:[%s3578] sm:$0xff]
        %v3580 = vld [vmem:[%s3578 + $0x8] sm:$0xff]
        %v3581 = vld [vmem:[%s3578 + $0x10] sm:$0xff]
        %v3582 = vld [vmem:[%s3578 + $0x18] sm:$0xff]
        %v3583 = vld [vmem:[%s3578 + $0x20] sm:$0xff]
        %v3584 = vld [vmem:[%s3578 + $0x28] sm:$0xff]
        %v3585 = vld [vmem:[%s3578 + $0x30] sm:$0xff]
        %v3586 = vld [vmem:[%s3578 + $0x38] sm:$0xff]
        %v3595 = vunpack.c.l.b16 %v3579
        %v3596 = vunpack.c.h.b16 %v3579
        %v3597 = vunpack.c.l.b16 %v3580
        %v3598 = vunpack.c.h.b16 %v3580
        %v3599 = vunpack.c.l.b16 %v3581
        %v3600 = vunpack.c.h.b16 %v3581
        %v3601 = vunpack.c.l.b16 %v3582
        %v3602 = vunpack.c.h.b16 %v3582
        %v3603 = vunpack.c.l.b16 %v3583
        %v3604 = vunpack.c.h.b16 %v3583
        %v3605 = vunpack.c.l.b16 %v3584
        %v3606 = vunpack.c.h.b16 %v3584
        %v3607 = vunpack.c.l.b16 %v3585
        %v3608 = vunpack.c.h.b16 %v3585
        %v3609 = vunpack.c.l.b16 %v3586
        %v3610 = vunpack.c.h.b16 %v3586
        %v3611 = vpack.c.b16 %v3597, %v3595
        %v3612 = vpack.c.b16 %v3598, %v3596
        %v3613 = vpack.c.b16 %v3601, %v3599
        %v3614 = vpack.c.b16 %v3602, %v3600
        %v3615 = vpack.c.b16 %v3605, %v3603
        %v3616 = vpack.c.b16 %v3606, %v3604
        %v3617 = vpack.c.b16 %v3609, %v3607
        %v3618 = vpack.c.b16 %v3610, %v3608
        %3627 = vrot.lane.b32.xlu0 %v3073, 100
        %v3628 = vpop.permute.xlu0 %3627
        %3629 = vrot.lane.b32.xlu0 %v3074, 100
        %v3630 = vpop.permute.xlu0 %3629
        %3631 = vrot.lane.b32.xlu0 %v3075, 100
        %v3632 = vpop.permute.xlu0 %3631
        %3633 = vrot.lane.b32.xlu0 %v3076, 100
        %v3634 = vpop.permute.xlu0 %3633
        %3635 = vrot.lane.b32.xlu0 %v3077, 100
        %v3636 = vpop.permute.xlu0 %3635
        %3637 = vrot.lane.b32.xlu0 %v3078, 100
        %v3638 = vpop.permute.xlu0 %3637
        %3639 = vrot.lane.b32.xlu0 %v3079, 100
        %v3640 = vpop.permute.xlu0 %3639
        %3641 = vrot.lane.b32.xlu0 %v3080, 100
        %v3642 = vpop.permute.xlu0 %3641
        %3643 = vrot.lane.b32.xlu0 %v3081, 100
        %v3644 = vpop.permute.xlu0 %3643
        %3645 = vrot.lane.b32.xlu0 %v3082, 100
        %v3646 = vpop.permute.xlu0 %3645
        %3647 = vrot.lane.b32.xlu0 %v3083, 100
        %v3648 = vpop.permute.xlu0 %3647
        %3649 = vrot.lane.b32.xlu0 %v3084, 100
        %v3650 = vpop.permute.xlu0 %3649
        %3651 = vrot.lane.b32.xlu0 %v3085, 100
        %v3652 = vpop.permute.xlu0 %3651
        %3653 = vrot.lane.b32.xlu0 %v3086, 100
        %v3654 = vpop.permute.xlu0 %3653
        %3655 = vrot.lane.b32.xlu0 %v3087, 100
        %v3656 = vpop.permute.xlu0 %3655
        %3657 = vrot.lane.b32.xlu0 %v3088, 100
        %v3658 = vpop.permute.xlu0 %3657
        %3675 = vmatpush.bf16.msra.mxu0 %v3642
        %3676 = vmatpush.bf16.msra.mxu0 %v3640
        %3677 = vmatpush.bf16.msra.mxu0 %v3638
        %3678 = vmatpush.bf16.msra.mxu0 %v3636
        %3679 = vmatpush.bf16.msra.mxu0 %v3634
        %3680 = vmatpush.bf16.msra.mxu0 %v3632
        %3681 = vmatpush.bf16.msra.mxu0 %v3630
        %3682 = vmatpush.bf16.msra.mxu0 %v3628
        %3683 = vmatmul.bf16.gmra.mxu0 %v3611
        %v3684 = vpop.f32.mrf.mxu0
        %v3685 = vadd.f32 0.0, %v3684
        %v3686 = vpop.f32.mrf.mxu0
        %v3687 = vadd.f32 0.0, %v3686
        %3688 = vmatmul.bf16.gmra.mxu0 %v3613
        %v3689 = vpop.f32.mrf.mxu0
        %v3690 = vadd.f32 0.0, %v3689
        %v3691 = vpop.f32.mrf.mxu0
        %v3692 = vadd.f32 0.0, %v3691
        %3693 = vmatmul.bf16.gmra.mxu0 %v3615
        %v3694 = vpop.f32.mrf.mxu0
        %v3695 = vadd.f32 0.0, %v3694
        %v3696 = vpop.f32.mrf.mxu0
        %v3697 = vadd.f32 0.0, %v3696
        %3698 = vmatmul.bf16.gmra.mxu0 %v3617
        %v3699 = vpop.f32.mrf.mxu0
        %v3700 = vadd.f32 0.0, %v3699
        %v3701 = vpop.f32.mrf.mxu0
        %v3702 = vadd.f32 0.0, %v3701
        %3703 = vdwg.mxu0
        %3704 = vmatpush.bf16.msra.mxu0 %v3658
        %3705 = vmatpush.bf16.msra.mxu0 %v3656
        %3706 = vmatpush.bf16.msra.mxu0 %v3654
        %3707 = vmatpush.bf16.msra.mxu0 %v3652
        %3708 = vmatpush.bf16.msra.mxu0 %v3650
        %3709 = vmatpush.bf16.msra.mxu0 %v3648
        %3710 = vmatpush.bf16.msra.mxu0 %v3646
        %3711 = vmatpush.bf16.msra.mxu0 %v3644
        %3712 = vmatmul.bf16.gmra.mxu0 %v3612
        %v3713 = vpop.f32.mrf.mxu0
        %v3714 = vadd.f32 %v3685, %v3713
        %v3715 = vpop.f32.mrf.mxu0
        %v3716 = vadd.f32 %v3687, %v3715
        %3717 = vmatmul.bf16.gmra.mxu0 %v3614
        %v3718 = vpop.f32.mrf.mxu0
        %v3719 = vadd.f32 %v3690, %v3718
        %v3720 = vpop.f32.mrf.mxu0
        %v3721 = vadd.f32 %v3692, %v3720
        %3722 = vmatmul.bf16.gmra.mxu0 %v3616
        %v3723 = vpop.f32.mrf.mxu0
        %v3724 = vadd.f32 %v3695, %v3723
        %v3725 = vpop.f32.mrf.mxu0
        %v3726 = vadd.f32 %v3697, %v3725
        %3727 = vmatmul.bf16.gmra.mxu0 %v3618
        %v3728 = vpop.f32.mrf.mxu0
        %v3729 = vadd.f32 %v3700, %v3728
        %v3730 = vpop.f32.mrf.mxu0
        %v3731 = vadd.f32 %v3702, %v3730
        %3732 = vdwg.mxu0
        %v3733 = vadd.f32 %v3570, %v3714
        %v3734 = vadd.f32 %v3571, %v3716
        %v3735 = vadd.f32 %v3572, %v3719
        %v3736 = vadd.f32 %v3573, %v3721
        %v3737 = vadd.f32 %v3574, %v3724
        %v3738 = vadd.f32 %v3575, %v3726
        %v3739 = vadd.f32 %v3576, %v3729
        %v3740 = vadd.f32 %v3577, %v3731
        %s3741 = scalar_lea.vmem [#allocation5], 896
        %v3742 = vld [vmem:[%s3741] sm:$0xff]
        %v3743 = vld [vmem:[%s3741 + $0x8] sm:$0xff]
        %v3744 = vld [vmem:[%s3741 + $0x10] sm:$0xff]
        %v3745 = vld [vmem:[%s3741 + $0x18] sm:$0xff]
        %v3746 = vld [vmem:[%s3741 + $0x20] sm:$0xff]
        %v3747 = vld [vmem:[%s3741 + $0x28] sm:$0xff]
        %v3748 = vld [vmem:[%s3741 + $0x30] sm:$0xff]
        %v3749 = vld [vmem:[%s3741 + $0x38] sm:$0xff]
        %v3758 = vunpack.c.l.b16 %v3742
        %v3759 = vunpack.c.h.b16 %v3742
        %v3760 = vunpack.c.l.b16 %v3743
        %v3761 = vunpack.c.h.b16 %v3743
        %v3762 = vunpack.c.l.b16 %v3744
        %v3763 = vunpack.c.h.b16 %v3744
        %v3764 = vunpack.c.l.b16 %v3745
        %v3765 = vunpack.c.h.b16 %v3745
        %v3766 = vunpack.c.l.b16 %v3746
        %v3767 = vunpack.c.h.b16 %v3746
        %v3768 = vunpack.c.l.b16 %v3747
        %v3769 = vunpack.c.h.b16 %v3747
        %v3770 = vunpack.c.l.b16 %v3748
        %v3771 = vunpack.c.h.b16 %v3748
        %v3772 = vunpack.c.l.b16 %v3749
        %v3773 = vunpack.c.h.b16 %v3749
        %v3774 = vpack.c.b16 %v3760, %v3758
        %v3775 = vpack.c.b16 %v3761, %v3759
        %v3776 = vpack.c.b16 %v3764, %v3762
        %v3777 = vpack.c.b16 %v3765, %v3763
        %v3778 = vpack.c.b16 %v3768, %v3766
        %v3779 = vpack.c.b16 %v3769, %v3767
        %v3780 = vpack.c.b16 %v3772, %v3770
        %v3781 = vpack.c.b16 %v3773, %v3771
        %3790 = vrot.lane.b32.xlu0 %v3073, 88
        %v3791 = vpop.permute.xlu0 %3790
        %3792 = vrot.lane.b32.xlu0 %v3074, 88
        %v3793 = vpop.permute.xlu0 %3792
        %3794 = vrot.lane.b32.xlu0 %v3075, 88
        %v3795 = vpop.permute.xlu0 %3794
        %3796 = vrot.lane.b32.xlu0 %v3076, 88
        %v3797 = vpop.permute.xlu0 %3796
        %3798 = vrot.lane.b32.xlu0 %v3077, 88
        %v3799 = vpop.permute.xlu0 %3798
        %3800 = vrot.lane.b32.xlu0 %v3078, 88
        %v3801 = vpop.permute.xlu0 %3800
        %3802 = vrot.lane.b32.xlu0 %v3079, 88
        %v3803 = vpop.permute.xlu0 %3802
        %3804 = vrot.lane.b32.xlu0 %v3080, 88
        %v3805 = vpop.permute.xlu0 %3804
        %3806 = vrot.lane.b32.xlu0 %v3081, 88
        %v3807 = vpop.permute.xlu0 %3806
        %3808 = vrot.lane.b32.xlu0 %v3082, 88
        %v3809 = vpop.permute.xlu0 %3808
        %3810 = vrot.lane.b32.xlu0 %v3083, 88
        %v3811 = vpop.permute.xlu0 %3810
        %3812 = vrot.lane.b32.xlu0 %v3084, 88
        %v3813 = vpop.permute.xlu0 %3812
        %3814 = vrot.lane.b32.xlu0 %v3085, 88
        %v3815 = vpop.permute.xlu0 %3814
        %3816 = vrot.lane.b32.xlu0 %v3086, 88
        %v3817 = vpop.permute.xlu0 %3816
        %3818 = vrot.lane.b32.xlu0 %v3087, 88
        %v3819 = vpop.permute.xlu0 %3818
        %3820 = vrot.lane.b32.xlu0 %v3088, 88
        %v3821 = vpop.permute.xlu0 %3820
        %3838 = vmatpush.bf16.msra.mxu0 %v3805
        %3839 = vmatpush.bf16.msra.mxu0 %v3803
        %3840 = vmatpush.bf16.msra.mxu0 %v3801
        %3841 = vmatpush.bf16.msra.mxu0 %v3799
        %3842 = vmatpush.bf16.msra.mxu0 %v3797
        %3843 = vmatpush.bf16.msra.mxu0 %v3795
        %3844 = vmatpush.bf16.msra.mxu0 %v3793
        %3845 = vmatpush.bf16.msra.mxu0 %v3791
        %3846 = vmatmul.bf16.gmra.mxu0 %v3774
        %v3847 = vpop.f32.mrf.mxu0
        %v3848 = vadd.f32 0.0, %v3847
        %v3849 = vpop.f32.mrf.mxu0
        %v3850 = vadd.f32 0.0, %v3849
        %3851 = vmatmul.bf16.gmra.mxu0 %v3776
        %v3852 = vpop.f32.mrf.mxu0
        %v3853 = vadd.f32 0.0, %v3852
        %v3854 = vpop.f32.mrf.mxu0
        %v3855 = vadd.f32 0.0, %v3854
        %3856 = vmatmul.bf16.gmra.mxu0 %v3778
        %v3857 = vpop.f32.mrf.mxu0
        %v3858 = vadd.f32 0.0, %v3857
        %v3859 = vpop.f32.mrf.mxu0
        %v3860 = vadd.f32 0.0, %v3859
        %3861 = vmatmul.bf16.gmra.mxu0 %v3780
        %v3862 = vpop.f32.mrf.mxu0
        %v3863 = vadd.f32 0.0, %v3862
        %v3864 = vpop.f32.mrf.mxu0
        %v3865 = vadd.f32 0.0, %v3864
        %3866 = vdwg.mxu0
        %3867 = vmatpush.bf16.msra.mxu0 %v3821
        %3868 = vmatpush.bf16.msra.mxu0 %v3819
        %3869 = vmatpush.bf16.msra.mxu0 %v3817
        %3870 = vmatpush.bf16.msra.mxu0 %v3815
        %3871 = vmatpush.bf16.msra.mxu0 %v3813
        %3872 = vmatpush.bf16.msra.mxu0 %v3811
        %3873 = vmatpush.bf16.msra.mxu0 %v3809
        %3874 = vmatpush.bf16.msra.mxu0 %v3807
        %3875 = vmatmul.bf16.gmra.mxu0 %v3775
        %v3876 = vpop.f32.mrf.mxu0
        %v3877 = vadd.f32 %v3848, %v3876
        %v3878 = vpop.f32.mrf.mxu0
        %v3879 = vadd.f32 %v3850, %v3878
        %3880 = vmatmul.bf16.gmra.mxu0 %v3777
        %v3881 = vpop.f32.mrf.mxu0
        %v3882 = vadd.f32 %v3853, %v3881
        %v3883 = vpop.f32.mrf.mxu0
        %v3884 = vadd.f32 %v3855, %v3883
        %3885 = vmatmul.bf16.gmra.mxu0 %v3779
        %v3886 = vpop.f32.mrf.mxu0
        %v3887 = vadd.f32 %v3858, %v3886
        %v3888 = vpop.f32.mrf.mxu0
        %v3889 = vadd.f32 %v3860, %v3888
        %3890 = vmatmul.bf16.gmra.mxu0 %v3781
        %v3891 = vpop.f32.mrf.mxu0
        %v3892 = vadd.f32 %v3863, %v3891
        %v3893 = vpop.f32.mrf.mxu0
        %v3894 = vadd.f32 %v3865, %v3893
        %3895 = vdwg.mxu0
        %v3896 = vadd.f32 %v3733, %v3877
        %v3897 = vadd.f32 %v3734, %v3879
        %v3898 = vadd.f32 %v3735, %v3882
        %v3899 = vadd.f32 %v3736, %v3884
        %v3900 = vadd.f32 %v3737, %v3887
        %v3901 = vadd.f32 %v3738, %v3889
        %v3902 = vadd.f32 %v3739, %v3892
        %v3903 = vadd.f32 %v3740, %v3894
        %s3904 = scalar_lea.vmem [#allocation5], 960
        %v3905 = vld [vmem:[%s3904] sm:$0xff]
        %v3906 = vld [vmem:[%s3904 + $0x8] sm:$0xff]
        %v3907 = vld [vmem:[%s3904 + $0x10] sm:$0xff]
        %v3908 = vld [vmem:[%s3904 + $0x18] sm:$0xff]
        %v3909 = vld [vmem:[%s3904 + $0x20] sm:$0xff]
        %v3910 = vld [vmem:[%s3904 + $0x28] sm:$0xff]
        %v3911 = vld [vmem:[%s3904 + $0x30] sm:$0xff]
        %v3912 = vld [vmem:[%s3904 + $0x38] sm:$0xff]
        %v3921 = vunpack.c.l.b16 %v3905
        %v3922 = vunpack.c.h.b16 %v3905
        %v3923 = vunpack.c.l.b16 %v3906
        %v3924 = vunpack.c.h.b16 %v3906
        %v3925 = vunpack.c.l.b16 %v3907
        %v3926 = vunpack.c.h.b16 %v3907
        %v3927 = vunpack.c.l.b16 %v3908
        %v3928 = vunpack.c.h.b16 %v3908
        %v3929 = vunpack.c.l.b16 %v3909
        %v3930 = vunpack.c.h.b16 %v3909
        %v3931 = vunpack.c.l.b16 %v3910
        %v3932 = vunpack.c.h.b16 %v3910
        %v3933 = vunpack.c.l.b16 %v3911
        %v3934 = vunpack.c.h.b16 %v3911
        %v3935 = vunpack.c.l.b16 %v3912
        %v3936 = vunpack.c.h.b16 %v3912
        %v3937 = vpack.c.b16 %v3923, %v3921
        %v3938 = vpack.c.b16 %v3924, %v3922
        %v3939 = vpack.c.b16 %v3927, %v3925
        %v3940 = vpack.c.b16 %v3928, %v3926
        %v3941 = vpack.c.b16 %v3931, %v3929
        %v3942 = vpack.c.b16 %v3932, %v3930
        %v3943 = vpack.c.b16 %v3935, %v3933
        %v3944 = vpack.c.b16 %v3936, %v3934
        %3953 = vrot.lane.b32.xlu0 %v3073, 76
        %v3954 = vpop.permute.xlu0 %3953
        %3955 = vrot.lane.b32.xlu0 %v3074, 76
        %v3956 = vpop.permute.xlu0 %3955
        %3957 = vrot.lane.b32.xlu0 %v3075, 76
        %v3958 = vpop.permute.xlu0 %3957
        %3959 = vrot.lane.b32.xlu0 %v3076, 76
        %v3960 = vpop.permute.xlu0 %3959
        %3961 = vrot.lane.b32.xlu0 %v3077, 76
        %v3962 = vpop.permute.xlu0 %3961
        %3963 = vrot.lane.b32.xlu0 %v3078, 76
        %v3964 = vpop.permute.xlu0 %3963
        %3965 = vrot.lane.b32.xlu0 %v3079, 76
        %v3966 = vpop.permute.xlu0 %3965
        %3967 = vrot.lane.b32.xlu0 %v3080, 76
        %v3968 = vpop.permute.xlu0 %3967
        %3969 = vrot.lane.b32.xlu0 %v3081, 76
        %v3970 = vpop.permute.xlu0 %3969
        %3971 = vrot.lane.b32.xlu0 %v3082, 76
        %v3972 = vpop.permute.xlu0 %3971
        %3973 = vrot.lane.b32.xlu0 %v3083, 76
        %v3974 = vpop.permute.xlu0 %3973
        %3975 = vrot.lane.b32.xlu0 %v3084, 76
        %v3976 = vpop.permute.xlu0 %3975
        %3977 = vrot.lane.b32.xlu0 %v3085, 76
        %v3978 = vpop.permute.xlu0 %3977
        %3979 = vrot.lane.b32.xlu0 %v3086, 76
        %v3980 = vpop.permute.xlu0 %3979
        %3981 = vrot.lane.b32.xlu0 %v3087, 76
        %v3982 = vpop.permute.xlu0 %3981
        %3983 = vrot.lane.b32.xlu0 %v3088, 76
        %v3984 = vpop.permute.xlu0 %3983
        %4001 = vmatpush.bf16.msra.mxu0 %v3968
        %4002 = vmatpush.bf16.msra.mxu0 %v3966
        %4003 = vmatpush.bf16.msra.mxu0 %v3964
        %4004 = vmatpush.bf16.msra.mxu0 %v3962
        %4005 = vmatpush.bf16.msra.mxu0 %v3960
        %4006 = vmatpush.bf16.msra.mxu0 %v3958
        %4007 = vmatpush.bf16.msra.mxu0 %v3956
        %4008 = vmatpush.bf16.msra.mxu0 %v3954
        %4009 = vmatmul.bf16.gmra.mxu0 %v3937
        %v4010 = vpop.f32.mrf.mxu0
        %v4011 = vadd.f32 0.0, %v4010
        %v4012 = vpop.f32.mrf.mxu0
        %v4013 = vadd.f32 0.0, %v4012
        %4014 = vmatmul.bf16.gmra.mxu0 %v3939
        %v4015 = vpop.f32.mrf.mxu0
        %v4016 = vadd.f32 0.0, %v4015
        %v4017 = vpop.f32.mrf.mxu0
        %v4018 = vadd.f32 0.0, %v4017
        %4019 = vmatmul.bf16.gmra.mxu0 %v3941
        %v4020 = vpop.f32.mrf.mxu0
        %v4021 = vadd.f32 0.0, %v4020
        %v4022 = vpop.f32.mrf.mxu0
        %v4023 = vadd.f32 0.0, %v4022
        %4024 = vmatmul.bf16.gmra.mxu0 %v3943
        %v4025 = vpop.f32.mrf.mxu0
        %v4026 = vadd.f32 0.0, %v4025
        %v4027 = vpop.f32.mrf.mxu0
        %v4028 = vadd.f32 0.0, %v4027
        %4029 = vdwg.mxu0
        %4030 = vmatpush.bf16.msra.mxu0 %v3984
        %4031 = vmatpush.bf16.msra.mxu0 %v3982
        %4032 = vmatpush.bf16.msra.mxu0 %v3980
        %4033 = vmatpush.bf16.msra.mxu0 %v3978
        %4034 = vmatpush.bf16.msra.mxu0 %v3976
        %4035 = vmatpush.bf16.msra.mxu0 %v3974
        %4036 = vmatpush.bf16.msra.mxu0 %v3972
        %4037 = vmatpush.bf16.msra.mxu0 %v3970
        %4038 = vmatmul.bf16.gmra.mxu0 %v3938
        %v4039 = vpop.f32.mrf.mxu0
        %v4040 = vadd.f32 %v4011, %v4039
        %v4041 = vpop.f32.mrf.mxu0
        %v4042 = vadd.f32 %v4013, %v4041
        %4043 = vmatmul.bf16.gmra.mxu0 %v3940
        %v4044 = vpop.f32.mrf.mxu0
        %v4045 = vadd.f32 %v4016, %v4044
        %v4046 = vpop.f32.mrf.mxu0
        %v4047 = vadd.f32 %v4018, %v4046
        %4048 = vmatmul.bf16.gmra.mxu0 %v3942
        %v4049 = vpop.f32.mrf.mxu0
        %v4050 = vadd.f32 %v4021, %v4049
        %v4051 = vpop.f32.mrf.mxu0
        %v4052 = vadd.f32 %v4023, %v4051
        %4053 = vmatmul.bf16.gmra.mxu0 %v3944
        %v4054 = vpop.f32.mrf.mxu0
        %v4055 = vadd.f32 %v4026, %v4054
        %v4056 = vpop.f32.mrf.mxu0
        %v4057 = vadd.f32 %v4028, %v4056
        %4058 = vdwg.mxu0
        %v4059 = vadd.f32 %v3896, %v4040
        %v4060 = vadd.f32 %v3897, %v4042
        %v4061 = vadd.f32 %v3898, %v4045
        %v4062 = vadd.f32 %v3899, %v4047
        %v4063 = vadd.f32 %v3900, %v4050
        %v4064 = vadd.f32 %v3901, %v4052
        %v4065 = vadd.f32 %v3902, %v4055
        %v4066 = vadd.f32 %v3903, %v4057
        %v4067 = vld [vmem:[%s3] sm:$0x1]
        %v4069 = vperm.slane %v4067, 0
        %v4071 = vadd.f32 %v4059, %v4069
        %v4072 = vadd.f32 %v4060, %v4069
        %v4073 = vadd.f32 %v4061, %v4069
        %v4074 = vadd.f32 %v4062, %v4069
        %v4075 = vadd.f32 %v4063, %v4069
        %v4076 = vadd.f32 %v4064, %v4069
        %v4077 = vadd.f32 %v4065, %v4069
        %v4078 = vadd.f32 %v4066, %v4069
        %v4079 = vmax.f32 %v4071, 0.0
        %v4080 = vmax.f32 %v4072, 0.0
        %v4081 = vmax.f32 %v4073, 0.0
        %v4082 = vmax.f32 %v4074, 0.0
        %v4083 = vmax.f32 %v4075, 0.0
        %v4084 = vmax.f32 %v4076, 0.0
        %v4085 = vmax.f32 %v4077, 0.0
        %v4086 = vmax.f32 %v4078, 0.0
        %v4087 = vpack.c.bf16 %v4080, %v4079
        %v4088 = vpack.c.bf16 %v4082, %v4081
        %v4089 = vpack.c.bf16 %v4084, %v4083
        %v4090 = vpack.c.bf16 %v4086, %v4085
        %v4091 = vld [vmem:[#allocation7] sm:$0xff]
        %v4092 = vld [vmem:[#allocation7 + $0x8] sm:$0xf]
        %v4093 = vld [vmem:[#allocation7 + $0xc] sm:$0x33]
        %v4094 = vld [vmem:[#allocation7 + $0x14] sm:$0x3]
        %v4099 = vunpack.c.l.b16 %v4091
        %v4100 = vunpack.c.h.b16 %v4091
        %v4101 = vunpack.c.l.b16 %v4092
        %v4102 = vunpack.c.l.b16 %v4093
        %v4103 = vunpack.c.h.b16 %v4093
        %v4104 = vunpack.c.l.b16 %v4094
        %v4105 = vpack.c.b16 %v4102, %v4099
        %v4106 = vpack.c.b16 %v4103, %v4100
        %v4107 = vpack.c.b16 %v4104, %v4101
        %vm4108 = vcmask 97280
        %v4110 = vsel %vm4108, %v4087, 0
        %v4113 = vsel %vm4108, %v4088, 0
        %v4116 = vsel %vm4108, %v4089, 0
        %v4119 = vsel %vm4108, %v4090, 0
        %vm4121 = vcmask 1045504
        %v4123 = vsel %vm4121, %v4105, 0
        %v4126 = vsel %vm4121, %v4106, 0
        %v4129 = vsel %vm4121, %v4107, 0
        %4131 = vmatpush.bf16.msra.mxu0 0
        %4132 = vmatpush.bf16.msra.mxu0 0
        %4133 = vmatpush.bf16.msra.mxu0 0
        %4134 = vmatpush.bf16.msra.mxu0 0
        %4135 = vmatpush.bf16.msra.mxu0 0
        %4136 = vmatpush.bf16.msra.mxu0 0
        %4137 = vmatpush.bf16.msra.mxu0 0
        %4138 = vmatpush.bf16.msra.mxu0 %v4123
        %4139 = vmatmul.bf16.gmra.mxu0 %v4110
        %v4140 = vpop.f32.mrf.mxu0
        %v4141 = vadd.f32 0.0, %v4140
        %v4142 = vpop.f32.mrf.mxu0
        %v4143 = vadd.f32 0.0, %v4142
        %4144 = vmatmul.bf16.gmra.mxu0 %v4113
        %v4145 = vpop.f32.mrf.mxu0
        %v4146 = vadd.f32 0.0, %v4145
        %v4147 = vpop.f32.mrf.mxu0
        %v4148 = vadd.f32 0.0, %v4147
        %4149 = vmatmul.bf16.gmra.mxu0 %v4116
        %v4150 = vpop.f32.mrf.mxu0
        %v4151 = vadd.f32 0.0, %v4150
        %v4152 = vpop.f32.mrf.mxu0
        %v4153 = vadd.f32 0.0, %v4152
        %4154 = vmatmul.bf16.gmra.mxu0 %v4119
        %v4155 = vpop.f32.mrf.mxu0
        %v4156 = vadd.f32 0.0, %v4155
        %v4157 = vpop.f32.mrf.mxu0
        %v4158 = vadd.f32 0.0, %v4157
        %4159 = vdwg.mxu0
        %4160 = vmatpush.bf16.msra.mxu0 0
        %4161 = vmatpush.bf16.msra.mxu0 0
        %4162 = vmatpush.bf16.msra.mxu0 0
        %4163 = vmatpush.bf16.msra.mxu0 0
        %4164 = vmatpush.bf16.msra.mxu0 0
        %4165 = vmatpush.bf16.msra.mxu0 0
        %4166 = vmatpush.bf16.msra.mxu0 0
        %4167 = vmatpush.bf16.msra.mxu0 %v4126
        %4168 = vmatmul.bf16.gmra.mxu0 %v4110
        %v4169 = vpop.f32.mrf.mxu0
        %v4170 = vadd.f32 0.0, %v4169
        %v4171 = vpop.f32.mrf.mxu0
        %v4172 = vadd.f32 0.0, %v4171
        %4173 = vmatmul.bf16.gmra.mxu0 %v4113
        %v4174 = vpop.f32.mrf.mxu0
        %v4175 = vadd.f32 0.0, %v4174
        %v4176 = vpop.f32.mrf.mxu0
        %v4177 = vadd.f32 0.0, %v4176
        %4178 = vmatmul.bf16.gmra.mxu0 %v4116
        %v4179 = vpop.f32.mrf.mxu0
        %v4180 = vadd.f32 0.0, %v4179
        %v4181 = vpop.f32.mrf.mxu0
        %v4182 = vadd.f32 0.0, %v4181
        %4183 = vmatmul.bf16.gmra.mxu0 %v4119
        %v4184 = vpop.f32.mrf.mxu0
        %v4185 = vadd.f32 0.0, %v4184
        %v4186 = vpop.f32.mrf.mxu0
        %v4187 = vadd.f32 0.0, %v4186
        %4188 = vdwg.mxu0
        %4189 = vmatpush.bf16.msra.mxu0 0
        %4190 = vmatpush.bf16.msra.mxu0 0
        %4191 = vmatpush.bf16.msra.mxu0 0
        %4192 = vmatpush.bf16.msra.mxu0 0
        %4193 = vmatpush.bf16.msra.mxu0 0
        %4194 = vmatpush.bf16.msra.mxu0 0
        %4195 = vmatpush.bf16.msra.mxu0 0
        %4196 = vmatpush.bf16.msra.mxu0 %v4129
        %4197 = vmatmul.bf16.gmra.mxu0 %v4110
        %v4198 = vpop.f32.mrf.mxu0
        %v4199 = vadd.f32 0.0, %v4198
        %v4200 = vpop.f32.mrf.mxu0
        %v4201 = vadd.f32 0.0, %v4200
        %4202 = vmatmul.bf16.gmra.mxu0 %v4113
        %v4203 = vpop.f32.mrf.mxu0
        %v4204 = vadd.f32 0.0, %v4203
        %v4205 = vpop.f32.mrf.mxu0
        %v4206 = vadd.f32 0.0, %v4205
        %4207 = vmatmul.bf16.gmra.mxu0 %v4116
        %v4208 = vpop.f32.mrf.mxu0
        %v4209 = vadd.f32 0.0, %v4208
        %v4210 = vpop.f32.mrf.mxu0
        %v4211 = vadd.f32 0.0, %v4210
        %4212 = vmatmul.bf16.gmra.mxu0 %v4119
        %v4213 = vpop.f32.mrf.mxu0
        %v4214 = vadd.f32 0.0, %v4213
        %v4215 = vpop.f32.mrf.mxu0
        %v4216 = vadd.f32 0.0, %v4215
        %4217 = vdwg.mxu0
        %v4218 = vpack.c.bf16 %v4170, %v4141
        %v4219 = vpack.c.bf16 %v4199, %v4199
        %v4220 = vpack.c.bf16 %v4172, %v4143
        %v4221 = vpack.c.bf16 %v4201, %v4201
        %v4222 = vpack.c.bf16 %v4175, %v4146
        %v4223 = vpack.c.bf16 %v4204, %v4204
        %v4224 = vpack.c.bf16 %v4177, %v4148
        %v4225 = vpack.c.bf16 %v4206, %v4206
        %v4226 = vpack.c.bf16 %v4180, %v4151
        %v4227 = vpack.c.bf16 %v4209, %v4209
        %v4228 = vpack.c.bf16 %v4182, %v4153
        %v4229 = vpack.c.bf16 %v4211, %v4211
        %v4230 = vpack.c.bf16 %v4185, %v4156
        %v4231 = vpack.c.bf16 %v4214, %v4214
        %v4232 = vpack.c.bf16 %v4187, %v4158
        %v4233 = vpack.c.bf16 %v4216, %v4216
        %v4234 = vld [vmem:[#allocation10] sm:$0xf]
        %v4235 = vld [vmem:[#allocation10 + $0x4] sm:$0xf]
        %s4236 = scalar_lea.vmem [#allocation10], 8
        %v4237 = vld [vmem:[%s4236] sm:$0xf]
        %v4238 = vld [vmem:[%s4236 + $0x4] sm:$0xf]
        %v4241 = vunpack.c.l.b16 %v4237
        %v4242 = vunpack.c.l.b16 %v4238
        %v4243 = vpack.c.b16 %v4242, %v4241
        %v4252 = vunpack.c.l.b16 %v4218
        %v4253 = vunpack.c.l.b16 %v4220
        %v4254 = vunpack.c.l.b16 %v4222
        %v4255 = vunpack.c.l.b16 %v4224
        %v4256 = vunpack.c.l.b16 %v4226
        %v4257 = vunpack.c.l.b16 %v4228
        %v4258 = vunpack.c.l.b16 %v4230
        %v4259 = vunpack.c.l.b16 %v4232
        %v4260 = vpack.c.b16 %v4253, %v4252
        %v4261 = vpack.c.b16 %v4255, %v4254
        %v4262 = vpack.c.b16 %v4257, %v4256
        %v4263 = vpack.c.b16 %v4259, %v4258
        %4264 = vrot.lane.b32.xlu0 %v4260, 104
        %v4265 = vpop.permute.xlu0 %4264
        %4266 = vrot.lane.b32.xlu0 %v4261, 104
        %v4267 = vpop.permute.xlu0 %4266
        %4268 = vrot.lane.b32.xlu0 %v4262, 104
        %v4269 = vpop.permute.xlu0 %4268
        %4270 = vrot.lane.b32.xlu0 %v4263, 104
        %v4271 = vpop.permute.xlu0 %4270
        %vm4276 = vcmask 523264
        %v4278 = vsel %vm4276, %v4243, 0
        %4280 = vmatpush.bf16.msra.mxu0 0
        %4281 = vmatpush.bf16.msra.mxu0 0
        %4282 = vmatpush.bf16.msra.mxu0 0
        %4283 = vmatpush.bf16.msra.mxu0 0
        %4284 = vmatpush.bf16.msra.mxu0 %v4271
        %4285 = vmatpush.bf16.msra.mxu0 %v4269
        %4286 = vmatpush.bf16.msra.mxu0 %v4267
        %4287 = vmatpush.bf16.msra.mxu0 %v4265
        %4288 = vmatmul.bf16.gmra.mxu0 %v4278
        %v4289 = vpop.f32.mrf.mxu0
        %v4290 = vadd.f32 0.0, %v4289
        %v4291 = vpop.f32.mrf.mxu0
        %v4292 = vadd.f32 0.0, %v4291
        %4293 = vdwg.mxu0
        %v4296 = vunpack.c.l.b16 %v4234
        %v4297 = vunpack.c.l.b16 %v4235
        %v4298 = vpack.c.b16 %v4297, %v4296
        %v4304 = vsel %vm4276, %v4298, 0
        %4306 = vmatpush.bf16.msra.mxu0 0
        %4307 = vmatpush.bf16.msra.mxu0 0
        %4308 = vmatpush.bf16.msra.mxu0 0
        %4309 = vmatpush.bf16.msra.mxu0 0
        %4310 = vmatpush.bf16.msra.mxu0 %v4263
        %4311 = vmatpush.bf16.msra.mxu0 %v4262
        %4312 = vmatpush.bf16.msra.mxu0 %v4261
        %4313 = vmatpush.bf16.msra.mxu0 %v4260
        %4314 = vmatmul.bf16.gmra.mxu0 %v4304
        %v4315 = vpop.f32.mrf.mxu0
        %v4316 = vadd.f32 %v4290, %v4315
        %v4317 = vpop.f32.mrf.mxu0
        %v4318 = vadd.f32 %v4292, %v4317
        %4319 = vdwg.mxu0
        %s4320 = scalar_lea.vmem [#allocation10], 16
        %v4321 = vld [vmem:[%s4320] sm:$0xf]
        %v4322 = vld [vmem:[%s4320 + $0x4] sm:$0xf]
        %v4325 = vunpack.c.l.b16 %v4321
        %v4326 = vunpack.c.l.b16 %v4322
        %v4327 = vpack.c.b16 %v4326, %v4325
        %4328 = vrot.lane.b32.xlu0 %v4260, 80
        %v4329 = vpop.permute.xlu0 %4328
        %4330 = vrot.lane.b32.xlu0 %v4261, 80
        %v4331 = vpop.permute.xlu0 %4330
        %4332 = vrot.lane.b32.xlu0 %v4262, 80
        %v4333 = vpop.permute.xlu0 %4332
        %4334 = vrot.lane.b32.xlu0 %v4263, 80
        %v4335 = vpop.permute.xlu0 %4334
        %v4341 = vsel %vm4276, %v4327, 0
        %4343 = vmatpush.bf16.msra.mxu0 0
        %4344 = vmatpush.bf16.msra.mxu0 0
        %4345 = vmatpush.bf16.msra.mxu0 0
        %4346 = vmatpush.bf16.msra.mxu0 0
        %4347 = vmatpush.bf16.msra.mxu0 %v4335
        %4348 = vmatpush.bf16.msra.mxu0 %v4333
        %4349 = vmatpush.bf16.msra.mxu0 %v4331
        %4350 = vmatpush.bf16.msra.mxu0 %v4329
        %4351 = vmatmul.bf16.gmra.mxu0 %v4341
        %v4352 = vpop.f32.mrf.mxu0
        %v4353 = vadd.f32 0.0, %v4352
        %v4354 = vpop.f32.mrf.mxu0
        %v4355 = vadd.f32 0.0, %v4354
        %4356 = vdwg.mxu0
        %v4357 = vadd.f32 %v4316, %v4353
        %v4358 = vadd.f32 %v4318, %v4355
        %s4359 = scalar_lea.vmem [#allocation10], 24
        %v4360 = vld [vmem:[%s4359] sm:$0xf]
        %v4361 = vld [vmem:[%s4359 + $0x4] sm:$0xf]
        %v4364 = vunpack.c.l.b16 %v4360
        %v4365 = vunpack.c.l.b16 %v4361
        %v4366 = vpack.c.b16 %v4365, %v4364
        %4367 = vrot.lane.b32.xlu0 %v4260, 56
        %v4368 = vpop.permute.xlu0 %4367
        %4369 = vrot.lane.b32.xlu0 %v4261, 56
        %v4370 = vpop.permute.xlu0 %4369
        %4371 = vrot.lane.b32.xlu0 %v4262, 56
        %v4372 = vpop.permute.xlu0 %4371
        %4373 = vrot.lane.b32.xlu0 %v4263, 56
        %v4374 = vpop.permute.xlu0 %4373
        %v4380 = vsel %vm4276, %v4366, 0
        %4382 = vmatpush.bf16.msra.mxu0 0
        %4383 = vmatpush.bf16.msra.mxu0 0
        %4384 = vmatpush.bf16.msra.mxu0 0
        %4385 = vmatpush.bf16.msra.mxu0 0
        %4386 = vmatpush.bf16.msra.mxu0 %v4374
        %4387 = vmatpush.bf16.msra.mxu0 %v4372
        %4388 = vmatpush.bf16.msra.mxu0 %v4370
        %4389 = vmatpush.bf16.msra.mxu0 %v4368
        %4390 = vmatmul.bf16.gmra.mxu0 %v4380
        %v4391 = vpop.f32.mrf.mxu0
        %v4392 = vadd.f32 0.0, %v4391
        %v4393 = vpop.f32.mrf.mxu0
        %v4394 = vadd.f32 0.0, %v4393
        %4395 = vdwg.mxu0
        %v4396 = vadd.f32 %v4357, %v4392
        %v4397 = vadd.f32 %v4358, %v4394
        %s4398 = scalar_lea.vmem [#allocation10], 32
        %v4399 = vld [vmem:[%s4398] sm:$0xf]
        %v4400 = vld [vmem:[%s4398 + $0x4] sm:$0xf]
        %v4403 = vunpack.c.l.b16 %v4399
        %v4404 = vunpack.c.l.b16 %v4400
        %v4405 = vpack.c.b16 %v4404, %v4403
        %4406 = vrot.lane.b32.xlu0 %v4260, 32
        %v4407 = vpop.permute.xlu0 %4406
        %4408 = vrot.lane.b32.xlu0 %v4261, 32
        %v4409 = vpop.permute.xlu0 %4408
        %4410 = vrot.lane.b32.xlu0 %v4262, 32
        %v4411 = vpop.permute.xlu0 %4410
        %4412 = vrot.lane.b32.xlu0 %v4263, 32
        %v4413 = vpop.permute.xlu0 %4412
        %v4419 = vsel %vm4276, %v4405, 0
        %4421 = vmatpush.bf16.msra.mxu0 0
        %4422 = vmatpush.bf16.msra.mxu0 0
        %4423 = vmatpush.bf16.msra.mxu0 0
        %4424 = vmatpush.bf16.msra.mxu0 0
        %4425 = vmatpush.bf16.msra.mxu0 %v4413
        %4426 = vmatpush.bf16.msra.mxu0 %v4411
        %4427 = vmatpush.bf16.msra.mxu0 %v4409
        %4428 = vmatpush.bf16.msra.mxu0 %v4407
        %4429 = vmatmul.bf16.gmra.mxu0 %v4419
        %v4430 = vpop.f32.mrf.mxu0
        %v4431 = vadd.f32 0.0, %v4430
        %v4432 = vpop.f32.mrf.mxu0
        %v4433 = vadd.f32 0.0, %v4432
        %4434 = vdwg.mxu0
        %v4435 = vadd.f32 %v4396, %v4431
        %v4436 = vadd.f32 %v4397, %v4433
        %s4437 = scalar_lea.vmem [#allocation10], 40
        %v4438 = vld [vmem:[%s4437] sm:$0xf]
        %v4439 = vld [vmem:[%s4437 + $0x4] sm:$0xf]
        %v4442 = vunpack.c.l.b16 %v4438
        %v4443 = vunpack.c.l.b16 %v4439
        %v4444 = vpack.c.b16 %v4443, %v4442
        %v4445 = vunpack.c.h.b16 %v4218
        %v4446 = vunpack.c.h.b16 %v4220
        %v4447 = vunpack.c.h.b16 %v4222
        %v4448 = vunpack.c.h.b16 %v4224
        %v4449 = vunpack.c.h.b16 %v4226
        %v4450 = vunpack.c.h.b16 %v4228
        %v4451 = vunpack.c.h.b16 %v4230
        %v4452 = vunpack.c.h.b16 %v4232
        %v4453 = vpack.c.b16 %v4446, %v4445
        %v4454 = vpack.c.b16 %v4448, %v4447
        %v4455 = vpack.c.b16 %v4450, %v4449
        %v4456 = vpack.c.b16 %v4452, %v4451
        %4457 = vrot.lane.b32.xlu0 %v4260, 8
        %v4458 = vpop.permute.xlu0 %4457
        %4459 = vrot.lane.b32.xlu0 %v4453, 8
        %v4460 = vpop.permute.xlu0 %4459
        %4461 = vrot.lane.b32.xlu0 %v4261, 8
        %v4462 = vpop.permute.xlu0 %4461
        %4463 = vrot.lane.b32.xlu0 %v4454, 8
        %v4464 = vpop.permute.xlu0 %4463
        %4465 = vrot.lane.b32.xlu0 %v4262, 8
        %v4466 = vpop.permute.xlu0 %4465
        %4467 = vrot.lane.b32.xlu0 %v4455, 8
        %v4468 = vpop.permute.xlu0 %4467
        %4469 = vrot.lane.b32.xlu0 %v4263, 8
        %v4470 = vpop.permute.xlu0 %4469
        %4471 = vrot.lane.b32.xlu0 %v4456, 8
        %v4472 = vpop.permute.xlu0 %4471
        %v4473 = vsel %vm3153, %v4458, %v4460
        %v4474 = vsel %vm3153, %v4462, %v4464
        %v4475 = vsel %vm3153, %v4466, %v4468
        %v4476 = vsel %vm3153, %v4470, %v4472
        %v4482 = vsel %vm4276, %v4444, 0
        %4484 = vmatpush.bf16.msra.mxu0 0
        %4485 = vmatpush.bf16.msra.mxu0 0
        %4486 = vmatpush.bf16.msra.mxu0 0
        %4487 = vmatpush.bf16.msra.mxu0 0
        %4488 = vmatpush.bf16.msra.mxu0 %v4476
        %4489 = vmatpush.bf16.msra.mxu0 %v4475
        %4490 = vmatpush.bf16.msra.mxu0 %v4474
        %4491 = vmatpush.bf16.msra.mxu0 %v4473
        %4492 = vmatmul.bf16.gmra.mxu0 %v4482
        %v4493 = vpop.f32.mrf.mxu0
        %v4494 = vadd.f32 0.0, %v4493
        %v4495 = vpop.f32.mrf.mxu0
        %v4496 = vadd.f32 0.0, %v4495
        %4497 = vdwg.mxu0
        %v4498 = vadd.f32 %v4435, %v4494
        %v4499 = vadd.f32 %v4436, %v4496
        %s4500 = scalar_lea.vmem [#allocation10], 48
        %v4501 = vld [vmem:[%s4500] sm:$0xf]
        %v4502 = vld [vmem:[%s4500 + $0x4] sm:$0xf]
        %v4505 = vunpack.c.l.b16 %v4501
        %v4506 = vunpack.c.l.b16 %v4502
        %v4507 = vpack.c.b16 %v4506, %v4505
        %4508 = vrot.lane.b32.xlu0 %v4453, 112
        %v4509 = vpop.permute.xlu0 %4508
        %4510 = vrot.lane.b32.xlu0 %v4454, 112
        %v4511 = vpop.permute.xlu0 %4510
        %4512 = vrot.lane.b32.xlu0 %v4455, 112
        %v4513 = vpop.permute.xlu0 %4512
        %4514 = vrot.lane.b32.xlu0 %v4456, 112
        %v4515 = vpop.permute.xlu0 %4514
        %v4521 = vsel %vm4276, %v4507, 0
        %4523 = vmatpush.bf16.msra.mxu0 0
        %4524 = vmatpush.bf16.msra.mxu0 0
        %4525 = vmatpush.bf16.msra.mxu0 0
        %4526 = vmatpush.bf16.msra.mxu0 0
        %4527 = vmatpush.bf16.msra.mxu0 %v4515
        %4528 = vmatpush.bf16.msra.mxu0 %v4513
        %4529 = vmatpush.bf16.msra.mxu0 %v4511
        %4530 = vmatpush.bf16.msra.mxu0 %v4509
        %4531 = vmatmul.bf16.gmra.mxu0 %v4521
        %v4532 = vpop.f32.mrf.mxu0
        %v4533 = vadd.f32 0.0, %v4532
        %v4534 = vpop.f32.mrf.mxu0
        %v4535 = vadd.f32 0.0, %v4534
        %4536 = vdwg.mxu0
        %v4537 = vadd.f32 %v4498, %v4533
        %v4538 = vadd.f32 %v4499, %v4535
        %s4539 = scalar_lea.vmem [#allocation10], 56
        %v4540 = vld [vmem:[%s4539] sm:$0xf]
        %v4541 = vld [vmem:[%s4539 + $0x4] sm:$0xf]
        %v4544 = vunpack.c.l.b16 %v4540
        %v4545 = vunpack.c.l.b16 %v4541
        %v4546 = vpack.c.b16 %v4545, %v4544
        %4547 = vrot.lane.b32.xlu0 %v4453, 88
        %v4548 = vpop.permute.xlu0 %4547
        %4549 = vrot.lane.b32.xlu0 %v4454, 88
        %v4550 = vpop.permute.xlu0 %4549
        %4551 = vrot.lane.b32.xlu0 %v4455, 88
        %v4552 = vpop.permute.xlu0 %4551
        %4553 = vrot.lane.b32.xlu0 %v4456, 88
        %v4554 = vpop.permute.xlu0 %4553
        %v4560 = vsel %vm4276, %v4546, 0
        %4562 = vmatpush.bf16.msra.mxu0 0
        %4563 = vmatpush.bf16.msra.mxu0 0
        %4564 = vmatpush.bf16.msra.mxu0 0
        %4565 = vmatpush.bf16.msra.mxu0 0
        %4566 = vmatpush.bf16.msra.mxu0 %v4554
        %4567 = vmatpush.bf16.msra.mxu0 %v4552
        %4568 = vmatpush.bf16.msra.mxu0 %v4550
        %4569 = vmatpush.bf16.msra.mxu0 %v4548
        %4570 = vmatmul.bf16.gmra.mxu0 %v4560
        %v4571 = vpop.f32.mrf.mxu0
        %v4572 = vadd.f32 0.0, %v4571
        %v4573 = vpop.f32.mrf.mxu0
        %v4574 = vadd.f32 0.0, %v4573
        %4575 = vdwg.mxu0
        %v4576 = vadd.f32 %v4537, %v4572
        %v4577 = vadd.f32 %v4538, %v4574
        %s4578 = scalar_lea.vmem [#allocation10], 64
        %v4579 = vld [vmem:[%s4578] sm:$0xf]
        %v4580 = vld [vmem:[%s4578 + $0x4] sm:$0xf]
        %v4583 = vunpack.c.l.b16 %v4579
        %v4584 = vunpack.c.l.b16 %v4580
        %v4585 = vpack.c.b16 %v4584, %v4583
        %4586 = vrot.lane.b32.xlu0 %v4453, 64
        %v4587 = vpop.permute.xlu0 %4586
        %4588 = vrot.lane.b32.xlu0 %v4454, 64
        %v4589 = vpop.permute.xlu0 %4588
        %4590 = vrot.lane.b32.xlu0 %v4455, 64
        %v4591 = vpop.permute.xlu0 %4590
        %4592 = vrot.lane.b32.xlu0 %v4456, 64
        %v4593 = vpop.permute.xlu0 %4592
        %v4599 = vsel %vm4276, %v4585, 0
        %4601 = vmatpush.bf16.msra.mxu0 0
        %4602 = vmatpush.bf16.msra.mxu0 0
        %4603 = vmatpush.bf16.msra.mxu0 0
        %4604 = vmatpush.bf16.msra.mxu0 0
        %4605 = vmatpush.bf16.msra.mxu0 %v4593
        %4606 = vmatpush.bf16.msra.mxu0 %v4591
        %4607 = vmatpush.bf16.msra.mxu0 %v4589
        %4608 = vmatpush.bf16.msra.mxu0 %v4587
        %4609 = vmatmul.bf16.gmra.mxu0 %v4599
        %v4610 = vpop.f32.mrf.mxu0
        %v4611 = vadd.f32 0.0, %v4610
        %v4612 = vpop.f32.mrf.mxu0
        %v4613 = vadd.f32 0.0, %v4612
        %4614 = vdwg.mxu0
        %v4615 = vadd.f32 %v4576, %v4611
        %v4616 = vadd.f32 %v4577, %v4613
        %s4617 = scalar_lea.vmem [#allocation10], 72
        %v4618 = vld [vmem:[%s4617] sm:$0xf]
        %v4619 = vld [vmem:[%s4617 + $0x4] sm:$0xf]
        %v4622 = vunpack.c.l.b16 %v4618
        %v4623 = vunpack.c.l.b16 %v4619
        %v4624 = vpack.c.b16 %v4623, %v4622
        %4625 = vrot.lane.b32.xlu0 %v4453, 40
        %v4626 = vpop.permute.xlu0 %4625
        %4627 = vrot.lane.b32.xlu0 %v4454, 40
        %v4628 = vpop.permute.xlu0 %4627
        %4629 = vrot.lane.b32.xlu0 %v4455, 40
        %v4630 = vpop.permute.xlu0 %4629
        %4631 = vrot.lane.b32.xlu0 %v4456, 40
        %v4632 = vpop.permute.xlu0 %4631
        %v4638 = vsel %vm4276, %v4624, 0
        %4640 = vmatpush.bf16.msra.mxu0 0
        %4641 = vmatpush.bf16.msra.mxu0 0
        %4642 = vmatpush.bf16.msra.mxu0 0
        %4643 = vmatpush.bf16.msra.mxu0 0
        %4644 = vmatpush.bf16.msra.mxu0 %v4632
        %4645 = vmatpush.bf16.msra.mxu0 %v4630
        %4646 = vmatpush.bf16.msra.mxu0 %v4628
        %4647 = vmatpush.bf16.msra.mxu0 %v4626
        %4648 = vmatmul.bf16.gmra.mxu0 %v4638
        %v4649 = vpop.f32.mrf.mxu0
        %v4650 = vadd.f32 0.0, %v4649
        %v4651 = vpop.f32.mrf.mxu0
        %v4652 = vadd.f32 0.0, %v4651
        %4653 = vdwg.mxu0
        %v4654 = vadd.f32 %v4615, %v4650
        %v4655 = vadd.f32 %v4616, %v4652
        %s4656 = scalar_lea.vmem [#allocation10], 80
        %v4657 = vld [vmem:[%s4656] sm:$0xf]
        %v4658 = vld [vmem:[%s4656 + $0x4] sm:$0xf]
        %v4661 = vunpack.c.l.b16 %v4657
        %v4662 = vunpack.c.l.b16 %v4658
        %v4663 = vpack.c.b16 %v4662, %v4661
        %v4672 = vunpack.c.l.b16 %v4219
        %v4673 = vunpack.c.l.b16 %v4221
        %v4674 = vunpack.c.l.b16 %v4223
        %v4675 = vunpack.c.l.b16 %v4225
        %v4676 = vunpack.c.l.b16 %v4227
        %v4677 = vunpack.c.l.b16 %v4229
        %v4678 = vunpack.c.l.b16 %v4231
        %v4679 = vunpack.c.l.b16 %v4233
        %v4680 = vpack.c.b16 %v4673, %v4672
        %v4681 = vpack.c.b16 %v4675, %v4674
        %v4682 = vpack.c.b16 %v4677, %v4676
        %v4683 = vpack.c.b16 %v4679, %v4678
        %4684 = vrot.lane.b32.xlu0 %v4453, 16
        %v4685 = vpop.permute.xlu0 %4684
        %4686 = vrot.lane.b32.xlu0 %v4680, 16
        %v4687 = vpop.permute.xlu0 %4686
        %4688 = vrot.lane.b32.xlu0 %v4454, 16
        %v4689 = vpop.permute.xlu0 %4688
        %4690 = vrot.lane.b32.xlu0 %v4681, 16
        %v4691 = vpop.permute.xlu0 %4690
        %4692 = vrot.lane.b32.xlu0 %v4455, 16
        %v4693 = vpop.permute.xlu0 %4692
        %4694 = vrot.lane.b32.xlu0 %v4682, 16
        %v4695 = vpop.permute.xlu0 %4694
        %4696 = vrot.lane.b32.xlu0 %v4456, 16
        %v4697 = vpop.permute.xlu0 %4696
        %4698 = vrot.lane.b32.xlu0 %v4683, 16
        %v4699 = vpop.permute.xlu0 %4698
        %vm4700 = vcmask 130048
        %v4701 = vsel %vm4700, %v4685, %v4687
        %v4702 = vsel %vm4700, %v4689, %v4691
        %v4703 = vsel %vm4700, %v4693, %v4695
        %v4704 = vsel %vm4700, %v4697, %v4699
        %v4710 = vsel %vm4276, %v4663, 0
        %4712 = vmatpush.bf16.msra.mxu0 0
        %4713 = vmatpush.bf16.msra.mxu0 0
        %4714 = vmatpush.bf16.msra.mxu0 0
        %4715 = vmatpush.bf16.msra.mxu0 0
        %4716 = vmatpush.bf16.msra.mxu0 %v4704
        %4717 = vmatpush.bf16.msra.mxu0 %v4703
        %4718 = vmatpush.bf16.msra.mxu0 %v4702
        %4719 = vmatpush.bf16.msra.mxu0 %v4701
        %4720 = vmatmul.bf16.gmra.mxu0 %v4710
        %v4721 = vpop.f32.mrf.mxu0
        %v4722 = vadd.f32 0.0, %v4721
        %v4723 = vpop.f32.mrf.mxu0
        %v4724 = vadd.f32 0.0, %v4723
        %4725 = vdwg.mxu0
        %v4726 = vadd.f32 %v4654, %v4722
        %v4727 = vadd.f32 %v4655, %v4724
        %s4728 = scalar_lea.vmem [#allocation10], 88
        %v4729 = vld [vmem:[%s4728] sm:$0xf]
        %v4730 = vld [vmem:[%s4728 + $0x4] sm:$0xf]
        %v4733 = vunpack.c.l.b16 %v4729
        %v4734 = vunpack.c.l.b16 %v4730
        %v4735 = vpack.c.b16 %v4734, %v4733
        %4736 = vrot.lane.b32.xlu0 %v4680, 120
        %v4737 = vpop.permute.xlu0 %4736
        %4738 = vrot.lane.b32.xlu0 %v4681, 120
        %v4739 = vpop.permute.xlu0 %4738
        %4740 = vrot.lane.b32.xlu0 %v4682, 120
        %v4741 = vpop.permute.xlu0 %4740
        %4742 = vrot.lane.b32.xlu0 %v4683, 120
        %v4743 = vpop.permute.xlu0 %4742
        %v4749 = vsel %vm4276, %v4735, 0
        %4751 = vmatpush.bf16.msra.mxu0 0
        %4752 = vmatpush.bf16.msra.mxu0 0
        %4753 = vmatpush.bf16.msra.mxu0 0
        %4754 = vmatpush.bf16.msra.mxu0 0
        %4755 = vmatpush.bf16.msra.mxu0 %v4743
        %4756 = vmatpush.bf16.msra.mxu0 %v4741
        %4757 = vmatpush.bf16.msra.mxu0 %v4739
        %4758 = vmatpush.bf16.msra.mxu0 %v4737
        %4759 = vmatmul.bf16.gmra.mxu0 %v4749
        %v4760 = vpop.f32.mrf.mxu0
        %v4761 = vadd.f32 0.0, %v4760
        %v4762 = vpop.f32.mrf.mxu0
        %v4763 = vadd.f32 0.0, %v4762
        %4764 = vdwg.mxu0
        %v4765 = vadd.f32 %v4726, %v4761
        %v4766 = vadd.f32 %v4727, %v4763
        %s4767 = scalar_lea.vmem [#allocation10], 96
        %v4768 = vld [vmem:[%s4767] sm:$0xf]
        %v4769 = vld [vmem:[%s4767 + $0x4] sm:$0xf]
        %v4772 = vunpack.c.l.b16 %v4768
        %v4773 = vunpack.c.l.b16 %v4769
        %v4774 = vpack.c.b16 %v4773, %v4772
        %4775 = vrot.lane.b32.xlu0 %v4680, 96
        %v4776 = vpop.permute.xlu0 %4775
        %4777 = vrot.lane.b32.xlu0 %v4681, 96
        %v4778 = vpop.permute.xlu0 %4777
        %4779 = vrot.lane.b32.xlu0 %v4682, 96
        %v4780 = vpop.permute.xlu0 %4779
        %4781 = vrot.lane.b32.xlu0 %v4683, 96
        %v4782 = vpop.permute.xlu0 %4781
        %v4788 = vsel %vm4276, %v4774, 0
        %4790 = vmatpush.bf16.msra.mxu0 0
        %4791 = vmatpush.bf16.msra.mxu0 0
        %4792 = vmatpush.bf16.msra.mxu0 0
        %4793 = vmatpush.bf16.msra.mxu0 0
        %4794 = vmatpush.bf16.msra.mxu0 %v4782
        %4795 = vmatpush.bf16.msra.mxu0 %v4780
        %4796 = vmatpush.bf16.msra.mxu0 %v4778
        %4797 = vmatpush.bf16.msra.mxu0 %v4776
        %4798 = vmatmul.bf16.gmra.mxu0 %v4788
        %v4799 = vpop.f32.mrf.mxu0
        %v4800 = vadd.f32 0.0, %v4799
        %v4801 = vpop.f32.mrf.mxu0
        %v4802 = vadd.f32 0.0, %v4801
        %4803 = vdwg.mxu0
        %v4804 = vadd.f32 %v4765, %v4800
        %v4805 = vadd.f32 %v4766, %v4802
        %s4806 = scalar_lea.vmem [#allocation10], 104
        %v4807 = vld [vmem:[%s4806] sm:$0xf]
        %v4808 = vld [vmem:[%s4806 + $0x4] sm:$0xf]
        %v4811 = vunpack.c.l.b16 %v4807
        %v4812 = vunpack.c.l.b16 %v4808
        %v4813 = vpack.c.b16 %v4812, %v4811
        %4814 = vrot.lane.b32.xlu0 %v4680, 72
        %v4815 = vpop.permute.xlu0 %4814
        %4816 = vrot.lane.b32.xlu0 %v4681, 72
        %v4817 = vpop.permute.xlu0 %4816
        %4818 = vrot.lane.b32.xlu0 %v4682, 72
        %v4819 = vpop.permute.xlu0 %4818
        %4820 = vrot.lane.b32.xlu0 %v4683, 72
        %v4821 = vpop.permute.xlu0 %4820
        %v4827 = vsel %vm4276, %v4813, 0
        %4829 = vmatpush.bf16.msra.mxu0 0
        %4830 = vmatpush.bf16.msra.mxu0 0
        %4831 = vmatpush.bf16.msra.mxu0 0
        %4832 = vmatpush.bf16.msra.mxu0 0
        %4833 = vmatpush.bf16.msra.mxu0 %v4821
        %4834 = vmatpush.bf16.msra.mxu0 %v4819
        %4835 = vmatpush.bf16.msra.mxu0 %v4817
        %4836 = vmatpush.bf16.msra.mxu0 %v4815
        %4837 = vmatmul.bf16.gmra.mxu0 %v4827
        %v4838 = vpop.f32.mrf.mxu0
        %v4839 = vadd.f32 0.0, %v4838
        %v4840 = vpop.f32.mrf.mxu0
        %v4841 = vadd.f32 0.0, %v4840
        %4842 = vdwg.mxu0
        %v4843 = vadd.f32 %v4804, %v4839
        %v4844 = vadd.f32 %v4805, %v4841
        %s4845 = scalar_lea.vmem [#allocation10], 112
        %v4846 = vld [vmem:[%s4845] sm:$0xf]
        %v4847 = vld [vmem:[%s4845 + $0x4] sm:$0xf]
        %v4850 = vunpack.c.l.b16 %v4846
        %v4851 = vunpack.c.l.b16 %v4847
        %v4852 = vpack.c.b16 %v4851, %v4850
        %4853 = vrot.lane.b32.xlu0 %v4680, 48
        %v4854 = vpop.permute.xlu0 %4853
        %4855 = vrot.lane.b32.xlu0 %v4681, 48
        %v4856 = vpop.permute.xlu0 %4855
        %4857 = vrot.lane.b32.xlu0 %v4682, 48
        %v4858 = vpop.permute.xlu0 %4857
        %4859 = vrot.lane.b32.xlu0 %v4683, 48
        %v4860 = vpop.permute.xlu0 %4859
        %v4866 = vsel %vm4276, %v4852, 0
        %4868 = vmatpush.bf16.msra.mxu0 0
        %4869 = vmatpush.bf16.msra.mxu0 0
        %4870 = vmatpush.bf16.msra.mxu0 0
        %4871 = vmatpush.bf16.msra.mxu0 0
        %4872 = vmatpush.bf16.msra.mxu0 %v4860
        %4873 = vmatpush.bf16.msra.mxu0 %v4858
        %4874 = vmatpush.bf16.msra.mxu0 %v4856
        %4875 = vmatpush.bf16.msra.mxu0 %v4854
        %4876 = vmatmul.bf16.gmra.mxu0 %v4866
        %v4877 = vpop.f32.mrf.mxu0
        %v4878 = vadd.f32 0.0, %v4877
        %v4879 = vpop.f32.mrf.mxu0
        %v4880 = vadd.f32 0.0, %v4879
        %4881 = vdwg.mxu0
        %v4882 = vadd.f32 %v4843, %v4878
        %v4883 = vadd.f32 %v4844, %v4880
        %s4884 = scalar_lea.vmem [#allocation10], 120
        %v4885 = vld [vmem:[%s4884] sm:$0xf]
        %v4886 = vld [vmem:[%s4884 + $0x4] sm:$0xf]
        %v4889 = vunpack.c.l.b16 %v4885
        %v4890 = vunpack.c.l.b16 %v4886
        %v4891 = vpack.c.b16 %v4890, %v4889
        %4892 = vrot.lane.b32.xlu0 %v4680, 24
        %v4893 = vpop.permute.xlu0 %4892
        %4894 = vrot.lane.b32.xlu0 %v4681, 24
        %v4895 = vpop.permute.xlu0 %4894
        %4896 = vrot.lane.b32.xlu0 %v4682, 24
        %v4897 = vpop.permute.xlu0 %4896
        %4898 = vrot.lane.b32.xlu0 %v4683, 24
        %v4899 = vpop.permute.xlu0 %4898
        %v4905 = vsel %vm4276, %v4891, 0
        %4907 = vmatpush.bf16.msra.mxu0 0
        %4908 = vmatpush.bf16.msra.mxu0 0
        %4909 = vmatpush.bf16.msra.mxu0 0
        %4910 = vmatpush.bf16.msra.mxu0 0
        %4911 = vmatpush.bf16.msra.mxu0 %v4899
        %4912 = vmatpush.bf16.msra.mxu0 %v4897
        %4913 = vmatpush.bf16.msra.mxu0 %v4895
        %4914 = vmatpush.bf16.msra.mxu0 %v4893
        %4915 = vmatmul.bf16.gmra.mxu0 %v4905
        %v4916 = vpop.f32.mrf.mxu0
        %v4917 = vadd.f32 0.0, %v4916
        %v4918 = vpop.f32.mrf.mxu0
        %v4919 = vadd.f32 0.0, %v4918
        %4920 = vdwg.mxu0
        %v4921 = vadd.f32 %v4882, %v4917
        %v4922 = vadd.f32 %v4883, %v4919
        %v4923 = vld [vmem:[#allocation8] sm:$0x1]
        %v4925 = vperm.slane %v4923, 0
        %v4927 = vadd.f32 %v4921, %v4925
        %v4928 = vadd.f32 %v4922, %v4925
        %v4929 = vmax.f32 %v4927, 0.0
        %v4930 = vmax.f32 %v4928, 0.0
        %v4931 = vpack.c.bf16 %v4930, %v4929
        %v4932 = vld [vmem:[#allocation11] sm:$0xff]
        %v4933 = vld [vmem:[#allocation11 + $0x8] sm:$0xff]
        %v4934 = vld [vmem:[#allocation11 + $0x10] sm:$0xff]
        %v4935 = vld [vmem:[#allocation11 + $0x18] sm:$0xff]
        %v4936 = vld [vmem:[#allocation11 + $0x20] sm:$0xff]
        %v4937 = vld [vmem:[#allocation11 + $0x28] sm:$0xff]
        %v4938 = vld [vmem:[#allocation11 + $0x30] sm:$0xff]
        %v4939 = vld [vmem:[#allocation11 + $0x38] sm:$0xff]
        %v4940 = vld [vmem:[#allocation11 + $0x40] sm:$0xff]
        %v4941 = vld [vmem:[#allocation11 + $0x48] sm:$0xff]
        %v4942 = vld [vmem:[#allocation11 + $0x50] sm:$0xff]
        %v4943 = vld [vmem:[#allocation11 + $0x58] sm:$0xff]
        %v4944 = vld [vmem:[#allocation11 + $0x60] sm:$0xff]
        %v4945 = vld [vmem:[#allocation11 + $0x68] sm:$0xff]
        %v4946 = vld [vmem:[#allocation11 + $0x70] sm:$0xff]
        %v4947 = vld [vmem:[#allocation11 + $0x78] sm:$0xff]
        %v4948 = vld [vmem:[#allocation11 + $0x80] sm:$0xff]
        %v4949 = vld [vmem:[#allocation11 + $0x88] sm:$0xff]
        %v4968 = vunpack.c.l.b16 %v4932
        %v4969 = vunpack.c.h.b16 %v4932
        %v4970 = vunpack.c.l.b16 %v4933
        %v4971 = vunpack.c.h.b16 %v4933
        %v4972 = vunpack.c.l.b16 %v4934
        %v4973 = vunpack.c.h.b16 %v4934
        %v4974 = vunpack.c.l.b16 %v4935
        %v4975 = vunpack.c.h.b16 %v4935
        %v4976 = vunpack.c.l.b16 %v4936
        %v4977 = vunpack.c.h.b16 %v4936
        %v4978 = vunpack.c.l.b16 %v4937
        %v4979 = vunpack.c.h.b16 %v4937
        %v4980 = vunpack.c.l.b16 %v4938
        %v4981 = vunpack.c.h.b16 %v4938
        %v4982 = vunpack.c.l.b16 %v4939
        %v4983 = vunpack.c.h.b16 %v4939
        %v4984 = vunpack.c.l.b16 %v4940
        %v4985 = vunpack.c.h.b16 %v4940
        %v4986 = vunpack.c.l.b16 %v4941
        %v4987 = vunpack.c.h.b16 %v4941
        %v4988 = vunpack.c.l.b16 %v4942
        %v4989 = vunpack.c.h.b16 %v4942
        %v4990 = vunpack.c.l.b16 %v4943
        %v4991 = vunpack.c.h.b16 %v4943
        %v4992 = vunpack.c.l.b16 %v4944
        %v4993 = vunpack.c.h.b16 %v4944
        %v4994 = vunpack.c.l.b16 %v4945
        %v4995 = vunpack.c.h.b16 %v4945
        %v4996 = vunpack.c.l.b16 %v4946
        %v4997 = vunpack.c.h.b16 %v4946
        %v4998 = vunpack.c.l.b16 %v4947
        %v4999 = vunpack.c.h.b16 %v4947
        %v5000 = vunpack.c.l.b16 %v4948
        %v5001 = vunpack.c.h.b16 %v4948
        %v5002 = vunpack.c.l.b16 %v4949
        %v5003 = vunpack.c.h.b16 %v4949
        %v5004 = vpack.c.b16 %v4980, %v4968
        %v5005 = vpack.c.b16 %v4981, %v4969
        %v5006 = vpack.c.b16 %v4982, %v4970
        %v5007 = vpack.c.b16 %v4983, %v4971
        %v5008 = vpack.c.b16 %v4984, %v4972
        %v5009 = vpack.c.b16 %v4985, %v4973
        %v5010 = vpack.c.b16 %v4986, %v4974
        %v5011 = vpack.c.b16 %v4987, %v4975
        %v5012 = vpack.c.b16 %v4988, %v4976
        %v5013 = vpack.c.b16 %v4989, %v4977
        %v5014 = vpack.c.b16 %v4990, %v4978
        %v5015 = vpack.c.b16 %v4991, %v4979
        %v5016 = vpack.c.b16 %v4992, %v4992
        %v5017 = vpack.c.b16 %v4993, %v4993
        %v5018 = vpack.c.b16 %v4994, %v4994
        %v5019 = vpack.c.b16 %v4995, %v4995
        %v5020 = vpack.c.b16 %v4996, %v4996
        %v5021 = vpack.c.b16 %v4997, %v4997
        %v5022 = vpack.c.b16 %v4998, %v4998
        %v5023 = vpack.c.b16 %v4999, %v4999
        %v5024 = vpack.c.b16 %v5000, %v5000
        %v5025 = vpack.c.b16 %v5001, %v5001
        %v5026 = vpack.c.b16 %v5002, %v5002
        %v5027 = vpack.c.b16 %v5003, %v5003
        %vm5040 = vcmask 195584
        %v5042 = vsel %vm5040, %v4931, 0
        %vm5044 = vcmask 1043456
        %v5046 = vsel %vm5044, %v5016, 0
        %v5049 = vsel %vm5044, %v5017, 0
        %v5052 = vsel %vm5044, %v5018, 0
        %v5055 = vsel %vm5044, %v5019, 0
        %v5058 = vsel %vm5044, %v5020, 0
        %v5061 = vsel %vm5044, %v5021, 0
        %v5064 = vsel %vm5044, %v5022, 0
        %v5067 = vsel %vm5044, %v5023, 0
        %v5070 = vsel %vm5044, %v5024, 0
        %v5073 = vsel %vm5044, %v5025, 0
        %v5076 = vsel %vm5044, %v5026, 0
        %v5079 = vsel %vm5044, %v5027, 0
        %5081 = vmatpush.bf16.msra.mxu0 0
        %5082 = vmatpush.bf16.msra.mxu0 0
        %5083 = vmatpush.bf16.msra.mxu0 0
        %5084 = vmatpush.bf16.msra.mxu0 0
        %5085 = vmatpush.bf16.msra.mxu0 0
        %5086 = vmatpush.bf16.msra.mxu0 0
        %5087 = vmatpush.bf16.msra.mxu0 %v5046
        %5088 = vmatpush.bf16.msra.mxu0 %v5004
        %5089 = vmatmul.bf16.gmra.mxu0 %v5042
        %v5090 = vpop.f32.mrf.mxu0
        %v5091 = vadd.f32 0.0, %v5090
        %v5092 = vpop.f32.mrf.mxu0
        %v5093 = vadd.f32 0.0, %v5092
        %5094 = vdwg.mxu0
        %5095 = vmatpush.bf16.msra.mxu0 0
        %5096 = vmatpush.bf16.msra.mxu0 0
        %5097 = vmatpush.bf16.msra.mxu0 0
        %5098 = vmatpush.bf16.msra.mxu0 0
        %5099 = vmatpush.bf16.msra.mxu0 0
        %5100 = vmatpush.bf16.msra.mxu0 0
        %5101 = vmatpush.bf16.msra.mxu0 %v5049
        %5102 = vmatpush.bf16.msra.mxu0 %v5005
        %5103 = vmatmul.bf16.gmra.mxu0 %v5042
        %v5104 = vpop.f32.mrf.mxu0
        %v5105 = vadd.f32 0.0, %v5104
        %v5106 = vpop.f32.mrf.mxu0
        %v5107 = vadd.f32 0.0, %v5106
        %5108 = vdwg.mxu0
        %5109 = vmatpush.bf16.msra.mxu0 0
        %5110 = vmatpush.bf16.msra.mxu0 0
        %5111 = vmatpush.bf16.msra.mxu0 0
        %5112 = vmatpush.bf16.msra.mxu0 0
        %5113 = vmatpush.bf16.msra.mxu0 0
        %5114 = vmatpush.bf16.msra.mxu0 0
        %5115 = vmatpush.bf16.msra.mxu0 %v5052
        %5116 = vmatpush.bf16.msra.mxu0 %v5006
        %5117 = vmatmul.bf16.gmra.mxu0 %v5042
        %v5118 = vpop.f32.mrf.mxu0
        %v5119 = vadd.f32 0.0, %v5118
        %v5120 = vpop.f32.mrf.mxu0
        %v5121 = vadd.f32 0.0, %v5120
        %5122 = vdwg.mxu0
        %5123 = vmatpush.bf16.msra.mxu0 0
        %5124 = vmatpush.bf16.msra.mxu0 0
        %5125 = vmatpush.bf16.msra.mxu0 0
        %5126 = vmatpush.bf16.msra.mxu0 0
        %5127 = vmatpush.bf16.msra.mxu0 0
        %5128 = vmatpush.bf16.msra.mxu0 0
        %5129 = vmatpush.bf16.msra.mxu0 %v5055
        %5130 = vmatpush.bf16.msra.mxu0 %v5007
        %5131 = vmatmul.bf16.gmra.mxu0 %v5042
        %v5132 = vpop.f32.mrf.mxu0
        %v5133 = vadd.f32 0.0, %v5132
        %v5134 = vpop.f32.mrf.mxu0
        %v5135 = vadd.f32 0.0, %v5134
        %5136 = vdwg.mxu0
        %5137 = vmatpush.bf16.msra.mxu0 0
        %5138 = vmatpush.bf16.msra.mxu0 0
        %5139 = vmatpush.bf16.msra.mxu0 0
        %5140 = vmatpush.bf16.msra.mxu0 0
        %5141 = vmatpush.bf16.msra.mxu0 0
        %5142 = vmatpush.bf16.msra.mxu0 0
        %5143 = vmatpush.bf16.msra.mxu0 %v5058
        %5144 = vmatpush.bf16.msra.mxu0 %v5008
        %5145 = vmatmul.bf16.gmra.mxu0 %v5042
        %v5146 = vpop.f32.mrf.mxu0
        %v5147 = vadd.f32 0.0, %v5146
        %v5148 = vpop.f32.mrf.mxu0
        %v5149 = vadd.f32 0.0, %v5148
        %5150 = vdwg.mxu0
        %5151 = vmatpush.bf16.msra.mxu0 0
        %5152 = vmatpush.bf16.msra.mxu0 0
        %5153 = vmatpush.bf16.msra.mxu0 0
        %5154 = vmatpush.bf16.msra.mxu0 0
        %5155 = vmatpush.bf16.msra.mxu0 0
        %5156 = vmatpush.bf16.msra.mxu0 0
        %5157 = vmatpush.bf16.msra.mxu0 %v5061
        %5158 = vmatpush.bf16.msra.mxu0 %v5009
        %5159 = vmatmul.bf16.gmra.mxu0 %v5042
        %v5160 = vpop.f32.mrf.mxu0
        %v5161 = vadd.f32 0.0, %v5160
        %v5162 = vpop.f32.mrf.mxu0
        %v5163 = vadd.f32 0.0, %v5162
        %5164 = vdwg.mxu0
        %5165 = vmatpush.bf16.msra.mxu0 0
        %5166 = vmatpush.bf16.msra.mxu0 0
        %5167 = vmatpush.bf16.msra.mxu0 0
        %5168 = vmatpush.bf16.msra.mxu0 0
        %5169 = vmatpush.bf16.msra.mxu0 0
        %5170 = vmatpush.bf16.msra.mxu0 0
        %5171 = vmatpush.bf16.msra.mxu0 %v5064
        %5172 = vmatpush.bf16.msra.mxu0 %v5010
        %5173 = vmatmul.bf16.gmra.mxu0 %v5042
        %v5174 = vpop.f32.mrf.mxu0
        %v5175 = vadd.f32 0.0, %v5174
        %v5176 = vpop.f32.mrf.mxu0
        %v5177 = vadd.f32 0.0, %v5176
        %5178 = vdwg.mxu0
        %5179 = vmatpush.bf16.msra.mxu0 0
        %5180 = vmatpush.bf16.msra.mxu0 0
        %5181 = vmatpush.bf16.msra.mxu0 0
        %5182 = vmatpush.bf16.msra.mxu0 0
        %5183 = vmatpush.bf16.msra.mxu0 0
        %5184 = vmatpush.bf16.msra.mxu0 0
        %5185 = vmatpush.bf16.msra.mxu0 %v5067
        %5186 = vmatpush.bf16.msra.mxu0 %v5011
        %5187 = vmatmul.bf16.gmra.mxu0 %v5042
        %v5188 = vpop.f32.mrf.mxu0
        %v5189 = vadd.f32 0.0, %v5188
        %v5190 = vpop.f32.mrf.mxu0
        %v5191 = vadd.f32 0.0, %v5190
        %5192 = vdwg.mxu0
        %5193 = vmatpush.bf16.msra.mxu0 0
        %5194 = vmatpush.bf16.msra.mxu0 0
        %5195 = vmatpush.bf16.msra.mxu0 0
        %5196 = vmatpush.bf16.msra.mxu0 0
        %5197 = vmatpush.bf16.msra.mxu0 0
        %5198 = vmatpush.bf16.msra.mxu0 0
        %5199 = vmatpush.bf16.msra.mxu0 %v5070
        %5200 = vmatpush.bf16.msra.mxu0 %v5012
        %5201 = vmatmul.bf16.gmra.mxu0 %v5042
        %v5202 = vpop.f32.mrf.mxu0
        %v5203 = vadd.f32 0.0, %v5202
        %v5204 = vpop.f32.mrf.mxu0
        %v5205 = vadd.f32 0.0, %v5204
        %5206 = vdwg.mxu0
        %5207 = vmatpush.bf16.msra.mxu0 0
        %5208 = vmatpush.bf16.msra.mxu0 0
        %5209 = vmatpush.bf16.msra.mxu0 0
        %5210 = vmatpush.bf16.msra.mxu0 0
        %5211 = vmatpush.bf16.msra.mxu0 0
        %5212 = vmatpush.bf16.msra.mxu0 0
        %5213 = vmatpush.bf16.msra.mxu0 %v5073
        %5214 = vmatpush.bf16.msra.mxu0 %v5013
        %5215 = vmatmul.bf16.gmra.mxu0 %v5042
        %v5216 = vpop.f32.mrf.mxu0
        %v5217 = vadd.f32 0.0, %v5216
        %v5218 = vpop.f32.mrf.mxu0
        %v5219 = vadd.f32 0.0, %v5218
        %5220 = vdwg.mxu0
        %5221 = vmatpush.bf16.msra.mxu0 0
        %5222 = vmatpush.bf16.msra.mxu0 0
        %5223 = vmatpush.bf16.msra.mxu0 0
        %5224 = vmatpush.bf16.msra.mxu0 0
        %5225 = vmatpush.bf16.msra.mxu0 0
        %5226 = vmatpush.bf16.msra.mxu0 0
        %5227 = vmatpush.bf16.msra.mxu0 %v5076
        %5228 = vmatpush.bf16.msra.mxu0 %v5014
        %5229 = vmatmul.bf16.gmra.mxu0 %v5042
        %v5230 = vpop.f32.mrf.mxu0
        %v5231 = vadd.f32 0.0, %v5230
        %v5232 = vpop.f32.mrf.mxu0
        %v5233 = vadd.f32 0.0, %v5232
        %5234 = vdwg.mxu0
        %5235 = vmatpush.bf16.msra.mxu0 0
        %5236 = vmatpush.bf16.msra.mxu0 0
        %5237 = vmatpush.bf16.msra.mxu0 0
        %5238 = vmatpush.bf16.msra.mxu0 0
        %5239 = vmatpush.bf16.msra.mxu0 0
        %5240 = vmatpush.bf16.msra.mxu0 0
        %5241 = vmatpush.bf16.msra.mxu0 %v5079
        %5242 = vmatpush.bf16.msra.mxu0 %v5015
        %5243 = vmatmul.bf16.gmra.mxu0 %v5042
        %v5244 = vpop.f32.mrf.mxu0
        %v5245 = vadd.f32 0.0, %v5244
        %v5246 = vpop.f32.mrf.mxu0
        %v5247 = vadd.f32 0.0, %v5246
        %5248 = vdwg.mxu0
        %v5249 = vpack.c.bf16 %v5105, %v5091
        %v5250 = vpack.c.bf16 %v5133, %v5119
        %v5251 = vpack.c.bf16 %v5161, %v5147
        %v5252 = vpack.c.bf16 %v5189, %v5175
        %v5253 = vpack.c.bf16 %v5217, %v5203
        %v5254 = vpack.c.bf16 %v5245, %v5231
        %v5255 = vpack.c.bf16 %v5107, %v5093
        %v5256 = vpack.c.bf16 %v5135, %v5121
        %v5257 = vpack.c.bf16 %v5163, %v5149
        %v5258 = vpack.c.bf16 %v5191, %v5177
        %v5259 = vpack.c.bf16 %v5219, %v5205
        %v5260 = vpack.c.bf16 %v5247, %v5233
        %v5261 = vld [vmem:[#allocation14] sm:$0x3]
        %s5262 = scalar_lea.vmem [#allocation14], 2
        %v5263 = vld [vmem:[%s5262] sm:$0x3]
        %v5266 = vunpack.c.l.b16 %v5249
        %v5267 = vunpack.c.h.b16 %v5249
        %v5268 = vunpack.c.l.b16 %v5255
        %v5269 = vunpack.c.h.b16 %v5255
        %v5270 = vpack.c.b16 %v5268, %v5266
        %v5271 = vpack.c.b16 %v5269, %v5267
        %5272 = vrot.lane.b32.xlu0 %v5270, 32
        %v5273 = vpop.permute.xlu0 %5272
        %5274 = vrot.lane.b32.xlu0 %v5271, 32
        %v5275 = vpop.permute.xlu0 %5274
        %vm5276 = vcmask 261120
        %v5277 = vsel %vm5276, %v5273, %v5275
        %vm5279 = vcmask 130048
        %v5281 = vsel %vm5279, %v5263, 0
        %5283 = vmatpush.bf16.msra.mxu0 0
        %5284 = vmatpush.bf16.msra.mxu0 0
        %5285 = vmatpush.bf16.msra.mxu0 0
        %5286 = vmatpush.bf16.msra.mxu0 0
        %5287 = vmatpush.bf16.msra.mxu0 0
        %5288 = vmatpush.bf16.msra.mxu0 0
        %5289 = vmatpush.bf16.msra.mxu0 0
        %5290 = vmatpush.bf16.msra.mxu0 %v5277
        %5291 = vmatmul.bf16.gmra.mxu0 %v5281
        %v5292 = vpop.f32.mrf.mxu0
        %v5293 = vadd.f32 0.0, %v5292
        %v5294 = vpop.f32.mrf.mxu0
        %5295 = vdwg.mxu0
        %v5298 = vsel %vm5279, %v5261, 0
        %5300 = vmatpush.bf16.msra.mxu0 0
        %5301 = vmatpush.bf16.msra.mxu0 0
        %5302 = vmatpush.bf16.msra.mxu0 0
        %5303 = vmatpush.bf16.msra.mxu0 0
        %5304 = vmatpush.bf16.msra.mxu0 0
        %5305 = vmatpush.bf16.msra.mxu0 0
        %5306 = vmatpush.bf16.msra.mxu0 0
        %5307 = vmatpush.bf16.msra.mxu0 %v5270
        %5308 = vmatmul.bf16.gmra.mxu0 %v5298
        %v5309 = vpop.f32.mrf.mxu0
        %v5310 = vadd.f32 %v5293, %v5309
        %v5311 = vpop.f32.mrf.mxu0
        %5312 = vdwg.mxu0
        %s5313 = scalar_lea.vmem [#allocation14], 4
        %v5314 = vld [vmem:[%s5313] sm:$0x3]
        %v5317 = vunpack.c.l.b16 %v5250
        %v5318 = vunpack.c.l.b16 %v5256
        %v5319 = vpack.c.b16 %v5318, %v5317
        %5320 = vrot.lane.b32.xlu0 %v5271, 64
        %v5321 = vpop.permute.xlu0 %5320
        %5322 = vrot.lane.b32.xlu0 %v5319, 64
        %v5323 = vpop.permute.xlu0 %5322
        %vm5324 = vcmask 523264
        %v5325 = vsel %vm5324, %v5321, %v5323
        %v5328 = vsel %vm5279, %v5314, 0
        %5330 = vmatpush.bf16.msra.mxu0 0
        %5331 = vmatpush.bf16.msra.mxu0 0
        %5332 = vmatpush.bf16.msra.mxu0 0
        %5333 = vmatpush.bf16.msra.mxu0 0
        %5334 = vmatpush.bf16.msra.mxu0 0
        %5335 = vmatpush.bf16.msra.mxu0 0
        %5336 = vmatpush.bf16.msra.mxu0 0
        %5337 = vmatpush.bf16.msra.mxu0 %v5325
        %5338 = vmatmul.bf16.gmra.mxu0 %v5328
        %v5339 = vpop.f32.mrf.mxu0
        %v5340 = vadd.f32 0.0, %v5339
        %v5341 = vpop.f32.mrf.mxu0
        %5342 = vdwg.mxu0
        %v5343 = vadd.f32 %v5310, %v5340
        %s5344 = scalar_lea.vmem [#allocation14], 6
        %v5345 = vld [vmem:[%s5344] sm:$0x3]
        %5346 = vrot.lane.b32.xlu0 %v5319, 96
        %v5347 = vpop.permute.xlu0 %5346
        %v5350 = vsel %vm5279, %v5345, 0
        %5352 = vmatpush.bf16.msra.mxu0 0
        %5353 = vmatpush.bf16.msra.mxu0 0
        %5354 = vmatpush.bf16.msra.mxu0 0
        %5355 = vmatpush.bf16.msra.mxu0 0
        %5356 = vmatpush.bf16.msra.mxu0 0
        %5357 = vmatpush.bf16.msra.mxu0 0
        %5358 = vmatpush.bf16.msra.mxu0 0
        %5359 = vmatpush.bf16.msra.mxu0 %v5347
        %5360 = vmatmul.bf16.gmra.mxu0 %v5350
        %v5361 = vpop.f32.mrf.mxu0
        %v5362 = vadd.f32 0.0, %v5361
        %v5363 = vpop.f32.mrf.mxu0
        %5364 = vdwg.mxu0
        %v5365 = vadd.f32 %v5343, %v5362
        %s5366 = scalar_lea.vmem [#allocation14], 8
        %v5367 = vld [vmem:[%s5366] sm:$0x3]
        %v5368 = vunpack.c.h.b16 %v5250
        %v5369 = vunpack.c.h.b16 %v5256
        %v5370 = vpack.c.b16 %v5369, %v5368
        %v5373 = vsel %vm5279, %v5367, 0
        %5375 = vmatpush.bf16.msra.mxu0 0
        %5376 = vmatpush.bf16.msra.mxu0 0
        %5377 = vmatpush.bf16.msra.mxu0 0
        %5378 = vmatpush.bf16.msra.mxu0 0
        %5379 = vmatpush.bf16.msra.mxu0 0
        %5380 = vmatpush.bf16.msra.mxu0 0
        %5381 = vmatpush.bf16.msra.mxu0 0
        %5382 = vmatpush.bf16.msra.mxu0 %v5370
        %5383 = vmatmul.bf16.gmra.mxu0 %v5373
        %v5384 = vpop.f32.mrf.mxu0
        %v5385 = vadd.f32 0.0, %v5384
        %v5386 = vpop.f32.mrf.mxu0
        %5387 = vdwg.mxu0
        %v5388 = vadd.f32 %v5365, %v5385
        %s5389 = scalar_lea.vmem [#allocation14], 10
        %v5390 = vld [vmem:[%s5389] sm:$0x3]
        %v5393 = vunpack.c.l.b16 %v5251
        %v5394 = vunpack.c.l.b16 %v5257
        %v5395 = vpack.c.b16 %v5394, %v5393
        %5396 = vrot.lane.b32.xlu0 %v5370, 32
        %v5397 = vpop.permute.xlu0 %5396
        %5398 = vrot.lane.b32.xlu0 %v5395, 32
        %v5399 = vpop.permute.xlu0 %5398
        %v5400 = vsel %vm5276, %v5397, %v5399
        %v5403 = vsel %vm5279, %v5390, 0
        %5405 = vmatpush.bf16.msra.mxu0 0
        %5406 = vmatpush.bf16.msra.mxu0 0
        %5407 = vmatpush.bf16.msra.mxu0 0
        %5408 = vmatpush.bf16.msra.mxu0 0
        %5409 = vmatpush.bf16.msra.mxu0 0
        %5410 = vmatpush.bf16.msra.mxu0 0
        %5411 = vmatpush.bf16.msra.mxu0 0
        %5412 = vmatpush.bf16.msra.mxu0 %v5400
        %5413 = vmatmul.bf16.gmra.mxu0 %v5403
        %v5414 = vpop.f32.mrf.mxu0
        %v5415 = vadd.f32 0.0, %v5414
        %v5416 = vpop.f32.mrf.mxu0
        %5417 = vdwg.mxu0
        %v5418 = vadd.f32 %v5388, %v5415
        %s5419 = scalar_lea.vmem [#allocation14], 12
        %v5420 = vld [vmem:[%s5419] sm:$0x3]
        %v5421 = vunpack.c.h.b16 %v5251
        %v5422 = vunpack.c.h.b16 %v5257
        %v5423 = vpack.c.b16 %v5422, %v5421
        %5424 = vrot.lane.b32.xlu0 %v5395, 64
        %v5425 = vpop.permute.xlu0 %5424
        %5426 = vrot.lane.b32.xlu0 %v5423, 64
        %v5427 = vpop.permute.xlu0 %5426
        %v5428 = vsel %vm5324, %v5425, %v5427
        %v5431 = vsel %vm5279, %v5420, 0
        %5433 = vmatpush.bf16.msra.mxu0 0
        %5434 = vmatpush.bf16.msra.mxu0 0
        %5435 = vmatpush.bf16.msra.mxu0 0
        %5436 = vmatpush.bf16.msra.mxu0 0
        %5437 = vmatpush.bf16.msra.mxu0 0
        %5438 = vmatpush.bf16.msra.mxu0 0
        %5439 = vmatpush.bf16.msra.mxu0 0
        %5440 = vmatpush.bf16.msra.mxu0 %v5428
        %5441 = vmatmul.bf16.gmra.mxu0 %v5431
        %v5442 = vpop.f32.mrf.mxu0
        %v5443 = vadd.f32 0.0, %v5442
        %v5444 = vpop.f32.mrf.mxu0
        %5445 = vdwg.mxu0
        %v5446 = vadd.f32 %v5418, %v5443
        %s5447 = scalar_lea.vmem [#allocation14], 14
        %v5448 = vld [vmem:[%s5447] sm:$0x3]
        %5449 = vrot.lane.b32.xlu0 %v5423, 96
        %v5450 = vpop.permute.xlu0 %5449
        %v5453 = vsel %vm5279, %v5448, 0
        %5455 = vmatpush.bf16.msra.mxu0 0
        %5456 = vmatpush.bf16.msra.mxu0 0
        %5457 = vmatpush.bf16.msra.mxu0 0
        %5458 = vmatpush.bf16.msra.mxu0 0
        %5459 = vmatpush.bf16.msra.mxu0 0
        %5460 = vmatpush.bf16.msra.mxu0 0
        %5461 = vmatpush.bf16.msra.mxu0 0
        %5462 = vmatpush.bf16.msra.mxu0 %v5450
        %5463 = vmatmul.bf16.gmra.mxu0 %v5453
        %v5464 = vpop.f32.mrf.mxu0
        %v5465 = vadd.f32 0.0, %v5464
        %v5466 = vpop.f32.mrf.mxu0
        %5467 = vdwg.mxu0
        %v5468 = vadd.f32 %v5446, %v5465
        %s5469 = scalar_lea.vmem [#allocation14], 16
        %v5470 = vld [vmem:[%s5469] sm:$0x3]
        %v5473 = vunpack.c.l.b16 %v5252
        %v5474 = vunpack.c.l.b16 %v5258
        %v5475 = vpack.c.b16 %v5474, %v5473
        %v5478 = vsel %vm5279, %v5470, 0
        %5480 = vmatpush.bf16.msra.mxu0 0
        %5481 = vmatpush.bf16.msra.mxu0 0
        %5482 = vmatpush.bf16.msra.mxu0 0
        %5483 = vmatpush.bf16.msra.mxu0 0
        %5484 = vmatpush.bf16.msra.mxu0 0
        %5485 = vmatpush.bf16.msra.mxu0 0
        %5486 = vmatpush.bf16.msra.mxu0 0
        %5487 = vmatpush.bf16.msra.mxu0 %v5475
        %5488 = vmatmul.bf16.gmra.mxu0 %v5478
        %v5489 = vpop.f32.mrf.mxu0
        %v5490 = vadd.f32 0.0, %v5489
        %v5491 = vpop.f32.mrf.mxu0
        %5492 = vdwg.mxu0
        %v5493 = vadd.f32 %v5468, %v5490
        %s5494 = scalar_lea.vmem [#allocation14], 18
        %v5495 = vld [vmem:[%s5494] sm:$0x3]
        %v5496 = vunpack.c.h.b16 %v5252
        %v5497 = vunpack.c.h.b16 %v5258
        %v5498 = vpack.c.b16 %v5497, %v5496
        %5499 = vrot.lane.b32.xlu0 %v5475, 32
        %v5500 = vpop.permute.xlu0 %5499
        %5501 = vrot.lane.b32.xlu0 %v5498, 32
        %v5502 = vpop.permute.xlu0 %5501
        %v5503 = vsel %vm5276, %v5500, %v5502
        %v5506 = vsel %vm5279, %v5495, 0
        %5508 = vmatpush.bf16.msra.mxu0 0
        %5509 = vmatpush.bf16.msra.mxu0 0
        %5510 = vmatpush.bf16.msra.mxu0 0
        %5511 = vmatpush.bf16.msra.mxu0 0
        %5512 = vmatpush.bf16.msra.mxu0 0
        %5513 = vmatpush.bf16.msra.mxu0 0
        %5514 = vmatpush.bf16.msra.mxu0 0
        %5515 = vmatpush.bf16.msra.mxu0 %v5503
        %5516 = vmatmul.bf16.gmra.mxu0 %v5506
        %v5517 = vpop.f32.mrf.mxu0
        %v5518 = vadd.f32 0.0, %v5517
        %v5519 = vpop.f32.mrf.mxu0
        %5520 = vdwg.mxu0
        %v5521 = vadd.f32 %v5493, %v5518
        %s5522 = scalar_lea.vmem [#allocation14], 20
        %v5523 = vld [vmem:[%s5522] sm:$0x3]
        %v5526 = vunpack.c.l.b16 %v5253
        %v5527 = vunpack.c.l.b16 %v5259
        %v5528 = vpack.c.b16 %v5527, %v5526
        %5529 = vrot.lane.b32.xlu0 %v5498, 64
        %v5530 = vpop.permute.xlu0 %5529
        %5531 = vrot.lane.b32.xlu0 %v5528, 64
        %v5532 = vpop.permute.xlu0 %5531
        %v5533 = vsel %vm5324, %v5530, %v5532
        %v5536 = vsel %vm5279, %v5523, 0
        %5538 = vmatpush.bf16.msra.mxu0 0
        %5539 = vmatpush.bf16.msra.mxu0 0
        %5540 = vmatpush.bf16.msra.mxu0 0
        %5541 = vmatpush.bf16.msra.mxu0 0
        %5542 = vmatpush.bf16.msra.mxu0 0
        %5543 = vmatpush.bf16.msra.mxu0 0
        %5544 = vmatpush.bf16.msra.mxu0 0
        %5545 = vmatpush.bf16.msra.mxu0 %v5533
        %5546 = vmatmul.bf16.gmra.mxu0 %v5536
        %v5547 = vpop.f32.mrf.mxu0
        %v5548 = vadd.f32 0.0, %v5547
        %v5549 = vpop.f32.mrf.mxu0
        %5550 = vdwg.mxu0
        %v5551 = vadd.f32 %v5521, %v5548
        %s5552 = scalar_lea.vmem [#allocation14], 22
        %v5553 = vld [vmem:[%s5552] sm:$0x3]
        %5554 = vrot.lane.b32.xlu0 %v5528, 96
        %v5555 = vpop.permute.xlu0 %5554
        %v5558 = vsel %vm5279, %v5553, 0
        %5560 = vmatpush.bf16.msra.mxu0 0
        %5561 = vmatpush.bf16.msra.mxu0 0
        %5562 = vmatpush.bf16.msra.mxu0 0
        %5563 = vmatpush.bf16.msra.mxu0 0
        %5564 = vmatpush.bf16.msra.mxu0 0
        %5565 = vmatpush.bf16.msra.mxu0 0
        %5566 = vmatpush.bf16.msra.mxu0 0
        %5567 = vmatpush.bf16.msra.mxu0 %v5555
        %5568 = vmatmul.bf16.gmra.mxu0 %v5558
        %v5569 = vpop.f32.mrf.mxu0
        %v5570 = vadd.f32 0.0, %v5569
        %v5571 = vpop.f32.mrf.mxu0
        %5572 = vdwg.mxu0
        %v5573 = vadd.f32 %v5551, %v5570
        %s5574 = scalar_lea.vmem [#allocation14], 24
        %v5575 = vld [vmem:[%s5574] sm:$0x3]
        %v5576 = vunpack.c.h.b16 %v5253
        %v5577 = vunpack.c.h.b16 %v5259
        %v5578 = vpack.c.b16 %v5577, %v5576
        %v5581 = vsel %vm5279, %v5575, 0
        %5583 = vmatpush.bf16.msra.mxu0 0
        %5584 = vmatpush.bf16.msra.mxu0 0
        %5585 = vmatpush.bf16.msra.mxu0 0
        %5586 = vmatpush.bf16.msra.mxu0 0
        %5587 = vmatpush.bf16.msra.mxu0 0
        %5588 = vmatpush.bf16.msra.mxu0 0
        %5589 = vmatpush.bf16.msra.mxu0 0
        %5590 = vmatpush.bf16.msra.mxu0 %v5578
        %5591 = vmatmul.bf16.gmra.mxu0 %v5581
        %v5592 = vpop.f32.mrf.mxu0
        %v5593 = vadd.f32 0.0, %v5592
        %v5594 = vpop.f32.mrf.mxu0
        %5595 = vdwg.mxu0
        %v5596 = vadd.f32 %v5573, %v5593
        %s5597 = scalar_lea.vmem [#allocation14], 26
        %v5598 = vld [vmem:[%s5597] sm:$0x3]
        %v5601 = vunpack.c.l.b16 %v5254
        %v5602 = vunpack.c.l.b16 %v5260
        %v5603 = vpack.c.b16 %v5602, %v5601
        %5604 = vrot.lane.b32.xlu0 %v5578, 32
        %v5605 = vpop.permute.xlu0 %5604
        %5606 = vrot.lane.b32.xlu0 %v5603, 32
        %v5607 = vpop.permute.xlu0 %5606
        %v5608 = vsel %vm5276, %v5605, %v5607
        %v5611 = vsel %vm5279, %v5598, 0
        %5613 = vmatpush.bf16.msra.mxu0 0
        %5614 = vmatpush.bf16.msra.mxu0 0
        %5615 = vmatpush.bf16.msra.mxu0 0
        %5616 = vmatpush.bf16.msra.mxu0 0
        %5617 = vmatpush.bf16.msra.mxu0 0
        %5618 = vmatpush.bf16.msra.mxu0 0
        %5619 = vmatpush.bf16.msra.mxu0 0
        %5620 = vmatpush.bf16.msra.mxu0 %v5608
        %5621 = vmatmul.bf16.gmra.mxu0 %v5611
        %v5622 = vpop.f32.mrf.mxu0
        %v5623 = vadd.f32 0.0, %v5622
        %v5624 = vpop.f32.mrf.mxu0
        %5625 = vdwg.mxu0
        %v5626 = vadd.f32 %v5596, %v5623
        %s5627 = scalar_lea.vmem [#allocation14], 28
        %v5628 = vld [vmem:[%s5627] sm:$0x3]
        %v5629 = vunpack.c.h.b16 %v5254
        %v5630 = vunpack.c.h.b16 %v5260
        %v5631 = vpack.c.b16 %v5630, %v5629
        %5632 = vrot.lane.b32.xlu0 %v5603, 64
        %v5633 = vpop.permute.xlu0 %5632
        %5634 = vrot.lane.b32.xlu0 %v5631, 64
        %v5635 = vpop.permute.xlu0 %5634
        %v5636 = vsel %vm5324, %v5633, %v5635
        %v5639 = vsel %vm5279, %v5628, 0
        %5641 = vmatpush.bf16.msra.mxu0 0
        %5642 = vmatpush.bf16.msra.mxu0 0
        %5643 = vmatpush.bf16.msra.mxu0 0
        %5644 = vmatpush.bf16.msra.mxu0 0
        %5645 = vmatpush.bf16.msra.mxu0 0
        %5646 = vmatpush.bf16.msra.mxu0 0
        %5647 = vmatpush.bf16.msra.mxu0 0
        %5648 = vmatpush.bf16.msra.mxu0 %v5636
        %5649 = vmatmul.bf16.gmra.mxu0 %v5639
        %v5650 = vpop.f32.mrf.mxu0
        %v5651 = vadd.f32 0.0, %v5650
        %v5652 = vpop.f32.mrf.mxu0
        %5653 = vdwg.mxu0
        %v5654 = vadd.f32 %v5626, %v5651
        %s5655 = scalar_lea.vmem [#allocation14], 30
        %v5656 = vld [vmem:[%s5655] sm:$0x3]
        %5657 = vrot.lane.b32.xlu0 %v5631, 96
        %v5658 = vpop.permute.xlu0 %5657
        %v5661 = vsel %vm5279, %v5656, 0
        %5663 = vmatpush.bf16.msra.mxu0 0
        %5664 = vmatpush.bf16.msra.mxu0 0
        %5665 = vmatpush.bf16.msra.mxu0 0
        %5666 = vmatpush.bf16.msra.mxu0 0
        %5667 = vmatpush.bf16.msra.mxu0 0
        %5668 = vmatpush.bf16.msra.mxu0 0
        %5669 = vmatpush.bf16.msra.mxu0 0
        %5670 = vmatpush.bf16.msra.mxu0 %v5658
        %5671 = vmatmul.bf16.gmra.mxu0 %v5661
        %v5672 = vpop.f32.mrf.mxu0
        %v5673 = vadd.f32 0.0, %v5672
        %v5674 = vpop.f32.mrf.mxu0
        %5675 = vdwg.mxu0
        %v5676 = vadd.f32 %v5654, %v5673
        %v5677 = vld [vmem:[#allocation13] sm:$0x1]
        %v5679 = vperm.slane %v5677, 0
        %v5681 = vadd.f32 %v5676, %v5679
        %v5682 = vmax.f32 %v5681, 0.0
        %vm5683 = vcmask 388096
        %5684 = vst.msk [vmem:[%s924] sm:$0xf] %vm5683, %v5682
        %5686 = vrot.lane.b32.xlu0 %v5682, 80
        %v5687 = vpop.permute.xlu0 %5686
        %5689 = vst.msk [vmem:[%s931] sm:$0xf] %vm5683, %v5687
        %v5690 = vld [vmem:[%s940] sm:$0xf]
        %v5691 = vmul.f32 %v5682, 0.5
        %v5692 = vmul.f32 %v5691, 1.442695
        %v5693 = vpow.pop %v5692
        %5695 = vrot.lane.b32.xlu0 %v5693, 80
        %v5696 = vpop.permute.xlu0 %5695
        %v5698 = vmul.f32 %v5690, %v5696
        %v5699 = vadd.f32 %v5682, %v5698
        %v5700 = vpack.c.bf16 %v5699, %v5699
        %v5701 = vld [vmem:[%s11] sm:$0xff]
        %v5702 = vld [vmem:[%s11 + $0x8] sm:$0xff]
        %v5703 = vld [vmem:[%s11 + $0x10] sm:$0xff]
        %v5704 = vld [vmem:[%s11 + $0x18] sm:$0xf]
        %v5705 = vld [vmem:[%s11 + $0x1c] sm:$0xff]
        %v5706 = vld [vmem:[%s11 + $0x24] sm:$0xff]
        %v5707 = vld [vmem:[%s11 + $0x2c] sm:$0xff]
        %v5708 = vld [vmem:[%s11 + $0x34] sm:$0xf]
        %v5709 = vld [vmem:[%s11 + $0x38] sm:$0xff]
        %v5710 = vld [vmem:[%s11 + $0x40] sm:$0xff]
        %v5711 = vld [vmem:[%s11 + $0x48] sm:$0xff]
        %v5712 = vld [vmem:[%s11 + $0x50] sm:$0xf]
        %v5713 = vld [vmem:[%s11 + $0x54] sm:$0xff]
        %v5714 = vld [vmem:[%s11 + $0x5c] sm:$0xff]
        %v5715 = vld [vmem:[%s11 + $0x64] sm:$0xff]
        %v5716 = vld [vmem:[%s11 + $0x6c] sm:$0xf]
        %v5717 = vld [vmem:[%s11 + $0x70] sm:$0xff]
        %v5718 = vld [vmem:[%s11 + $0x78] sm:$0xff]
        %v5719 = vld [vmem:[%s11 + $0x80] sm:$0xff]
        %v5720 = vld [vmem:[%s11 + $0x88] sm:$0xf]
        %v5721 = vld [vmem:[%s11 + $0x8c] sm:$0xff]
        %v5722 = vld [vmem:[%s11 + $0x94] sm:$0xff]
        %v5723 = vld [vmem:[%s11 + $0x9c] sm:$0xff]
        %v5724 = vld [vmem:[%s11 + $0xa4] sm:$0xf]
        %v5749 = vunpack.c.l.b16 %v5701
        %v5750 = vunpack.c.h.b16 %v5701
        %v5751 = vunpack.c.l.b16 %v5702
        %v5752 = vunpack.c.h.b16 %v5702
        %v5753 = vunpack.c.l.b16 %v5703
        %v5754 = vunpack.c.h.b16 %v5703
        %v5755 = vunpack.c.l.b16 %v5704
        %v5756 = vunpack.c.l.b16 %v5705
        %v5757 = vunpack.c.h.b16 %v5705
        %v5758 = vunpack.c.l.b16 %v5706
        %v5759 = vunpack.c.h.b16 %v5706
        %v5760 = vunpack.c.l.b16 %v5707
        %v5761 = vunpack.c.h.b16 %v5707
        %v5762 = vunpack.c.l.b16 %v5708
        %v5763 = vunpack.c.l.b16 %v5709
        %v5764 = vunpack.c.h.b16 %v5709
        %v5765 = vunpack.c.l.b16 %v5710
        %v5766 = vunpack.c.h.b16 %v5710
        %v5767 = vunpack.c.l.b16 %v5711
        %v5768 = vunpack.c.h.b16 %v5711
        %v5769 = vunpack.c.l.b16 %v5712
        %v5770 = vunpack.c.l.b16 %v5713
        %v5771 = vunpack.c.h.b16 %v5713
        %v5772 = vunpack.c.l.b16 %v5714
        %v5773 = vunpack.c.h.b16 %v5714
        %v5774 = vunpack.c.l.b16 %v5715
        %v5775 = vunpack.c.h.b16 %v5715
        %v5776 = vunpack.c.l.b16 %v5716
        %v5777 = vunpack.c.l.b16 %v5717
        %v5778 = vunpack.c.h.b16 %v5717
        %v5779 = vunpack.c.l.b16 %v5718
        %v5780 = vunpack.c.h.b16 %v5718
        %v5781 = vunpack.c.l.b16 %v5719
        %v5782 = vunpack.c.h.b16 %v5719
        %v5783 = vunpack.c.l.b16 %v5720
        %v5784 = vunpack.c.l.b16 %v5721
        %v5785 = vunpack.c.h.b16 %v5721
        %v5786 = vunpack.c.l.b16 %v5722
        %v5787 = vunpack.c.h.b16 %v5722
        %v5788 = vunpack.c.l.b16 %v5723
        %v5789 = vunpack.c.h.b16 %v5723
        %v5790 = vunpack.c.l.b16 %v5724
        %v5791 = vpack.c.b16 %v5756, %v5749
        %v5792 = vpack.c.b16 %v5757, %v5750
        %v5793 = vpack.c.b16 %v5758, %v5751
        %v5794 = vpack.c.b16 %v5759, %v5752
        %v5795 = vpack.c.b16 %v5760, %v5753
        %v5796 = vpack.c.b16 %v5761, %v5754
        %v5797 = vpack.c.b16 %v5762, %v5755
        %v5798 = vpack.c.b16 %v5770, %v5763
        %v5799 = vpack.c.b16 %v5771, %v5764
        %v5800 = vpack.c.b16 %v5772, %v5765
        %v5801 = vpack.c.b16 %v5773, %v5766
        %v5802 = vpack.c.b16 %v5774, %v5767
        %v5803 = vpack.c.b16 %v5775, %v5768
        %v5804 = vpack.c.b16 %v5776, %v5769
        %v5805 = vpack.c.b16 %v5784, %v5777
        %v5806 = vpack.c.b16 %v5785, %v5778
        %v5807 = vpack.c.b16 %v5786, %v5779
        %v5808 = vpack.c.b16 %v5787, %v5780
        %v5809 = vpack.c.b16 %v5788, %v5781
        %v5810 = vpack.c.b16 %v5789, %v5782
        %v5811 = vpack.c.b16 %v5790, %v5783
        %vm5833 = vcmask 392192
        %v5835 = vsel %vm5833, %v5700, 0
        %5837 = vmatpush.bf16.msra.mxu0 0
        %5838 = vmatpush.bf16.msra.mxu0 0
        %5839 = vmatpush.bf16.msra.mxu0 0
        %5840 = vmatpush.bf16.msra.mxu0 0
        %5841 = vmatpush.bf16.msra.mxu0 0
        %5842 = vmatpush.bf16.msra.mxu0 %v5805
        %5843 = vmatpush.bf16.msra.mxu0 %v5798
        %5844 = vmatpush.bf16.msra.mxu0 %v5791
        %5845 = vmatmul.bf16.gmra.mxu0 %v5835
        %v5846 = vpop.f32.mrf.mxu0
        %v5847 = vadd.f32 0.0, %v5846
        %v5848 = vpop.f32.mrf.mxu0
        %5849 = vdwg.mxu0
        %5850 = vmatpush.bf16.msra.mxu0 0
        %5851 = vmatpush.bf16.msra.mxu0 0
        %5852 = vmatpush.bf16.msra.mxu0 0
        %5853 = vmatpush.bf16.msra.mxu0 0
        %5854 = vmatpush.bf16.msra.mxu0 0
        %5855 = vmatpush.bf16.msra.mxu0 %v5806
        %5856 = vmatpush.bf16.msra.mxu0 %v5799
        %5857 = vmatpush.bf16.msra.mxu0 %v5792
        %5858 = vmatmul.bf16.gmra.mxu0 %v5835
        %v5859 = vpop.f32.mrf.mxu0
        %v5860 = vadd.f32 0.0, %v5859
        %v5861 = vpop.f32.mrf.mxu0
        %5862 = vdwg.mxu0
        %5863 = vmatpush.bf16.msra.mxu0 0
        %5864 = vmatpush.bf16.msra.mxu0 0
        %5865 = vmatpush.bf16.msra.mxu0 0
        %5866 = vmatpush.bf16.msra.mxu0 0
        %5867 = vmatpush.bf16.msra.mxu0 0
        %5868 = vmatpush.bf16.msra.mxu0 %v5807
        %5869 = vmatpush.bf16.msra.mxu0 %v5800
        %5870 = vmatpush.bf16.msra.mxu0 %v5793
        %5871 = vmatmul.bf16.gmra.mxu0 %v5835
        %v5872 = vpop.f32.mrf.mxu0
        %v5873 = vadd.f32 0.0, %v5872
        %v5874 = vpop.f32.mrf.mxu0
        %5875 = vdwg.mxu0
        %5876 = vmatpush.bf16.msra.mxu0 0
        %5877 = vmatpush.bf16.msra.mxu0 0
        %5878 = vmatpush.bf16.msra.mxu0 0
        %5879 = vmatpush.bf16.msra.mxu0 0
        %5880 = vmatpush.bf16.msra.mxu0 0
        %5881 = vmatpush.bf16.msra.mxu0 %v5808
        %5882 = vmatpush.bf16.msra.mxu0 %v5801
        %5883 = vmatpush.bf16.msra.mxu0 %v5794
        %5884 = vmatmul.bf16.gmra.mxu0 %v5835
        %v5885 = vpop.f32.mrf.mxu0
        %v5886 = vadd.f32 0.0, %v5885
        %v5887 = vpop.f32.mrf.mxu0
        %5888 = vdwg.mxu0
        %5889 = vmatpush.bf16.msra.mxu0 0
        %5890 = vmatpush.bf16.msra.mxu0 0
        %5891 = vmatpush.bf16.msra.mxu0 0
        %5892 = vmatpush.bf16.msra.mxu0 0
        %5893 = vmatpush.bf16.msra.mxu0 0
        %5894 = vmatpush.bf16.msra.mxu0 %v5809
        %5895 = vmatpush.bf16.msra.mxu0 %v5802
        %5896 = vmatpush.bf16.msra.mxu0 %v5795
        %5897 = vmatmul.bf16.gmra.mxu0 %v5835
        %v5898 = vpop.f32.mrf.mxu0
        %v5899 = vadd.f32 0.0, %v5898
        %v5900 = vpop.f32.mrf.mxu0
        %5901 = vdwg.mxu0
        %5902 = vmatpush.bf16.msra.mxu0 0
        %5903 = vmatpush.bf16.msra.mxu0 0
        %5904 = vmatpush.bf16.msra.mxu0 0
        %5905 = vmatpush.bf16.msra.mxu0 0
        %5906 = vmatpush.bf16.msra.mxu0 0
        %5907 = vmatpush.bf16.msra.mxu0 %v5810
        %5908 = vmatpush.bf16.msra.mxu0 %v5803
        %5909 = vmatpush.bf16.msra.mxu0 %v5796
        %5910 = vmatmul.bf16.gmra.mxu0 %v5835
        %v5911 = vpop.f32.mrf.mxu0
        %v5912 = vadd.f32 0.0, %v5911
        %v5913 = vpop.f32.mrf.mxu0
        %5914 = vdwg.mxu0
        %5915 = vmatpush.bf16.msra.mxu0 0
        %5916 = vmatpush.bf16.msra.mxu0 0
        %5917 = vmatpush.bf16.msra.mxu0 0
        %5918 = vmatpush.bf16.msra.mxu0 0
        %5919 = vmatpush.bf16.msra.mxu0 0
        %5920 = vmatpush.bf16.msra.mxu0 %v5811
        %5921 = vmatpush.bf16.msra.mxu0 %v5804
        %5922 = vmatpush.bf16.msra.mxu0 %v5797
        %5923 = vmatmul.bf16.gmra.mxu0 %v5835
        %v5924 = vpop.f32.mrf.mxu0
        %v5925 = vadd.f32 0.0, %v5924
        %v5926 = vpop.f32.mrf.mxu0
        %5927 = vdwg.mxu0
        %v5928 = vpack.c.bf16 %v5860, %v5847
        %v5929 = vpack.c.bf16 %v5886, %v5873
        %v5930 = vpack.c.bf16 %v5912, %v5899
        %v5931 = vpack.c.bf16 %v5925, %v5925
        %v5932 = vld [vmem:[%s13] sm:$0x3]
        %s5933 = scalar_lea.vmem %s13, 2
        %v5934 = vld [vmem:[%s5933] sm:$0x3]
        %v5936 = vunpack.c.l.b16 %v5928
        %v5937 = vunpack.c.h.b16 %v5928
        %v5938 = vpack.c.b16 %v5936, %v5936
        %v5939 = vpack.c.b16 %v5937, %v5937
        %5940 = vrot.lane.b32.xlu0 %v5938, 32
        %v5941 = vpop.permute.xlu0 %5940
        %5942 = vrot.lane.b32.xlu0 %v5939, 32
        %v5943 = vpop.permute.xlu0 %5942
        %v5944 = vsel %vm5276, %v5941, %v5943
        %vm5945 = vcmask 31744
        %v5947 = vsel %vm5945, %v5934, 0
        %v5950 = vsel %vm1114, %v5944, 0
        %5952 = vmatpush.bf16.msra.mxu0 0
        %5953 = vmatpush.bf16.msra.mxu0 0
        %5954 = vmatpush.bf16.msra.mxu0 0
        %5955 = vmatpush.bf16.msra.mxu0 0
        %5956 = vmatpush.bf16.msra.mxu0 0
        %5957 = vmatpush.bf16.msra.mxu0 0
        %5958 = vmatpush.bf16.msra.mxu0 0
        %5959 = vmatpush.bf16.msra.mxu0 %v5950
        %5960 = vmatmul.bf16.gmra.mxu0 %v5947
        %v5961 = vpop.f32.mrf.mxu0
        %v5962 = vadd.f32 0.0, %v5961
        %v5963 = vpop.f32.mrf.mxu0
        %5964 = vdwg.mxu0
        %v5966 = vsel %vm5945, %v5932, 0
        %v5969 = vsel %vm1114, %v5928, 0
        %5971 = vmatpush.bf16.msra.mxu0 0
        %5972 = vmatpush.bf16.msra.mxu0 0
        %5973 = vmatpush.bf16.msra.mxu0 0
        %5974 = vmatpush.bf16.msra.mxu0 0
        %5975 = vmatpush.bf16.msra.mxu0 0
        %5976 = vmatpush.bf16.msra.mxu0 0
        %5977 = vmatpush.bf16.msra.mxu0 0
        %5978 = vmatpush.bf16.msra.mxu0 %v5969
        %5979 = vmatmul.bf16.gmra.mxu0 %v5966
        %v5980 = vpop.f32.mrf.mxu0
        %v5981 = vadd.f32 %v5962, %v5980
        %v5982 = vpop.f32.mrf.mxu0
        %5983 = vdwg.mxu0
        %s5984 = scalar_lea.vmem %s13, 4
        %v5985 = vld [vmem:[%s5984] sm:$0x3]
        %v5987 = vunpack.c.l.b16 %v5929
        %v5988 = vpack.c.b16 %v5987, %v5987
        %5989 = vrot.lane.b32.xlu0 %v5939, 64
        %v5990 = vpop.permute.xlu0 %5989
        %5991 = vrot.lane.b32.xlu0 %v5988, 64
        %v5992 = vpop.permute.xlu0 %5991
        %v5993 = vsel %vm5324, %v5990, %v5992
        %v5995 = vsel %vm5945, %v5985, 0
        %v5998 = vsel %vm1114, %v5993, 0
        %6000 = vmatpush.bf16.msra.mxu0 0
        %6001 = vmatpush.bf16.msra.mxu0 0
        %6002 = vmatpush.bf16.msra.mxu0 0
        %6003 = vmatpush.bf16.msra.mxu0 0
        %6004 = vmatpush.bf16.msra.mxu0 0
        %6005 = vmatpush.bf16.msra.mxu0 0
        %6006 = vmatpush.bf16.msra.mxu0 0
        %6007 = vmatpush.bf16.msra.mxu0 %v5998
        %6008 = vmatmul.bf16.gmra.mxu0 %v5995
        %v6009 = vpop.f32.mrf.mxu0
        %v6010 = vadd.f32 0.0, %v6009
        %v6011 = vpop.f32.mrf.mxu0
        %6012 = vdwg.mxu0
        %v6013 = vadd.f32 %v5981, %v6010
        %s6014 = scalar_lea.vmem %s13, 6
        %v6015 = vld [vmem:[%s6014] sm:$0x3]
        %6016 = vrot.lane.b32.xlu0 %v5988, 96
        %v6017 = vpop.permute.xlu0 %6016
        %v6019 = vsel %vm5945, %v6015, 0
        %v6022 = vsel %vm1114, %v6017, 0
        %6024 = vmatpush.bf16.msra.mxu0 0
        %6025 = vmatpush.bf16.msra.mxu0 0
        %6026 = vmatpush.bf16.msra.mxu0 0
        %6027 = vmatpush.bf16.msra.mxu0 0
        %6028 = vmatpush.bf16.msra.mxu0 0
        %6029 = vmatpush.bf16.msra.mxu0 0
        %6030 = vmatpush.bf16.msra.mxu0 0
        %6031 = vmatpush.bf16.msra.mxu0 %v6022
        %6032 = vmatmul.bf16.gmra.mxu0 %v6019
        %v6033 = vpop.f32.mrf.mxu0
        %v6034 = vadd.f32 0.0, %v6033
        %v6035 = vpop.f32.mrf.mxu0
        %6036 = vdwg.mxu0
        %v6037 = vadd.f32 %v6013, %v6034
        %s6038 = scalar_lea.vmem %s13, 8
        %v6039 = vld [vmem:[%s6038] sm:$0x3]
        %v6040 = vunpack.c.h.b16 %v5929
        %v6041 = vpack.c.b16 %v6040, %v6040
        %v6043 = vsel %vm5945, %v6039, 0
        %v6046 = vsel %vm1114, %v6041, 0
        %6048 = vmatpush.bf16.msra.mxu0 0
        %6049 = vmatpush.bf16.msra.mxu0 0
        %6050 = vmatpush.bf16.msra.mxu0 0
        %6051 = vmatpush.bf16.msra.mxu0 0
        %6052 = vmatpush.bf16.msra.mxu0 0
        %6053 = vmatpush.bf16.msra.mxu0 0
        %6054 = vmatpush.bf16.msra.mxu0 0
        %6055 = vmatpush.bf16.msra.mxu0 %v6046
        %6056 = vmatmul.bf16.gmra.mxu0 %v6043
        %v6057 = vpop.f32.mrf.mxu0
        %v6058 = vadd.f32 0.0, %v6057
        %v6059 = vpop.f32.mrf.mxu0
        %6060 = vdwg.mxu0
        %v6061 = vadd.f32 %v6037, %v6058
        %s6062 = scalar_lea.vmem %s13, 10
        %v6063 = vld [vmem:[%s6062] sm:$0x3]
        %v6065 = vunpack.c.l.b16 %v5930
        %v6066 = vpack.c.b16 %v6065, %v6065
        %6067 = vrot.lane.b32.xlu0 %v6041, 32
        %v6068 = vpop.permute.xlu0 %6067
        %6069 = vrot.lane.b32.xlu0 %v6066, 32
        %v6070 = vpop.permute.xlu0 %6069
        %v6071 = vsel %vm5276, %v6068, %v6070
        %v6073 = vsel %vm5945, %v6063, 0
        %v6076 = vsel %vm1114, %v6071, 0
        %6078 = vmatpush.bf16.msra.mxu0 0
        %6079 = vmatpush.bf16.msra.mxu0 0
        %6080 = vmatpush.bf16.msra.mxu0 0
        %6081 = vmatpush.bf16.msra.mxu0 0
        %6082 = vmatpush.bf16.msra.mxu0 0
        %6083 = vmatpush.bf16.msra.mxu0 0
        %6084 = vmatpush.bf16.msra.mxu0 0
        %6085 = vmatpush.bf16.msra.mxu0 %v6076
        %6086 = vmatmul.bf16.gmra.mxu0 %v6073
        %v6087 = vpop.f32.mrf.mxu0
        %v6088 = vadd.f32 0.0, %v6087
        %v6089 = vpop.f32.mrf.mxu0
        %6090 = vdwg.mxu0
        %v6091 = vadd.f32 %v6061, %v6088
        %s6092 = scalar_lea.vmem %s13, 12
        %v6093 = vld [vmem:[%s6092] sm:$0x3]
        %v6094 = vunpack.c.h.b16 %v5930
        %v6095 = vpack.c.b16 %v6094, %v6094
        %6096 = vrot.lane.b32.xlu0 %v6066, 64
        %v6097 = vpop.permute.xlu0 %6096
        %6098 = vrot.lane.b32.xlu0 %v6095, 64
        %v6099 = vpop.permute.xlu0 %6098
        %v6100 = vsel %vm5324, %v6097, %v6099
        %v6102 = vsel %vm5945, %v6093, 0
        %v6105 = vsel %vm1114, %v6100, 0
        %6107 = vmatpush.bf16.msra.mxu0 0
        %6108 = vmatpush.bf16.msra.mxu0 0
        %6109 = vmatpush.bf16.msra.mxu0 0
        %6110 = vmatpush.bf16.msra.mxu0 0
        %6111 = vmatpush.bf16.msra.mxu0 0
        %6112 = vmatpush.bf16.msra.mxu0 0
        %6113 = vmatpush.bf16.msra.mxu0 0
        %6114 = vmatpush.bf16.msra.mxu0 %v6105
        %6115 = vmatmul.bf16.gmra.mxu0 %v6102
        %v6116 = vpop.f32.mrf.mxu0
        %v6117 = vadd.f32 0.0, %v6116
        %v6118 = vpop.f32.mrf.mxu0
        %6119 = vdwg.mxu0
        %v6120 = vadd.f32 %v6091, %v6117
        %s6121 = scalar_lea.vmem %s13, 14
        %v6122 = vld [vmem:[%s6121] sm:$0x3]
        %6123 = vrot.lane.b32.xlu0 %v6095, 96
        %v6124 = vpop.permute.xlu0 %6123
        %v6126 = vsel %vm5945, %v6122, 0
        %v6129 = vsel %vm1114, %v6124, 0
        %6131 = vmatpush.bf16.msra.mxu0 0
        %6132 = vmatpush.bf16.msra.mxu0 0
        %6133 = vmatpush.bf16.msra.mxu0 0
        %6134 = vmatpush.bf16.msra.mxu0 0
        %6135 = vmatpush.bf16.msra.mxu0 0
        %6136 = vmatpush.bf16.msra.mxu0 0
        %6137 = vmatpush.bf16.msra.mxu0 0
        %6138 = vmatpush.bf16.msra.mxu0 %v6129
        %6139 = vmatmul.bf16.gmra.mxu0 %v6126
        %v6140 = vpop.f32.mrf.mxu0
        %v6141 = vadd.f32 0.0, %v6140
        %v6142 = vpop.f32.mrf.mxu0
        %6143 = vdwg.mxu0
        %v6144 = vadd.f32 %v6120, %v6141
        %s6145 = scalar_lea.vmem %s13, 16
        %v6146 = vld [vmem:[%s6145] sm:$0x3]
        %v6148 = vsel %vm5945, %v6146, 0
        %v6151 = vsel %vm1114, %v5931, 0
        %6153 = vmatpush.bf16.msra.mxu0 0
        %6154 = vmatpush.bf16.msra.mxu0 0
        %6155 = vmatpush.bf16.msra.mxu0 0
        %6156 = vmatpush.bf16.msra.mxu0 0
        %6157 = vmatpush.bf16.msra.mxu0 0
        %6158 = vmatpush.bf16.msra.mxu0 0
        %6159 = vmatpush.bf16.msra.mxu0 0
        %6160 = vmatpush.bf16.msra.mxu0 %v6151
        %6161 = vmatmul.bf16.gmra.mxu0 %v6148
        %v6162 = vpop.f32.mrf.mxu0
        %v6163 = vadd.f32 0.0, %v6162
        %v6164 = vpop.f32.mrf.mxu0
        %6165 = vdwg.mxu0
        %v6166 = vadd.f32 %v6144, %v6163
        %v6167 = vld [vmem:[#allocation16] sm:$0x1]
        %v6169 = vperm.slane %v6167, 0
        %v6171 = vadd.f32 %v6166, %v6169
        %v6172 = vmax.f32 %v6171, 0.0
        %v6173 = vpack.c.bf16 %v6172, %v6172
        %v6174 = vld [vmem:[%s14] sm:$0xf]
        %v6175 = vld [vmem:[%s14 + $0x4] sm:$0xf]
        %s6176 = scalar_lea.vmem %s14, 8
        %v6177 = vld [vmem:[%s6176] sm:$0xf]
        %v6178 = vld [vmem:[%s6176 + $0x4] sm:$0xf]
        %v6181 = vunpack.c.l.b16 %v6177
        %v6182 = vunpack.c.l.b16 %v6178
        %v6183 = vpack.c.b16 %v6182, %v6181
        %v6185 = vunpack.c.l.b16 %v6173
        %v6186 = vpack.c.b16 %v6185, %v6185
        %6187 = vrot.lane.b32.xlu0 %v6186, 104
        %v6188 = vpop.permute.xlu0 %6187
        %v6190 = vsel %vm5945, %v6183, 0
        %v6193 = vsel %vm1114, %v6188, 0
        %6195 = vmatpush.bf16.msra.mxu0 0
        %6196 = vmatpush.bf16.msra.mxu0 0
        %6197 = vmatpush.bf16.msra.mxu0 0
        %6198 = vmatpush.bf16.msra.mxu0 0
        %6199 = vmatpush.bf16.msra.mxu0 0
        %6200 = vmatpush.bf16.msra.mxu0 0
        %6201 = vmatpush.bf16.msra.mxu0 0
        %6202 = vmatpush.bf16.msra.mxu0 %v6193
        %6203 = vmatmul.bf16.gmra.mxu0 %v6190
        %v6204 = vpop.f32.mrf.mxu0
        %v6205 = vadd.f32 0.0, %v6204
        %v6206 = vpop.f32.mrf.mxu0
        %v6207 = vadd.f32 0.0, %v6206
        %6208 = vdwg.mxu0
        %v6211 = vunpack.c.l.b16 %v6174
        %v6212 = vunpack.c.l.b16 %v6175
        %v6213 = vpack.c.b16 %v6212, %v6211
        %v6215 = vsel %vm5945, %v6213, 0
        %v6218 = vsel %vm1114, %v6173, 0
        %6220 = vmatpush.bf16.msra.mxu0 0
        %6221 = vmatpush.bf16.msra.mxu0 0
        %6222 = vmatpush.bf16.msra.mxu0 0
        %6223 = vmatpush.bf16.msra.mxu0 0
        %6224 = vmatpush.bf16.msra.mxu0 0
        %6225 = vmatpush.bf16.msra.mxu0 0
        %6226 = vmatpush.bf16.msra.mxu0 0
        %6227 = vmatpush.bf16.msra.mxu0 %v6218
        %6228 = vmatmul.bf16.gmra.mxu0 %v6215
        %v6229 = vpop.f32.mrf.mxu0
        %v6230 = vadd.f32 %v6205, %v6229
        %v6231 = vpop.f32.mrf.mxu0
        %v6232 = vadd.f32 %v6207, %v6231
        %6233 = vdwg.mxu0
        %s6234 = scalar_lea.vmem %s14, 16
        %v6235 = vld [vmem:[%s6234] sm:$0xf]
        %v6236 = vld [vmem:[%s6234 + $0x4] sm:$0xf]
        %v6239 = vunpack.c.l.b16 %v6235
        %v6240 = vunpack.c.l.b16 %v6236
        %v6241 = vpack.c.b16 %v6240, %v6239
        %6242 = vrot.lane.b32.xlu0 %v6186, 80
        %v6243 = vpop.permute.xlu0 %6242
        %v6245 = vsel %vm5945, %v6241, 0
        %v6248 = vsel %vm1114, %v6243, 0
        %6250 = vmatpush.bf16.msra.mxu0 0
        %6251 = vmatpush.bf16.msra.mxu0 0
        %6252 = vmatpush.bf16.msra.mxu0 0
        %6253 = vmatpush.bf16.msra.mxu0 0
        %6254 = vmatpush.bf16.msra.mxu0 0
        %6255 = vmatpush.bf16.msra.mxu0 0
        %6256 = vmatpush.bf16.msra.mxu0 0
        %6257 = vmatpush.bf16.msra.mxu0 %v6248
        %6258 = vmatmul.bf16.gmra.mxu0 %v6245
        %v6259 = vpop.f32.mrf.mxu0
        %v6260 = vadd.f32 0.0, %v6259
        %v6261 = vpop.f32.mrf.mxu0
        %v6262 = vadd.f32 0.0, %v6261
        %6263 = vdwg.mxu0
        %v6264 = vadd.f32 %v6230, %v6260
        %v6265 = vadd.f32 %v6232, %v6262
        %s6266 = scalar_lea.vmem %s14, 24
        %v6267 = vld [vmem:[%s6266] sm:$0xf]
        %v6268 = vld [vmem:[%s6266 + $0x4] sm:$0xf]
        %v6271 = vunpack.c.l.b16 %v6267
        %v6272 = vunpack.c.l.b16 %v6268
        %v6273 = vpack.c.b16 %v6272, %v6271
        %6274 = vrot.lane.b32.xlu0 %v6186, 56
        %v6275 = vpop.permute.xlu0 %6274
        %v6277 = vsel %vm5945, %v6273, 0
        %v6280 = vsel %vm1114, %v6275, 0
        %6282 = vmatpush.bf16.msra.mxu0 0
        %6283 = vmatpush.bf16.msra.mxu0 0
        %6284 = vmatpush.bf16.msra.mxu0 0
        %6285 = vmatpush.bf16.msra.mxu0 0
        %6286 = vmatpush.bf16.msra.mxu0 0
        %6287 = vmatpush.bf16.msra.mxu0 0
        %6288 = vmatpush.bf16.msra.mxu0 0
        %6289 = vmatpush.bf16.msra.mxu0 %v6280
        %6290 = vmatmul.bf16.gmra.mxu0 %v6277
        %v6291 = vpop.f32.mrf.mxu0
        %v6292 = vadd.f32 0.0, %v6291
        %v6293 = vpop.f32.mrf.mxu0
        %v6294 = vadd.f32 0.0, %v6293
        %6295 = vdwg.mxu0
        %v6296 = vadd.f32 %v6264, %v6292
        %v6297 = vadd.f32 %v6265, %v6294
        %v6298 = vpack.c.bf16 %v6297, %v6296
        %v6299 = vld [vmem:[%s15] sm:$0xff]
        %v6300 = vld [vmem:[%s15 + $0x8] sm:$0xff]
        %v6301 = vld [vmem:[%s15 + $0x10] sm:$0xff]
        %v6302 = vld [vmem:[%s15 + $0x18] sm:$0xff]
        %v6303 = vld [vmem:[%s15 + $0x20] sm:$0xff]
        %v6304 = vld [vmem:[%s15 + $0x28] sm:$0xff]
        %v6311 = vunpack.c.l.b16 %v6299
        %v6312 = vunpack.c.h.b16 %v6299
        %v6313 = vunpack.c.l.b16 %v6300
        %v6314 = vunpack.c.h.b16 %v6300
        %v6315 = vunpack.c.l.b16 %v6301
        %v6316 = vunpack.c.h.b16 %v6301
        %v6317 = vunpack.c.l.b16 %v6302
        %v6318 = vunpack.c.h.b16 %v6302
        %v6319 = vunpack.c.l.b16 %v6303
        %v6320 = vunpack.c.h.b16 %v6303
        %v6321 = vunpack.c.l.b16 %v6304
        %v6322 = vunpack.c.h.b16 %v6304
        %v6323 = vpack.c.b16 %v6315, %v6311
        %v6324 = vpack.c.b16 %v6316, %v6312
        %v6325 = vpack.c.b16 %v6317, %v6313
        %v6326 = vpack.c.b16 %v6318, %v6314
        %v6327 = vpack.c.b16 %v6319, %v6319
        %v6328 = vpack.c.b16 %v6320, %v6320
        %v6329 = vpack.c.b16 %v6321, %v6321
        %v6330 = vpack.c.b16 %v6322, %v6322
        %v6336 = vsel %vm5040, %v6298, 0
        %v6339 = vsel %vm5044, %v6327, 0
        %v6342 = vsel %vm5044, %v6328, 0
        %v6345 = vsel %vm5044, %v6329, 0
        %v6348 = vsel %vm5044, %v6330, 0
        %6350 = vmatpush.bf16.msra.mxu0 0
        %6351 = vmatpush.bf16.msra.mxu0 0
        %6352 = vmatpush.bf16.msra.mxu0 0
        %6353 = vmatpush.bf16.msra.mxu0 0
        %6354 = vmatpush.bf16.msra.mxu0 0
        %6355 = vmatpush.bf16.msra.mxu0 0
        %6356 = vmatpush.bf16.msra.mxu0 %v6339
        %6357 = vmatpush.bf16.msra.mxu0 %v6323
        %6358 = vmatmul.bf16.gmra.mxu0 %v6336
        %v6359 = vpop.f32.mrf.mxu0
        %v6360 = vadd.f32 0.0, %v6359
        %v6361 = vpop.f32.mrf.mxu0
        %v6362 = vadd.f32 0.0, %v6361
        %6363 = vdwg.mxu0
        %6364 = vmatpush.bf16.msra.mxu0 0
        %6365 = vmatpush.bf16.msra.mxu0 0
        %6366 = vmatpush.bf16.msra.mxu0 0
        %6367 = vmatpush.bf16.msra.mxu0 0
        %6368 = vmatpush.bf16.msra.mxu0 0
        %6369 = vmatpush.bf16.msra.mxu0 0
        %6370 = vmatpush.bf16.msra.mxu0 %v6342
        %6371 = vmatpush.bf16.msra.mxu0 %v6324
        %6372 = vmatmul.bf16.gmra.mxu0 %v6336
        %v6373 = vpop.f32.mrf.mxu0
        %v6374 = vadd.f32 0.0, %v6373
        %v6375 = vpop.f32.mrf.mxu0
        %v6376 = vadd.f32 0.0, %v6375
        %6377 = vdwg.mxu0
        %6378 = vmatpush.bf16.msra.mxu0 0
        %6379 = vmatpush.bf16.msra.mxu0 0
        %6380 = vmatpush.bf16.msra.mxu0 0
        %6381 = vmatpush.bf16.msra.mxu0 0
        %6382 = vmatpush.bf16.msra.mxu0 0
        %6383 = vmatpush.bf16.msra.mxu0 0
        %6384 = vmatpush.bf16.msra.mxu0 %v6345
        %6385 = vmatpush.bf16.msra.mxu0 %v6325
        %6386 = vmatmul.bf16.gmra.mxu0 %v6336
        %v6387 = vpop.f32.mrf.mxu0
        %v6388 = vadd.f32 0.0, %v6387
        %v6389 = vpop.f32.mrf.mxu0
        %v6390 = vadd.f32 0.0, %v6389
        %6391 = vdwg.mxu0
        %6392 = vmatpush.bf16.msra.mxu0 0
        %6393 = vmatpush.bf16.msra.mxu0 0
        %6394 = vmatpush.bf16.msra.mxu0 0
        %6395 = vmatpush.bf16.msra.mxu0 0
        %6396 = vmatpush.bf16.msra.mxu0 0
        %6397 = vmatpush.bf16.msra.mxu0 0
        %6398 = vmatpush.bf16.msra.mxu0 %v6348
        %6399 = vmatpush.bf16.msra.mxu0 %v6326
        %6400 = vmatmul.bf16.gmra.mxu0 %v6336
        %v6401 = vpop.f32.mrf.mxu0
        %v6402 = vadd.f32 0.0, %v6401
        %v6403 = vpop.f32.mrf.mxu0
        %v6404 = vadd.f32 0.0, %v6403
        %6405 = vdwg.mxu0
        %v6406 = vpack.c.bf16 %v6374, %v6360
        %v6407 = vpack.c.bf16 %v6402, %v6388
        %v6408 = vpack.c.bf16 %v6376, %v6362
        %v6409 = vpack.c.bf16 %v6404, %v6390
        %v6410 = vld [vmem:[%s17] sm:$0xf]
        %v6411 = vld [vmem:[%s17 + $0x4] sm:$0xf]
        %s6412 = scalar_lea.vmem %s17, 8
        %v6413 = vld [vmem:[%s6412] sm:$0xf]
        %v6414 = vld [vmem:[%s6412 + $0x4] sm:$0xf]
        %v6417 = vunpack.c.l.b16 %v6413
        %v6418 = vunpack.c.l.b16 %v6414
        %v6419 = vpack.c.b16 %v6418, %v6417
        %v6422 = vunpack.c.l.b16 %v6406
        %v6423 = vunpack.c.l.b16 %v6408
        %v6424 = vpack.c.b16 %v6423, %v6422
        %6425 = vrot.lane.b32.xlu0 %v6424, 80
        %v6426 = vpop.permute.xlu0 %6425
        %v6429 = vsel %vm5279, %v6419, 0
        %6431 = vmatpush.bf16.msra.mxu0 0
        %6432 = vmatpush.bf16.msra.mxu0 0
        %6433 = vmatpush.bf16.msra.mxu0 0
        %6434 = vmatpush.bf16.msra.mxu0 0
        %6435 = vmatpush.bf16.msra.mxu0 0
        %6436 = vmatpush.bf16.msra.mxu0 0
        %6437 = vmatpush.bf16.msra.mxu0 0
        %6438 = vmatpush.bf16.msra.mxu0 %v6426
        %6439 = vmatmul.bf16.gmra.mxu0 %v6429
        %v6440 = vpop.f32.mrf.mxu0
        %v6441 = vadd.f32 0.0, %v6440
        %v6442 = vpop.f32.mrf.mxu0
        %v6443 = vadd.f32 0.0, %v6442
        %6444 = vdwg.mxu0
        %v6447 = vunpack.c.l.b16 %v6410
        %v6448 = vunpack.c.l.b16 %v6411
        %v6449 = vpack.c.b16 %v6448, %v6447
        %v6452 = vsel %vm5279, %v6449, 0
        %6454 = vmatpush.bf16.msra.mxu0 0
        %6455 = vmatpush.bf16.msra.mxu0 0
        %6456 = vmatpush.bf16.msra.mxu0 0
        %6457 = vmatpush.bf16.msra.mxu0 0
        %6458 = vmatpush.bf16.msra.mxu0 0
        %6459 = vmatpush.bf16.msra.mxu0 0
        %6460 = vmatpush.bf16.msra.mxu0 0
        %6461 = vmatpush.bf16.msra.mxu0 %v6424
        %6462 = vmatmul.bf16.gmra.mxu0 %v6452
        %v6463 = vpop.f32.mrf.mxu0
        %v6464 = vadd.f32 %v6441, %v6463
        %v6465 = vpop.f32.mrf.mxu0
        %v6466 = vadd.f32 %v6443, %v6465
        %6467 = vdwg.mxu0
        %s6468 = scalar_lea.vmem %s17, 16
        %v6469 = vld [vmem:[%s6468] sm:$0xf]
        %v6470 = vld [vmem:[%s6468 + $0x4] sm:$0xf]
        %v6473 = vunpack.c.l.b16 %v6469
        %v6474 = vunpack.c.l.b16 %v6470
        %v6475 = vpack.c.b16 %v6474, %v6473
        %v6476 = vunpack.c.h.b16 %v6406
        %v6477 = vunpack.c.h.b16 %v6408
        %v6478 = vpack.c.b16 %v6477, %v6476
        %6479 = vrot.lane.b32.xlu0 %v6424, 32
        %v6480 = vpop.permute.xlu0 %6479
        %6481 = vrot.lane.b32.xlu0 %v6478, 32
        %v6482 = vpop.permute.xlu0 %6481
        %v6483 = vsel %vm5276, %v6480, %v6482
        %v6486 = vsel %vm5279, %v6475, 0
        %6488 = vmatpush.bf16.msra.mxu0 0
        %6489 = vmatpush.bf16.msra.mxu0 0
        %6490 = vmatpush.bf16.msra.mxu0 0
        %6491 = vmatpush.bf16.msra.mxu0 0
        %6492 = vmatpush.bf16.msra.mxu0 0
        %6493 = vmatpush.bf16.msra.mxu0 0
        %6494 = vmatpush.bf16.msra.mxu0 0
        %6495 = vmatpush.bf16.msra.mxu0 %v6483
        %6496 = vmatmul.bf16.gmra.mxu0 %v6486
        %v6497 = vpop.f32.mrf.mxu0
        %v6498 = vadd.f32 0.0, %v6497
        %v6499 = vpop.f32.mrf.mxu0
        %v6500 = vadd.f32 0.0, %v6499
        %6501 = vdwg.mxu0
        %v6502 = vadd.f32 %v6464, %v6498
        %v6503 = vadd.f32 %v6466, %v6500
        %s6504 = scalar_lea.vmem %s17, 24
        %v6505 = vld [vmem:[%s6504] sm:$0xf]
        %v6506 = vld [vmem:[%s6504 + $0x4] sm:$0xf]
        %v6509 = vunpack.c.l.b16 %v6505
        %v6510 = vunpack.c.l.b16 %v6506
        %v6511 = vpack.c.b16 %v6510, %v6509
        %6512 = vrot.lane.b32.xlu0 %v6478, 112
        %v6513 = vpop.permute.xlu0 %6512
        %v6516 = vsel %vm5279, %v6511, 0
        %6518 = vmatpush.bf16.msra.mxu0 0
        %6519 = vmatpush.bf16.msra.mxu0 0
        %6520 = vmatpush.bf16.msra.mxu0 0
        %6521 = vmatpush.bf16.msra.mxu0 0
        %6522 = vmatpush.bf16.msra.mxu0 0
        %6523 = vmatpush.bf16.msra.mxu0 0
        %6524 = vmatpush.bf16.msra.mxu0 0
        %6525 = vmatpush.bf16.msra.mxu0 %v6513
        %6526 = vmatmul.bf16.gmra.mxu0 %v6516
        %v6527 = vpop.f32.mrf.mxu0
        %v6528 = vadd.f32 0.0, %v6527
        %v6529 = vpop.f32.mrf.mxu0
        %v6530 = vadd.f32 0.0, %v6529
        %6531 = vdwg.mxu0
        %v6532 = vadd.f32 %v6502, %v6528
        %v6533 = vadd.f32 %v6503, %v6530
        %s6534 = scalar_lea.vmem %s17, 32
        %v6535 = vld [vmem:[%s6534] sm:$0xf]
        %v6536 = vld [vmem:[%s6534 + $0x4] sm:$0xf]
        %v6539 = vunpack.c.l.b16 %v6535
        %v6540 = vunpack.c.l.b16 %v6536
        %v6541 = vpack.c.b16 %v6540, %v6539
        %6542 = vrot.lane.b32.xlu0 %v6478, 64
        %v6543 = vpop.permute.xlu0 %6542
        %v6546 = vsel %vm5279, %v6541, 0
        %6548 = vmatpush.bf16.msra.mxu0 0
        %6549 = vmatpush.bf16.msra.mxu0 0
        %6550 = vmatpush.bf16.msra.mxu0 0
        %6551 = vmatpush.bf16.msra.mxu0 0
        %6552 = vmatpush.bf16.msra.mxu0 0
        %6553 = vmatpush.bf16.msra.mxu0 0
        %6554 = vmatpush.bf16.msra.mxu0 0
        %6555 = vmatpush.bf16.msra.mxu0 %v6543
        %6556 = vmatmul.bf16.gmra.mxu0 %v6546
        %v6557 = vpop.f32.mrf.mxu0
        %v6558 = vadd.f32 0.0, %v6557
        %v6559 = vpop.f32.mrf.mxu0
        %v6560 = vadd.f32 0.0, %v6559
        %6561 = vdwg.mxu0
        %v6562 = vadd.f32 %v6532, %v6558
        %v6563 = vadd.f32 %v6533, %v6560
        %s6564 = scalar_lea.vmem %s17, 40
        %v6565 = vld [vmem:[%s6564] sm:$0xf]
        %v6566 = vld [vmem:[%s6564 + $0x4] sm:$0xf]
        %v6569 = vunpack.c.l.b16 %v6565
        %v6570 = vunpack.c.l.b16 %v6566
        %v6571 = vpack.c.b16 %v6570, %v6569
        %v6574 = vunpack.c.l.b16 %v6407
        %v6575 = vunpack.c.l.b16 %v6409
        %v6576 = vpack.c.b16 %v6575, %v6574
        %6577 = vrot.lane.b32.xlu0 %v6478, 16
        %v6578 = vpop.permute.xlu0 %6577
        %6579 = vrot.lane.b32.xlu0 %v6576, 16
        %v6580 = vpop.permute.xlu0 %6579
        %v6581 = vsel %vm4700, %v6578, %v6580
        %v6584 = vsel %vm5279, %v6571, 0
        %6586 = vmatpush.bf16.msra.mxu0 0
        %6587 = vmatpush.bf16.msra.mxu0 0
        %6588 = vmatpush.bf16.msra.mxu0 0
        %6589 = vmatpush.bf16.msra.mxu0 0
        %6590 = vmatpush.bf16.msra.mxu0 0
        %6591 = vmatpush.bf16.msra.mxu0 0
        %6592 = vmatpush.bf16.msra.mxu0 0
        %6593 = vmatpush.bf16.msra.mxu0 %v6581
        %6594 = vmatmul.bf16.gmra.mxu0 %v6584
        %v6595 = vpop.f32.mrf.mxu0
        %v6596 = vadd.f32 0.0, %v6595
        %v6597 = vpop.f32.mrf.mxu0
        %v6598 = vadd.f32 0.0, %v6597
        %6599 = vdwg.mxu0
        %v6600 = vadd.f32 %v6562, %v6596
        %v6601 = vadd.f32 %v6563, %v6598
        %s6602 = scalar_lea.vmem %s17, 48
        %v6603 = vld [vmem:[%s6602] sm:$0xf]
        %v6604 = vld [vmem:[%s6602 + $0x4] sm:$0xf]
        %v6607 = vunpack.c.l.b16 %v6603
        %v6608 = vunpack.c.l.b16 %v6604
        %v6609 = vpack.c.b16 %v6608, %v6607
        %6610 = vrot.lane.b32.xlu0 %v6576, 96
        %v6611 = vpop.permute.xlu0 %6610
        %v6614 = vsel %vm5279, %v6609, 0
        %6616 = vmatpush.bf16.msra.mxu0 0
        %6617 = vmatpush.bf16.msra.mxu0 0
        %6618 = vmatpush.bf16.msra.mxu0 0
        %6619 = vmatpush.bf16.msra.mxu0 0
        %6620 = vmatpush.bf16.msra.mxu0 0
        %6621 = vmatpush.bf16.msra.mxu0 0
        %6622 = vmatpush.bf16.msra.mxu0 0
        %6623 = vmatpush.bf16.msra.mxu0 %v6611
        %6624 = vmatmul.bf16.gmra.mxu0 %v6614
        %v6625 = vpop.f32.mrf.mxu0
        %v6626 = vadd.f32 0.0, %v6625
        %v6627 = vpop.f32.mrf.mxu0
        %v6628 = vadd.f32 0.0, %v6627
        %6629 = vdwg.mxu0
        %v6630 = vadd.f32 %v6600, %v6626
        %v6631 = vadd.f32 %v6601, %v6628
        %s6632 = scalar_lea.vmem %s17, 56
        %v6633 = vld [vmem:[%s6632] sm:$0xf]
        %v6634 = vld [vmem:[%s6632 + $0x4] sm:$0xf]
        %v6637 = vunpack.c.l.b16 %v6633
        %v6638 = vunpack.c.l.b16 %v6634
        %v6639 = vpack.c.b16 %v6638, %v6637
        %6640 = vrot.lane.b32.xlu0 %v6576, 48
        %v6641 = vpop.permute.xlu0 %6640
        %v6644 = vsel %vm5279, %v6639, 0
        %6646 = vmatpush.bf16.msra.mxu0 0
        %6647 = vmatpush.bf16.msra.mxu0 0
        %6648 = vmatpush.bf16.msra.mxu0 0
        %6649 = vmatpush.bf16.msra.mxu0 0
        %6650 = vmatpush.bf16.msra.mxu0 0
        %6651 = vmatpush.bf16.msra.mxu0 0
        %6652 = vmatpush.bf16.msra.mxu0 0
        %6653 = vmatpush.bf16.msra.mxu0 %v6641
        %6654 = vmatmul.bf16.gmra.mxu0 %v6644
        %v6655 = vpop.f32.mrf.mxu0
        %v6656 = vadd.f32 0.0, %v6655
        %v6657 = vpop.f32.mrf.mxu0
        %v6658 = vadd.f32 0.0, %v6657
        %6659 = vdwg.mxu0
        %v6660 = vadd.f32 %v6630, %v6656
        %v6661 = vadd.f32 %v6631, %v6658
        %s6662 = scalar_lea.vmem %s17, 64
        %v6663 = vld [vmem:[%s6662] sm:$0xf]
        %v6664 = vld [vmem:[%s6662 + $0x4] sm:$0xf]
        %v6667 = vunpack.c.l.b16 %v6663
        %v6668 = vunpack.c.l.b16 %v6664
        %v6669 = vpack.c.b16 %v6668, %v6667
        %v6670 = vunpack.c.h.b16 %v6407
        %v6671 = vunpack.c.h.b16 %v6409
        %v6672 = vpack.c.b16 %v6671, %v6670
        %v6675 = vsel %vm5279, %v6669, 0
        %6677 = vmatpush.bf16.msra.mxu0 0
        %6678 = vmatpush.bf16.msra.mxu0 0
        %6679 = vmatpush.bf16.msra.mxu0 0
        %6680 = vmatpush.bf16.msra.mxu0 0
        %6681 = vmatpush.bf16.msra.mxu0 0
        %6682 = vmatpush.bf16.msra.mxu0 0
        %6683 = vmatpush.bf16.msra.mxu0 0
        %6684 = vmatpush.bf16.msra.mxu0 %v6672
        %6685 = vmatmul.bf16.gmra.mxu0 %v6675
        %v6686 = vpop.f32.mrf.mxu0
        %v6687 = vadd.f32 0.0, %v6686
        %v6688 = vpop.f32.mrf.mxu0
        %v6689 = vadd.f32 0.0, %v6688
        %6690 = vdwg.mxu0
        %v6691 = vadd.f32 %v6660, %v6687
        %v6692 = vadd.f32 %v6661, %v6689
        %v6693 = vld [vmem:[#allocation17] sm:$0x1]
        %v6695 = vperm.slane %v6693, 0
        %v6697 = vadd.f32 %v6691, %v6695
        %v6698 = vadd.f32 %v6692, %v6695
        %v6699 = vmax.f32 %v6697, 0.0
        %v6700 = vmax.f32 %v6698, 0.0
        %v6701 = vpack.c.bf16 %v6699, %v6699
        %v6702 = vpack.c.bf16 %v6700, %v6700
        %v6703 = vld [vmem:[%s18] sm:$0xf]
        %v6704 = vld [vmem:[%s18 + $0x4] sm:$0xf]
        %v6705 = vld [vmem:[%s18 + $0x8] sm:$0xf]
        %v6706 = vld [vmem:[%s18 + $0xc] sm:$0xf]
        %v6707 = vld [vmem:[%s18 + $0x10] sm:$0xf]
        %v6708 = vld [vmem:[%s18 + $0x14] sm:$0xf]
        %v6709 = vld [vmem:[%s18 + $0x18] sm:$0xf]
        %v6710 = vld [vmem:[%s18 + $0x1c] sm:$0xf]
        %s6711 = scalar_lea.vmem %s18, 32
        %v6712 = vld [vmem:[%s6711] sm:$0xf]
        %v6713 = vld [vmem:[%s6711 + $0x4] sm:$0xf]
        %v6714 = vld [vmem:[%s6711 + $0x8] sm:$0xf]
        %v6715 = vld [vmem:[%s6711 + $0xc] sm:$0xf]
        %v6716 = vld [vmem:[%s6711 + $0x10] sm:$0xf]
        %v6717 = vld [vmem:[%s6711 + $0x14] sm:$0xf]
        %v6718 = vld [vmem:[%s6711 + $0x18] sm:$0xf]
        %v6719 = vld [vmem:[%s6711 + $0x1c] sm:$0xf]
        %v6728 = vunpack.c.l.b16 %v6712
        %v6729 = vunpack.c.l.b16 %v6713
        %v6730 = vunpack.c.l.b16 %v6714
        %v6731 = vunpack.c.l.b16 %v6715
        %v6732 = vunpack.c.l.b16 %v6716
        %v6733 = vunpack.c.l.b16 %v6717
        %v6734 = vunpack.c.l.b16 %v6718
        %v6735 = vunpack.c.l.b16 %v6719
        %v6736 = vpack.c.b16 %v6729, %v6728
        %v6737 = vpack.c.b16 %v6731, %v6730
        %v6738 = vpack.c.b16 %v6733, %v6732
        %v6739 = vpack.c.b16 %v6735, %v6734
        %v6742 = vunpack.c.l.b16 %v6701
        %v6743 = vunpack.c.l.b16 %v6702
        %v6744 = vpack.c.b16 %v6743, %v6742
        %6745 = vrot.lane.b32.xlu0 %v6744, 116
        %v6746 = vpop.permute.xlu0 %6745
        %v6749 = vsel %vm5279, %v6736, 0
        %v6752 = vsel %vm5279, %v6737, 0
        %v6755 = vsel %vm5279, %v6738, 0
        %v6758 = vsel %vm5279, %v6739, 0
        %6760 = vmatpush.bf16.msra.mxu0 0
        %6761 = vmatpush.bf16.msra.mxu0 0
        %6762 = vmatpush.bf16.msra.mxu0 0
        %6763 = vmatpush.bf16.msra.mxu0 0
        %6764 = vmatpush.bf16.msra.mxu0 0
        %6765 = vmatpush.bf16.msra.mxu0 0
        %6766 = vmatpush.bf16.msra.mxu0 0
        %6767 = vmatpush.bf16.msra.mxu0 %v6746
        %6768 = vmatmul.bf16.gmra.mxu0 %v6749
        %v6769 = vpop.f32.mrf.mxu0
        %v6770 = vadd.f32 0.0, %v6769
        %v6771 = vpop.f32.mrf.mxu0
        %v6772 = vadd.f32 0.0, %v6771
        %6773 = vmatmul.bf16.gmra.mxu0 %v6752
        %v6774 = vpop.f32.mrf.mxu0
        %v6775 = vadd.f32 0.0, %v6774
        %v6776 = vpop.f32.mrf.mxu0
        %v6777 = vadd.f32 0.0, %v6776
        %6778 = vmatmul.bf16.gmra.mxu0 %v6755
        %v6779 = vpop.f32.mrf.mxu0
        %v6780 = vadd.f32 0.0, %v6779
        %v6781 = vpop.f32.mrf.mxu0
        %v6782 = vadd.f32 0.0, %v6781
        %6783 = vmatmul.bf16.gmra.mxu0 %v6758
        %v6784 = vpop.f32.mrf.mxu0
        %v6785 = vadd.f32 0.0, %v6784
        %v6786 = vpop.f32.mrf.mxu0
        %v6787 = vadd.f32 0.0, %v6786
        %6788 = vdwg.mxu0
        %v6797 = vunpack.c.l.b16 %v6703
        %v6798 = vunpack.c.l.b16 %v6704
        %v6799 = vunpack.c.l.b16 %v6705
        %v6800 = vunpack.c.l.b16 %v6706
        %v6801 = vunpack.c.l.b16 %v6707
        %v6802 = vunpack.c.l.b16 %v6708
        %v6803 = vunpack.c.l.b16 %v6709
        %v6804 = vunpack.c.l.b16 %v6710
        %v6805 = vpack.c.b16 %v6798, %v6797
        %v6806 = vpack.c.b16 %v6800, %v6799
        %v6807 = vpack.c.b16 %v6802, %v6801
        %v6808 = vpack.c.b16 %v6804, %v6803
        %v6811 = vsel %vm5279, %v6805, 0
        %v6814 = vsel %vm5279, %v6806, 0
        %v6817 = vsel %vm5279, %v6807, 0
        %v6820 = vsel %vm5279, %v6808, 0
        %6822 = vmatpush.bf16.msra.mxu0 0
        %6823 = vmatpush.bf16.msra.mxu0 0
        %6824 = vmatpush.bf16.msra.mxu0 0
        %6825 = vmatpush.bf16.msra.mxu0 0
        %6826 = vmatpush.bf16.msra.mxu0 0
        %6827 = vmatpush.bf16.msra.mxu0 0
        %6828 = vmatpush.bf16.msra.mxu0 0
        %6829 = vmatpush.bf16.msra.mxu0 %v6744
        %6830 = vmatmul.bf16.gmra.mxu0 %v6811
        %v6831 = vpop.f32.mrf.mxu0
        %v6832 = vadd.f32 %v6770, %v6831
        %v6833 = vpop.f32.mrf.mxu0
        %v6834 = vadd.f32 %v6772, %v6833
        %6835 = vmatmul.bf16.gmra.mxu0 %v6814
        %v6836 = vpop.f32.mrf.mxu0
        %v6837 = vadd.f32 %v6775, %v6836
        %v6838 = vpop.f32.mrf.mxu0
        %v6839 = vadd.f32 %v6777, %v6838
        %6840 = vmatmul.bf16.gmra.mxu0 %v6817
        %v6841 = vpop.f32.mrf.mxu0
        %v6842 = vadd.f32 %v6780, %v6841
        %v6843 = vpop.f32.mrf.mxu0
        %v6844 = vadd.f32 %v6782, %v6843
        %6845 = vmatmul.bf16.gmra.mxu0 %v6820
        %v6846 = vpop.f32.mrf.mxu0
        %v6847 = vadd.f32 %v6785, %v6846
        %v6848 = vpop.f32.mrf.mxu0
        %v6849 = vadd.f32 %v6787, %v6848
        %6850 = vdwg.mxu0
        %s6851 = scalar_lea.vmem %s18, 64
        %v6852 = vld [vmem:[%s6851] sm:$0xf]
        %v6853 = vld [vmem:[%s6851 + $0x4] sm:$0xf]
        %v6854 = vld [vmem:[%s6851 + $0x8] sm:$0xf]
        %v6855 = vld [vmem:[%s6851 + $0xc] sm:$0xf]
        %v6856 = vld [vmem:[%s6851 + $0x10] sm:$0xf]
        %v6857 = vld [vmem:[%s6851 + $0x14] sm:$0xf]
        %v6858 = vld [vmem:[%s6851 + $0x18] sm:$0xf]
        %v6859 = vld [vmem:[%s6851 + $0x1c] sm:$0xf]
        %v6868 = vunpack.c.l.b16 %v6852
        %v6869 = vunpack.c.l.b16 %v6853
        %v6870 = vunpack.c.l.b16 %v6854
        %v6871 = vunpack.c.l.b16 %v6855
        %v6872 = vunpack.c.l.b16 %v6856
        %v6873 = vunpack.c.l.b16 %v6857
        %v6874 = vunpack.c.l.b16 %v6858
        %v6875 = vunpack.c.l.b16 %v6859
        %v6876 = vpack.c.b16 %v6869, %v6868
        %v6877 = vpack.c.b16 %v6871, %v6870
        %v6878 = vpack.c.b16 %v6873, %v6872
        %v6879 = vpack.c.b16 %v6875, %v6874
        %6880 = vrot.lane.b32.xlu0 %v6744, 104
        %v6881 = vpop.permute.xlu0 %6880
        %v6884 = vsel %vm5279, %v6876, 0
        %v6887 = vsel %vm5279, %v6877, 0
        %v6890 = vsel %vm5279, %v6878, 0
        %v6893 = vsel %vm5279, %v6879, 0
        %6895 = vmatpush.bf16.msra.mxu0 0
        %6896 = vmatpush.bf16.msra.mxu0 0
        %6897 = vmatpush.bf16.msra.mxu0 0
        %6898 = vmatpush.bf16.msra.mxu0 0
        %6899 = vmatpush.bf16.msra.mxu0 0
        %6900 = vmatpush.bf16.msra.mxu0 0
        %6901 = vmatpush.bf16.msra.mxu0 0
        %6902 = vmatpush.bf16.msra.mxu0 %v6881
        %6903 = vmatmul.bf16.gmra.mxu0 %v6884
        %v6904 = vpop.f32.mrf.mxu0
        %v6905 = vadd.f32 0.0, %v6904
        %v6906 = vpop.f32.mrf.mxu0
        %v6907 = vadd.f32 0.0, %v6906
        %6908 = vmatmul.bf16.gmra.mxu0 %v6887
        %v6909 = vpop.f32.mrf.mxu0
        %v6910 = vadd.f32 0.0, %v6909
        %v6911 = vpop.f32.mrf.mxu0
        %v6912 = vadd.f32 0.0, %v6911
        %6913 = vmatmul.bf16.gmra.mxu0 %v6890
        %v6914 = vpop.f32.mrf.mxu0
        %v6915 = vadd.f32 0.0, %v6914
        %v6916 = vpop.f32.mrf.mxu0
        %v6917 = vadd.f32 0.0, %v6916
        %6918 = vmatmul.bf16.gmra.mxu0 %v6893
        %v6919 = vpop.f32.mrf.mxu0
        %v6920 = vadd.f32 0.0, %v6919
        %v6921 = vpop.f32.mrf.mxu0
        %v6922 = vadd.f32 0.0, %v6921
        %6923 = vdwg.mxu0
        %v6924 = vadd.f32 %v6832, %v6905
        %v6925 = vadd.f32 %v6834, %v6907
        %v6926 = vadd.f32 %v6837, %v6910
        %v6927 = vadd.f32 %v6839, %v6912
        %v6928 = vadd.f32 %v6842, %v6915
        %v6929 = vadd.f32 %v6844, %v6917
        %v6930 = vadd.f32 %v6847, %v6920
        %v6931 = vadd.f32 %v6849, %v6922
        %s6932 = scalar_lea.vmem %s18, 96
        %v6933 = vld [vmem:[%s6932] sm:$0xf]
        %v6934 = vld [vmem:[%s6932 + $0x4] sm:$0xf]
        %v6935 = vld [vmem:[%s6932 + $0x8] sm:$0xf]
        %v6936 = vld [vmem:[%s6932 + $0xc] sm:$0xf]
        %v6937 = vld [vmem:[%s6932 + $0x10] sm:$0xf]
        %v6938 = vld [vmem:[%s6932 + $0x14] sm:$0xf]
        %v6939 = vld [vmem:[%s6932 + $0x18] sm:$0xf]
        %v6940 = vld [vmem:[%s6932 + $0x1c] sm:$0xf]
        %v6949 = vunpack.c.l.b16 %v6933
        %v6950 = vunpack.c.l.b16 %v6934
        %v6951 = vunpack.c.l.b16 %v6935
        %v6952 = vunpack.c.l.b16 %v6936
        %v6953 = vunpack.c.l.b16 %v6937
        %v6954 = vunpack.c.l.b16 %v6938
        %v6955 = vunpack.c.l.b16 %v6939
        %v6956 = vunpack.c.l.b16 %v6940
        %v6957 = vpack.c.b16 %v6950, %v6949
        %v6958 = vpack.c.b16 %v6952, %v6951
        %v6959 = vpack.c.b16 %v6954, %v6953
        %v6960 = vpack.c.b16 %v6956, %v6955
        %6961 = vrot.lane.b32.xlu0 %v6744, 92
        %v6962 = vpop.permute.xlu0 %6961
        %v6965 = vsel %vm5279, %v6957, 0
        %v6968 = vsel %vm5279, %v6958, 0
        %v6971 = vsel %vm5279, %v6959, 0
        %v6974 = vsel %vm5279, %v6960, 0
        %6976 = vmatpush.bf16.msra.mxu0 0
        %6977 = vmatpush.bf16.msra.mxu0 0
        %6978 = vmatpush.bf16.msra.mxu0 0
        %6979 = vmatpush.bf16.msra.mxu0 0
        %6980 = vmatpush.bf16.msra.mxu0 0
        %6981 = vmatpush.bf16.msra.mxu0 0
        %6982 = vmatpush.bf16.msra.mxu0 0
        %6983 = vmatpush.bf16.msra.mxu0 %v6962
        %6984 = vmatmul.bf16.gmra.mxu0 %v6965
        %v6985 = vpop.f32.mrf.mxu0
        %v6986 = vadd.f32 0.0, %v6985
        %v6987 = vpop.f32.mrf.mxu0
        %v6988 = vadd.f32 0.0, %v6987
        %6989 = vmatmul.bf16.gmra.mxu0 %v6968
        %v6990 = vpop.f32.mrf.mxu0
        %v6991 = vadd.f32 0.0, %v6990
        %v6992 = vpop.f32.mrf.mxu0
        %v6993 = vadd.f32 0.0, %v6992
        %6994 = vmatmul.bf16.gmra.mxu0 %v6971
        %v6995 = vpop.f32.mrf.mxu0
        %v6996 = vadd.f32 0.0, %v6995
        %v6997 = vpop.f32.mrf.mxu0
        %v6998 = vadd.f32 0.0, %v6997
        %6999 = vmatmul.bf16.gmra.mxu0 %v6974
        %v7000 = vpop.f32.mrf.mxu0
        %v7001 = vadd.f32 0.0, %v7000
        %v7002 = vpop.f32.mrf.mxu0
        %v7003 = vadd.f32 0.0, %v7002
        %7004 = vdwg.mxu0
        %v7005 = vadd.f32 %v6924, %v6986
        %v7006 = vadd.f32 %v6925, %v6988
        %v7007 = vadd.f32 %v6926, %v6991
        %v7008 = vadd.f32 %v6927, %v6993
        %v7009 = vadd.f32 %v6928, %v6996
        %v7010 = vadd.f32 %v6929, %v6998
        %v7011 = vadd.f32 %v6930, %v7001
        %v7012 = vadd.f32 %v6931, %v7003
        %v7013 = vpack.c.bf16 %v7006, %v7005
        %v7014 = vpack.c.bf16 %v7008, %v7007
        %v7015 = vpack.c.bf16 %v7010, %v7009
        %v7016 = vpack.c.bf16 %v7012, %v7011
        %v7017 = vld [vmem:[%s19] sm:$0xf]
        %v7018 = vld [vmem:[%s19 + $0x4] sm:$0x3]
        %v7021 = vunpack.c.l.b16 %v7017
        %v7022 = vunpack.c.l.b16 %v7018
        %v7023 = vpack.c.b16 %v7022, %v7021
        %v7025 = vsel %vm4108, %v7013, 0
        %v7028 = vsel %vm4108, %v7014, 0
        %v7031 = vsel %vm4108, %v7015, 0
        %v7034 = vsel %vm4108, %v7016, 0
        %v7037 = vsel %vm4121, %v7023, 0
        %7039 = vmatpush.bf16.msra.mxu0 0
        %7040 = vmatpush.bf16.msra.mxu0 0
        %7041 = vmatpush.bf16.msra.mxu0 0
        %7042 = vmatpush.bf16.msra.mxu0 0
        %7043 = vmatpush.bf16.msra.mxu0 0
        %7044 = vmatpush.bf16.msra.mxu0 0
        %7045 = vmatpush.bf16.msra.mxu0 0
        %7046 = vmatpush.bf16.msra.mxu0 %v7037
        %7047 = vmatmul.bf16.gmra.mxu0 %v7025
        %v7048 = vpop.f32.mrf.mxu0
        %v7049 = vadd.f32 0.0, %v7048
        %v7050 = vpop.f32.mrf.mxu0
        %v7051 = vadd.f32 0.0, %v7050
        %7052 = vmatmul.bf16.gmra.mxu0 %v7028
        %v7053 = vpop.f32.mrf.mxu0
        %v7054 = vadd.f32 0.0, %v7053
        %v7055 = vpop.f32.mrf.mxu0
        %v7056 = vadd.f32 0.0, %v7055
        %7057 = vmatmul.bf16.gmra.mxu0 %v7031
        %v7058 = vpop.f32.mrf.mxu0
        %v7059 = vadd.f32 0.0, %v7058
        %v7060 = vpop.f32.mrf.mxu0
        %v7061 = vadd.f32 0.0, %v7060
        %7062 = vmatmul.bf16.gmra.mxu0 %v7034
        %v7063 = vpop.f32.mrf.mxu0
        %v7064 = vadd.f32 0.0, %v7063
        %v7065 = vpop.f32.mrf.mxu0
        %v7066 = vadd.f32 0.0, %v7065
        %7067 = vdwg.mxu0
        %v7068 = vpack.c.bf16 %v7049, %v7049
        %v7069 = vpack.c.bf16 %v7051, %v7051
        %v7070 = vpack.c.bf16 %v7054, %v7054
        %v7071 = vpack.c.bf16 %v7056, %v7056
        %v7072 = vpack.c.bf16 %v7059, %v7059
        %v7073 = vpack.c.bf16 %v7061, %v7061
        %v7074 = vpack.c.bf16 %v7064, %v7064
        %v7075 = vpack.c.bf16 %v7066, %v7066
        %v7076 = vld [vmem:[%s21] sm:$0xf]
        %v7077 = vld [vmem:[%s21 + $0x4] sm:$0xf]
        %v7078 = vld [vmem:[%s21 + $0x8] sm:$0xf]
        %v7079 = vld [vmem:[%s21 + $0xc] sm:$0xf]
        %v7080 = vld [vmem:[%s21 + $0x10] sm:$0xf]
        %v7081 = vld [vmem:[%s21 + $0x14] sm:$0xf]
        %v7082 = vld [vmem:[%s21 + $0x18] sm:$0xf]
        %v7083 = vld [vmem:[%s21 + $0x1c] sm:$0xf]
        %s7084 = scalar_lea.vmem %s21, 32
        %v7085 = vld [vmem:[%s7084] sm:$0xf]
        %v7086 = vld [vmem:[%s7084 + $0x4] sm:$0xf]
        %v7087 = vld [vmem:[%s7084 + $0x8] sm:$0xf]
        %v7088 = vld [vmem:[%s7084 + $0xc] sm:$0xf]
        %v7089 = vld [vmem:[%s7084 + $0x10] sm:$0xf]
        %v7090 = vld [vmem:[%s7084 + $0x14] sm:$0xf]
        %v7091 = vld [vmem:[%s7084 + $0x18] sm:$0xf]
        %v7092 = vld [vmem:[%s7084 + $0x1c] sm:$0xf]
        %v7101 = vunpack.c.l.b16 %v7085
        %v7102 = vunpack.c.l.b16 %v7086
        %v7103 = vunpack.c.l.b16 %v7087
        %v7104 = vunpack.c.l.b16 %v7088
        %v7105 = vunpack.c.l.b16 %v7089
        %v7106 = vunpack.c.l.b16 %v7090
        %v7107 = vunpack.c.l.b16 %v7091
        %v7108 = vunpack.c.l.b16 %v7092
        %v7109 = vpack.c.b16 %v7102, %v7101
        %v7110 = vpack.c.b16 %v7104, %v7103
        %v7111 = vpack.c.b16 %v7106, %v7105
        %v7112 = vpack.c.b16 %v7108, %v7107
        %v7121 = vunpack.c.l.b16 %v7068
        %v7122 = vunpack.c.l.b16 %v7069
        %v7123 = vunpack.c.l.b16 %v7070
        %v7124 = vunpack.c.l.b16 %v7071
        %v7125 = vunpack.c.l.b16 %v7072
        %v7126 = vunpack.c.l.b16 %v7073
        %v7127 = vunpack.c.l.b16 %v7074
        %v7128 = vunpack.c.l.b16 %v7075
        %v7129 = vpack.c.b16 %v7122, %v7121
        %v7130 = vpack.c.b16 %v7124, %v7123
        %v7131 = vpack.c.b16 %v7126, %v7125
        %v7132 = vpack.c.b16 %v7128, %v7127
        %7133 = vrot.lane.b32.xlu0 %v7129, 116
        %v7134 = vpop.permute.xlu0 %7133
        %7135 = vrot.lane.b32.xlu0 %v7130, 116
        %v7136 = vpop.permute.xlu0 %7135
        %7137 = vrot.lane.b32.xlu0 %v7131, 116
        %v7138 = vpop.permute.xlu0 %7137
        %7139 = vrot.lane.b32.xlu0 %v7132, 116
        %v7140 = vpop.permute.xlu0 %7139
        %v7146 = vsel %vm4276, %v7109, 0
        %v7149 = vsel %vm4276, %v7110, 0
        %v7152 = vsel %vm4276, %v7111, 0
        %v7155 = vsel %vm4276, %v7112, 0
        %7157 = vmatpush.bf16.msra.mxu0 0
        %7158 = vmatpush.bf16.msra.mxu0 0
        %7159 = vmatpush.bf16.msra.mxu0 0
        %7160 = vmatpush.bf16.msra.mxu0 0
        %7161 = vmatpush.bf16.msra.mxu0 %v7140
        %7162 = vmatpush.bf16.msra.mxu0 %v7138
        %7163 = vmatpush.bf16.msra.mxu0 %v7136
        %7164 = vmatpush.bf16.msra.mxu0 %v7134
        %7165 = vmatmul.bf16.gmra.mxu0 %v7146
        %v7166 = vpop.f32.mrf.mxu0
        %v7167 = vadd.f32 0.0, %v7166
        %v7168 = vpop.f32.mrf.mxu0
        %v7169 = vadd.f32 0.0, %v7168
        %7170 = vmatmul.bf16.gmra.mxu0 %v7149
        %v7171 = vpop.f32.mrf.mxu0
        %v7172 = vadd.f32 0.0, %v7171
        %v7173 = vpop.f32.mrf.mxu0
        %v7174 = vadd.f32 0.0, %v7173
        %7175 = vmatmul.bf16.gmra.mxu0 %v7152
        %v7176 = vpop.f32.mrf.mxu0
        %v7177 = vadd.f32 0.0, %v7176
        %v7178 = vpop.f32.mrf.mxu0
        %v7179 = vadd.f32 0.0, %v7178
        %7180 = vmatmul.bf16.gmra.mxu0 %v7155
        %v7181 = vpop.f32.mrf.mxu0
        %v7182 = vadd.f32 0.0, %v7181
        %v7183 = vpop.f32.mrf.mxu0
        %v7184 = vadd.f32 0.0, %v7183
        %7185 = vdwg.mxu0
        %v7194 = vunpack.c.l.b16 %v7076
        %v7195 = vunpack.c.l.b16 %v7077
        %v7196 = vunpack.c.l.b16 %v7078
        %v7197 = vunpack.c.l.b16 %v7079
        %v7198 = vunpack.c.l.b16 %v7080
        %v7199 = vunpack.c.l.b16 %v7081
        %v7200 = vunpack.c.l.b16 %v7082
        %v7201 = vunpack.c.l.b16 %v7083
        %v7202 = vpack.c.b16 %v7195, %v7194
        %v7203 = vpack.c.b16 %v7197, %v7196
        %v7204 = vpack.c.b16 %v7199, %v7198
        %v7205 = vpack.c.b16 %v7201, %v7200
        %v7211 = vsel %vm4276, %v7202, 0
        %v7214 = vsel %vm4276, %v7203, 0
        %v7217 = vsel %vm4276, %v7204, 0
        %v7220 = vsel %vm4276, %v7205, 0
        %7222 = vmatpush.bf16.msra.mxu0 0
        %7223 = vmatpush.bf16.msra.mxu0 0
        %7224 = vmatpush.bf16.msra.mxu0 0
        %7225 = vmatpush.bf16.msra.mxu0 0
        %7226 = vmatpush.bf16.msra.mxu0 %v7132
        %7227 = vmatpush.bf16.msra.mxu0 %v7131
        %7228 = vmatpush.bf16.msra.mxu0 %v7130
        %7229 = vmatpush.bf16.msra.mxu0 %v7129
        %7230 = vmatmul.bf16.gmra.mxu0 %v7211
        %v7231 = vpop.f32.mrf.mxu0
        %v7232 = vadd.f32 %v7167, %v7231
        %v7233 = vpop.f32.mrf.mxu0
        %v7234 = vadd.f32 %v7169, %v7233
        %7235 = vmatmul.bf16.gmra.mxu0 %v7214
        %v7236 = vpop.f32.mrf.mxu0
        %v7237 = vadd.f32 %v7172, %v7236
        %v7238 = vpop.f32.mrf.mxu0
        %v7239 = vadd.f32 %v7174, %v7238
        %7240 = vmatmul.bf16.gmra.mxu0 %v7217
        %v7241 = vpop.f32.mrf.mxu0
        %v7242 = vadd.f32 %v7177, %v7241
        %v7243 = vpop.f32.mrf.mxu0
        %v7244 = vadd.f32 %v7179, %v7243
        %7245 = vmatmul.bf16.gmra.mxu0 %v7220
        %v7246 = vpop.f32.mrf.mxu0
        %v7247 = vadd.f32 %v7182, %v7246
        %v7248 = vpop.f32.mrf.mxu0
        %v7249 = vadd.f32 %v7184, %v7248
        %7250 = vdwg.mxu0
        %s7251 = scalar_lea.vmem %s21, 64
        %v7252 = vld [vmem:[%s7251] sm:$0xf]
        %v7253 = vld [vmem:[%s7251 + $0x4] sm:$0xf]
        %v7254 = vld [vmem:[%s7251 + $0x8] sm:$0xf]
        %v7255 = vld [vmem:[%s7251 + $0xc] sm:$0xf]
        %v7256 = vld [vmem:[%s7251 + $0x10] sm:$0xf]
        %v7257 = vld [vmem:[%s7251 + $0x14] sm:$0xf]
        %v7258 = vld [vmem:[%s7251 + $0x18] sm:$0xf]
        %v7259 = vld [vmem:[%s7251 + $0x1c] sm:$0xf]
        %v7268 = vunpack.c.l.b16 %v7252
        %v7269 = vunpack.c.l.b16 %v7253
        %v7270 = vunpack.c.l.b16 %v7254
        %v7271 = vunpack.c.l.b16 %v7255
        %v7272 = vunpack.c.l.b16 %v7256
        %v7273 = vunpack.c.l.b16 %v7257
        %v7274 = vunpack.c.l.b16 %v7258
        %v7275 = vunpack.c.l.b16 %v7259
        %v7276 = vpack.c.b16 %v7269, %v7268
        %v7277 = vpack.c.b16 %v7271, %v7270
        %v7278 = vpack.c.b16 %v7273, %v7272
        %v7279 = vpack.c.b16 %v7275, %v7274
        %7280 = vrot.lane.b32.xlu0 %v7129, 104
        %v7281 = vpop.permute.xlu0 %7280
        %7282 = vrot.lane.b32.xlu0 %v7130, 104
        %v7283 = vpop.permute.xlu0 %7282
        %7284 = vrot.lane.b32.xlu0 %v7131, 104
        %v7285 = vpop.permute.xlu0 %7284
        %7286 = vrot.lane.b32.xlu0 %v7132, 104
        %v7287 = vpop.permute.xlu0 %7286
        %v7293 = vsel %vm4276, %v7276, 0
        %v7296 = vsel %vm4276, %v7277, 0
        %v7299 = vsel %vm4276, %v7278, 0
        %v7302 = vsel %vm4276, %v7279, 0
        %7304 = vmatpush.bf16.msra.mxu0 0
        %7305 = vmatpush.bf16.msra.mxu0 0
        %7306 = vmatpush.bf16.msra.mxu0 0
        %7307 = vmatpush.bf16.msra.mxu0 0
        %7308 = vmatpush.bf16.msra.mxu0 %v7287
        %7309 = vmatpush.bf16.msra.mxu0 %v7285
        %7310 = vmatpush.bf16.msra.mxu0 %v7283
        %7311 = vmatpush.bf16.msra.mxu0 %v7281
        %7312 = vmatmul.bf16.gmra.mxu0 %v7293
        %v7313 = vpop.f32.mrf.mxu0
        %v7314 = vadd.f32 0.0, %v7313
        %v7315 = vpop.f32.mrf.mxu0
        %v7316 = vadd.f32 0.0, %v7315
        %7317 = vmatmul.bf16.gmra.mxu0 %v7296
        %v7318 = vpop.f32.mrf.mxu0
        %v7319 = vadd.f32 0.0, %v7318
        %v7320 = vpop.f32.mrf.mxu0
        %v7321 = vadd.f32 0.0, %v7320
        %7322 = vmatmul.bf16.gmra.mxu0 %v7299
        %v7323 = vpop.f32.mrf.mxu0
        %v7324 = vadd.f32 0.0, %v7323
        %v7325 = vpop.f32.mrf.mxu0
        %v7326 = vadd.f32 0.0, %v7325
        %7327 = vmatmul.bf16.gmra.mxu0 %v7302
        %v7328 = vpop.f32.mrf.mxu0
        %v7329 = vadd.f32 0.0, %v7328
        %v7330 = vpop.f32.mrf.mxu0
        %v7331 = vadd.f32 0.0, %v7330
        %7332 = vdwg.mxu0
        %v7333 = vadd.f32 %v7232, %v7314
        %v7334 = vadd.f32 %v7234, %v7316
        %v7335 = vadd.f32 %v7237, %v7319
        %v7336 = vadd.f32 %v7239, %v7321
        %v7337 = vadd.f32 %v7242, %v7324
        %v7338 = vadd.f32 %v7244, %v7326
        %v7339 = vadd.f32 %v7247, %v7329
        %v7340 = vadd.f32 %v7249, %v7331
        %s7341 = scalar_lea.vmem %s21, 96
        %v7342 = vld [vmem:[%s7341] sm:$0xf]
        %v7343 = vld [vmem:[%s7341 + $0x4] sm:$0xf]
        %v7344 = vld [vmem:[%s7341 + $0x8] sm:$0xf]
        %v7345 = vld [vmem:[%s7341 + $0xc] sm:$0xf]
        %v7346 = vld [vmem:[%s7341 + $0x10] sm:$0xf]
        %v7347 = vld [vmem:[%s7341 + $0x14] sm:$0xf]
        %v7348 = vld [vmem:[%s7341 + $0x18] sm:$0xf]
        %v7349 = vld [vmem:[%s7341 + $0x1c] sm:$0xf]
        %v7358 = vunpack.c.l.b16 %v7342
        %v7359 = vunpack.c.l.b16 %v7343
        %v7360 = vunpack.c.l.b16 %v7344
        %v7361 = vunpack.c.l.b16 %v7345
        %v7362 = vunpack.c.l.b16 %v7346
        %v7363 = vunpack.c.l.b16 %v7347
        %v7364 = vunpack.c.l.b16 %v7348
        %v7365 = vunpack.c.l.b16 %v7349
        %v7366 = vpack.c.b16 %v7359, %v7358
        %v7367 = vpack.c.b16 %v7361, %v7360
        %v7368 = vpack.c.b16 %v7363, %v7362
        %v7369 = vpack.c.b16 %v7365, %v7364
        %7370 = vrot.lane.b32.xlu0 %v7129, 92
        %v7371 = vpop.permute.xlu0 %7370
        %7372 = vrot.lane.b32.xlu0 %v7130, 92
        %v7373 = vpop.permute.xlu0 %7372
        %7374 = vrot.lane.b32.xlu0 %v7131, 92
        %v7375 = vpop.permute.xlu0 %7374
        %7376 = vrot.lane.b32.xlu0 %v7132, 92
        %v7377 = vpop.permute.xlu0 %7376
        %v7383 = vsel %vm4276, %v7366, 0
        %v7386 = vsel %vm4276, %v7367, 0
        %v7389 = vsel %vm4276, %v7368, 0
        %v7392 = vsel %vm4276, %v7369, 0
        %7394 = vmatpush.bf16.msra.mxu0 0
        %7395 = vmatpush.bf16.msra.mxu0 0
        %7396 = vmatpush.bf16.msra.mxu0 0
        %7397 = vmatpush.bf16.msra.mxu0 0
        %7398 = vmatpush.bf16.msra.mxu0 %v7377
        %7399 = vmatpush.bf16.msra.mxu0 %v7375
        %7400 = vmatpush.bf16.msra.mxu0 %v7373
        %7401 = vmatpush.bf16.msra.mxu0 %v7371
        %7402 = vmatmul.bf16.gmra.mxu0 %v7383
        %v7403 = vpop.f32.mrf.mxu0
        %v7404 = vadd.f32 0.0, %v7403
        %v7405 = vpop.f32.mrf.mxu0
        %v7406 = vadd.f32 0.0, %v7405
        %7407 = vmatmul.bf16.gmra.mxu0 %v7386
        %v7408 = vpop.f32.mrf.mxu0
        %v7409 = vadd.f32 0.0, %v7408
        %v7410 = vpop.f32.mrf.mxu0
        %v7411 = vadd.f32 0.0, %v7410
        %7412 = vmatmul.bf16.gmra.mxu0 %v7389
        %v7413 = vpop.f32.mrf.mxu0
        %v7414 = vadd.f32 0.0, %v7413
        %v7415 = vpop.f32.mrf.mxu0
        %v7416 = vadd.f32 0.0, %v7415
        %7417 = vmatmul.bf16.gmra.mxu0 %v7392
        %v7418 = vpop.f32.mrf.mxu0
        %v7419 = vadd.f32 0.0, %v7418
        %v7420 = vpop.f32.mrf.mxu0
        %v7421 = vadd.f32 0.0, %v7420
        %7422 = vdwg.mxu0
        %v7423 = vadd.f32 %v7333, %v7404
        %v7424 = vadd.f32 %v7334, %v7406
        %v7425 = vadd.f32 %v7335, %v7409
        %v7426 = vadd.f32 %v7336, %v7411
        %v7427 = vadd.f32 %v7337, %v7414
        %v7428 = vadd.f32 %v7338, %v7416
        %v7429 = vadd.f32 %v7339, %v7419
        %v7430 = vadd.f32 %v7340, %v7421
        %s7431 = scalar_lea.vmem %s21, 128
        %v7432 = vld [vmem:[%s7431] sm:$0xf]
        %v7433 = vld [vmem:[%s7431 + $0x4] sm:$0xf]
        %v7434 = vld [vmem:[%s7431 + $0x8] sm:$0xf]
        %v7435 = vld [vmem:[%s7431 + $0xc] sm:$0xf]
        %v7436 = vld [vmem:[%s7431 + $0x10] sm:$0xf]
        %v7437 = vld [vmem:[%s7431 + $0x14] sm:$0xf]
        %v7438 = vld [vmem:[%s7431 + $0x18] sm:$0xf]
        %v7439 = vld [vmem:[%s7431 + $0x1c] sm:$0xf]
        %v7448 = vunpack.c.l.b16 %v7432
        %v7449 = vunpack.c.l.b16 %v7433
        %v7450 = vunpack.c.l.b16 %v7434
        %v7451 = vunpack.c.l.b16 %v7435
        %v7452 = vunpack.c.l.b16 %v7436
        %v7453 = vunpack.c.l.b16 %v7437
        %v7454 = vunpack.c.l.b16 %v7438
        %v7455 = vunpack.c.l.b16 %v7439
        %v7456 = vpack.c.b16 %v7449, %v7448
        %v7457 = vpack.c.b16 %v7451, %v7450
        %v7458 = vpack.c.b16 %v7453, %v7452
        %v7459 = vpack.c.b16 %v7455, %v7454
        %7460 = vrot.lane.b32.xlu0 %v7129, 80
        %v7461 = vpop.permute.xlu0 %7460
        %7462 = vrot.lane.b32.xlu0 %v7130, 80
        %v7463 = vpop.permute.xlu0 %7462
        %7464 = vrot.lane.b32.xlu0 %v7131, 80
        %v7465 = vpop.permute.xlu0 %7464
        %7466 = vrot.lane.b32.xlu0 %v7132, 80
        %v7467 = vpop.permute.xlu0 %7466
        %v7473 = vsel %vm4276, %v7456, 0
        %v7476 = vsel %vm4276, %v7457, 0
        %v7479 = vsel %vm4276, %v7458, 0
        %v7482 = vsel %vm4276, %v7459, 0
        %7484 = vmatpush.bf16.msra.mxu0 0
        %7485 = vmatpush.bf16.msra.mxu0 0
        %7486 = vmatpush.bf16.msra.mxu0 0
        %7487 = vmatpush.bf16.msra.mxu0 0
        %7488 = vmatpush.bf16.msra.mxu0 %v7467
        %7489 = vmatpush.bf16.msra.mxu0 %v7465
        %7490 = vmatpush.bf16.msra.mxu0 %v7463
        %7491 = vmatpush.bf16.msra.mxu0 %v7461
        %7492 = vmatmul.bf16.gmra.mxu0 %v7473
        %v7493 = vpop.f32.mrf.mxu0
        %v7494 = vadd.f32 0.0, %v7493
        %v7495 = vpop.f32.mrf.mxu0
        %v7496 = vadd.f32 0.0, %v7495
        %7497 = vmatmul.bf16.gmra.mxu0 %v7476
        %v7498 = vpop.f32.mrf.mxu0
        %v7499 = vadd.f32 0.0, %v7498
        %v7500 = vpop.f32.mrf.mxu0
        %v7501 = vadd.f32 0.0, %v7500
        %7502 = vmatmul.bf16.gmra.mxu0 %v7479
        %v7503 = vpop.f32.mrf.mxu0
        %v7504 = vadd.f32 0.0, %v7503
        %v7505 = vpop.f32.mrf.mxu0
        %v7506 = vadd.f32 0.0, %v7505
        %7507 = vmatmul.bf16.gmra.mxu0 %v7482
        %v7508 = vpop.f32.mrf.mxu0
        %v7509 = vadd.f32 0.0, %v7508
        %v7510 = vpop.f32.mrf.mxu0
        %v7511 = vadd.f32 0.0, %v7510
        %7512 = vdwg.mxu0
        %v7513 = vadd.f32 %v7423, %v7494
        %v7514 = vadd.f32 %v7424, %v7496
        %v7515 = vadd.f32 %v7425, %v7499
        %v7516 = vadd.f32 %v7426, %v7501
        %v7517 = vadd.f32 %v7427, %v7504
        %v7518 = vadd.f32 %v7428, %v7506
        %v7519 = vadd.f32 %v7429, %v7509
        %v7520 = vadd.f32 %v7430, %v7511
        %s7521 = scalar_lea.vmem %s21, 160
        %v7522 = vld [vmem:[%s7521] sm:$0xf]
        %v7523 = vld [vmem:[%s7521 + $0x4] sm:$0xf]
        %v7524 = vld [vmem:[%s7521 + $0x8] sm:$0xf]
        %v7525 = vld [vmem:[%s7521 + $0xc] sm:$0xf]
        %v7526 = vld [vmem:[%s7521 + $0x10] sm:$0xf]
        %v7527 = vld [vmem:[%s7521 + $0x14] sm:$0xf]
        %v7528 = vld [vmem:[%s7521 + $0x18] sm:$0xf]
        %v7529 = vld [vmem:[%s7521 + $0x1c] sm:$0xf]
        %v7538 = vunpack.c.l.b16 %v7522
        %v7539 = vunpack.c.l.b16 %v7523
        %v7540 = vunpack.c.l.b16 %v7524
        %v7541 = vunpack.c.l.b16 %v7525
        %v7542 = vunpack.c.l.b16 %v7526
        %v7543 = vunpack.c.l.b16 %v7527
        %v7544 = vunpack.c.l.b16 %v7528
        %v7545 = vunpack.c.l.b16 %v7529
        %v7546 = vpack.c.b16 %v7539, %v7538
        %v7547 = vpack.c.b16 %v7541, %v7540
        %v7548 = vpack.c.b16 %v7543, %v7542
        %v7549 = vpack.c.b16 %v7545, %v7544
        %7550 = vrot.lane.b32.xlu0 %v7129, 68
        %v7551 = vpop.permute.xlu0 %7550
        %7552 = vrot.lane.b32.xlu0 %v7130, 68
        %v7553 = vpop.permute.xlu0 %7552
        %7554 = vrot.lane.b32.xlu0 %v7131, 68
        %v7555 = vpop.permute.xlu0 %7554
        %7556 = vrot.lane.b32.xlu0 %v7132, 68
        %v7557 = vpop.permute.xlu0 %7556
        %v7563 = vsel %vm4276, %v7546, 0
        %v7566 = vsel %vm4276, %v7547, 0
        %v7569 = vsel %vm4276, %v7548, 0
        %v7572 = vsel %vm4276, %v7549, 0
        %7574 = vmatpush.bf16.msra.mxu0 0
        %7575 = vmatpush.bf16.msra.mxu0 0
        %7576 = vmatpush.bf16.msra.mxu0 0
        %7577 = vmatpush.bf16.msra.mxu0 0
        %7578 = vmatpush.bf16.msra.mxu0 %v7557
        %7579 = vmatpush.bf16.msra.mxu0 %v7555
        %7580 = vmatpush.bf16.msra.mxu0 %v7553
        %7581 = vmatpush.bf16.msra.mxu0 %v7551
        %7582 = vmatmul.bf16.gmra.mxu0 %v7563
        %v7583 = vpop.f32.mrf.mxu0
        %v7584 = vadd.f32 0.0, %v7583
        %v7585 = vpop.f32.mrf.mxu0
        %v7586 = vadd.f32 0.0, %v7585
        %7587 = vmatmul.bf16.gmra.mxu0 %v7566
        %v7588 = vpop.f32.mrf.mxu0
        %v7589 = vadd.f32 0.0, %v7588
        %v7590 = vpop.f32.mrf.mxu0
        %v7591 = vadd.f32 0.0, %v7590
        %7592 = vmatmul.bf16.gmra.mxu0 %v7569
        %v7593 = vpop.f32.mrf.mxu0
        %v7594 = vadd.f32 0.0, %v7593
        %v7595 = vpop.f32.mrf.mxu0
        %v7596 = vadd.f32 0.0, %v7595
        %7597 = vmatmul.bf16.gmra.mxu0 %v7572
        %v7598 = vpop.f32.mrf.mxu0
        %v7599 = vadd.f32 0.0, %v7598
        %v7600 = vpop.f32.mrf.mxu0
        %v7601 = vadd.f32 0.0, %v7600
        %7602 = vdwg.mxu0
        %v7603 = vadd.f32 %v7513, %v7584
        %v7604 = vadd.f32 %v7514, %v7586
        %v7605 = vadd.f32 %v7515, %v7589
        %v7606 = vadd.f32 %v7516, %v7591
        %v7607 = vadd.f32 %v7517, %v7594
        %v7608 = vadd.f32 %v7518, %v7596
        %v7609 = vadd.f32 %v7519, %v7599
        %v7610 = vadd.f32 %v7520, %v7601
        %s7611 = scalar_lea.vmem %s21, 192
        %v7612 = vld [vmem:[%s7611] sm:$0xf]
        %v7613 = vld [vmem:[%s7611 + $0x4] sm:$0xf]
        %v7614 = vld [vmem:[%s7611 + $0x8] sm:$0xf]
        %v7615 = vld [vmem:[%s7611 + $0xc] sm:$0xf]
        %v7616 = vld [vmem:[%s7611 + $0x10] sm:$0xf]
        %v7617 = vld [vmem:[%s7611 + $0x14] sm:$0xf]
        %v7618 = vld [vmem:[%s7611 + $0x18] sm:$0xf]
        %v7619 = vld [vmem:[%s7611 + $0x1c] sm:$0xf]
        %v7628 = vunpack.c.l.b16 %v7612
        %v7629 = vunpack.c.l.b16 %v7613
        %v7630 = vunpack.c.l.b16 %v7614
        %v7631 = vunpack.c.l.b16 %v7615
        %v7632 = vunpack.c.l.b16 %v7616
        %v7633 = vunpack.c.l.b16 %v7617
        %v7634 = vunpack.c.l.b16 %v7618
        %v7635 = vunpack.c.l.b16 %v7619
        %v7636 = vpack.c.b16 %v7629, %v7628
        %v7637 = vpack.c.b16 %v7631, %v7630
        %v7638 = vpack.c.b16 %v7633, %v7632
        %v7639 = vpack.c.b16 %v7635, %v7634
        %7640 = vrot.lane.b32.xlu0 %v7129, 56
        %v7641 = vpop.permute.xlu0 %7640
        %7642 = vrot.lane.b32.xlu0 %v7130, 56
        %v7643 = vpop.permute.xlu0 %7642
        %7644 = vrot.lane.b32.xlu0 %v7131, 56
        %v7645 = vpop.permute.xlu0 %7644
        %7646 = vrot.lane.b32.xlu0 %v7132, 56
        %v7647 = vpop.permute.xlu0 %7646
        %v7653 = vsel %vm4276, %v7636, 0
        %v7656 = vsel %vm4276, %v7637, 0
        %v7659 = vsel %vm4276, %v7638, 0
        %v7662 = vsel %vm4276, %v7639, 0
        %7664 = vmatpush.bf16.msra.mxu0 0
        %7665 = vmatpush.bf16.msra.mxu0 0
        %7666 = vmatpush.bf16.msra.mxu0 0
        %7667 = vmatpush.bf16.msra.mxu0 0
        %7668 = vmatpush.bf16.msra.mxu0 %v7647
        %7669 = vmatpush.bf16.msra.mxu0 %v7645
        %7670 = vmatpush.bf16.msra.mxu0 %v7643
        %7671 = vmatpush.bf16.msra.mxu0 %v7641
        %7672 = vmatmul.bf16.gmra.mxu0 %v7653
        %v7673 = vpop.f32.mrf.mxu0
        %v7674 = vadd.f32 0.0, %v7673
        %v7675 = vpop.f32.mrf.mxu0
        %v7676 = vadd.f32 0.0, %v7675
        %7677 = vmatmul.bf16.gmra.mxu0 %v7656
        %v7678 = vpop.f32.mrf.mxu0
        %v7679 = vadd.f32 0.0, %v7678
        %v7680 = vpop.f32.mrf.mxu0
        %v7681 = vadd.f32 0.0, %v7680
        %7682 = vmatmul.bf16.gmra.mxu0 %v7659
        %v7683 = vpop.f32.mrf.mxu0
        %v7684 = vadd.f32 0.0, %v7683
        %v7685 = vpop.f32.mrf.mxu0
        %v7686 = vadd.f32 0.0, %v7685
        %7687 = vmatmul.bf16.gmra.mxu0 %v7662
        %v7688 = vpop.f32.mrf.mxu0
        %v7689 = vadd.f32 0.0, %v7688
        %v7690 = vpop.f32.mrf.mxu0
        %v7691 = vadd.f32 0.0, %v7690
        %7692 = vdwg.mxu0
        %v7693 = vadd.f32 %v7603, %v7674
        %v7694 = vadd.f32 %v7604, %v7676
        %v7695 = vadd.f32 %v7605, %v7679
        %v7696 = vadd.f32 %v7606, %v7681
        %v7697 = vadd.f32 %v7607, %v7684
        %v7698 = vadd.f32 %v7608, %v7686
        %v7699 = vadd.f32 %v7609, %v7689
        %v7700 = vadd.f32 %v7610, %v7691
        %s7701 = scalar_lea.vmem %s21, 224
        %v7702 = vld [vmem:[%s7701] sm:$0xf]
        %v7703 = vld [vmem:[%s7701 + $0x4] sm:$0xf]
        %v7704 = vld [vmem:[%s7701 + $0x8] sm:$0xf]
        %v7705 = vld [vmem:[%s7701 + $0xc] sm:$0xf]
        %v7706 = vld [vmem:[%s7701 + $0x10] sm:$0xf]
        %v7707 = vld [vmem:[%s7701 + $0x14] sm:$0xf]
        %v7708 = vld [vmem:[%s7701 + $0x18] sm:$0xf]
        %v7709 = vld [vmem:[%s7701 + $0x1c] sm:$0xf]
        %v7718 = vunpack.c.l.b16 %v7702
        %v7719 = vunpack.c.l.b16 %v7703
        %v7720 = vunpack.c.l.b16 %v7704
        %v7721 = vunpack.c.l.b16 %v7705
        %v7722 = vunpack.c.l.b16 %v7706
        %v7723 = vunpack.c.l.b16 %v7707
        %v7724 = vunpack.c.l.b16 %v7708
        %v7725 = vunpack.c.l.b16 %v7709
        %v7726 = vpack.c.b16 %v7719, %v7718
        %v7727 = vpack.c.b16 %v7721, %v7720
        %v7728 = vpack.c.b16 %v7723, %v7722
        %v7729 = vpack.c.b16 %v7725, %v7724
        %7730 = vrot.lane.b32.xlu0 %v7129, 44
        %v7731 = vpop.permute.xlu0 %7730
        %7732 = vrot.lane.b32.xlu0 %v7130, 44
        %v7733 = vpop.permute.xlu0 %7732
        %7734 = vrot.lane.b32.xlu0 %v7131, 44
        %v7735 = vpop.permute.xlu0 %7734
        %7736 = vrot.lane.b32.xlu0 %v7132, 44
        %v7737 = vpop.permute.xlu0 %7736
        %v7743 = vsel %vm4276, %v7726, 0
        %v7746 = vsel %vm4276, %v7727, 0
        %v7749 = vsel %vm4276, %v7728, 0
        %v7752 = vsel %vm4276, %v7729, 0
        %7754 = vmatpush.bf16.msra.mxu0 0
        %7755 = vmatpush.bf16.msra.mxu0 0
        %7756 = vmatpush.bf16.msra.mxu0 0
        %7757 = vmatpush.bf16.msra.mxu0 0
        %7758 = vmatpush.bf16.msra.mxu0 %v7737
        %7759 = vmatpush.bf16.msra.mxu0 %v7735
        %7760 = vmatpush.bf16.msra.mxu0 %v7733
        %7761 = vmatpush.bf16.msra.mxu0 %v7731
        %7762 = vmatmul.bf16.gmra.mxu0 %v7743
        %v7763 = vpop.f32.mrf.mxu0
        %v7764 = vadd.f32 0.0, %v7763
        %v7765 = vpop.f32.mrf.mxu0
        %v7766 = vadd.f32 0.0, %v7765
        %7767 = vmatmul.bf16.gmra.mxu0 %v7746
        %v7768 = vpop.f32.mrf.mxu0
        %v7769 = vadd.f32 0.0, %v7768
        %v7770 = vpop.f32.mrf.mxu0
        %v7771 = vadd.f32 0.0, %v7770
        %7772 = vmatmul.bf16.gmra.mxu0 %v7749
        %v7773 = vpop.f32.mrf.mxu0
        %v7774 = vadd.f32 0.0, %v7773
        %v7775 = vpop.f32.mrf.mxu0
        %v7776 = vadd.f32 0.0, %v7775
        %7777 = vmatmul.bf16.gmra.mxu0 %v7752
        %v7778 = vpop.f32.mrf.mxu0
        %v7779 = vadd.f32 0.0, %v7778
        %v7780 = vpop.f32.mrf.mxu0
        %v7781 = vadd.f32 0.0, %v7780
        %7782 = vdwg.mxu0
        %v7783 = vadd.f32 %v7693, %v7764
        %v7784 = vadd.f32 %v7694, %v7766
        %v7785 = vadd.f32 %v7695, %v7769
        %v7786 = vadd.f32 %v7696, %v7771
        %v7787 = vadd.f32 %v7697, %v7774
        %v7788 = vadd.f32 %v7698, %v7776
        %v7789 = vadd.f32 %v7699, %v7779
        %v7790 = vadd.f32 %v7700, %v7781
        %s7791 = scalar_lea.vmem %s21, 256
        %v7792 = vld [vmem:[%s7791] sm:$0xf]
        %v7793 = vld [vmem:[%s7791 + $0x4] sm:$0xf]
        %v7794 = vld [vmem:[%s7791 + $0x8] sm:$0xf]
        %v7795 = vld [vmem:[%s7791 + $0xc] sm:$0xf]
        %v7796 = vld [vmem:[%s7791 + $0x10] sm:$0xf]
        %v7797 = vld [vmem:[%s7791 + $0x14] sm:$0xf]
        %v7798 = vld [vmem:[%s7791 + $0x18] sm:$0xf]
        %v7799 = vld [vmem:[%s7791 + $0x1c] sm:$0xf]
        %v7808 = vunpack.c.l.b16 %v7792
        %v7809 = vunpack.c.l.b16 %v7793
        %v7810 = vunpack.c.l.b16 %v7794
        %v7811 = vunpack.c.l.b16 %v7795
        %v7812 = vunpack.c.l.b16 %v7796
        %v7813 = vunpack.c.l.b16 %v7797
        %v7814 = vunpack.c.l.b16 %v7798
        %v7815 = vunpack.c.l.b16 %v7799
        %v7816 = vpack.c.b16 %v7809, %v7808
        %v7817 = vpack.c.b16 %v7811, %v7810
        %v7818 = vpack.c.b16 %v7813, %v7812
        %v7819 = vpack.c.b16 %v7815, %v7814
        %7820 = vrot.lane.b32.xlu0 %v7129, 32
        %v7821 = vpop.permute.xlu0 %7820
        %7822 = vrot.lane.b32.xlu0 %v7130, 32
        %v7823 = vpop.permute.xlu0 %7822
        %7824 = vrot.lane.b32.xlu0 %v7131, 32
        %v7825 = vpop.permute.xlu0 %7824
        %7826 = vrot.lane.b32.xlu0 %v7132, 32
        %v7827 = vpop.permute.xlu0 %7826
        %v7833 = vsel %vm4276, %v7816, 0
        %v7836 = vsel %vm4276, %v7817, 0
        %v7839 = vsel %vm4276, %v7818, 0
        %v7842 = vsel %vm4276, %v7819, 0
        %7844 = vmatpush.bf16.msra.mxu0 0
        %7845 = vmatpush.bf16.msra.mxu0 0
        %7846 = vmatpush.bf16.msra.mxu0 0
        %7847 = vmatpush.bf16.msra.mxu0 0
        %7848 = vmatpush.bf16.msra.mxu0 %v7827
        %7849 = vmatpush.bf16.msra.mxu0 %v7825
        %7850 = vmatpush.bf16.msra.mxu0 %v7823
        %7851 = vmatpush.bf16.msra.mxu0 %v7821
        %7852 = vmatmul.bf16.gmra.mxu0 %v7833
        %v7853 = vpop.f32.mrf.mxu0
        %v7854 = vadd.f32 0.0, %v7853
        %v7855 = vpop.f32.mrf.mxu0
        %v7856 = vadd.f32 0.0, %v7855
        %7857 = vmatmul.bf16.gmra.mxu0 %v7836
        %v7858 = vpop.f32.mrf.mxu0
        %v7859 = vadd.f32 0.0, %v7858
        %v7860 = vpop.f32.mrf.mxu0
        %v7861 = vadd.f32 0.0, %v7860
        %7862 = vmatmul.bf16.gmra.mxu0 %v7839
        %v7863 = vpop.f32.mrf.mxu0
        %v7864 = vadd.f32 0.0, %v7863
        %v7865 = vpop.f32.mrf.mxu0
        %v7866 = vadd.f32 0.0, %v7865
        %7867 = vmatmul.bf16.gmra.mxu0 %v7842
        %v7868 = vpop.f32.mrf.mxu0
        %v7869 = vadd.f32 0.0, %v7868
        %v7870 = vpop.f32.mrf.mxu0
        %v7871 = vadd.f32 0.0, %v7870
        %7872 = vdwg.mxu0
        %v7873 = vadd.f32 %v7783, %v7854
        %v7874 = vadd.f32 %v7784, %v7856
        %v7875 = vadd.f32 %v7785, %v7859
        %v7876 = vadd.f32 %v7786, %v7861
        %v7877 = vadd.f32 %v7787, %v7864
        %v7878 = vadd.f32 %v7788, %v7866
        %v7879 = vadd.f32 %v7789, %v7869
        %v7880 = vadd.f32 %v7790, %v7871
        %v7881 = vld [vmem:[#allocation19] sm:$0x1]
        %v7883 = vperm.slane %v7881, 0
        %v7885 = vadd.f32 %v7873, %v7883
        %v7886 = vadd.f32 %v7874, %v7883
        %v7887 = vadd.f32 %v7875, %v7883
        %v7888 = vadd.f32 %v7876, %v7883
        %v7889 = vadd.f32 %v7877, %v7883
        %v7890 = vadd.f32 %v7878, %v7883
        %v7891 = vadd.f32 %v7879, %v7883
        %v7892 = vadd.f32 %v7880, %v7883
        %v7893 = vtanh.pop %v7885
        %v7894 = vtanh.pop %v7886
        %v7895 = vtanh.pop %v7887
        %v7896 = vtanh.pop %v7888
        %v7897 = vtanh.pop %v7889
        %v7898 = vtanh.pop %v7890
        %v7899 = vtanh.pop %v7891
        %v7900 = vtanh.pop %v7892
        %7901 = vst.msk [vmem:[%s945] sm:$0xff] %vm4108, %v7893
        %7902 = vst.msk [vmem:[%s945 + $0x8] sm:$0xff] %vm4108, %v7894
        %7903 = vst.msk [vmem:[%s945 + $0x10] sm:$0xff] %vm4108, %v7895
        %7904 = vst.msk [vmem:[%s945 + $0x18] sm:$0xff] %vm4108, %v7896
        %7905 = vst.msk [vmem:[%s945 + $0x20] sm:$0xff] %vm4108, %v7897
        %7906 = vst.msk [vmem:[%s945 + $0x28] sm:$0xff] %vm4108, %v7898
        %7907 = vst.msk [vmem:[%s945 + $0x30] sm:$0xff] %vm4108, %v7899
        %7908 = vst.msk [vmem:[%s945 + $0x38] sm:$0xff] %vm4108, %v7900
        %p7909 = scmp.lt.s32.totalorder %s48, 1
        %s7910 = scalar_select %p7909, %s48, 1
        %s7911 = smul.addr %s7910, 8
        %s7912 = smul.addr %s7911, 8
        %s7913 = scalar_lea.vmem %s22, %s7912
        %s7914 = sand.u32 %s554, 1
        %s7915 = scalar_lea.sflag [#allocation4], %s7914
        %s7916 = sand.u32 %s554, 1
        %s7917 = smul.addr %s7916, 4
        %s7918 = scalar_lea.vmem [#allocation20], %s7917
        %s7919 = sand.u32 %s580, 1
        %s7920 = scalar_lea.sflag [#allocation22], %s7919
        %s7921 = sand.u32 %s580, 1
        %s7922 = smul.addr %s7921, 4
        %s7923 = scalar_lea.vmem [#allocation21], %s7922
        // Predicated region
        $region153: #{vae_forward.1} parent=107 // pred_check
          %p7924 = pneg %p538
        $region154: #{vae_forward.1} parent=107 // pred_check_branch
          %7926 = sbr.rel (%p7924) target = $region156
        $region155: #{vae_forward.1} parent=107 // pred_region
          _
        $region156: #{vae_forward.1} parent=107 // pred_fallthru
          _
        // Predicated region
        $region157: #{vae_forward.1} parent=107 // pred_check
          %p7927 = pneg %p564
        $region158: #{vae_forward.1} parent=107 // pred_check_branch
          %7929 = sbr.rel (%p7927) target = $region160
        $region159: #{vae_forward.1} parent=107 // pred_region
          %7931 = vsyncadd %s7915, 0
          %s7932 = smul.addr %s48, 4
          %s7933 = scalar_lea.hbm %s23, %s7932
          %s7935 = sshll.u32 %s7918, 4
          %s7936 = int_to_ptr.vmem [resolvable:$true] %s7935
          %s7937 = sshll.u32 %s7933, 4
          %s7938 = int_to_ptr.hbm [resolvable:$true] %s7937
          %7940 = dma.vmem_to_hbm [thread:$0]  %s7936, 64, %s7938, %s7915
        $region160: #{vae_forward.1} parent=107 // pred_fallthru
          _
        // Predicated region
        $region161: #{vae_forward.1} parent=107 // pred_check
          %p7941 = pneg %p590
        $region162: #{vae_forward.1} parent=107 // pred_check_branch
          %7943 = sbr.rel (%p7941) target = $region164
        $region163: #{vae_forward.1} parent=107 // pred_region
          %7945 = vsyncadd %s7920, 0
          %s7946 = smul.addr %s48, 4
          %s7947 = scalar_lea.hbm %s24, %s7946
          %s7949 = sshll.u32 %s7923, 4
          %s7950 = int_to_ptr.vmem [resolvable:$true] %s7949
          %s7951 = sshll.u32 %s7947, 4
          %s7952 = int_to_ptr.hbm [resolvable:$true] %s7951
          %7954 = dma.vmem_to_hbm [thread:$0]  %s7950, 64, %s7952, %s7920
        $region164: #{vae_forward.1} parent=107 // pred_fallthru
          _
      $region108: #{vae_forward.1} parent=5 // pred_fallthru
        _
      %p7955 = scmp.le.s32.totalorder 2, %s43
      // Predicated region
      $region165: #{vae_forward.1} parent=5 // pred_check
        %p7956 = pneg %p7955
      $region166: #{vae_forward.1} parent=5 // pred_check_branch
        %7958 = sbr.rel (%p7956) target = $region168
      $region167: #{vae_forward.1} parent=5 // pred_region
        %s7959 = ssub.s32 %s43, 2
        // Predicated region
        $region169: #{vae_forward.1} parent=167 // pred_check
          %p7960 = pneg %p544
        $region170: #{vae_forward.1} parent=167 // pred_check_branch
          %7962 = sbr.rel (%p7960) target = $region172
        $region171: #{vae_forward.1} parent=167 // pred_region
          %p7963 = scmp.lt.s32.totalorder %s49, 1
          %s7964 = scalar_select %p7963, %s49, 1
          %s7965 = smul.addr %s7964, 8
          %s7966 = smul.addr %s7965, 8
          %s7967 = scalar_lea.vmem %s22, %s7966
        $region172: #{vae_forward.1} parent=167 // pred_fallthru
          _
        // Predicated region
        $region173: #{vae_forward.1} parent=167 // pred_check
          %p7968 = pneg %p570
        $region174: #{vae_forward.1} parent=167 // pred_check_branch
          %7970 = sbr.rel (%p7968) target = $region176
        $region175: #{vae_forward.1} parent=167 // pred_region
          %s7971 = sand.u32 %s555, 1
          %s7972 = scalar_lea.sflag [#allocation4], %s7971
          %s7973 = sand.u32 %s555, 1
          %s7974 = smul.addr %s7973, 4
          %s7975 = scalar_lea.vmem [#allocation20], %s7974
          %7977 = dma.done %s7972, 64
        $region176: #{vae_forward.1} parent=167 // pred_fallthru
          _
        // Predicated region
        $region177: #{vae_forward.1} parent=167 // pred_check
          %p7978 = pneg %p596
        $region178: #{vae_forward.1} parent=167 // pred_check_branch
          %7980 = sbr.rel (%p7978) target = $region180
        $region179: #{vae_forward.1} parent=167 // pred_region
          %s7981 = sand.u32 %s581, 1
          %s7982 = scalar_lea.sflag [#allocation22], %s7981
          %s7983 = sand.u32 %s581, 1
          %s7984 = smul.addr %s7983, 4
          %s7985 = scalar_lea.vmem [#allocation21], %s7984
          %7987 = dma.done %s7982, 64
        $region180: #{vae_forward.1} parent=167 // pred_fallthru
          _
      $region168: #{vae_forward.1} parent=5 // pred_fallthru
        _
    $region6: #{vae_forward.1} parent=1 // loop_footer
      %s47 = sadd.s32 1, %s43
    $region7: #{vae_forward.1} parent=1 // loop_footer_branch
      %42 = sbr.rel target = $region3
    $region8: #{vae_forward.1} parent=1 // loop_exit
      _
    %7988 = vsyncpa [#allocation3], 1
    %s7989 = scalar_lea.sflag [#allocation3], 1
    %7990 = vsyncpa %s7989, 1
    %7991 = vsyncpa [#allocation6], 1
    %7992 = vsyncpa [#allocation9], 1
    %7993 = vsyncpa [#allocation12], 1
    %7994 = vsyncpa [#allocation15], 1
    %7995 = vsyncpa [#allocation18], 1
    %7996 = vsyncpa [#allocation4], 1
    %s7997 = scalar_lea.sflag [#allocation4], 1
    %7998 = vsyncpa %s7997, 1
    %7999 = vsyncpa [#allocation22], 1
    %s8000 = scalar_lea.sflag [#allocation22], 1
    %8001 = vsyncpa %s8000, 1

</llo_original>
